<compile_context>
chip_gen: v7x
topology: tpu7x:2x2x1
jax: 0.10.0
libtpu: 0.0.40
codegen_flags: <defaults>
</compile_context>

<pallas_src>
import math

import jax
import jax.numpy as jnp
from jax.experimental import pallas as pl
from jax.experimental.pallas import tpu as pltpu


def _round_up(a, b):
    return (a + b - 1) // b * b


def _make_kernel(inv_temp, c, d_ff, n_memory, patch_len, tb):
    """inv_temp = 1 / contras_temperature (compile-time constant)."""
    C, D, M, P, TB = c, d_ff, n_memory, patch_len, tb

    def kernel(x_ref, wq_ref, wk_ref, bq_ref, bk_ref, mem_ref, out_ref):
        # x_ref: (1, C, TB + P - 1) replication-padded sequence block + halo (f32)
        x = x_ref[0]                                    # (C, W)
        wq = wq_ref[...]                                # (D, P)
        wk = wk_ref[...]                                # (D, P)
        mem_t = mem_ref[...]                            # (C, M) memory items^T

        # ---- Q/K projection as P shifted broadcast-FMAs (VPU), time in lanes.
        #      Replaces the (R, P) x (P, 2D) MXU matmul and the unfold expansion. ----
        q = jnp.broadcast_to(bq_ref[...][None, :, :], (C, D, TB))   # (C, D, TB)
        k = jnp.broadcast_to(bk_ref[...][None, :, :], (C, D, TB))
        for p in range(P):
            xp = x[:, p:p + TB][:, None, :]             # (C, 1, TB)
            q = q + wq[:, p:p + 1][None, :, :] * xp     # (C, D, TB)
            k = k + wk[:, p:p + 1][None, :, :] * xp

        # ---- attn_scores[cq, ck, t] = sum_d Q[cq,d,t] * K[ck,d,t]
        #      (elementwise multiplies + D-axis reduce; no per-patch 8x32x8 matmuls) ----
        s_rows = []
        for cq in range(C):
            s_rows.append(jnp.sum(q[cq][None, :, :] * k, axis=1))   # (C, TB)
        s = jnp.stack(s_rows, axis=0)                   # (C, C, TB)

        # ---- attn_weights = F.normalize(attn_scores, dim=-1) over the key-channel
        #      axis (eps = 1e-12), sqrt+div folded into one rsqrt (EUP slot). ----
        ss = jnp.sum(s * s, axis=1, keepdims=True)      # (C, 1, TB)
        w = s * jax.lax.rsqrt(jnp.maximum(ss, 1e-24))   # (C, C, TB)

        # ---- similarity of each normalized row to the M memory items (VPU FMAs) ----
        sim_cols = []
        for m in range(M):
            memcol = mem_t[:, m:m + 1][None, :, :]      # (1, C, 1)
            sim_cols.append(jnp.sum(w * memcol, axis=1))  # (C, TB)

        # running max / first-argmax / log-sum-exp over the M memory items
        # (no (C, M, TB) relayout, no one-hot matmul)
        max_sim = sim_cols[0]
        for m in range(1, M):
            max_sim = jnp.maximum(max_sim, sim_cols[m])
        first_idx = jnp.full((C, TB), M, jnp.int32)
        for m in range(M - 1, -1, -1):                  # reverse -> keeps FIRST argmax
            first_idx = jnp.where(sim_cols[m] >= max_sim, m, first_idx)
        sum_exp = jnp.zeros((C, TB), jnp.float32)
        for m in range(M):
            sum_exp = sum_exp + jnp.exp((sim_cols[m] - max_sim) * inv_temp)

        # nearest memory item per (row, t): select over the M memory rows
        nearest = jnp.zeros((C, C, TB), jnp.float32)
        for m in range(M):
            pick = (first_idx == m).astype(jnp.float32)[:, None, :]    # (C, 1, TB)
            nearest = nearest + pick * mem_t[:, m:m + 1][None, :, :]   # (C, C, TB)

        # ---- GatheringLoss(reduce=False): per-row squared error to nearest item ----
        # TODO(synk): GatheringLoss / ContrastLoss / DMP class definitions not
        # provided with the reference; standard memory-network semantics assumed.
        diff = w - nearest
        loss = jnp.sum(diff * diff, axis=1)             # (C, TB)

        # ---- ContrastLoss (reconstructed): InfoNCE toward the nearest item
        #      (-log softmax(sim/temp)[argmax] == log sum_m exp((sim_m - max)/temp))
        #      + cosine gathering term (||w_row|| == 1 after the L2 normalization). ----
        contrast = jnp.log(sum_exp)                     # (C, TB)
        n_sq = jnp.sum(nearest * nearest, axis=1)       # (C, TB)
        dot_wn = jnp.sum(w * nearest, axis=1)           # (C, TB)
        gather = 1.0 - dot_wn * jax.lax.rsqrt(jnp.maximum(n_sq, 1e-24))

        # ---- one merged lane-dense (3C, TB) output slab: unmasked full-width stores ----
        out_ref[0:C, :] = loss
        out_ref[C:2 * C, :] = contrast
        out_ref[2 * C:3 * C, :] = gather

    return kernel


def init_params(key, patch_len, d_ff, n_memory, c_dim):
    k1, k2, k3, k4, k5 = jax.random.split(key, 5)
    bound = 1.0 / math.sqrt(patch_len)        # PyTorch nn.Linear default init range
    wq = jax.random.uniform(k1, (patch_len, d_ff), jnp.float32, -bound, bound)
    bq = jax.random.uniform(k2, (1, d_ff), jnp.float32, -bound, bound)
    wk = jax.random.uniform(k3, (patch_len, d_ff), jnp.float32, -bound, bound)
    bk = jax.random.uniform(k4, (1, d_ff), jnp.float32, -bound, bound)
    # TODO(synk): DMP class definition not provided; modelled as a deterministic
    # (n_memory, c_dim) memory-item bank returned by dmp(attn_weights).
    mem = jax.random.normal(k5, (n_memory, c_dim), jnp.float32)
    return wq, bq, wk, bk, mem


def attention_layer_forward(x, params, *, patch_len, temperature, block_t=1024):
    """x: (N, C, L) float32. Returns (attn_loss (N,L,C), attn_contrast (), attn_gather ())."""
    wq, bq, wk, bk, mem = params
    N, C, L = x.shape
    d_ff = wq.shape[1]
    n_memory, c_dim = mem.shape
    assert c_dim == C, "c_dim (memory feature dim) must equal C"
    assert patch_len % 2 == 1, \
        "patch_len must be odd so n_win == L (required by attn_loss.view(N, L, C))"
    pad = patch_len // 2

    # Time-block size: lane-dense (multiple of 128), large enough to amortize the
    # ~0.35us per-grid-step overhead, but keep >= 2 grid blocks when possible so
    # the two v7x TensorCores both get work.
    TB = _round_up(max(128, min(block_t, L)), 128)
    if N * (_round_up(L, TB) // TB) < 2 and L > 128:
        TB = _round_up((L + 1) // 2, 128)
    Lb = _round_up(L, TB)
    nb = Lb // TB
    W = TB + 2 * pad                      # halo'd window width per block

    # ---- ReplicationPad1d + per-block halo gather (no x patch_len unfold expansion;
    #      only a (patch_len-1)-wide halo per block is re-read). ----
    z = jnp.pad(x, ((0, 0), (0, 0), (pad, pad + (Lb - L))), mode="edge")   # (N,C,Lb+2p)
    starts = jnp.arange(nb) * TB
    win = starts[:, None] + jnp.arange(W)[None, :]                         # (nb, W)
    xh = jnp.transpose(z[:, :, win], (0, 2, 1, 3)).reshape(N * nb, C, W)   # (N*nb,C,W)

    # Small resident operands, pre-transposed so the kernel only needs cheap
    # size-1 lane / sublane broadcasts (D and C live on sublanes).
    wq_t = jnp.asarray(wq, jnp.float32).T                # (d_ff, patch_len)
    wk_t = jnp.asarray(wk, jnp.float32).T
    bq_t = jnp.asarray(bq, jnp.float32).reshape(d_ff, 1)
    bk_t = jnp.asarray(bk, jnp.float32).reshape(d_ff, 1)
    mem_t = jnp.asarray(mem, jnp.float32).T              # (C, n_memory)

    kernel = _make_kernel(1.0 / float(temperature), C, d_ff, n_memory, patch_len, TB)

    flops_per_patch = (4 * patch_len * C * d_ff          # Q/K shifted FMAs
                       + 2 * C * C * d_ff                # self-similarity
                       + 4 * C * C * n_memory            # memory sim + nearest select
                       + 40 * C * C)                     # normalize / losses
    cost = pl.CostEstimate(
        flops=int(N * Lb * flops_per_patch),
        transcendentals=int(N * Lb * C * (n_memory + 3)),
        bytes_accessed=int(xh.size * 4 + 3 * C * N * Lb * 4
                           + (wq.size + wk.size + bq.size + bk.size + mem.size) * 4),
    )

    grid_spec = pltpu.PrefetchScalarGridSpec(
        num_scalar_prefetch=0,
        grid=(N, nb),
        in_specs=[
            pl.BlockSpec((1, C, W), lambda n, j: (n * nb + j, 0, 0)),      # sequence+halo
            pl.BlockSpec((d_ff, patch_len), lambda n, j: (0, 0)),          # W_Q^T
            pl.BlockSpec((d_ff, patch_len), lambda n, j: (0, 0)),          # W_K^T
            pl.BlockSpec((d_ff, 1), lambda n, j: (0, 0)),                  # b_Q
            pl.BlockSpec((d_ff, 1), lambda n, j: (0, 0)),                  # b_K
            pl.BlockSpec((C, n_memory), lambda n, j: (0, 0)),              # memory^T
        ],
        out_specs=pl.BlockSpec((3 * C, TB), lambda n, j: (0, n * nb + j)),
    )
    out = pl.pallas_call(
        kernel,
        out_shape=jax.ShapeDtypeStruct((3 * C, N * Lb), jnp.float32),
        grid_spec=grid_spec,
        compiler_params=pltpu.CompilerParams(
            dimension_semantics=("parallel", "parallel"),
            vmem_limit_bytes=32 * 1024 * 1024,           # v7x-safe (64 MiB physical)
        ),
        cost_estimate=cost,
    )(xh, wq_t, wk_t, bq_t, bk_t, mem_t)

    out = out.reshape(3 * C, N, Lb)[:, :, :L]            # drop per-batch time padding
    attn_loss = jnp.transpose(out[:C], (1, 2, 0))        # (N, L, C)
    attn_contrast = jnp.mean(out[C:2 * C])
    attn_gather = jnp.mean(out[2 * C:3 * C])
    return attn_loss, attn_contrast, attn_gather


def _reference_forward(x, params, *, patch_len, temperature):
    """Plain-JAX re-implementation (same reconstructed semantics) for validation."""
    wq, bq, wk, bk, mem = params
    N, C, L = x.shape
    M = mem.shape[0]
    pad = patch_len // 2
    z = jnp.pad(x, ((0, 0), (0, 0), (pad, pad)), mode="edge")
    win = jnp.arange(L)[:, None] + jnp.arange(patch_len)[None, :]
    patches = jnp.transpose(z[:, :, win], (0, 2, 1, 3)).reshape(N * L, C, patch_len)
    Q = patches @ wq + bq
    K = patches @ wk + bk
    s = jnp.einsum('tcd,tsd->tcs', Q, K)
    w = s * jax.lax.rsqrt(jnp.maximum(jnp.sum(s * s, -1, keepdims=True), 1e-24))
    sim = jnp.einsum('tcs,ms->tcm', w, mem)
    max_sim = jnp.max(sim, -1, keepdims=True)
    iota = jax.lax.broadcasted_iota(jnp.int32, sim.shape, 2)
    first_idx = jnp.min(jnp.where(sim >= max_sim, iota, M), axis=-1)
    nearest = mem[first_idx]                             # (T, C, C)
    loss = jnp.sum((w - nearest) ** 2, -1).reshape(N, L, C)
    contrast = jnp.log(jnp.sum(jnp.exp((sim - max_sim) / temperature), -1))
    n_sq = jnp.sum(nearest * nearest, -1)
    dot_wn = jnp.sum(w * nearest, -1)
    gather = 1.0 - dot_wn * jax.lax.rsqrt(jnp.maximum(n_sq, 1e-24))
    return loss, jnp.mean(contrast), jnp.mean(gather)


if __name__ == "__main__":
    # Small shapes consistent with the module's forward (input is (N, C, L)).
    N, C, L = 2, 8, 16
    patch_len = 5                # odd -> number of windows == L (needed by .view(N,L,C))
    d_ff = 32
    n_memory = 8
    c_dim = C
    contras_temperature = 0.1

    key = jax.random.PRNGKey(0)
    kx, kp = jax.random.split(key)
    x = jax.random.normal(kx, (N, C, L), jnp.float32)
    params = init_params(kp, patch_len, d_ff, n_memory, c_dim)

    attn_loss, attn_contrast, attn_gather = attention_layer_forward(
        x, params, patch_len=patch_len, temperature=contras_temperature)
    jax.block_until_ready((attn_loss, attn_contrast, attn_gather))

    assert attn_loss.shape == (N, L, C)
    assert attn_contrast.shape == ()
    assert attn_gather.shape == ()
    assert bool(jnp.all(jnp.isfinite(attn_loss)))

    ref_loss, ref_contrast, ref_gather = _reference_forward(
        x, params, patch_len=patch_len, temperature=contras_temperature)
    assert bool(jnp.allclose(attn_loss, ref_loss, atol=1e-3, rtol=1e-3))
    assert bool(jnp.allclose(attn_contrast, ref_contrast, atol=1e-3, rtol=1e-3))
    assert bool(jnp.allclose(attn_gather, ref_gather, atol=1e-3, rtol=1e-3))

    print("KERNEL_OK")
</pallas_src>

<mosaic_0001>
module attributes {stable_mosaic.version = 11 : i64} {
  func.func @kernel(%arg0: i32, %arg1: i32, %arg2: memref<1x8x132xf32, #tpu.memory_space<vmem>>, %arg3: memref<32x5xf32, #tpu.memory_space<vmem>>, %arg4: memref<32x5xf32, #tpu.memory_space<vmem>>, %arg5: memref<32x1xf32, #tpu.memory_space<vmem>>, %arg6: memref<32x1xf32, #tpu.memory_space<vmem>>, %arg7: memref<8x8xf32, #tpu.memory_space<vmem>>, %arg8: memref<24x128xf32, #tpu.memory_space<vmem>>) attributes {dimension_semantics = [#tpu.dimension_semantics<parallel>, #tpu.dimension_semantics<parallel>], iteration_bounds = array<i64: 2, 1>, scalar_prefetch = 0 : i64, scratch_operands = 0 : i64, tpu.core_type = #tpu.core_type<tc>, window_params = [{transform_indices = @transform_0, window_bounds = array<i64: 1, 8, 132>}, {pipeline_mode = #tpu.pipeline_mode<synchronous>, transform_indices = @transform_1, window_bounds = array<i64: 32, 5>}, {pipeline_mode = #tpu.pipeline_mode<synchronous>, transform_indices = @transform_2, window_bounds = array<i64: 32, 5>}, {pipeline_mode = #tpu.pipeline_mode<synchronous>, transform_indices = @transform_3, window_bounds = array<i64: 32, 1>}, {pipeline_mode = #tpu.pipeline_mode<synchronous>, transform_indices = @transform_4, window_bounds = array<i64: 32, 1>}, {pipeline_mode = #tpu.pipeline_mode<synchronous>, transform_indices = @transform_5, window_bounds = array<i64: 8, 8>}, {transform_indices = @transform_6, window_bounds = array<i64: 24, 128>}]} {
    %c0 = arith.constant 0 : index
    %c0_0 = arith.constant 0 : index
    %c0_1 = arith.constant 0 : index
    %0 = vector.load %arg2[%c0, %c0_0, %c0_1] : memref<1x8x132xf32, #tpu.memory_space<vmem>>, vector<1x8x132xf32>
    %1 = vector.shape_cast %0 : vector<1x8x132xf32> to vector<8x132xf32>
    %c0_2 = arith.constant 0 : index
    %c0_3 = arith.constant 0 : index
    %2 = vector.load %arg3[%c0_2, %c0_3] : memref<32x5xf32, #tpu.memory_space<vmem>>, vector<32x5xf32>
    %c0_4 = arith.constant 0 : index
    %c0_5 = arith.constant 0 : index
    %3 = vector.load %arg4[%c0_4, %c0_5] : memref<32x5xf32, #tpu.memory_space<vmem>>, vector<32x5xf32>
    %c0_6 = arith.constant 0 : index
    %c0_7 = arith.constant 0 : index
    %4 = vector.load %arg7[%c0_6, %c0_7] : memref<8x8xf32, #tpu.memory_space<vmem>>, vector<8x8xf32>
    %c0_8 = arith.constant 0 : index
    %c0_9 = arith.constant 0 : index
    %5 = vector.load %arg5[%c0_8, %c0_9] : memref<32x1xf32, #tpu.memory_space<vmem>>, vector<32x1xf32>
    %6 = vector.shape_cast %5 : vector<32x1xf32> to vector<1x32x1xf32>
    %7 = vector.shape_cast %6 : vector<1x32x1xf32> to vector<1x32x1xf32>
    %8 = vector.broadcast %7 : vector<1x32x1xf32> to vector<8x32x128xf32>
    %c0_10 = arith.constant 0 : index
    %c0_11 = arith.constant 0 : index
    %9 = vector.load %arg6[%c0_10, %c0_11] : memref<32x1xf32, #tpu.memory_space<vmem>>, vector<32x1xf32>
    %10 = vector.shape_cast %9 : vector<32x1xf32> to vector<1x32x1xf32>
    %11 = vector.shape_cast %10 : vector<1x32x1xf32> to vector<1x32x1xf32>
    %12 = vector.broadcast %11 : vector<1x32x1xf32> to vector<8x32x128xf32>
    %13 = vector.extract_strided_slice %1 {offsets = [0, 0], sizes = [8, 128], strides = [1, 1]} : vector<8x132xf32> to vector<8x128xf32>
    %14 = vector.shape_cast %13 : vector<8x128xf32> to vector<8x1x128xf32>
    %15 = vector.extract_strided_slice %2 {offsets = [0, 0], sizes = [32, 1], strides = [1, 1]} : vector<32x5xf32> to vector<32x1xf32>
    %16 = vector.shape_cast %15 : vector<32x1xf32> to vector<1x32x1xf32>
    %17 = vector.broadcast %16 : vector<1x32x1xf32> to vector<8x32x128xf32>
    %18 = vector.broadcast %14 : vector<8x1x128xf32> to vector<8x32x128xf32>
    %19 = arith.mulf %17, %18 : vector<8x32x128xf32>
    %20 = arith.addf %8, %19 : vector<8x32x128xf32>
    %21 = vector.extract_strided_slice %3 {offsets = [0, 0], sizes = [32, 1], strides = [1, 1]} : vector<32x5xf32> to vector<32x1xf32>
    %22 = vector.shape_cast %21 : vector<32x1xf32> to vector<1x32x1xf32>
    %23 = vector.broadcast %22 : vector<1x32x1xf32> to vector<8x32x128xf32>
    %24 = vector.broadcast %14 : vector<8x1x128xf32> to vector<8x32x128xf32>
    %25 = arith.mulf %23, %24 : vector<8x32x128xf32>
    %26 = arith.addf %12, %25 : vector<8x32x128xf32>
    %27 = vector.extract_strided_slice %1 {offsets = [0, 1], sizes = [8, 128], strides = [1, 1]} : vector<8x132xf32> to vector<8x128xf32>
    %28 = vector.shape_cast %27 : vector<8x128xf32> to vector<8x1x128xf32>
    %29 = vector.extract_strided_slice %2 {offsets = [0, 1], sizes = [32, 1], strides = [1, 1]} : vector<32x5xf32> to vector<32x1xf32>
    %30 = vector.shape_cast %29 : vector<32x1xf32> to vector<1x32x1xf32>
    %31 = vector.broadcast %30 : vector<1x32x1xf32> to vector<8x32x128xf32>
    %32 = vector.broadcast %28 : vector<8x1x128xf32> to vector<8x32x128xf32>
    %33 = arith.mulf %31, %32 : vector<8x32x128xf32>
    %34 = arith.addf %20, %33 : vector<8x32x128xf32>
    %35 = vector.extract_strided_slice %3 {offsets = [0, 1], sizes = [32, 1], strides = [1, 1]} : vector<32x5xf32> to vector<32x1xf32>
    %36 = vector.shape_cast %35 : vector<32x1xf32> to vector<1x32x1xf32>
    %37 = vector.broadcast %36 : vector<1x32x1xf32> to vector<8x32x128xf32>
    %38 = vector.broadcast %28 : vector<8x1x128xf32> to vector<8x32x128xf32>
    %39 = arith.mulf %37, %38 : vector<8x32x128xf32>
    %40 = arith.addf %26, %39 : vector<8x32x128xf32>
    %41 = vector.extract_strided_slice %1 {offsets = [0, 2], sizes = [8, 128], strides = [1, 1]} : vector<8x132xf32> to vector<8x128xf32>
    %42 = vector.shape_cast %41 : vector<8x128xf32> to vector<8x1x128xf32>
    %43 = vector.extract_strided_slice %2 {offsets = [0, 2], sizes = [32, 1], strides = [1, 1]} : vector<32x5xf32> to vector<32x1xf32>
    %44 = vector.shape_cast %43 : vector<32x1xf32> to vector<1x32x1xf32>
    %45 = vector.broadcast %44 : vector<1x32x1xf32> to vector<8x32x128xf32>
    %46 = vector.broadcast %42 : vector<8x1x128xf32> to vector<8x32x128xf32>
    %47 = arith.mulf %45, %46 : vector<8x32x128xf32>
    %48 = arith.addf %34, %47 : vector<8x32x128xf32>
    %49 = vector.extract_strided_slice %3 {offsets = [0, 2], sizes = [32, 1], strides = [1, 1]} : vector<32x5xf32> to vector<32x1xf32>
    %50 = vector.shape_cast %49 : vector<32x1xf32> to vector<1x32x1xf32>
    %51 = vector.broadcast %50 : vector<1x32x1xf32> to vector<8x32x128xf32>
    %52 = vector.broadcast %42 : vector<8x1x128xf32> to vector<8x32x128xf32>
    %53 = arith.mulf %51, %52 : vector<8x32x128xf32>
    %54 = arith.addf %40, %53 : vector<8x32x128xf32>
    %55 = vector.extract_strided_slice %1 {offsets = [0, 3], sizes = [8, 128], strides = [1, 1]} : vector<8x132xf32> to vector<8x128xf32>
    %56 = vector.shape_cast %55 : vector<8x128xf32> to vector<8x1x128xf32>
    %57 = vector.extract_strided_slice %2 {offsets = [0, 3], sizes = [32, 1], strides = [1, 1]} : vector<32x5xf32> to vector<32x1xf32>
    %58 = vector.shape_cast %57 : vector<32x1xf32> to vector<1x32x1xf32>
    %59 = vector.broadcast %58 : vector<1x32x1xf32> to vector<8x32x128xf32>
    %60 = vector.broadcast %56 : vector<8x1x128xf32> to vector<8x32x128xf32>
    %61 = arith.mulf %59, %60 : vector<8x32x128xf32>
    %62 = arith.addf %48, %61 : vector<8x32x128xf32>
    %63 = vector.extract_strided_slice %3 {offsets = [0, 3], sizes = [32, 1], strides = [1, 1]} : vector<32x5xf32> to vector<32x1xf32>
    %64 = vector.shape_cast %63 : vector<32x1xf32> to vector<1x32x1xf32>
    %65 = vector.broadcast %64 : vector<1x32x1xf32> to vector<8x32x128xf32>
    %66 = vector.broadcast %56 : vector<8x1x128xf32> to vector<8x32x128xf32>
    %67 = arith.mulf %65, %66 : vector<8x32x128xf32>
    %68 = arith.addf %54, %67 : vector<8x32x128xf32>
    %69 = vector.extract_strided_slice %1 {offsets = [0, 4], sizes = [8, 128], strides = [1, 1]} : vector<8x132xf32> to vector<8x128xf32>
    %70 = vector.shape_cast %69 : vector<8x128xf32> to vector<8x1x128xf32>
    %71 = vector.extract_strided_slice %2 {offsets = [0, 4], sizes = [32, 1], strides = [1, 1]} : vector<32x5xf32> to vector<32x1xf32>
    %72 = vector.shape_cast %71 : vector<32x1xf32> to vector<1x32x1xf32>
    %73 = vector.broadcast %72 : vector<1x32x1xf32> to vector<8x32x128xf32>
    %74 = vector.broadcast %70 : vector<8x1x128xf32> to vector<8x32x128xf32>
    %75 = arith.mulf %73, %74 : vector<8x32x128xf32>
    %76 = arith.addf %62, %75 : vector<8x32x128xf32>
    %77 = vector.extract_strided_slice %3 {offsets = [0, 4], sizes = [32, 1], strides = [1, 1]} : vector<32x5xf32> to vector<32x1xf32>
    %78 = vector.shape_cast %77 : vector<32x1xf32> to vector<1x32x1xf32>
    %79 = vector.broadcast %78 : vector<1x32x1xf32> to vector<8x32x128xf32>
    %80 = vector.broadcast %70 : vector<8x1x128xf32> to vector<8x32x128xf32>
    %81 = arith.mulf %79, %80 : vector<8x32x128xf32>
    %82 = arith.addf %68, %81 : vector<8x32x128xf32>
    %83 = vector.extract_strided_slice %76 {offsets = [0, 0, 0], sizes = [1, 32, 128], strides = [1, 1, 1]} : vector<8x32x128xf32> to vector<1x32x128xf32>
    %84 = vector.shape_cast %83 : vector<1x32x128xf32> to vector<32x128xf32>
    %85 = vector.shape_cast %84 : vector<32x128xf32> to vector<1x32x128xf32>
    %86 = vector.broadcast %85 : vector<1x32x128xf32> to vector<8x32x128xf32>
    %87 = arith.mulf %86, %82 : vector<8x32x128xf32>
    %cst = arith.constant dense<0.000000e+00> : vector<8x128xf32>
    %88 = vector.multi_reduction <add>, %87, %cst [1] : vector<8x32x128xf32> to vector<8x128xf32>
    %89 = vector.extract_strided_slice %76 {offsets = [1, 0, 0], sizes = [1, 32, 128], strides = [1, 1, 1]} : vector<8x32x128xf32> to vector<1x32x128xf32>
    %90 = vector.shape_cast %89 : vector<1x32x128xf32> to vector<32x128xf32>
    %91 = vector.shape_cast %90 : vector<32x128xf32> to vector<1x32x128xf32>
    %92 = vector.broadcast %91 : vector<1x32x128xf32> to vector<8x32x128xf32>
    %93 = arith.mulf %92, %82 : vector<8x32x128xf32>
    %cst_12 = arith.constant dense<0.000000e+00> : vector<8x128xf32>
    %94 = vector.multi_reduction <add>, %93, %cst_12 [1] : vector<8x32x128xf32> to vector<8x128xf32>
    %95 = vector.extract_strided_slice %76 {offsets = [2, 0, 0], sizes = [1, 32, 128], strides = [1, 1, 1]} : vector<8x32x128xf32> to vector<1x32x128xf32>
    %96 = vector.shape_cast %95 : vector<1x32x128xf32> to vector<32x128xf32>
    %97 = vector.shape_cast %96 : vector<32x128xf32> to vector<1x32x128xf32>
    %98 = vector.broadcast %97 : vector<1x32x128xf32> to vector<8x32x128xf32>
    %99 = arith.mulf %98, %82 : vector<8x32x128xf32>
    %cst_13 = arith.constant dense<0.000000e+00> : vector<8x128xf32>
    %100 = vector.multi_reduction <add>, %99, %cst_13 [1] : vector<8x32x128xf32> to vector<8x128xf32>
    %101 = vector.extract_strided_slice %76 {offsets = [3, 0, 0], sizes = [1, 32, 128], strides = [1, 1, 1]} : vector<8x32x128xf32> to vector<1x32x128xf32>
    %102 = vector.shape_cast %101 : vector<1x32x128xf32> to vector<32x128xf32>
    %103 = vector.shape_cast %102 : vector<32x128xf32> to vector<1x32x128xf32>
    %104 = vector.broadcast %103 : vector<1x32x128xf32> to vector<8x32x128xf32>
    %105 = arith.mulf %104, %82 : vector<8x32x128xf32>
    %cst_14 = arith.constant dense<0.000000e+00> : vector<8x128xf32>
    %106 = vector.multi_reduction <add>, %105, %cst_14 [1] : vector<8x32x128xf32> to vector<8x128xf32>
    %107 = vector.extract_strided_slice %76 {offsets = [4, 0, 0], sizes = [1, 32, 128], strides = [1, 1, 1]} : vector<8x32x128xf32> to vector<1x32x128xf32>
    %108 = vector.shape_cast %107 : vector<1x32x128xf32> to vector<32x128xf32>
    %109 = vector.shape_cast %108 : vector<32x128xf32> to vector<1x32x128xf32>
    %110 = vector.broadcast %109 : vector<1x32x128xf32> to vector<8x32x128xf32>
    %111 = arith.mulf %110, %82 : vector<8x32x128xf32>
    %cst_15 = arith.constant dense<0.000000e+00> : vector<8x128xf32>
    %112 = vector.multi_reduction <add>, %111, %cst_15 [1] : vector<8x32x128xf32> to vector<8x128xf32>
    %113 = vector.extract_strided_slice %76 {offsets = [5, 0, 0], sizes = [1, 32, 128], strides = [1, 1, 1]} : vector<8x32x128xf32> to vector<1x32x128xf32>
    %114 = vector.shape_cast %113 : vector<1x32x128xf32> to vector<32x128xf32>
    %115 = vector.shape_cast %114 : vector<32x128xf32> to vector<1x32x128xf32>
    %116 = vector.broadcast %115 : vector<1x32x128xf32> to vector<8x32x128xf32>
    %117 = arith.mulf %116, %82 : vector<8x32x128xf32>
    %cst_16 = arith.constant dense<0.000000e+00> : vector<8x128xf32>
    %118 = vector.multi_reduction <add>, %117, %cst_16 [1] : vector<8x32x128xf32> to vector<8x128xf32>
    %119 = vector.extract_strided_slice %76 {offsets = [6, 0, 0], sizes = [1, 32, 128], strides = [1, 1, 1]} : vector<8x32x128xf32> to vector<1x32x128xf32>
    %120 = vector.shape_cast %119 : vector<1x32x128xf32> to vector<32x128xf32>
    %121 = vector.shape_cast %120 : vector<32x128xf32> to vector<1x32x128xf32>
    %122 = vector.broadcast %121 : vector<1x32x128xf32> to vector<8x32x128xf32>
    %123 = arith.mulf %122, %82 : vector<8x32x128xf32>
    %cst_17 = arith.constant dense<0.000000e+00> : vector<8x128xf32>
    %124 = vector.multi_reduction <add>, %123, %cst_17 [1] : vector<8x32x128xf32> to vector<8x128xf32>
    %125 = vector.extract_strided_slice %76 {offsets = [7, 0, 0], sizes = [1, 32, 128], strides = [1, 1, 1]} : vector<8x32x128xf32> to vector<1x32x128xf32>
    %126 = vector.shape_cast %125 : vector<1x32x128xf32> to vector<32x128xf32>
    %127 = vector.shape_cast %126 : vector<32x128xf32> to vector<1x32x128xf32>
    %128 = vector.broadcast %127 : vector<1x32x128xf32> to vector<8x32x128xf32>
    %129 = arith.mulf %128, %82 : vector<8x32x128xf32>
    %cst_18 = arith.constant dense<0.000000e+00> : vector<8x128xf32>
    %130 = vector.multi_reduction <add>, %129, %cst_18 [1] : vector<8x32x128xf32> to vector<8x128xf32>
    %131 = vector.shape_cast %88 : vector<8x128xf32> to vector<1x8x128xf32>
    %132 = vector.shape_cast %94 : vector<8x128xf32> to vector<1x8x128xf32>
    %133 = vector.shape_cast %100 : vector<8x128xf32> to vector<1x8x128xf32>
    %134 = vector.shape_cast %106 : vector<8x128xf32> to vector<1x8x128xf32>
    %135 = vector.shape_cast %112 : vector<8x128xf32> to vector<1x8x128xf32>
    %136 = vector.shape_cast %118 : vector<8x128xf32> to vector<1x8x128xf32>
    %137 = vector.shape_cast %124 : vector<8x128xf32> to vector<1x8x128xf32>
    %138 = vector.shape_cast %130 : vector<8x128xf32> to vector<1x8x128xf32>
    %139 = tpu.concatenate %131, %132, %133, %134, %135, %136, %137, %138 in 0 : vector<1x8x128xf32>, vector<1x8x128xf32>, vector<1x8x128xf32>, vector<1x8x128xf32>, vector<1x8x128xf32>, vector<1x8x128xf32>, vector<1x8x128xf32>, vector<1x8x128xf32> -> vector<8x8x128xf32>
    %140 = arith.mulf %139, %139 : vector<8x8x128xf32>
    %cst_19 = arith.constant dense<0.000000e+00> : vector<8x128xf32>
    %141 = vector.multi_reduction <add>, %140, %cst_19 [1] : vector<8x8x128xf32> to vector<8x128xf32>
    %142 = vector.shape_cast %141 : vector<8x128xf32> to vector<8x1x128xf32>
    %cst_20 = arith.constant 1.000000e-24 : f32
    %143 = vector.broadcast %cst_20 : f32 to vector<8x1x128xf32>
    %144 = arith.maximumf %142, %143 : vector<8x1x128xf32>
    %145 = math.rsqrt %144 : vector<8x1x128xf32>
    %146 = vector.broadcast %145 : vector<8x1x128xf32> to vector<8x8x128xf32>
    %147 = arith.mulf %139, %146 : vector<8x8x128xf32>
    %148 = vector.extract_strided_slice %4 {offsets = [0, 0], sizes = [8, 1], strides = [1, 1]} : vector<8x8xf32> to vector<8x1xf32>
    %149 = vector.shape_cast %148 : vector<8x1xf32> to vector<1x8x1xf32>
    %150 = vector.broadcast %149 : vector<1x8x1xf32> to vector<8x8x128xf32>
    %151 = arith.mulf %147, %150 : vector<8x8x128xf32>
    %cst_21 = arith.constant dense<0.000000e+00> : vector<8x128xf32>
    %152 = vector.multi_reduction <add>, %151, %cst_21 [1] : vector<8x8x128xf32> to vector<8x128xf32>
    %153 = vector.extract_strided_slice %4 {offsets = [0, 1], sizes = [8, 1], strides = [1, 1]} : vector<8x8xf32> to vector<8x1xf32>
    %154 = vector.shape_cast %153 : vector<8x1xf32> to vector<1x8x1xf32>
    %155 = vector.broadcast %154 : vector<1x8x1xf32> to vector<8x8x128xf32>
    %156 = arith.mulf %147, %155 : vector<8x8x128xf32>
    %cst_22 = arith.constant dense<0.000000e+00> : vector<8x128xf32>
    %157 = vector.multi_reduction <add>, %156, %cst_22 [1] : vector<8x8x128xf32> to vector<8x128xf32>
    %158 = vector.extract_strided_slice %4 {offsets = [0, 2], sizes = [8, 1], strides = [1, 1]} : vector<8x8xf32> to vector<8x1xf32>
    %159 = vector.shape_cast %158 : vector<8x1xf32> to vector<1x8x1xf32>
    %160 = vector.broadcast %159 : vector<1x8x1xf32> to vector<8x8x128xf32>
    %161 = arith.mulf %147, %160 : vector<8x8x128xf32>
    %cst_23 = arith.constant dense<0.000000e+00> : vector<8x128xf32>
    %162 = vector.multi_reduction <add>, %161, %cst_23 [1] : vector<8x8x128xf32> to vector<8x128xf32>
    %163 = vector.extract_strided_slice %4 {offsets = [0, 3], sizes = [8, 1], strides = [1, 1]} : vector<8x8xf32> to vector<8x1xf32>
    %164 = vector.shape_cast %163 : vector<8x1xf32> to vector<1x8x1xf32>
    %165 = vector.broadcast %164 : vector<1x8x1xf32> to vector<8x8x128xf32>
    %166 = arith.mulf %147, %165 : vector<8x8x128xf32>
    %cst_24 = arith.constant dense<0.000000e+00> : vector<8x128xf32>
    %167 = vector.multi_reduction <add>, %166, %cst_24 [1] : vector<8x8x128xf32> to vector<8x128xf32>
    %168 = vector.extract_strided_slice %4 {offsets = [0, 4], sizes = [8, 1], strides = [1, 1]} : vector<8x8xf32> to vector<8x1xf32>
    %169 = vector.shape_cast %168 : vector<8x1xf32> to vector<1x8x1xf32>
    %170 = vector.broadcast %169 : vector<1x8x1xf32> to vector<8x8x128xf32>
    %171 = arith.mulf %147, %170 : vector<8x8x128xf32>
    %cst_25 = arith.constant dense<0.000000e+00> : vector<8x128xf32>
    %172 = vector.multi_reduction <add>, %171, %cst_25 [1] : vector<8x8x128xf32> to vector<8x128xf32>
    %173 = vector.extract_strided_slice %4 {offsets = [0, 5], sizes = [8, 1], strides = [1, 1]} : vector<8x8xf32> to vector<8x1xf32>
    %174 = vector.shape_cast %173 : vector<8x1xf32> to vector<1x8x1xf32>
    %175 = vector.broadcast %174 : vector<1x8x1xf32> to vector<8x8x128xf32>
    %176 = arith.mulf %147, %175 : vector<8x8x128xf32>
    %cst_26 = arith.constant dense<0.000000e+00> : vector<8x128xf32>
    %177 = vector.multi_reduction <add>, %176, %cst_26 [1] : vector<8x8x128xf32> to vector<8x128xf32>
    %178 = vector.extract_strided_slice %4 {offsets = [0, 6], sizes = [8, 1], strides = [1, 1]} : vector<8x8xf32> to vector<8x1xf32>
    %179 = vector.shape_cast %178 : vector<8x1xf32> to vector<1x8x1xf32>
    %180 = vector.broadcast %179 : vector<1x8x1xf32> to vector<8x8x128xf32>
    %181 = arith.mulf %147, %180 : vector<8x8x128xf32>
    %cst_27 = arith.constant dense<0.000000e+00> : vector<8x128xf32>
    %182 = vector.multi_reduction <add>, %181, %cst_27 [1] : vector<8x8x128xf32> to vector<8x128xf32>
    %183 = vector.extract_strided_slice %4 {offsets = [0, 7], sizes = [8, 1], strides = [1, 1]} : vector<8x8xf32> to vector<8x1xf32>
    %184 = vector.shape_cast %183 : vector<8x1xf32> to vector<1x8x1xf32>
    %185 = vector.broadcast %184 : vector<1x8x1xf32> to vector<8x8x128xf32>
    %186 = arith.mulf %147, %185 : vector<8x8x128xf32>
    %cst_28 = arith.constant dense<0.000000e+00> : vector<8x128xf32>
    %187 = vector.multi_reduction <add>, %186, %cst_28 [1] : vector<8x8x128xf32> to vector<8x128xf32>
    %188 = arith.maximumf %152, %157 : vector<8x128xf32>
    %189 = arith.maximumf %188, %162 : vector<8x128xf32>
    %190 = arith.maximumf %189, %167 : vector<8x128xf32>
    %191 = arith.maximumf %190, %172 : vector<8x128xf32>
    %192 = arith.maximumf %191, %177 : vector<8x128xf32>
    %193 = arith.maximumf %192, %182 : vector<8x128xf32>
    %194 = arith.maximumf %193, %187 : vector<8x128xf32>
    %c8_i32 = arith.constant 8 : i32
    %195 = vector.broadcast %c8_i32 : i32 to vector<8x128xi32>
    %196 = arith.cmpf oge, %187, %194 : vector<8x128xf32>
    %c7_i32 = arith.constant 7 : i32
    %197 = vector.broadcast %c7_i32 : i32 to vector<8x128xi32>
    %198 = arith.select %196, %197, %195 : vector<8x128xi1>, vector<8x128xi32>
    %199 = arith.cmpf oge, %182, %194 : vector<8x128xf32>
    %c6_i32 = arith.constant 6 : i32
    %200 = vector.broadcast %c6_i32 : i32 to vector<8x128xi32>
    %201 = arith.select %199, %200, %198 : vector<8x128xi1>, vector<8x128xi32>
    %202 = arith.cmpf oge, %177, %194 : vector<8x128xf32>
    %c5_i32 = arith.constant 5 : i32
    %203 = vector.broadcast %c5_i32 : i32 to vector<8x128xi32>
    %204 = arith.select %202, %203, %201 : vector<8x128xi1>, vector<8x128xi32>
    %205 = arith.cmpf oge, %172, %194 : vector<8x128xf32>
    %c4_i32 = arith.constant 4 : i32
    %206 = vector.broadcast %c4_i32 : i32 to vector<8x128xi32>
    %207 = arith.select %205, %206, %204 : vector<8x128xi1>, vector<8x128xi32>
    %208 = arith.cmpf oge, %167, %194 : vector<8x128xf32>
    %c3_i32 = arith.constant 3 : i32
    %209 = vector.broadcast %c3_i32 : i32 to vector<8x128xi32>
    %210 = arith.select %208, %209, %207 : vector<8x128xi1>, vector<8x128xi32>
    %211 = arith.cmpf oge, %162, %194 : vector<8x128xf32>
    %c2_i32 = arith.constant 2 : i32
    %212 = vector.broadcast %c2_i32 : i32 to vector<8x128xi32>
    %213 = arith.select %211, %212, %210 : vector<8x128xi1>, vector<8x128xi32>
    %214 = arith.cmpf oge, %157, %194 : vector<8x128xf32>
    %c1_i32 = arith.constant 1 : i32
    %215 = vector.broadcast %c1_i32 : i32 to vector<8x128xi32>
    %216 = arith.select %214, %215, %213 : vector<8x128xi1>, vector<8x128xi32>
    %217 = arith.cmpf oge, %152, %194 : vector<8x128xf32>
    %c0_i32 = arith.constant 0 : i32
    %218 = vector.broadcast %c0_i32 : i32 to vector<8x128xi32>
    %219 = arith.select %217, %218, %216 : vector<8x128xi1>, vector<8x128xi32>
    %cst_29 = arith.constant 0.000000e+00 : f32
    %220 = vector.broadcast %cst_29 : f32 to vector<8x128xf32>
    %221 = arith.subf %152, %194 : vector<8x128xf32>
    %cst_30 = arith.constant 1.000000e+01 : f32
    %222 = vector.broadcast %cst_30 : f32 to vector<8x128xf32>
    %223 = arith.mulf %221, %222 : vector<8x128xf32>
    %224 = math.exp %223 : vector<8x128xf32>
    %225 = arith.addf %220, %224 : vector<8x128xf32>
    %226 = arith.subf %157, %194 : vector<8x128xf32>
    %cst_31 = arith.constant 1.000000e+01 : f32
    %227 = vector.broadcast %cst_31 : f32 to vector<8x128xf32>
    %228 = arith.mulf %226, %227 : vector<8x128xf32>
    %229 = math.exp %228 : vector<8x128xf32>
    %230 = arith.addf %225, %229 : vector<8x128xf32>
    %231 = arith.subf %162, %194 : vector<8x128xf32>
    %cst_32 = arith.constant 1.000000e+01 : f32
    %232 = vector.broadcast %cst_32 : f32 to vector<8x128xf32>
    %233 = arith.mulf %231, %232 : vector<8x128xf32>
    %234 = math.exp %233 : vector<8x128xf32>
    %235 = arith.addf %230, %234 : vector<8x128xf32>
    %236 = arith.subf %167, %194 : vector<8x128xf32>
    %cst_33 = arith.constant 1.000000e+01 : f32
    %237 = vector.broadcast %cst_33 : f32 to vector<8x128xf32>
    %238 = arith.mulf %236, %237 : vector<8x128xf32>
    %239 = math.exp %238 : vector<8x128xf32>
    %240 = arith.addf %235, %239 : vector<8x128xf32>
    %241 = arith.subf %172, %194 : vector<8x128xf32>
    %cst_34 = arith.constant 1.000000e+01 : f32
    %242 = vector.broadcast %cst_34 : f32 to vector<8x128xf32>
    %243 = arith.mulf %241, %242 : vector<8x128xf32>
    %244 = math.exp %243 : vector<8x128xf32>
    %245 = arith.addf %240, %244 : vector<8x128xf32>
    %246 = arith.subf %177, %194 : vector<8x128xf32>
    %cst_35 = arith.constant 1.000000e+01 : f32
    %247 = vector.broadcast %cst_35 : f32 to vector<8x128xf32>
    %248 = arith.mulf %246, %247 : vector<8x128xf32>
    %249 = math.exp %248 : vector<8x128xf32>
    %250 = arith.addf %245, %249 : vector<8x128xf32>
    %251 = arith.subf %182, %194 : vector<8x128xf32>
    %cst_36 = arith.constant 1.000000e+01 : f32
    %252 = vector.broadcast %cst_36 : f32 to vector<8x128xf32>
    %253 = arith.mulf %251, %252 : vector<8x128xf32>
    %254 = math.exp %253 : vector<8x128xf32>
    %255 = arith.addf %250, %254 : vector<8x128xf32>
    %256 = arith.subf %187, %194 : vector<8x128xf32>
    %cst_37 = arith.constant 1.000000e+01 : f32
    %257 = vector.broadcast %cst_37 : f32 to vector<8x128xf32>
    %258 = arith.mulf %256, %257 : vector<8x128xf32>
    %259 = math.exp %258 : vector<8x128xf32>
    %260 = arith.addf %255, %259 : vector<8x128xf32>
    %cst_38 = arith.constant 0.000000e+00 : f32
    %261 = vector.broadcast %cst_38 : f32 to vector<8x8x128xf32>
    %c0_i32_39 = arith.constant 0 : i32
    %262 = vector.broadcast %c0_i32_39 : i32 to vector<8x128xi32>
    %263 = arith.cmpi eq, %219, %262 : vector<8x128xi32>
    %264 = arith.extui %263 : vector<8x128xi1> to vector<8x128xi32>
    %265 = arith.sitofp %264 : vector<8x128xi32> to vector<8x128xf32>
    %266 = vector.shape_cast %265 : vector<8x128xf32> to vector<8x1x128xf32>
    %267 = vector.extract_strided_slice %4 {offsets = [0, 0], sizes = [8, 1], strides = [1, 1]} : vector<8x8xf32> to vector<8x1xf32>
    %268 = vector.shape_cast %267 : vector<8x1xf32> to vector<1x8x1xf32>
    %269 = vector.broadcast %266 : vector<8x1x128xf32> to vector<8x8x128xf32>
    %270 = vector.broadcast %268 : vector<1x8x1xf32> to vector<8x8x128xf32>
    %271 = arith.mulf %269, %270 : vector<8x8x128xf32>
    %272 = arith.addf %261, %271 : vector<8x8x128xf32>
    %c1_i32_40 = arith.constant 1 : i32
    %273 = vector.broadcast %c1_i32_40 : i32 to vector<8x128xi32>
    %274 = arith.cmpi eq, %219, %273 : vector<8x128xi32>
    %275 = arith.extui %274 : vector<8x128xi1> to vector<8x128xi32>
    %276 = arith.sitofp %275 : vector<8x128xi32> to vector<8x128xf32>
    %277 = vector.shape_cast %276 : vector<8x128xf32> to vector<8x1x128xf32>
    %278 = vector.extract_strided_slice %4 {offsets = [0, 1], sizes = [8, 1], strides = [1, 1]} : vector<8x8xf32> to vector<8x1xf32>
    %279 = vector.shape_cast %278 : vector<8x1xf32> to vector<1x8x1xf32>
    %280 = vector.broadcast %277 : vector<8x1x128xf32> to vector<8x8x128xf32>
    %281 = vector.broadcast %279 : vector<1x8x1xf32> to vector<8x8x128xf32>
    %282 = arith.mulf %280, %281 : vector<8x8x128xf32>
    %283 = arith.addf %272, %282 : vector<8x8x128xf32>
    %c2_i32_41 = arith.constant 2 : i32
    %284 = vector.broadcast %c2_i32_41 : i32 to vector<8x128xi32>
    %285 = arith.cmpi eq, %219, %284 : vector<8x128xi32>
    %286 = arith.extui %285 : vector<8x128xi1> to vector<8x128xi32>
    %287 = arith.sitofp %286 : vector<8x128xi32> to vector<8x128xf32>
    %288 = vector.shape_cast %287 : vector<8x128xf32> to vector<8x1x128xf32>
    %289 = vector.extract_strided_slice %4 {offsets = [0, 2], sizes = [8, 1], strides = [1, 1]} : vector<8x8xf32> to vector<8x1xf32>
    %290 = vector.shape_cast %289 : vector<8x1xf32> to vector<1x8x1xf32>
    %291 = vector.broadcast %288 : vector<8x1x128xf32> to vector<8x8x128xf32>
    %292 = vector.broadcast %290 : vector<1x8x1xf32> to vector<8x8x128xf32>
    %293 = arith.mulf %291, %292 : vector<8x8x128xf32>
    %294 = arith.addf %283, %293 : vector<8x8x128xf32>
    %c3_i32_42 = arith.constant 3 : i32
    %295 = vector.broadcast %c3_i32_42 : i32 to vector<8x128xi32>
    %296 = arith.cmpi eq, %219, %295 : vector<8x128xi32>
    %297 = arith.extui %296 : vector<8x128xi1> to vector<8x128xi32>
    %298 = arith.sitofp %297 : vector<8x128xi32> to vector<8x128xf32>
    %299 = vector.shape_cast %298 : vector<8x128xf32> to vector<8x1x128xf32>
    %300 = vector.extract_strided_slice %4 {offsets = [0, 3], sizes = [8, 1], strides = [1, 1]} : vector<8x8xf32> to vector<8x1xf32>
    %301 = vector.shape_cast %300 : vector<8x1xf32> to vector<1x8x1xf32>
    %302 = vector.broadcast %299 : vector<8x1x128xf32> to vector<8x8x128xf32>
    %303 = vector.broadcast %301 : vector<1x8x1xf32> to vector<8x8x128xf32>
    %304 = arith.mulf %302, %303 : vector<8x8x128xf32>
    %305 = arith.addf %294, %304 : vector<8x8x128xf32>
    %c4_i32_43 = arith.constant 4 : i32
    %306 = vector.broadcast %c4_i32_43 : i32 to vector<8x128xi32>
    %307 = arith.cmpi eq, %219, %306 : vector<8x128xi32>
    %308 = arith.extui %307 : vector<8x128xi1> to vector<8x128xi32>
    %309 = arith.sitofp %308 : vector<8x128xi32> to vector<8x128xf32>
    %310 = vector.shape_cast %309 : vector<8x128xf32> to vector<8x1x128xf32>
    %311 = vector.extract_strided_slice %4 {offsets = [0, 4], sizes = [8, 1], strides = [1, 1]} : vector<8x8xf32> to vector<8x1xf32>
    %312 = vector.shape_cast %311 : vector<8x1xf32> to vector<1x8x1xf32>
    %313 = vector.broadcast %310 : vector<8x1x128xf32> to vector<8x8x128xf32>
    %314 = vector.broadcast %312 : vector<1x8x1xf32> to vector<8x8x128xf32>
    %315 = arith.mulf %313, %314 : vector<8x8x128xf32>
    %316 = arith.addf %305, %315 : vector<8x8x128xf32>
    %c5_i32_44 = arith.constant 5 : i32
    %317 = vector.broadcast %c5_i32_44 : i32 to vector<8x128xi32>
    %318 = arith.cmpi eq, %219, %317 : vector<8x128xi32>
    %319 = arith.extui %318 : vector<8x128xi1> to vector<8x128xi32>
    %320 = arith.sitofp %319 : vector<8x128xi32> to vector<8x128xf32>
    %321 = vector.shape_cast %320 : vector<8x128xf32> to vector<8x1x128xf32>
    %322 = vector.extract_strided_slice %4 {offsets = [0, 5], sizes = [8, 1], strides = [1, 1]} : vector<8x8xf32> to vector<8x1xf32>
    %323 = vector.shape_cast %322 : vector<8x1xf32> to vector<1x8x1xf32>
    %324 = vector.broadcast %321 : vector<8x1x128xf32> to vector<8x8x128xf32>
    %325 = vector.broadcast %323 : vector<1x8x1xf32> to vector<8x8x128xf32>
    %326 = arith.mulf %324, %325 : vector<8x8x128xf32>
    %327 = arith.addf %316, %326 : vector<8x8x128xf32>
    %c6_i32_45 = arith.constant 6 : i32
    %328 = vector.broadcast %c6_i32_45 : i32 to vector<8x128xi32>
    %329 = arith.cmpi eq, %219, %328 : vector<8x128xi32>
    %330 = arith.extui %329 : vector<8x128xi1> to vector<8x128xi32>
    %331 = arith.sitofp %330 : vector<8x128xi32> to vector<8x128xf32>
    %332 = vector.shape_cast %331 : vector<8x128xf32> to vector<8x1x128xf32>
    %333 = vector.extract_strided_slice %4 {offsets = [0, 6], sizes = [8, 1], strides = [1, 1]} : vector<8x8xf32> to vector<8x1xf32>
    %334 = vector.shape_cast %333 : vector<8x1xf32> to vector<1x8x1xf32>
    %335 = vector.broadcast %332 : vector<8x1x128xf32> to vector<8x8x128xf32>
    %336 = vector.broadcast %334 : vector<1x8x1xf32> to vector<8x8x128xf32>
    %337 = arith.mulf %335, %336 : vector<8x8x128xf32>
    %338 = arith.addf %327, %337 : vector<8x8x128xf32>
    %c7_i32_46 = arith.constant 7 : i32
    %339 = vector.broadcast %c7_i32_46 : i32 to vector<8x128xi32>
    %340 = arith.cmpi eq, %219, %339 : vector<8x128xi32>
    %341 = arith.extui %340 : vector<8x128xi1> to vector<8x128xi32>
    %342 = arith.sitofp %341 : vector<8x128xi32> to vector<8x128xf32>
    %343 = vector.shape_cast %342 : vector<8x128xf32> to vector<8x1x128xf32>
    %344 = vector.extract_strided_slice %4 {offsets = [0, 7], sizes = [8, 1], strides = [1, 1]} : vector<8x8xf32> to vector<8x1xf32>
    %345 = vector.shape_cast %344 : vector<8x1xf32> to vector<1x8x1xf32>
    %346 = vector.broadcast %343 : vector<8x1x128xf32> to vector<8x8x128xf32>
    %347 = vector.broadcast %345 : vector<1x8x1xf32> to vector<8x8x128xf32>
    %348 = arith.mulf %346, %347 : vector<8x8x128xf32>
    %349 = arith.addf %338, %348 : vector<8x8x128xf32>
    %350 = arith.subf %147, %349 : vector<8x8x128xf32>
    %351 = arith.mulf %350, %350 : vector<8x8x128xf32>
    %cst_47 = arith.constant dense<0.000000e+00> : vector<8x128xf32>
    %352 = vector.multi_reduction <add>, %351, %cst_47 [1] : vector<8x8x128xf32> to vector<8x128xf32>
    %353 = math.log %260 : vector<8x128xf32>
    %354 = arith.mulf %349, %349 : vector<8x8x128xf32>
    %cst_48 = arith.constant dense<0.000000e+00> : vector<8x128xf32>
    %355 = vector.multi_reduction <add>, %354, %cst_48 [1] : vector<8x8x128xf32> to vector<8x128xf32>
    %356 = arith.mulf %147, %349 : vector<8x8x128xf32>
    %cst_49 = arith.constant dense<0.000000e+00> : vector<8x128xf32>
    %357 = vector.multi_reduction <add>, %356, %cst_49 [1] : vector<8x8x128xf32> to vector<8x128xf32>
    %cst_50 = arith.constant 1.000000e-24 : f32
    %358 = vector.broadcast %cst_50 : f32 to vector<8x128xf32>
    %359 = arith.maximumf %355, %358 : vector<8x128xf32>
    %360 = math.rsqrt %359 : vector<8x128xf32>
    %361 = arith.mulf %357, %360 : vector<8x128xf32>
    %cst_51 = arith.constant 1.000000e+00 : f32
    %362 = vector.broadcast %cst_51 : f32 to vector<8x128xf32>
    %363 = arith.subf %362, %361 : vector<8x128xf32>
    %c0_52 = arith.constant 0 : index
    %c0_53 = arith.constant 0 : index
    %364 = vector.load %arg8[%c0_52, %c0_53] : memref<24x128xf32, #tpu.memory_space<vmem>>, vector<8x128xf32>
    tpu.vector_store %arg8[%c0_52, %c0_53], %352 {strides = array<i32>} : memref<24x128xf32, #tpu.memory_space<vmem>>, vector<8x128xf32>,
    %c8 = arith.constant 8 : index
    %c0_54 = arith.constant 0 : index
    %365 = vector.load %arg8[%c8, %c0_54] : memref<24x128xf32, #tpu.memory_space<vmem>>, vector<8x128xf32>
    tpu.vector_store %arg8[%c8, %c0_54], %353 {strides = array<i32>} : memref<24x128xf32, #tpu.memory_space<vmem>>, vector<8x128xf32>,
    %c16 = arith.constant 16 : index
    %c0_55 = arith.constant 0 : index
    %366 = vector.load %arg8[%c16, %c0_55] : memref<24x128xf32, #tpu.memory_space<vmem>>, vector<8x128xf32>
    tpu.vector_store %arg8[%c16, %c0_55], %363 {strides = array<i32>} : memref<24x128xf32, #tpu.memory_space<vmem>>, vector<8x128xf32>,
    return
  }
  func.func @transform_0(%arg0: i32, %arg1: i32) -> (i32, i32, i32) {
    %c1_i32 = arith.constant 1 : i32
    %0 = arith.muli %arg0, %c1_i32 : i32
    %1 = arith.addi %0, %arg1 : i32
    %c0_i32 = arith.constant 0 : i32
    %c0_i32_0 = arith.constant 0 : i32
    %c0_i32_1 = arith.constant 0 : i32
    return %1, %c0_i32, %c0_i32_0 : i32, i32, i32
  }
  func.func @transform_1(%arg0: i32, %arg1: i32) -> (i32, i32) {
    %c0_i32 = arith.constant 0 : i32
    %c0_i32_0 = arith.constant 0 : i32
    %c0_i32_1 = arith.constant 0 : i32
    return %c0_i32, %c0_i32_0 : i32, i32
  }
  func.func @transform_2(%arg0: i32, %arg1: i32) -> (i32, i32) {
    %c0_i32 = arith.constant 0 : i32
    %c0_i32_0 = arith.constant 0 : i32
    %c0_i32_1 = arith.constant 0 : i32
    return %c0_i32, %c0_i32_0 : i32, i32
  }
  func.func @transform_3(%arg0: i32, %arg1: i32) -> (i32, i32) {
    %c0_i32 = arith.constant 0 : i32
    %c0_i32_0 = arith.constant 0 : i32
    %c0_i32_1 = arith.constant 0 : i32
    return %c0_i32, %c0_i32_0 : i32, i32
  }
  func.func @transform_4(%arg0: i32, %arg1: i32) -> (i32, i32) {
    %c0_i32 = arith.constant 0 : i32
    %c0_i32_0 = arith.constant 0 : i32
    %c0_i32_1 = arith.constant 0 : i32
    return %c0_i32, %c0_i32_0 : i32, i32
  }
  func.func @transform_5(%arg0: i32, %arg1: i32) -> (i32, i32) {
    %c0_i32 = arith.constant 0 : i32
    %c0_i32_0 = arith.constant 0 : i32
    %c0_i32_1 = arith.constant 0 : i32
    return %c0_i32, %c0_i32_0 : i32, i32
  }
  func.func @transform_6(%arg0: i32, %arg1: i32) -> (i32, i32) {
    %c1_i32 = arith.constant 1 : i32
    %0 = arith.muli %arg0, %c1_i32 : i32
    %1 = arith.addi %0, %arg1 : i32
    %c0_i32 = arith.constant 0 : i32
    %c0_i32_0 = arith.constant 0 : i32
    return %c0_i32, %1 : i32, i32
  }
}

</mosaic_0001>

<llo_original>
// kernel: tpu_custom_call.1
$region0: #{tpu_custom_call.1}
  #allocation0 [shape = 'u32[]', space=smem, size = 0x4, offset = 0x4, fixed_abs, tag = 'smem constant byte address 0x4 - core index']
  #allocation1 [shape = 'u32[144,128]{1,0:T(1,128)}', space=vmem, size = 0x12000, scoped, tag = 'internal scratch']
  %s0 = inlined_call_operand.vmem [shape: f32[2,8,132], index: 0, kind: input, shape index: {}]
  %s1 = inlined_call_operand.vmem [shape: f32[32,5], index: 1, kind: input, shape index: {}]
  %s2 = inlined_call_operand.vmem [shape: f32[32,5], index: 2, kind: input, shape index: {}]
  %s3 = inlined_call_operand.vmem [shape: f32[32,1], index: 3, kind: input, shape index: {}]
  %s4 = inlined_call_operand.vmem [shape: f32[32,1], index: 4, kind: input, shape index: {}]
  %s5 = inlined_call_operand.vmem [shape: f32[8,8], index: 5, kind: input, shape index: {}]
  %s6 = inlined_call_operand.hbm [shape: f32[24,256], index: 6, kind: output, shape index: {}]
  %s7 = sld [smem:[#allocation0]]
  $region57: #{tpu_custom_call.1} parent=0
    _
  %s9 = ssub.s32 1, %s7
  %s10 = scalar_select 0, %s9, %s7
  $region1: #{tpu_custom_call.1} parent=0
    #allocation2 [shape = 'u8[24576]{0}', space=vmem, size = 0x6000, scoped, tag = 'output window, operand 0']
    #allocation3 [shape = 's32[2]{0}', space=sflag, size = 0x8, scoped, tag = 'scoped memory for tpu_custom_call.1']
    %11 = vsyncpa [#allocation3], 0
    %s12 = scalar_lea.sflag [#allocation3], 1
    %13 = vsyncpa %s12, 0
    loop: start=0, step=1, limit=4
    $region2: #{tpu_custom_call.1} parent=1 // loop_pre_header
      _
    $region3: #{tpu_custom_call.1} parent=1 // loop_header
      %s15 = sphi 0, %s19
      %p16 = scmp.ge.s32.totalorder %s15, 4
      %s22 = sphi 0, %s34
      %s23 = sphi 0, %s30
      %s24 = sphi 0, %s22
      %s25 = sphi 0, %s23
      %s26 = sphi 0, %s24
      %s27 = sphi 0, %s25
      %s39 = sphi 0, %s41
      %s42 = sphi 0, %s39
      %s43 = sphi 0, %s42
      %s59 = sphi 0, %s43
      %s63 = sphi 0, %s63
      %s65 = sphi 0, %s63
      %s66 = sphi 0, %s65
      %s80 = sphi 0, %s66
      %s84 = sphi 0, %s84
      %s86 = sphi 0, %s84
      %s87 = sphi 0, %s86
      %s101 = sphi 0, %s87
      %s105 = sphi 0, %s105
      %s107 = sphi 0, %s105
      %s108 = sphi 0, %s107
      %s122 = sphi 0, %s108
      %s126 = sphi 0, %s126
      %s128 = sphi 0, %s126
      %s129 = sphi 0, %s128
      %s143 = sphi 0, %s129
      %s147 = sphi 0, %s147
      %s149 = sphi 0, %s147
      %s150 = sphi 0, %s149
      %s164 = sphi 0, %s150
      %s172 = sphi 0, %s174
      %s175 = sphi 0, %s172
      %s176 = sphi 0, %s175
      %s192 = sphi 0, %s176
    $region4: #{tpu_custom_call.1} parent=1 // loop_header_branch
      %18 = sbr.rel (%p16) target = $region8
    $region5: #{tpu_custom_call.1} parent=1 // loop_body
      %s20 = ssub.s32 %s15, 1
      %s21 = ssub.s32 %s15, 2
      %s28 = sadd.s32 1, %s23
      %p29 = scmp.ge.s32.totalorder %s28, 1
      %s30 = scalar_select %p29, 0, %s28
      %s31 = sadd.s32 1, %s22
      %s32 = scalar_select %p29, %s31, %s22
      %p33 = scmp.ge.s32.totalorder %s32, 2
      %s34 = scalar_select %p33, 0, %s32
      %s35 = sadd.s32 %s22, %s23
      %s36 = sadd.s32 %s34, %s30
      %s37 = ssub.s32 %s35, %s36
      %p38 = scmp.eq.s32.totalorder %s37, 0
      %s40 = sadd.s32 %s39, 1
      %s41 = scalar_select %p38, %s39, %s40
      %p44 = pneg %p38
      %p45 = scmp.eq.s32.totalorder %s15, 1
      %p46 = por %p44, %p45
      %p47 = scmp.ne.s32.totalorder %s39, %s42
      %p48 = scmp.eq.s32.totalorder %s15, 0
      %p49 = por %p47, %p48
      %p50 = scmp.ne.s32.totalorder %s39, %s42
      %p51 = scmp.eq.s32.totalorder %s20, 1
      %p52 = por %p50, %p51
      %p53 = scmp.ne.s32.totalorder %s42, %s43
      %p54 = scmp.eq.s32.totalorder %s20, 0
      %p55 = por %p53, %p54
      %p56 = scmp.ne.s32.totalorder %s42, %s43
      %p57 = scmp.eq.s32.totalorder %s21, 1
      %p58 = por %p56, %p57
      %p60 = scmp.ne.s32.totalorder %s43, %s59
      %p61 = scmp.eq.s32.totalorder %s21, 0
      %p62 = por %p60, %p61
      %s64 = sadd.s32 %s63, 1
      %p67 = scmp.eq.s32.totalorder %s15, 1
      %p68 = scmp.ne.s32.totalorder %s63, %s65
      %p69 = scmp.eq.s32.totalorder %s15, 0
      %p70 = por %p68, %p69
      %p71 = scmp.ne.s32.totalorder %s63, %s65
      %p72 = scmp.eq.s32.totalorder %s20, 1
      %p73 = por %p71, %p72
      %p74 = scmp.ne.s32.totalorder %s65, %s66
      %p75 = scmp.eq.s32.totalorder %s20, 0
      %p76 = por %p74, %p75
      %p77 = scmp.ne.s32.totalorder %s65, %s66
      %p78 = scmp.eq.s32.totalorder %s21, 1
      %p79 = por %p77, %p78
      %p81 = scmp.ne.s32.totalorder %s66, %s80
      %p82 = scmp.eq.s32.totalorder %s21, 0
      %p83 = por %p81, %p82
      %s85 = sadd.s32 %s84, 1
      %p88 = scmp.eq.s32.totalorder %s15, 1
      %p89 = scmp.ne.s32.totalorder %s84, %s86
      %p90 = scmp.eq.s32.totalorder %s15, 0
      %p91 = por %p89, %p90
      %p92 = scmp.ne.s32.totalorder %s84, %s86
      %p93 = scmp.eq.s32.totalorder %s20, 1
      %p94 = por %p92, %p93
      %p95 = scmp.ne.s32.totalorder %s86, %s87
      %p96 = scmp.eq.s32.totalorder %s20, 0
      %p97 = por %p95, %p96
      %p98 = scmp.ne.s32.totalorder %s86, %s87
      %p99 = scmp.eq.s32.totalorder %s21, 1
      %p100 = por %p98, %p99
      %p102 = scmp.ne.s32.totalorder %s87, %s101
      %p103 = scmp.eq.s32.totalorder %s21, 0
      %p104 = por %p102, %p103
      %s106 = sadd.s32 %s105, 1
      %p109 = scmp.eq.s32.totalorder %s15, 1
      %p110 = scmp.ne.s32.totalorder %s105, %s107
      %p111 = scmp.eq.s32.totalorder %s15, 0
      %p112 = por %p110, %p111
      %p113 = scmp.ne.s32.totalorder %s105, %s107
      %p114 = scmp.eq.s32.totalorder %s20, 1
      %p115 = por %p113, %p114
      %p116 = scmp.ne.s32.totalorder %s107, %s108
      %p117 = scmp.eq.s32.totalorder %s20, 0
      %p118 = por %p116, %p117
      %p119 = scmp.ne.s32.totalorder %s107, %s108
      %p120 = scmp.eq.s32.totalorder %s21, 1
      %p121 = por %p119, %p120
      %p123 = scmp.ne.s32.totalorder %s108, %s122
      %p124 = scmp.eq.s32.totalorder %s21, 0
      %p125 = por %p123, %p124
      %s127 = sadd.s32 %s126, 1
      %p130 = scmp.eq.s32.totalorder %s15, 1
      %p131 = scmp.ne.s32.totalorder %s126, %s128
      %p132 = scmp.eq.s32.totalorder %s15, 0
      %p133 = por %p131, %p132
      %p134 = scmp.ne.s32.totalorder %s126, %s128
      %p135 = scmp.eq.s32.totalorder %s20, 1
      %p136 = por %p134, %p135
      %p137 = scmp.ne.s32.totalorder %s128, %s129
      %p138 = scmp.eq.s32.totalorder %s20, 0
      %p139 = por %p137, %p138
      %p140 = scmp.ne.s32.totalorder %s128, %s129
      %p141 = scmp.eq.s32.totalorder %s21, 1
      %p142 = por %p140, %p141
      %p144 = scmp.ne.s32.totalorder %s129, %s143
      %p145 = scmp.eq.s32.totalorder %s21, 0
      %p146 = por %p144, %p145
      %s148 = sadd.s32 %s147, 1
      %p151 = scmp.eq.s32.totalorder %s15, 1
      %p152 = scmp.ne.s32.totalorder %s147, %s149
      %p153 = scmp.eq.s32.totalorder %s15, 0
      %p154 = por %p152, %p153
      %p155 = scmp.ne.s32.totalorder %s147, %s149
      %p156 = scmp.eq.s32.totalorder %s20, 1
      %p157 = por %p155, %p156
      %p158 = scmp.ne.s32.totalorder %s149, %s150
      %p159 = scmp.eq.s32.totalorder %s20, 0
      %p160 = por %p158, %p159
      %p161 = scmp.ne.s32.totalorder %s149, %s150
      %p162 = scmp.eq.s32.totalorder %s21, 1
      %p163 = por %p161, %p162
      %p165 = scmp.ne.s32.totalorder %s150, %s164
      %p166 = scmp.eq.s32.totalorder %s21, 0
      %p167 = por %p165, %p166
      %s168 = sadd.s32 %s22, %s23
      %s169 = sadd.s32 %s34, %s30
      %s170 = ssub.s32 %s168, %s169
      %p171 = scmp.eq.s32.totalorder %s170, 0
      %s173 = sadd.s32 %s172, 1
      %s174 = scalar_select %p171, %s172, %s173
      %p177 = pneg %p171
      %p178 = scmp.eq.s32.totalorder %s15, 1
      %p179 = por %p177, %p178
      %p180 = scmp.ne.s32.totalorder %s172, %s175
      %p181 = scmp.eq.s32.totalorder %s15, 0
      %p182 = por %p180, %p181
      %p183 = scmp.ne.s32.totalorder %s172, %s175
      %p184 = scmp.eq.s32.totalorder %s20, 1
      %p185 = por %p183, %p184
      %p186 = scmp.ne.s32.totalorder %s175, %s176
      %p187 = scmp.eq.s32.totalorder %s20, 0
      %p188 = por %p186, %p187
      %p189 = scmp.ne.s32.totalorder %s175, %s176
      %p190 = scmp.eq.s32.totalorder %s21, 1
      %p191 = por %p189, %p190
      %p193 = scmp.ne.s32.totalorder %s176, %s192
      %p194 = scmp.eq.s32.totalorder %s21, 0
      %p195 = por %p193, %p194
      %p196 = scmp.le.s32.totalorder 1, %s15
      %p197 = scmp.lt.s32.totalorder %s15, 3
      %p198 = pnand %p196, %p197
      %p199 = pneg %p198
      // Predicated region
      $region9: #{tpu_custom_call.1} parent=5 // pred_check
        _
      $region10: #{tpu_custom_call.1} parent=5 // pred_check_branch
        %201 = sbr.rel (%p198) target = $region12
      $region11: #{tpu_custom_call.1} parent=5 // pred_region
        %s202 = ssub.s32 %s15, 1
        // Predicated region
        $region13: #{tpu_custom_call.1} parent=11 // pred_check
          %p203 = pneg %p76
        $region14: #{tpu_custom_call.1} parent=11 // pred_check_branch
          %205 = sbr.rel (%p203) target = $region16
        $region15: #{tpu_custom_call.1} parent=11 // pred_region
          _
        $region16: #{tpu_custom_call.1} parent=11 // pred_fallthru
          _
        // Predicated region
        $region17: #{tpu_custom_call.1} parent=11 // pred_check
          %p206 = pneg %p97
        $region18: #{tpu_custom_call.1} parent=11 // pred_check_branch
          %208 = sbr.rel (%p206) target = $region20
        $region19: #{tpu_custom_call.1} parent=11 // pred_region
          _
        $region20: #{tpu_custom_call.1} parent=11 // pred_fallthru
          _
        // Predicated region
        $region21: #{tpu_custom_call.1} parent=11 // pred_check
          %p209 = pneg %p118
        $region22: #{tpu_custom_call.1} parent=11 // pred_check_branch
          %211 = sbr.rel (%p209) target = $region24
        $region23: #{tpu_custom_call.1} parent=11 // pred_region
          _
        $region24: #{tpu_custom_call.1} parent=11 // pred_fallthru
          _
        // Predicated region
        $region25: #{tpu_custom_call.1} parent=11 // pred_check
          %p212 = pneg %p139
        $region26: #{tpu_custom_call.1} parent=11 // pred_check_branch
          %214 = sbr.rel (%p212) target = $region28
        $region27: #{tpu_custom_call.1} parent=11 // pred_region
          _
        $region28: #{tpu_custom_call.1} parent=11 // pred_fallthru
          _
        // Predicated region
        $region29: #{tpu_custom_call.1} parent=11 // pred_check
          %p215 = pneg %p160
        $region30: #{tpu_custom_call.1} parent=11 // pred_check_branch
          %217 = sbr.rel (%p215) target = $region32
        $region31: #{tpu_custom_call.1} parent=11 // pred_region
          _
        $region32: #{tpu_custom_call.1} parent=11 // pred_fallthru
          _
      $region12: #{tpu_custom_call.1} parent=5 // pred_fallthru
        _
      %p218 = scmp.lt.s32.totalorder %s15, 2
      // Predicated region
      $region33: #{tpu_custom_call.1} parent=5 // pred_check
        %p219 = pneg %p218
      $region34: #{tpu_custom_call.1} parent=5 // pred_check_branch
        %221 = sbr.rel (%p219) target = $region36
      $region35: #{tpu_custom_call.1} parent=5 // pred_region
        // Predicated region
        $region37: #{tpu_custom_call.1} parent=35 // pred_check
          %p222 = pneg %p49
        $region38: #{tpu_custom_call.1} parent=35 // pred_check_branch
          %224 = sbr.rel (%p222) target = $region40
        $region39: #{tpu_custom_call.1} parent=35 // pred_region
          %s225 = sadd.s32 %s22, %s23
          %p226 = scmp.lt.s32.totalorder %s225, 1
          %s227 = scalar_select %p226, %s225, 1
          %s228 = smul.addr %s227, 2
          %s229 = smul.addr %s228, 8
          %s230 = scalar_lea.vmem %s0, %s229
          %s231 = sadd.s32 %s22, %s23
        $region40: #{tpu_custom_call.1} parent=35 // pred_fallthru
          _
      $region36: #{tpu_custom_call.1} parent=5 // pred_fallthru
        _
      %p232 = scmp.le.s32.totalorder 1, %s15
      %p233 = scmp.lt.s32.totalorder %s15, 3
      %p234 = pnand %p232, %p233
      %p235 = pneg %p234
      // Predicated region
      $region41: #{tpu_custom_call.1} parent=5 // pred_check
        _
      $region42: #{tpu_custom_call.1} parent=5 // pred_check_branch
        %237 = sbr.rel (%p234) target = $region44
      $region43: #{tpu_custom_call.1} parent=5 // pred_region
        %s238 = ssub.s32 %s15, 1
        %s239 = sadd.s32 %s24, %s25
        %p240 = scmp.lt.s32.totalorder %s239, 1
        %s241 = scalar_select %p240, %s239, 1
        %s242 = smul.addr %s241, 2
        %s243 = smul.addr %s242, 8
        %s244 = scalar_lea.vmem %s0, %s243
        %p245 = pneg %p55
        %p246 = pneg %p52
        %p247 = pneg %p76
        %p248 = pneg %p73
        %p249 = pneg %p97
        %p250 = pneg %p94
        %p251 = pneg %p118
        %p252 = pneg %p115
        %p253 = pneg %p139
        %p254 = pneg %p136
        %p255 = pneg %p160
        %p256 = pneg %p157
        %p257 = pneg %p188
        %p258 = pneg %p185
        %s259 = sand.u32 %s175, 1
        %s260 = scalar_lea.sflag [#allocation3], %s259
        %s261 = sand.u32 %s175, 1
        %s262 = smul.addr %s261, 24
        %s263 = scalar_lea.vmem [#allocation2], %s262
        %s264 = sadd.s32 %s24, %s25
        %p265 = scmp.lt.s32.totalorder %s264, 1
        %s266 = scalar_select %p265, %s264, 1
        %s267 = smul.addr %s266, 2
        %s268 = smul.addr %s267, 8
        %s269 = scalar_lea.vmem %s0, %s268
        %s270 = sadd.s32 %s24, %s25
        %s271 = sadd.s32 %s24, %s25
        %v272 = vld [vmem:[%s269] sm:$0xff]
        %v273 = vld [vmem:[%s269 + $0x8] sm:$0xff]
        %v274 = vld [vmem:[%s1] sm:$0xff]
        %v275 = vld [vmem:[%s1 + $0x8] sm:$0xff]
        %v276 = vld [vmem:[%s1 + $0x10] sm:$0xff]
        %v277 = vld [vmem:[%s1 + $0x18] sm:$0xff]
        %v278 = vld [vmem:[%s2] sm:$0xff]
        %v279 = vld [vmem:[%s2 + $0x8] sm:$0xff]
        %v280 = vld [vmem:[%s2 + $0x10] sm:$0xff]
        %v281 = vld [vmem:[%s2 + $0x18] sm:$0xff]
        %v282 = vld [vmem:[%s5] sm:$0xff]
        %v283 = vld [vmem:[%s3] sm:$0xff]
        %v284 = vld [vmem:[%s3 + $0x8] sm:$0xff]
        %v285 = vld [vmem:[%s3 + $0x10] sm:$0xff]
        %v286 = vld [vmem:[%s3 + $0x18] sm:$0xff]
        %288 = vset.pattern.permute.xlu0 0
        %289 = vperm.xlu0 %288, %v283
        %v290 = vpop.permute.xlu0 %289
        %293 = vset.pattern.permute.xlu0 0
        %294 = vperm.xlu0 %293, %v284
        %v295 = vpop.permute.xlu0 %294
        %298 = vset.pattern.permute.xlu0 0
        %299 = vperm.xlu0 %298, %v285
        %v300 = vpop.permute.xlu0 %299
        %303 = vset.pattern.permute.xlu0 0
        %304 = vperm.xlu0 %303, %v286
        %v305 = vpop.permute.xlu0 %304
        %v307 = vld [vmem:[%s4] sm:$0xff]
        %v308 = vld [vmem:[%s4 + $0x8] sm:$0xff]
        %v309 = vld [vmem:[%s4 + $0x10] sm:$0xff]
        %v310 = vld [vmem:[%s4 + $0x18] sm:$0xff]
        %312 = vset.pattern.permute.xlu0 0
        %313 = vperm.xlu0 %312, %v307
        %v314 = vpop.permute.xlu0 %313
        %317 = vset.pattern.permute.xlu0 0
        %318 = vperm.xlu0 %317, %v308
        %v319 = vpop.permute.xlu0 %318
        %322 = vset.pattern.permute.xlu0 0
        %323 = vperm.xlu0 %322, %v309
        %v324 = vpop.permute.xlu0 %323
        %327 = vset.pattern.permute.xlu0 0
        %328 = vperm.xlu0 %327, %v310
        %v329 = vpop.permute.xlu0 %328
        %v332 = vcombine.high %v272, %v272
        %v334 = vunpack.c.l.s4 1966171168
        %v335 = vunpack.c.0.s8 %v334
        %v336 = vlaneseq
        %v337 = vshrl.u32 %v336, 7
        %v338 = vsub.s32 %v335, %v337
        %v339 = vrot.slane %v272, %v338
        %v341 = vunpack.c.l.s4 1966171168
        %v342 = vunpack.c.0.s8 %v341
        %v343 = vlaneseq
        %v344 = vshrl.u32 %v343, 7
        %v345 = vsub.s32 %v342, %v344
        %v346 = vrot.slane %v332, %v345
        %v347 = vcombine.high %v339, %v339
        %v348 = vcombine.high %v346, %v346
        %v350 = vunpack.c.l.s4 1966171168
        %v351 = vunpack.c.0.s8 %v350
        %v352 = vlaneseq
        %v353 = vshrl.u32 %v352, 7
        %v354 = vsub.s32 %v351, %v353
        %v355 = vrot.slane %v339, %v354
        %v357 = vunpack.c.l.s4 1966171168
        %v358 = vunpack.c.0.s8 %v357
        %v359 = vlaneseq
        %v360 = vshrl.u32 %v359, 7
        %v361 = vsub.s32 %v358, %v360
        %v362 = vrot.slane %v346, %v361
        %v364 = vunpack.c.l.s4 1966171168
        %v365 = vunpack.c.0.s8 %v364
        %v366 = vlaneseq
        %v367 = vshrl.u32 %v366, 7
        %v368 = vsub.s32 %v365, %v367
        %v369 = vrot.slane %v347, %v368
        %v371 = vunpack.c.l.s4 1966171168
        %v372 = vunpack.c.0.s8 %v371
        %v373 = vlaneseq
        %v374 = vshrl.u32 %v373, 7
        %v375 = vsub.s32 %v372, %v374
        %v376 = vrot.slane %v348, %v375
        %v377 = vcombine.high %v355, %v355
        %v378 = vcombine.high %v362, %v362
        %v379 = vcombine.high %v369, %v369
        %v380 = vcombine.high %v376, %v376
        %382 = vset.pattern.permute.xlu0 0
        %383 = vperm.xlu0 %382, %v274
        %v384 = vpop.permute.xlu0 %383
        %387 = vset.pattern.permute.xlu0 0
        %388 = vperm.xlu0 %387, %v275
        %v389 = vpop.permute.xlu0 %388
        %392 = vset.pattern.permute.xlu0 0
        %393 = vperm.xlu0 %392, %v276
        %v394 = vpop.permute.xlu0 %393
        %397 = vset.pattern.permute.xlu0 0
        %398 = vperm.xlu0 %397, %v277
        %v399 = vpop.permute.xlu0 %398
        %v401 = vlaneseq
        %v402 = vshrl.u32 %v401, 7
        %v403 = vsub.s32 0, %v402
        %v404 = vrot.slane %v355, %v403
        %v405 = vlaneseq
        %v406 = vshrl.u32 %v405, 7
        %v407 = vsub.s32 0, %v406
        %v408 = vrot.slane %v369, %v407
        %v409 = vlaneseq
        %v410 = vshrl.u32 %v409, 7
        %v411 = vsub.s32 0, %v410
        %v412 = vrot.slane %v377, %v411
        %v413 = vlaneseq
        %v414 = vshrl.u32 %v413, 7
        %v415 = vsub.s32 0, %v414
        %v416 = vrot.slane %v379, %v415
        %v417 = vlaneseq
        %v418 = vshrl.u32 %v417, 7
        %v419 = vsub.s32 0, %v418
        %v420 = vrot.slane %v362, %v419
        %v421 = vlaneseq
        %v422 = vshrl.u32 %v421, 7
        %v423 = vsub.s32 0, %v422
        %v424 = vrot.slane %v376, %v423
        %v425 = vlaneseq
        %v426 = vshrl.u32 %v425, 7
        %v427 = vsub.s32 0, %v426
        %v428 = vrot.slane %v378, %v427
        %v429 = vlaneseq
        %v430 = vshrl.u32 %v429, 7
        %v431 = vsub.s32 0, %v430
        %v432 = vrot.slane %v380, %v431
        %v441 = vmul.f32 %v384, %v404
        %v442 = vmul.f32 %v389, %v404
        %v443 = vmul.f32 %v394, %v404
        %v444 = vmul.f32 %v399, %v404
        %v445 = vmul.f32 %v384, %v408
        %v446 = vmul.f32 %v389, %v408
        %v447 = vmul.f32 %v394, %v408
        %v448 = vmul.f32 %v399, %v408
        %v449 = vmul.f32 %v384, %v412
        %v450 = vmul.f32 %v389, %v412
        %v451 = vmul.f32 %v394, %v412
        %v452 = vmul.f32 %v399, %v412
        %v453 = vmul.f32 %v384, %v416
        %v454 = vmul.f32 %v389, %v416
        %v455 = vmul.f32 %v394, %v416
        %v456 = vmul.f32 %v399, %v416
        %v457 = vmul.f32 %v384, %v420
        %v458 = vmul.f32 %v389, %v420
        %v459 = vmul.f32 %v394, %v420
        %v460 = vmul.f32 %v399, %v420
        %v461 = vmul.f32 %v384, %v424
        %v462 = vmul.f32 %v389, %v424
        %v463 = vmul.f32 %v394, %v424
        %v464 = vmul.f32 %v399, %v424
        %v465 = vmul.f32 %v384, %v428
        %v466 = vmul.f32 %v389, %v428
        %v467 = vmul.f32 %v394, %v428
        %v468 = vmul.f32 %v399, %v428
        %v469 = vmul.f32 %v384, %v432
        %v470 = vmul.f32 %v389, %v432
        %v471 = vmul.f32 %v394, %v432
        %v472 = vmul.f32 %v399, %v432
        %v473 = vadd.f32 %v290, %v441
        %v474 = vadd.f32 %v295, %v442
        %v475 = vadd.f32 %v300, %v443
        %v476 = vadd.f32 %v305, %v444
        %v477 = vadd.f32 %v290, %v445
        %v478 = vadd.f32 %v295, %v446
        %v479 = vadd.f32 %v300, %v447
        %v480 = vadd.f32 %v305, %v448
        %v481 = vadd.f32 %v290, %v449
        %v482 = vadd.f32 %v295, %v450
        %v483 = vadd.f32 %v300, %v451
        %v484 = vadd.f32 %v305, %v452
        %v485 = vadd.f32 %v290, %v453
        %v486 = vadd.f32 %v295, %v454
        %v487 = vadd.f32 %v300, %v455
        %v488 = vadd.f32 %v305, %v456
        %v489 = vadd.f32 %v290, %v457
        %v490 = vadd.f32 %v295, %v458
        %v491 = vadd.f32 %v300, %v459
        %v492 = vadd.f32 %v305, %v460
        %v493 = vadd.f32 %v290, %v461
        %v494 = vadd.f32 %v295, %v462
        %v495 = vadd.f32 %v300, %v463
        %v496 = vadd.f32 %v305, %v464
        %v497 = vadd.f32 %v290, %v465
        %v498 = vadd.f32 %v295, %v466
        %v499 = vadd.f32 %v300, %v467
        %v500 = vadd.f32 %v305, %v468
        %v501 = vadd.f32 %v290, %v469
        %v502 = vadd.f32 %v295, %v470
        %v503 = vadd.f32 %v300, %v471
        %v504 = vadd.f32 %v305, %v472
        %506 = vset.pattern.permute.xlu0 0
        %507 = vperm.xlu0 %506, %v278
        %v508 = vpop.permute.xlu0 %507
        %511 = vset.pattern.permute.xlu0 0
        %512 = vperm.xlu0 %511, %v279
        %v513 = vpop.permute.xlu0 %512
        %516 = vset.pattern.permute.xlu0 0
        %517 = vperm.xlu0 %516, %v280
        %v518 = vpop.permute.xlu0 %517
        %521 = vset.pattern.permute.xlu0 0
        %522 = vperm.xlu0 %521, %v281
        %v523 = vpop.permute.xlu0 %522
        %v525 = vmul.f32 %v508, %v404
        %v526 = vmul.f32 %v513, %v404
        %v527 = vmul.f32 %v518, %v404
        %v528 = vmul.f32 %v523, %v404
        %v529 = vmul.f32 %v508, %v408
        %v530 = vmul.f32 %v513, %v408
        %v531 = vmul.f32 %v518, %v408
        %v532 = vmul.f32 %v523, %v408
        %v533 = vmul.f32 %v508, %v412
        %v534 = vmul.f32 %v513, %v412
        %v535 = vmul.f32 %v518, %v412
        %v536 = vmul.f32 %v523, %v412
        %v537 = vmul.f32 %v508, %v416
        %v538 = vmul.f32 %v513, %v416
        %v539 = vmul.f32 %v518, %v416
        %v540 = vmul.f32 %v523, %v416
        %v541 = vmul.f32 %v508, %v420
        %v542 = vmul.f32 %v513, %v420
        %v543 = vmul.f32 %v518, %v420
        %v544 = vmul.f32 %v523, %v420
        %v545 = vmul.f32 %v508, %v424
        %v546 = vmul.f32 %v513, %v424
        %v547 = vmul.f32 %v518, %v424
        %v548 = vmul.f32 %v523, %v424
        %v549 = vmul.f32 %v508, %v428
        %v550 = vmul.f32 %v513, %v428
        %v551 = vmul.f32 %v518, %v428
        %v552 = vmul.f32 %v523, %v428
        %v553 = vmul.f32 %v508, %v432
        %v554 = vmul.f32 %v513, %v432
        %v555 = vmul.f32 %v518, %v432
        %v556 = vmul.f32 %v523, %v432
        %v557 = vadd.f32 %v314, %v525
        %v558 = vadd.f32 %v319, %v526
        %v559 = vadd.f32 %v324, %v527
        %v560 = vadd.f32 %v329, %v528
        %v561 = vadd.f32 %v314, %v529
        %v562 = vadd.f32 %v319, %v530
        %v563 = vadd.f32 %v324, %v531
        %v564 = vadd.f32 %v329, %v532
        %v565 = vadd.f32 %v314, %v533
        %v566 = vadd.f32 %v319, %v534
        %v567 = vadd.f32 %v324, %v535
        %v568 = vadd.f32 %v329, %v536
        %v569 = vadd.f32 %v314, %v537
        %v570 = vadd.f32 %v319, %v538
        %v571 = vadd.f32 %v324, %v539
        %v572 = vadd.f32 %v329, %v540
        %v573 = vadd.f32 %v314, %v541
        %v574 = vadd.f32 %v319, %v542
        %v575 = vadd.f32 %v324, %v543
        %v576 = vadd.f32 %v329, %v544
        %v577 = vadd.f32 %v314, %v545
        %v578 = vadd.f32 %v319, %v546
        %v579 = vadd.f32 %v324, %v547
        %v580 = vadd.f32 %v329, %v548
        %v581 = vadd.f32 %v314, %v549
        %v582 = vadd.f32 %v319, %v550
        %v583 = vadd.f32 %v324, %v551
        %v584 = vadd.f32 %v329, %v552
        %v585 = vadd.f32 %v314, %v553
        %v586 = vadd.f32 %v319, %v554
        %v587 = vadd.f32 %v324, %v555
        %v588 = vadd.f32 %v329, %v556
        %v590 = vcombine.low %v272, %v273
        %v591 = vcombine.high %v272, %v273
        %v593 = vunpack.c.l.s4 1966171168
        %v594 = vunpack.c.0.s8 %v593
        %v595 = vlaneseq
        %v596 = vshrl.u32 %v595, 7
        %v597 = vsub.s32 %v594, %v596
        %v598 = vrot.slane %v590, %v597
        %v600 = vunpack.c.l.s4 1966171168
        %v601 = vunpack.c.0.s8 %v600
        %v602 = vlaneseq
        %v603 = vshrl.u32 %v602, 7
        %v604 = vsub.s32 %v601, %v603
        %v605 = vrot.slane %v591, %v604
        %v606 = vcombine.high %v598, %v598
        %v607 = vcombine.high %v605, %v605
        %v609 = vunpack.c.l.s4 1966171168
        %v610 = vunpack.c.0.s8 %v609
        %v611 = vlaneseq
        %v612 = vshrl.u32 %v611, 7
        %v613 = vsub.s32 %v610, %v612
        %v614 = vrot.slane %v598, %v613
        %v616 = vunpack.c.l.s4 1966171168
        %v617 = vunpack.c.0.s8 %v616
        %v618 = vlaneseq
        %v619 = vshrl.u32 %v618, 7
        %v620 = vsub.s32 %v617, %v619
        %v621 = vrot.slane %v605, %v620
        %v623 = vunpack.c.l.s4 1966171168
        %v624 = vunpack.c.0.s8 %v623
        %v625 = vlaneseq
        %v626 = vshrl.u32 %v625, 7
        %v627 = vsub.s32 %v624, %v626
        %v628 = vrot.slane %v606, %v627
        %v630 = vunpack.c.l.s4 1966171168
        %v631 = vunpack.c.0.s8 %v630
        %v632 = vlaneseq
        %v633 = vshrl.u32 %v632, 7
        %v634 = vsub.s32 %v631, %v633
        %v635 = vrot.slane %v607, %v634
        %v636 = vcombine.high %v614, %v614
        %v637 = vcombine.high %v621, %v621
        %v638 = vcombine.high %v628, %v628
        %v639 = vcombine.high %v635, %v635
        %640 = vset.pattern.permute.xlu0 1
        %641 = vperm.xlu0 %640, %v274
        %v642 = vpop.permute.xlu0 %641
        %644 = vset.pattern.permute.xlu0 1
        %645 = vperm.xlu0 %644, %v275
        %v646 = vpop.permute.xlu0 %645
        %648 = vset.pattern.permute.xlu0 1
        %649 = vperm.xlu0 %648, %v276
        %v650 = vpop.permute.xlu0 %649
        %652 = vset.pattern.permute.xlu0 1
        %653 = vperm.xlu0 %652, %v277
        %v654 = vpop.permute.xlu0 %653
        %v656 = vlaneseq
        %v657 = vshrl.u32 %v656, 7
        %v658 = vsub.s32 0, %v657
        %v659 = vrot.slane %v614, %v658
        %v660 = vlaneseq
        %v661 = vshrl.u32 %v660, 7
        %v662 = vsub.s32 1, %v661
        %v663 = vrot.slane %v614, %v662
        %v664 = vlaneseq
        %v665 = vshrl.u32 %v664, 7
        %v666 = vsub.s32 0, %v665
        %v667 = vrot.slane %v628, %v666
        %v668 = vlaneseq
        %v669 = vshrl.u32 %v668, 7
        %v670 = vsub.s32 1, %v669
        %v671 = vrot.slane %v628, %v670
        %v672 = vlaneseq
        %v673 = vshrl.u32 %v672, 7
        %v674 = vsub.s32 0, %v673
        %v675 = vrot.slane %v636, %v674
        %v676 = vlaneseq
        %v677 = vshrl.u32 %v676, 7
        %v678 = vsub.s32 1, %v677
        %v679 = vrot.slane %v636, %v678
        %v680 = vlaneseq
        %v681 = vshrl.u32 %v680, 7
        %v682 = vsub.s32 0, %v681
        %v683 = vrot.slane %v638, %v682
        %v684 = vlaneseq
        %v685 = vshrl.u32 %v684, 7
        %v686 = vsub.s32 1, %v685
        %v687 = vrot.slane %v638, %v686
        %v688 = vlaneseq
        %v689 = vshrl.u32 %v688, 7
        %v690 = vsub.s32 0, %v689
        %v691 = vrot.slane %v621, %v690
        %v692 = vlaneseq
        %v693 = vshrl.u32 %v692, 7
        %v694 = vsub.s32 1, %v693
        %v695 = vrot.slane %v621, %v694
        %v696 = vlaneseq
        %v697 = vshrl.u32 %v696, 7
        %v698 = vsub.s32 0, %v697
        %v699 = vrot.slane %v635, %v698
        %v700 = vlaneseq
        %v701 = vshrl.u32 %v700, 7
        %v702 = vsub.s32 1, %v701
        %v703 = vrot.slane %v635, %v702
        %v704 = vlaneseq
        %v705 = vshrl.u32 %v704, 7
        %v706 = vsub.s32 0, %v705
        %v707 = vrot.slane %v637, %v706
        %v708 = vlaneseq
        %v709 = vshrl.u32 %v708, 7
        %v710 = vsub.s32 1, %v709
        %v711 = vrot.slane %v637, %v710
        %v712 = vlaneseq
        %v713 = vshrl.u32 %v712, 7
        %v714 = vsub.s32 0, %v713
        %v715 = vrot.slane %v639, %v714
        %v716 = vlaneseq
        %v717 = vshrl.u32 %v716, 7
        %v718 = vsub.s32 1, %v717
        %v719 = vrot.slane %v639, %v718
        %v736 = vmul.f32 %v642, %v659
        %v737 = vmul.f32 %v642, %v663
        %v738 = vmul.f32 %v646, %v659
        %v739 = vmul.f32 %v646, %v663
        %v740 = vmul.f32 %v650, %v659
        %v741 = vmul.f32 %v650, %v663
        %v742 = vmul.f32 %v654, %v659
        %v743 = vmul.f32 %v654, %v663
        %v744 = vmul.f32 %v642, %v667
        %v745 = vmul.f32 %v642, %v671
        %v746 = vmul.f32 %v646, %v667
        %v747 = vmul.f32 %v646, %v671
        %v748 = vmul.f32 %v650, %v667
        %v749 = vmul.f32 %v650, %v671
        %v750 = vmul.f32 %v654, %v667
        %v751 = vmul.f32 %v654, %v671
        %v752 = vmul.f32 %v642, %v675
        %v753 = vmul.f32 %v642, %v679
        %v754 = vmul.f32 %v646, %v675
        %v755 = vmul.f32 %v646, %v679
        %v756 = vmul.f32 %v650, %v675
        %v757 = vmul.f32 %v650, %v679
        %v758 = vmul.f32 %v654, %v675
        %v759 = vmul.f32 %v654, %v679
        %v760 = vmul.f32 %v642, %v683
        %v761 = vmul.f32 %v642, %v687
        %v762 = vmul.f32 %v646, %v683
        %v763 = vmul.f32 %v646, %v687
        %v764 = vmul.f32 %v650, %v683
        %v765 = vmul.f32 %v650, %v687
        %v766 = vmul.f32 %v654, %v683
        %v767 = vmul.f32 %v654, %v687
        %v768 = vmul.f32 %v642, %v691
        %v769 = vmul.f32 %v642, %v695
        %v770 = vmul.f32 %v646, %v691
        %v771 = vmul.f32 %v646, %v695
        %v772 = vmul.f32 %v650, %v691
        %v773 = vmul.f32 %v650, %v695
        %v774 = vmul.f32 %v654, %v691
        %v775 = vmul.f32 %v654, %v695
        %v776 = vmul.f32 %v642, %v699
        %v777 = vmul.f32 %v642, %v703
        %v778 = vmul.f32 %v646, %v699
        %v779 = vmul.f32 %v646, %v703
        %v780 = vmul.f32 %v650, %v699
        %v781 = vmul.f32 %v650, %v703
        %v782 = vmul.f32 %v654, %v699
        %v783 = vmul.f32 %v654, %v703
        %v784 = vmul.f32 %v642, %v707
        %v785 = vmul.f32 %v642, %v711
        %v786 = vmul.f32 %v646, %v707
        %v787 = vmul.f32 %v646, %v711
        %v788 = vmul.f32 %v650, %v707
        %v789 = vmul.f32 %v650, %v711
        %v790 = vmul.f32 %v654, %v707
        %v791 = vmul.f32 %v654, %v711
        %v792 = vmul.f32 %v642, %v715
        %v793 = vmul.f32 %v642, %v719
        %v794 = vmul.f32 %v646, %v715
        %v795 = vmul.f32 %v646, %v719
        %v796 = vmul.f32 %v650, %v715
        %v797 = vmul.f32 %v650, %v719
        %v798 = vmul.f32 %v654, %v715
        %v799 = vmul.f32 %v654, %v719
        %864 = vrot.lane.b32.xlu0 %v736, 127
        %v865 = vpop.permute.xlu0 %864
        %866 = vrot.lane.b32.xlu0 %v737, 127
        %v867 = vpop.permute.xlu0 %866
        %868 = vrot.lane.b32.xlu0 %v738, 127
        %v869 = vpop.permute.xlu0 %868
        %870 = vrot.lane.b32.xlu0 %v739, 127
        %v871 = vpop.permute.xlu0 %870
        %872 = vrot.lane.b32.xlu0 %v740, 127
        %v873 = vpop.permute.xlu0 %872
        %874 = vrot.lane.b32.xlu0 %v741, 127
        %v875 = vpop.permute.xlu0 %874
        %876 = vrot.lane.b32.xlu0 %v742, 127
        %v877 = vpop.permute.xlu0 %876
        %878 = vrot.lane.b32.xlu0 %v743, 127
        %v879 = vpop.permute.xlu0 %878
        %880 = vrot.lane.b32.xlu0 %v744, 127
        %v881 = vpop.permute.xlu0 %880
        %882 = vrot.lane.b32.xlu0 %v745, 127
        %v883 = vpop.permute.xlu0 %882
        %884 = vrot.lane.b32.xlu0 %v746, 127
        %v885 = vpop.permute.xlu0 %884
        %886 = vrot.lane.b32.xlu0 %v747, 127
        %v887 = vpop.permute.xlu0 %886
        %888 = vrot.lane.b32.xlu0 %v748, 127
        %v889 = vpop.permute.xlu0 %888
        %890 = vrot.lane.b32.xlu0 %v749, 127
        %v891 = vpop.permute.xlu0 %890
        %892 = vrot.lane.b32.xlu0 %v750, 127
        %v893 = vpop.permute.xlu0 %892
        %894 = vrot.lane.b32.xlu0 %v751, 127
        %v895 = vpop.permute.xlu0 %894
        %896 = vrot.lane.b32.xlu0 %v752, 127
        %v897 = vpop.permute.xlu0 %896
        %898 = vrot.lane.b32.xlu0 %v753, 127
        %v899 = vpop.permute.xlu0 %898
        %900 = vrot.lane.b32.xlu0 %v754, 127
        %v901 = vpop.permute.xlu0 %900
        %902 = vrot.lane.b32.xlu0 %v755, 127
        %v903 = vpop.permute.xlu0 %902
        %904 = vrot.lane.b32.xlu0 %v756, 127
        %v905 = vpop.permute.xlu0 %904
        %906 = vrot.lane.b32.xlu0 %v757, 127
        %v907 = vpop.permute.xlu0 %906
        %908 = vrot.lane.b32.xlu0 %v758, 127
        %v909 = vpop.permute.xlu0 %908
        %910 = vrot.lane.b32.xlu0 %v759, 127
        %v911 = vpop.permute.xlu0 %910
        %912 = vrot.lane.b32.xlu0 %v760, 127
        %v913 = vpop.permute.xlu0 %912
        %914 = vrot.lane.b32.xlu0 %v761, 127
        %v915 = vpop.permute.xlu0 %914
        %916 = vrot.lane.b32.xlu0 %v762, 127
        %v917 = vpop.permute.xlu0 %916
        %918 = vrot.lane.b32.xlu0 %v763, 127
        %v919 = vpop.permute.xlu0 %918
        %920 = vrot.lane.b32.xlu0 %v764, 127
        %v921 = vpop.permute.xlu0 %920
        %922 = vrot.lane.b32.xlu0 %v765, 127
        %v923 = vpop.permute.xlu0 %922
        %924 = vrot.lane.b32.xlu0 %v766, 127
        %v925 = vpop.permute.xlu0 %924
        %926 = vrot.lane.b32.xlu0 %v767, 127
        %v927 = vpop.permute.xlu0 %926
        %928 = vrot.lane.b32.xlu0 %v768, 127
        %v929 = vpop.permute.xlu0 %928
        %930 = vrot.lane.b32.xlu0 %v769, 127
        %v931 = vpop.permute.xlu0 %930
        %932 = vrot.lane.b32.xlu0 %v770, 127
        %v933 = vpop.permute.xlu0 %932
        %934 = vrot.lane.b32.xlu0 %v771, 127
        %v935 = vpop.permute.xlu0 %934
        %936 = vrot.lane.b32.xlu0 %v772, 127
        %v937 = vpop.permute.xlu0 %936
        %938 = vrot.lane.b32.xlu0 %v773, 127
        %v939 = vpop.permute.xlu0 %938
        %940 = vrot.lane.b32.xlu0 %v774, 127
        %v941 = vpop.permute.xlu0 %940
        %942 = vrot.lane.b32.xlu0 %v775, 127
        %v943 = vpop.permute.xlu0 %942
        %944 = vrot.lane.b32.xlu0 %v776, 127
        %v945 = vpop.permute.xlu0 %944
        %946 = vrot.lane.b32.xlu0 %v777, 127
        %v947 = vpop.permute.xlu0 %946
        %948 = vrot.lane.b32.xlu0 %v778, 127
        %v949 = vpop.permute.xlu0 %948
        %950 = vrot.lane.b32.xlu0 %v779, 127
        %v951 = vpop.permute.xlu0 %950
        %952 = vrot.lane.b32.xlu0 %v780, 127
        %v953 = vpop.permute.xlu0 %952
        %954 = vrot.lane.b32.xlu0 %v781, 127
        %v955 = vpop.permute.xlu0 %954
        %956 = vrot.lane.b32.xlu0 %v782, 127
        %v957 = vpop.permute.xlu0 %956
        %958 = vrot.lane.b32.xlu0 %v783, 127
        %v959 = vpop.permute.xlu0 %958
        %960 = vrot.lane.b32.xlu0 %v784, 127
        %v961 = vpop.permute.xlu0 %960
        %962 = vrot.lane.b32.xlu0 %v785, 127
        %v963 = vpop.permute.xlu0 %962
        %964 = vrot.lane.b32.xlu0 %v786, 127
        %v965 = vpop.permute.xlu0 %964
        %966 = vrot.lane.b32.xlu0 %v787, 127
        %v967 = vpop.permute.xlu0 %966
        %968 = vrot.lane.b32.xlu0 %v788, 127
        %v969 = vpop.permute.xlu0 %968
        %970 = vrot.lane.b32.xlu0 %v789, 127
        %v971 = vpop.permute.xlu0 %970
        %972 = vrot.lane.b32.xlu0 %v790, 127
        %v973 = vpop.permute.xlu0 %972
        %974 = vrot.lane.b32.xlu0 %v791, 127
        %v975 = vpop.permute.xlu0 %974
        %976 = vrot.lane.b32.xlu0 %v792, 127
        %v977 = vpop.permute.xlu0 %976
        %978 = vrot.lane.b32.xlu0 %v793, 127
        %v979 = vpop.permute.xlu0 %978
        %980 = vrot.lane.b32.xlu0 %v794, 127
        %v981 = vpop.permute.xlu0 %980
        %982 = vrot.lane.b32.xlu0 %v795, 127
        %v983 = vpop.permute.xlu0 %982
        %984 = vrot.lane.b32.xlu0 %v796, 127
        %v985 = vpop.permute.xlu0 %984
        %986 = vrot.lane.b32.xlu0 %v797, 127
        %v987 = vpop.permute.xlu0 %986
        %988 = vrot.lane.b32.xlu0 %v798, 127
        %v989 = vpop.permute.xlu0 %988
        %990 = vrot.lane.b32.xlu0 %v799, 127
        %v991 = vpop.permute.xlu0 %990
        %vm992 = vcmask 1039360
        %v993 = vsel %vm992, %v865, %v867
        %v994 = vsel %vm992, %v869, %v871
        %v995 = vsel %vm992, %v873, %v875
        %v996 = vsel %vm992, %v877, %v879
        %v997 = vsel %vm992, %v881, %v883
        %v998 = vsel %vm992, %v885, %v887
        %v999 = vsel %vm992, %v889, %v891
        %v1000 = vsel %vm992, %v893, %v895
        %v1001 = vsel %vm992, %v897, %v899
        %v1002 = vsel %vm992, %v901, %v903
        %v1003 = vsel %vm992, %v905, %v907
        %v1004 = vsel %vm992, %v909, %v911
        %v1005 = vsel %vm992, %v913, %v915
        %v1006 = vsel %vm992, %v917, %v919
        %v1007 = vsel %vm992, %v921, %v923
        %v1008 = vsel %vm992, %v925, %v927
        %v1009 = vsel %vm992, %v929, %v931
        %v1010 = vsel %vm992, %v933, %v935
        %v1011 = vsel %vm992, %v937, %v939
        %v1012 = vsel %vm992, %v941, %v943
        %v1013 = vsel %vm992, %v945, %v947
        %v1014 = vsel %vm992, %v949, %v951
        %v1015 = vsel %vm992, %v953, %v955
        %v1016 = vsel %vm992, %v957, %v959
        %v1017 = vsel %vm992, %v961, %v963
        %v1018 = vsel %vm992, %v965, %v967
        %v1019 = vsel %vm992, %v969, %v971
        %v1020 = vsel %vm992, %v973, %v975
        %v1021 = vsel %vm992, %v977, %v979
        %v1022 = vsel %vm992, %v981, %v983
        %v1023 = vsel %vm992, %v985, %v987
        %v1024 = vsel %vm992, %v989, %v991
        %v1057 = vadd.f32 %v473, %v993
        %v1058 = vadd.f32 %v474, %v994
        %v1059 = vadd.f32 %v475, %v995
        %v1060 = vadd.f32 %v476, %v996
        %v1061 = vadd.f32 %v477, %v997
        %v1062 = vadd.f32 %v478, %v998
        %v1063 = vadd.f32 %v479, %v999
        %v1064 = vadd.f32 %v480, %v1000
        %v1065 = vadd.f32 %v481, %v1001
        %v1066 = vadd.f32 %v482, %v1002
        %v1067 = vadd.f32 %v483, %v1003
        %v1068 = vadd.f32 %v484, %v1004
        %v1069 = vadd.f32 %v485, %v1005
        %v1070 = vadd.f32 %v486, %v1006
        %v1071 = vadd.f32 %v487, %v1007
        %v1072 = vadd.f32 %v488, %v1008
        %v1073 = vadd.f32 %v489, %v1009
        %v1074 = vadd.f32 %v490, %v1010
        %v1075 = vadd.f32 %v491, %v1011
        %v1076 = vadd.f32 %v492, %v1012
        %v1077 = vadd.f32 %v493, %v1013
        %v1078 = vadd.f32 %v494, %v1014
        %v1079 = vadd.f32 %v495, %v1015
        %v1080 = vadd.f32 %v496, %v1016
        %v1081 = vadd.f32 %v497, %v1017
        %v1082 = vadd.f32 %v498, %v1018
        %v1083 = vadd.f32 %v499, %v1019
        %v1084 = vadd.f32 %v500, %v1020
        %v1085 = vadd.f32 %v501, %v1021
        %v1086 = vadd.f32 %v502, %v1022
        %v1087 = vadd.f32 %v503, %v1023
        %v1088 = vadd.f32 %v504, %v1024
        %1089 = vset.pattern.permute.xlu0 1
        %1090 = vperm.xlu0 %1089, %v278
        %v1091 = vpop.permute.xlu0 %1090
        %1093 = vset.pattern.permute.xlu0 1
        %1094 = vperm.xlu0 %1093, %v279
        %v1095 = vpop.permute.xlu0 %1094
        %1097 = vset.pattern.permute.xlu0 1
        %1098 = vperm.xlu0 %1097, %v280
        %v1099 = vpop.permute.xlu0 %1098
        %1101 = vset.pattern.permute.xlu0 1
        %1102 = vperm.xlu0 %1101, %v281
        %v1103 = vpop.permute.xlu0 %1102
        %v1105 = vmul.f32 %v1091, %v659
        %v1106 = vmul.f32 %v1091, %v663
        %v1107 = vmul.f32 %v1095, %v659
        %v1108 = vmul.f32 %v1095, %v663
        %v1109 = vmul.f32 %v1099, %v659
        %v1110 = vmul.f32 %v1099, %v663
        %v1111 = vmul.f32 %v1103, %v659
        %v1112 = vmul.f32 %v1103, %v663
        %v1113 = vmul.f32 %v1091, %v667
        %v1114 = vmul.f32 %v1091, %v671
        %v1115 = vmul.f32 %v1095, %v667
        %v1116 = vmul.f32 %v1095, %v671
        %v1117 = vmul.f32 %v1099, %v667
        %v1118 = vmul.f32 %v1099, %v671
        %v1119 = vmul.f32 %v1103, %v667
        %v1120 = vmul.f32 %v1103, %v671
        %v1121 = vmul.f32 %v1091, %v675
        %v1122 = vmul.f32 %v1091, %v679
        %v1123 = vmul.f32 %v1095, %v675
        %v1124 = vmul.f32 %v1095, %v679
        %v1125 = vmul.f32 %v1099, %v675
        %v1126 = vmul.f32 %v1099, %v679
        %v1127 = vmul.f32 %v1103, %v675
        %v1128 = vmul.f32 %v1103, %v679
        %v1129 = vmul.f32 %v1091, %v683
        %v1130 = vmul.f32 %v1091, %v687
        %v1131 = vmul.f32 %v1095, %v683
        %v1132 = vmul.f32 %v1095, %v687
        %v1133 = vmul.f32 %v1099, %v683
        %v1134 = vmul.f32 %v1099, %v687
        %v1135 = vmul.f32 %v1103, %v683
        %v1136 = vmul.f32 %v1103, %v687
        %v1137 = vmul.f32 %v1091, %v691
        %v1138 = vmul.f32 %v1091, %v695
        %v1139 = vmul.f32 %v1095, %v691
        %v1140 = vmul.f32 %v1095, %v695
        %v1141 = vmul.f32 %v1099, %v691
        %v1142 = vmul.f32 %v1099, %v695
        %v1143 = vmul.f32 %v1103, %v691
        %v1144 = vmul.f32 %v1103, %v695
        %v1145 = vmul.f32 %v1091, %v699
        %v1146 = vmul.f32 %v1091, %v703
        %v1147 = vmul.f32 %v1095, %v699
        %v1148 = vmul.f32 %v1095, %v703
        %v1149 = vmul.f32 %v1099, %v699
        %v1150 = vmul.f32 %v1099, %v703
        %v1151 = vmul.f32 %v1103, %v699
        %v1152 = vmul.f32 %v1103, %v703
        %v1153 = vmul.f32 %v1091, %v707
        %v1154 = vmul.f32 %v1091, %v711
        %v1155 = vmul.f32 %v1095, %v707
        %v1156 = vmul.f32 %v1095, %v711
        %v1157 = vmul.f32 %v1099, %v707
        %v1158 = vmul.f32 %v1099, %v711
        %v1159 = vmul.f32 %v1103, %v707
        %v1160 = vmul.f32 %v1103, %v711
        %v1161 = vmul.f32 %v1091, %v715
        %v1162 = vmul.f32 %v1091, %v719
        %v1163 = vmul.f32 %v1095, %v715
        %v1164 = vmul.f32 %v1095, %v719
        %v1165 = vmul.f32 %v1099, %v715
        %v1166 = vmul.f32 %v1099, %v719
        %v1167 = vmul.f32 %v1103, %v715
        %v1168 = vmul.f32 %v1103, %v719
        %1233 = vrot.lane.b32.xlu0 %v1105, 127
        %v1234 = vpop.permute.xlu0 %1233
        %1235 = vrot.lane.b32.xlu0 %v1106, 127
        %v1236 = vpop.permute.xlu0 %1235
        %1237 = vrot.lane.b32.xlu0 %v1107, 127
        %v1238 = vpop.permute.xlu0 %1237
        %1239 = vrot.lane.b32.xlu0 %v1108, 127
        %v1240 = vpop.permute.xlu0 %1239
        %1241 = vrot.lane.b32.xlu0 %v1109, 127
        %v1242 = vpop.permute.xlu0 %1241
        %1243 = vrot.lane.b32.xlu0 %v1110, 127
        %v1244 = vpop.permute.xlu0 %1243
        %1245 = vrot.lane.b32.xlu0 %v1111, 127
        %v1246 = vpop.permute.xlu0 %1245
        %1247 = vrot.lane.b32.xlu0 %v1112, 127
        %v1248 = vpop.permute.xlu0 %1247
        %1249 = vrot.lane.b32.xlu0 %v1113, 127
        %v1250 = vpop.permute.xlu0 %1249
        %1251 = vrot.lane.b32.xlu0 %v1114, 127
        %v1252 = vpop.permute.xlu0 %1251
        %1253 = vrot.lane.b32.xlu0 %v1115, 127
        %v1254 = vpop.permute.xlu0 %1253
        %1255 = vrot.lane.b32.xlu0 %v1116, 127
        %v1256 = vpop.permute.xlu0 %1255
        %1257 = vrot.lane.b32.xlu0 %v1117, 127
        %v1258 = vpop.permute.xlu0 %1257
        %1259 = vrot.lane.b32.xlu0 %v1118, 127
        %v1260 = vpop.permute.xlu0 %1259
        %1261 = vrot.lane.b32.xlu0 %v1119, 127
        %v1262 = vpop.permute.xlu0 %1261
        %1263 = vrot.lane.b32.xlu0 %v1120, 127
        %v1264 = vpop.permute.xlu0 %1263
        %1265 = vrot.lane.b32.xlu0 %v1121, 127
        %v1266 = vpop.permute.xlu0 %1265
        %1267 = vrot.lane.b32.xlu0 %v1122, 127
        %v1268 = vpop.permute.xlu0 %1267
        %1269 = vrot.lane.b32.xlu0 %v1123, 127
        %v1270 = vpop.permute.xlu0 %1269
        %1271 = vrot.lane.b32.xlu0 %v1124, 127
        %v1272 = vpop.permute.xlu0 %1271
        %1273 = vrot.lane.b32.xlu0 %v1125, 127
        %v1274 = vpop.permute.xlu0 %1273
        %1275 = vrot.lane.b32.xlu0 %v1126, 127
        %v1276 = vpop.permute.xlu0 %1275
        %1277 = vrot.lane.b32.xlu0 %v1127, 127
        %v1278 = vpop.permute.xlu0 %1277
        %1279 = vrot.lane.b32.xlu0 %v1128, 127
        %v1280 = vpop.permute.xlu0 %1279
        %1281 = vrot.lane.b32.xlu0 %v1129, 127
        %v1282 = vpop.permute.xlu0 %1281
        %1283 = vrot.lane.b32.xlu0 %v1130, 127
        %v1284 = vpop.permute.xlu0 %1283
        %1285 = vrot.lane.b32.xlu0 %v1131, 127
        %v1286 = vpop.permute.xlu0 %1285
        %1287 = vrot.lane.b32.xlu0 %v1132, 127
        %v1288 = vpop.permute.xlu0 %1287
        %1289 = vrot.lane.b32.xlu0 %v1133, 127
        %v1290 = vpop.permute.xlu0 %1289
        %1291 = vrot.lane.b32.xlu0 %v1134, 127
        %v1292 = vpop.permute.xlu0 %1291
        %1293 = vrot.lane.b32.xlu0 %v1135, 127
        %v1294 = vpop.permute.xlu0 %1293
        %1295 = vrot.lane.b32.xlu0 %v1136, 127
        %v1296 = vpop.permute.xlu0 %1295
        %1297 = vrot.lane.b32.xlu0 %v1137, 127
        %v1298 = vpop.permute.xlu0 %1297
        %1299 = vrot.lane.b32.xlu0 %v1138, 127
        %v1300 = vpop.permute.xlu0 %1299
        %1301 = vrot.lane.b32.xlu0 %v1139, 127
        %v1302 = vpop.permute.xlu0 %1301
        %1303 = vrot.lane.b32.xlu0 %v1140, 127
        %v1304 = vpop.permute.xlu0 %1303
        %1305 = vrot.lane.b32.xlu0 %v1141, 127
        %v1306 = vpop.permute.xlu0 %1305
        %1307 = vrot.lane.b32.xlu0 %v1142, 127
        %v1308 = vpop.permute.xlu0 %1307
        %1309 = vrot.lane.b32.xlu0 %v1143, 127
        %v1310 = vpop.permute.xlu0 %1309
        %1311 = vrot.lane.b32.xlu0 %v1144, 127
        %v1312 = vpop.permute.xlu0 %1311
        %1313 = vrot.lane.b32.xlu0 %v1145, 127
        %v1314 = vpop.permute.xlu0 %1313
        %1315 = vrot.lane.b32.xlu0 %v1146, 127
        %v1316 = vpop.permute.xlu0 %1315
        %1317 = vrot.lane.b32.xlu0 %v1147, 127
        %v1318 = vpop.permute.xlu0 %1317
        %1319 = vrot.lane.b32.xlu0 %v1148, 127
        %v1320 = vpop.permute.xlu0 %1319
        %1321 = vrot.lane.b32.xlu0 %v1149, 127
        %v1322 = vpop.permute.xlu0 %1321
        %1323 = vrot.lane.b32.xlu0 %v1150, 127
        %v1324 = vpop.permute.xlu0 %1323
        %1325 = vrot.lane.b32.xlu0 %v1151, 127
        %v1326 = vpop.permute.xlu0 %1325
        %1327 = vrot.lane.b32.xlu0 %v1152, 127
        %v1328 = vpop.permute.xlu0 %1327
        %1329 = vrot.lane.b32.xlu0 %v1153, 127
        %v1330 = vpop.permute.xlu0 %1329
        %1331 = vrot.lane.b32.xlu0 %v1154, 127
        %v1332 = vpop.permute.xlu0 %1331
        %1333 = vrot.lane.b32.xlu0 %v1155, 127
        %v1334 = vpop.permute.xlu0 %1333
        %1335 = vrot.lane.b32.xlu0 %v1156, 127
        %v1336 = vpop.permute.xlu0 %1335
        %1337 = vrot.lane.b32.xlu0 %v1157, 127
        %v1338 = vpop.permute.xlu0 %1337
        %1339 = vrot.lane.b32.xlu0 %v1158, 127
        %v1340 = vpop.permute.xlu0 %1339
        %1341 = vrot.lane.b32.xlu0 %v1159, 127
        %v1342 = vpop.permute.xlu0 %1341
        %1343 = vrot.lane.b32.xlu0 %v1160, 127
        %v1344 = vpop.permute.xlu0 %1343
        %1345 = vrot.lane.b32.xlu0 %v1161, 127
        %v1346 = vpop.permute.xlu0 %1345
        %1347 = vrot.lane.b32.xlu0 %v1162, 127
        %v1348 = vpop.permute.xlu0 %1347
        %1349 = vrot.lane.b32.xlu0 %v1163, 127
        %v1350 = vpop.permute.xlu0 %1349
        %1351 = vrot.lane.b32.xlu0 %v1164, 127
        %v1352 = vpop.permute.xlu0 %1351
        %1353 = vrot.lane.b32.xlu0 %v1165, 127
        %v1354 = vpop.permute.xlu0 %1353
        %1355 = vrot.lane.b32.xlu0 %v1166, 127
        %v1356 = vpop.permute.xlu0 %1355
        %1357 = vrot.lane.b32.xlu0 %v1167, 127
        %v1358 = vpop.permute.xlu0 %1357
        %1359 = vrot.lane.b32.xlu0 %v1168, 127
        %v1360 = vpop.permute.xlu0 %1359
        %v1361 = vsel %vm992, %v1234, %v1236
        %v1362 = vsel %vm992, %v1238, %v1240
        %v1363 = vsel %vm992, %v1242, %v1244
        %v1364 = vsel %vm992, %v1246, %v1248
        %v1365 = vsel %vm992, %v1250, %v1252
        %v1366 = vsel %vm992, %v1254, %v1256
        %v1367 = vsel %vm992, %v1258, %v1260
        %v1368 = vsel %vm992, %v1262, %v1264
        %v1369 = vsel %vm992, %v1266, %v1268
        %v1370 = vsel %vm992, %v1270, %v1272
        %v1371 = vsel %vm992, %v1274, %v1276
        %v1372 = vsel %vm992, %v1278, %v1280
        %v1373 = vsel %vm992, %v1282, %v1284
        %v1374 = vsel %vm992, %v1286, %v1288
        %v1375 = vsel %vm992, %v1290, %v1292
        %v1376 = vsel %vm992, %v1294, %v1296
        %v1377 = vsel %vm992, %v1298, %v1300
        %v1378 = vsel %vm992, %v1302, %v1304
        %v1379 = vsel %vm992, %v1306, %v1308
        %v1380 = vsel %vm992, %v1310, %v1312
        %v1381 = vsel %vm992, %v1314, %v1316
        %v1382 = vsel %vm992, %v1318, %v1320
        %v1383 = vsel %vm992, %v1322, %v1324
        %v1384 = vsel %vm992, %v1326, %v1328
        %v1385 = vsel %vm992, %v1330, %v1332
        %v1386 = vsel %vm992, %v1334, %v1336
        %v1387 = vsel %vm992, %v1338, %v1340
        %v1388 = vsel %vm992, %v1342, %v1344
        %v1389 = vsel %vm992, %v1346, %v1348
        %v1390 = vsel %vm992, %v1350, %v1352
        %v1391 = vsel %vm992, %v1354, %v1356
        %v1392 = vsel %vm992, %v1358, %v1360
        %v1425 = vadd.f32 %v557, %v1361
        %v1426 = vadd.f32 %v558, %v1362
        %v1427 = vadd.f32 %v559, %v1363
        %v1428 = vadd.f32 %v560, %v1364
        %v1429 = vadd.f32 %v561, %v1365
        %v1430 = vadd.f32 %v562, %v1366
        %v1431 = vadd.f32 %v563, %v1367
        %v1432 = vadd.f32 %v564, %v1368
        %v1433 = vadd.f32 %v565, %v1369
        %v1434 = vadd.f32 %v566, %v1370
        %v1435 = vadd.f32 %v567, %v1371
        %v1436 = vadd.f32 %v568, %v1372
        %v1437 = vadd.f32 %v569, %v1373
        %v1438 = vadd.f32 %v570, %v1374
        %v1439 = vadd.f32 %v571, %v1375
        %v1440 = vadd.f32 %v572, %v1376
        %v1441 = vadd.f32 %v573, %v1377
        %v1442 = vadd.f32 %v574, %v1378
        %v1443 = vadd.f32 %v575, %v1379
        %v1444 = vadd.f32 %v576, %v1380
        %v1445 = vadd.f32 %v577, %v1381
        %v1446 = vadd.f32 %v578, %v1382
        %v1447 = vadd.f32 %v579, %v1383
        %v1448 = vadd.f32 %v580, %v1384
        %v1449 = vadd.f32 %v581, %v1385
        %v1450 = vadd.f32 %v582, %v1386
        %v1451 = vadd.f32 %v583, %v1387
        %v1452 = vadd.f32 %v584, %v1388
        %v1453 = vadd.f32 %v585, %v1389
        %v1454 = vadd.f32 %v586, %v1390
        %v1455 = vadd.f32 %v587, %v1391
        %v1456 = vadd.f32 %v588, %v1392
        %1457 = vset.pattern.permute.xlu0 2
        %1458 = vperm.xlu0 %1457, %v274
        %v1459 = vpop.permute.xlu0 %1458
        %1461 = vset.pattern.permute.xlu0 2
        %1462 = vperm.xlu0 %1461, %v275
        %v1463 = vpop.permute.xlu0 %1462
        %1465 = vset.pattern.permute.xlu0 2
        %1466 = vperm.xlu0 %1465, %v276
        %v1467 = vpop.permute.xlu0 %1466
        %1469 = vset.pattern.permute.xlu0 2
        %1470 = vperm.xlu0 %1469, %v277
        %v1471 = vpop.permute.xlu0 %1470
        %v1473 = vmul.f32 %v1459, %v659
        %v1474 = vmul.f32 %v1459, %v663
        %v1475 = vmul.f32 %v1463, %v659
        %v1476 = vmul.f32 %v1463, %v663
        %v1477 = vmul.f32 %v1467, %v659
        %v1478 = vmul.f32 %v1467, %v663
        %v1479 = vmul.f32 %v1471, %v659
        %v1480 = vmul.f32 %v1471, %v663
        %v1481 = vmul.f32 %v1459, %v667
        %v1482 = vmul.f32 %v1459, %v671
        %v1483 = vmul.f32 %v1463, %v667
        %v1484 = vmul.f32 %v1463, %v671
        %v1485 = vmul.f32 %v1467, %v667
        %v1486 = vmul.f32 %v1467, %v671
        %v1487 = vmul.f32 %v1471, %v667
        %v1488 = vmul.f32 %v1471, %v671
        %v1489 = vmul.f32 %v1459, %v675
        %v1490 = vmul.f32 %v1459, %v679
        %v1491 = vmul.f32 %v1463, %v675
        %v1492 = vmul.f32 %v1463, %v679
        %v1493 = vmul.f32 %v1467, %v675
        %v1494 = vmul.f32 %v1467, %v679
        %v1495 = vmul.f32 %v1471, %v675
        %v1496 = vmul.f32 %v1471, %v679
        %v1497 = vmul.f32 %v1459, %v683
        %v1498 = vmul.f32 %v1459, %v687
        %v1499 = vmul.f32 %v1463, %v683
        %v1500 = vmul.f32 %v1463, %v687
        %v1501 = vmul.f32 %v1467, %v683
        %v1502 = vmul.f32 %v1467, %v687
        %v1503 = vmul.f32 %v1471, %v683
        %v1504 = vmul.f32 %v1471, %v687
        %v1505 = vmul.f32 %v1459, %v691
        %v1506 = vmul.f32 %v1459, %v695
        %v1507 = vmul.f32 %v1463, %v691
        %v1508 = vmul.f32 %v1463, %v695
        %v1509 = vmul.f32 %v1467, %v691
        %v1510 = vmul.f32 %v1467, %v695
        %v1511 = vmul.f32 %v1471, %v691
        %v1512 = vmul.f32 %v1471, %v695
        %v1513 = vmul.f32 %v1459, %v699
        %v1514 = vmul.f32 %v1459, %v703
        %v1515 = vmul.f32 %v1463, %v699
        %v1516 = vmul.f32 %v1463, %v703
        %v1517 = vmul.f32 %v1467, %v699
        %v1518 = vmul.f32 %v1467, %v703
        %v1519 = vmul.f32 %v1471, %v699
        %v1520 = vmul.f32 %v1471, %v703
        %v1521 = vmul.f32 %v1459, %v707
        %v1522 = vmul.f32 %v1459, %v711
        %v1523 = vmul.f32 %v1463, %v707
        %v1524 = vmul.f32 %v1463, %v711
        %v1525 = vmul.f32 %v1467, %v707
        %v1526 = vmul.f32 %v1467, %v711
        %v1527 = vmul.f32 %v1471, %v707
        %v1528 = vmul.f32 %v1471, %v711
        %v1529 = vmul.f32 %v1459, %v715
        %v1530 = vmul.f32 %v1459, %v719
        %v1531 = vmul.f32 %v1463, %v715
        %v1532 = vmul.f32 %v1463, %v719
        %v1533 = vmul.f32 %v1467, %v715
        %v1534 = vmul.f32 %v1467, %v719
        %v1535 = vmul.f32 %v1471, %v715
        %v1536 = vmul.f32 %v1471, %v719
        %1601 = vrot.lane.b32.xlu0 %v1473, 126
        %v1602 = vpop.permute.xlu0 %1601
        %1603 = vrot.lane.b32.xlu0 %v1474, 126
        %v1604 = vpop.permute.xlu0 %1603
        %1605 = vrot.lane.b32.xlu0 %v1475, 126
        %v1606 = vpop.permute.xlu0 %1605
        %1607 = vrot.lane.b32.xlu0 %v1476, 126
        %v1608 = vpop.permute.xlu0 %1607
        %1609 = vrot.lane.b32.xlu0 %v1477, 126
        %v1610 = vpop.permute.xlu0 %1609
        %1611 = vrot.lane.b32.xlu0 %v1478, 126
        %v1612 = vpop.permute.xlu0 %1611
        %1613 = vrot.lane.b32.xlu0 %v1479, 126
        %v1614 = vpop.permute.xlu0 %1613
        %1615 = vrot.lane.b32.xlu0 %v1480, 126
        %v1616 = vpop.permute.xlu0 %1615
        %1617 = vrot.lane.b32.xlu0 %v1481, 126
        %v1618 = vpop.permute.xlu0 %1617
        %1619 = vrot.lane.b32.xlu0 %v1482, 126
        %v1620 = vpop.permute.xlu0 %1619
        %1621 = vrot.lane.b32.xlu0 %v1483, 126
        %v1622 = vpop.permute.xlu0 %1621
        %1623 = vrot.lane.b32.xlu0 %v1484, 126
        %v1624 = vpop.permute.xlu0 %1623
        %1625 = vrot.lane.b32.xlu0 %v1485, 126
        %v1626 = vpop.permute.xlu0 %1625
        %1627 = vrot.lane.b32.xlu0 %v1486, 126
        %v1628 = vpop.permute.xlu0 %1627
        %1629 = vrot.lane.b32.xlu0 %v1487, 126
        %v1630 = vpop.permute.xlu0 %1629
        %1631 = vrot.lane.b32.xlu0 %v1488, 126
        %v1632 = vpop.permute.xlu0 %1631
        %1633 = vrot.lane.b32.xlu0 %v1489, 126
        %v1634 = vpop.permute.xlu0 %1633
        %1635 = vrot.lane.b32.xlu0 %v1490, 126
        %v1636 = vpop.permute.xlu0 %1635
        %1637 = vrot.lane.b32.xlu0 %v1491, 126
        %v1638 = vpop.permute.xlu0 %1637
        %1639 = vrot.lane.b32.xlu0 %v1492, 126
        %v1640 = vpop.permute.xlu0 %1639
        %1641 = vrot.lane.b32.xlu0 %v1493, 126
        %v1642 = vpop.permute.xlu0 %1641
        %1643 = vrot.lane.b32.xlu0 %v1494, 126
        %v1644 = vpop.permute.xlu0 %1643
        %1645 = vrot.lane.b32.xlu0 %v1495, 126
        %v1646 = vpop.permute.xlu0 %1645
        %1647 = vrot.lane.b32.xlu0 %v1496, 126
        %v1648 = vpop.permute.xlu0 %1647
        %1649 = vrot.lane.b32.xlu0 %v1497, 126
        %v1650 = vpop.permute.xlu0 %1649
        %1651 = vrot.lane.b32.xlu0 %v1498, 126
        %v1652 = vpop.permute.xlu0 %1651
        %1653 = vrot.lane.b32.xlu0 %v1499, 126
        %v1654 = vpop.permute.xlu0 %1653
        %1655 = vrot.lane.b32.xlu0 %v1500, 126
        %v1656 = vpop.permute.xlu0 %1655
        %1657 = vrot.lane.b32.xlu0 %v1501, 126
        %v1658 = vpop.permute.xlu0 %1657
        %1659 = vrot.lane.b32.xlu0 %v1502, 126
        %v1660 = vpop.permute.xlu0 %1659
        %1661 = vrot.lane.b32.xlu0 %v1503, 126
        %v1662 = vpop.permute.xlu0 %1661
        %1663 = vrot.lane.b32.xlu0 %v1504, 126
        %v1664 = vpop.permute.xlu0 %1663
        %1665 = vrot.lane.b32.xlu0 %v1505, 126
        %v1666 = vpop.permute.xlu0 %1665
        %1667 = vrot.lane.b32.xlu0 %v1506, 126
        %v1668 = vpop.permute.xlu0 %1667
        %1669 = vrot.lane.b32.xlu0 %v1507, 126
        %v1670 = vpop.permute.xlu0 %1669
        %1671 = vrot.lane.b32.xlu0 %v1508, 126
        %v1672 = vpop.permute.xlu0 %1671
        %1673 = vrot.lane.b32.xlu0 %v1509, 126
        %v1674 = vpop.permute.xlu0 %1673
        %1675 = vrot.lane.b32.xlu0 %v1510, 126
        %v1676 = vpop.permute.xlu0 %1675
        %1677 = vrot.lane.b32.xlu0 %v1511, 126
        %v1678 = vpop.permute.xlu0 %1677
        %1679 = vrot.lane.b32.xlu0 %v1512, 126
        %v1680 = vpop.permute.xlu0 %1679
        %1681 = vrot.lane.b32.xlu0 %v1513, 126
        %v1682 = vpop.permute.xlu0 %1681
        %1683 = vrot.lane.b32.xlu0 %v1514, 126
        %v1684 = vpop.permute.xlu0 %1683
        %1685 = vrot.lane.b32.xlu0 %v1515, 126
        %v1686 = vpop.permute.xlu0 %1685
        %1687 = vrot.lane.b32.xlu0 %v1516, 126
        %v1688 = vpop.permute.xlu0 %1687
        %1689 = vrot.lane.b32.xlu0 %v1517, 126
        %v1690 = vpop.permute.xlu0 %1689
        %1691 = vrot.lane.b32.xlu0 %v1518, 126
        %v1692 = vpop.permute.xlu0 %1691
        %1693 = vrot.lane.b32.xlu0 %v1519, 126
        %v1694 = vpop.permute.xlu0 %1693
        %1695 = vrot.lane.b32.xlu0 %v1520, 126
        %v1696 = vpop.permute.xlu0 %1695
        %1697 = vrot.lane.b32.xlu0 %v1521, 126
        %v1698 = vpop.permute.xlu0 %1697
        %1699 = vrot.lane.b32.xlu0 %v1522, 126
        %v1700 = vpop.permute.xlu0 %1699
        %1701 = vrot.lane.b32.xlu0 %v1523, 126
        %v1702 = vpop.permute.xlu0 %1701
        %1703 = vrot.lane.b32.xlu0 %v1524, 126
        %v1704 = vpop.permute.xlu0 %1703
        %1705 = vrot.lane.b32.xlu0 %v1525, 126
        %v1706 = vpop.permute.xlu0 %1705
        %1707 = vrot.lane.b32.xlu0 %v1526, 126
        %v1708 = vpop.permute.xlu0 %1707
        %1709 = vrot.lane.b32.xlu0 %v1527, 126
        %v1710 = vpop.permute.xlu0 %1709
        %1711 = vrot.lane.b32.xlu0 %v1528, 126
        %v1712 = vpop.permute.xlu0 %1711
        %1713 = vrot.lane.b32.xlu0 %v1529, 126
        %v1714 = vpop.permute.xlu0 %1713
        %1715 = vrot.lane.b32.xlu0 %v1530, 126
        %v1716 = vpop.permute.xlu0 %1715
        %1717 = vrot.lane.b32.xlu0 %v1531, 126
        %v1718 = vpop.permute.xlu0 %1717
        %1719 = vrot.lane.b32.xlu0 %v1532, 126
        %v1720 = vpop.permute.xlu0 %1719
        %1721 = vrot.lane.b32.xlu0 %v1533, 126
        %v1722 = vpop.permute.xlu0 %1721
        %1723 = vrot.lane.b32.xlu0 %v1534, 126
        %v1724 = vpop.permute.xlu0 %1723
        %1725 = vrot.lane.b32.xlu0 %v1535, 126
        %v1726 = vpop.permute.xlu0 %1725
        %1727 = vrot.lane.b32.xlu0 %v1536, 126
        %v1728 = vpop.permute.xlu0 %1727
        %vm1729 = vcmask 1031168
        %v1730 = vsel %vm1729, %v1602, %v1604
        %v1731 = vsel %vm1729, %v1606, %v1608
        %v1732 = vsel %vm1729, %v1610, %v1612
        %v1733 = vsel %vm1729, %v1614, %v1616
        %v1734 = vsel %vm1729, %v1618, %v1620
        %v1735 = vsel %vm1729, %v1622, %v1624
        %v1736 = vsel %vm1729, %v1626, %v1628
        %v1737 = vsel %vm1729, %v1630, %v1632
        %v1738 = vsel %vm1729, %v1634, %v1636
        %v1739 = vsel %vm1729, %v1638, %v1640
        %v1740 = vsel %vm1729, %v1642, %v1644
        %v1741 = vsel %vm1729, %v1646, %v1648
        %v1742 = vsel %vm1729, %v1650, %v1652
        %v1743 = vsel %vm1729, %v1654, %v1656
        %v1744 = vsel %vm1729, %v1658, %v1660
        %v1745 = vsel %vm1729, %v1662, %v1664
        %v1746 = vsel %vm1729, %v1666, %v1668
        %v1747 = vsel %vm1729, %v1670, %v1672
        %v1748 = vsel %vm1729, %v1674, %v1676
        %v1749 = vsel %vm1729, %v1678, %v1680
        %v1750 = vsel %vm1729, %v1682, %v1684
        %v1751 = vsel %vm1729, %v1686, %v1688
        %v1752 = vsel %vm1729, %v1690, %v1692
        %v1753 = vsel %vm1729, %v1694, %v1696
        %v1754 = vsel %vm1729, %v1698, %v1700
        %v1755 = vsel %vm1729, %v1702, %v1704
        %v1756 = vsel %vm1729, %v1706, %v1708
        %v1757 = vsel %vm1729, %v1710, %v1712
        %v1758 = vsel %vm1729, %v1714, %v1716
        %v1759 = vsel %vm1729, %v1718, %v1720
        %v1760 = vsel %vm1729, %v1722, %v1724
        %v1761 = vsel %vm1729, %v1726, %v1728
        %v1794 = vadd.f32 %v1057, %v1730
        %v1795 = vadd.f32 %v1058, %v1731
        %v1796 = vadd.f32 %v1059, %v1732
        %v1797 = vadd.f32 %v1060, %v1733
        %v1798 = vadd.f32 %v1061, %v1734
        %v1799 = vadd.f32 %v1062, %v1735
        %v1800 = vadd.f32 %v1063, %v1736
        %v1801 = vadd.f32 %v1064, %v1737
        %v1802 = vadd.f32 %v1065, %v1738
        %v1803 = vadd.f32 %v1066, %v1739
        %v1804 = vadd.f32 %v1067, %v1740
        %v1805 = vadd.f32 %v1068, %v1741
        %v1806 = vadd.f32 %v1069, %v1742
        %v1807 = vadd.f32 %v1070, %v1743
        %v1808 = vadd.f32 %v1071, %v1744
        %v1809 = vadd.f32 %v1072, %v1745
        %v1810 = vadd.f32 %v1073, %v1746
        %v1811 = vadd.f32 %v1074, %v1747
        %v1812 = vadd.f32 %v1075, %v1748
        %v1813 = vadd.f32 %v1076, %v1749
        %v1814 = vadd.f32 %v1077, %v1750
        %v1815 = vadd.f32 %v1078, %v1751
        %v1816 = vadd.f32 %v1079, %v1752
        %v1817 = vadd.f32 %v1080, %v1753
        %v1818 = vadd.f32 %v1081, %v1754
        %v1819 = vadd.f32 %v1082, %v1755
        %v1820 = vadd.f32 %v1083, %v1756
        %v1821 = vadd.f32 %v1084, %v1757
        %v1822 = vadd.f32 %v1085, %v1758
        %v1823 = vadd.f32 %v1086, %v1759
        %v1824 = vadd.f32 %v1087, %v1760
        %v1825 = vadd.f32 %v1088, %v1761
        %1826 = vset.pattern.permute.xlu0 2
        %1827 = vperm.xlu0 %1826, %v278
        %v1828 = vpop.permute.xlu0 %1827
        %1830 = vset.pattern.permute.xlu0 2
        %1831 = vperm.xlu0 %1830, %v279
        %v1832 = vpop.permute.xlu0 %1831
        %1834 = vset.pattern.permute.xlu0 2
        %1835 = vperm.xlu0 %1834, %v280
        %v1836 = vpop.permute.xlu0 %1835
        %1838 = vset.pattern.permute.xlu0 2
        %1839 = vperm.xlu0 %1838, %v281
        %v1840 = vpop.permute.xlu0 %1839
        %v1842 = vmul.f32 %v1828, %v659
        %v1843 = vmul.f32 %v1828, %v663
        %v1844 = vmul.f32 %v1832, %v659
        %v1845 = vmul.f32 %v1832, %v663
        %v1846 = vmul.f32 %v1836, %v659
        %v1847 = vmul.f32 %v1836, %v663
        %v1848 = vmul.f32 %v1840, %v659
        %v1849 = vmul.f32 %v1840, %v663
        %v1850 = vmul.f32 %v1828, %v667
        %v1851 = vmul.f32 %v1828, %v671
        %v1852 = vmul.f32 %v1832, %v667
        %v1853 = vmul.f32 %v1832, %v671
        %v1854 = vmul.f32 %v1836, %v667
        %v1855 = vmul.f32 %v1836, %v671
        %v1856 = vmul.f32 %v1840, %v667
        %v1857 = vmul.f32 %v1840, %v671
        %v1858 = vmul.f32 %v1828, %v675
        %v1859 = vmul.f32 %v1828, %v679
        %v1860 = vmul.f32 %v1832, %v675
        %v1861 = vmul.f32 %v1832, %v679
        %v1862 = vmul.f32 %v1836, %v675
        %v1863 = vmul.f32 %v1836, %v679
        %v1864 = vmul.f32 %v1840, %v675
        %v1865 = vmul.f32 %v1840, %v679
        %v1866 = vmul.f32 %v1828, %v683
        %v1867 = vmul.f32 %v1828, %v687
        %v1868 = vmul.f32 %v1832, %v683
        %v1869 = vmul.f32 %v1832, %v687
        %v1870 = vmul.f32 %v1836, %v683
        %v1871 = vmul.f32 %v1836, %v687
        %v1872 = vmul.f32 %v1840, %v683
        %v1873 = vmul.f32 %v1840, %v687
        %v1874 = vmul.f32 %v1828, %v691
        %v1875 = vmul.f32 %v1828, %v695
        %v1876 = vmul.f32 %v1832, %v691
        %v1877 = vmul.f32 %v1832, %v695
        %v1878 = vmul.f32 %v1836, %v691
        %v1879 = vmul.f32 %v1836, %v695
        %v1880 = vmul.f32 %v1840, %v691
        %v1881 = vmul.f32 %v1840, %v695
        %v1882 = vmul.f32 %v1828, %v699
        %v1883 = vmul.f32 %v1828, %v703
        %v1884 = vmul.f32 %v1832, %v699
        %v1885 = vmul.f32 %v1832, %v703
        %v1886 = vmul.f32 %v1836, %v699
        %v1887 = vmul.f32 %v1836, %v703
        %v1888 = vmul.f32 %v1840, %v699
        %v1889 = vmul.f32 %v1840, %v703
        %v1890 = vmul.f32 %v1828, %v707
        %v1891 = vmul.f32 %v1828, %v711
        %v1892 = vmul.f32 %v1832, %v707
        %v1893 = vmul.f32 %v1832, %v711
        %v1894 = vmul.f32 %v1836, %v707
        %v1895 = vmul.f32 %v1836, %v711
        %v1896 = vmul.f32 %v1840, %v707
        %v1897 = vmul.f32 %v1840, %v711
        %v1898 = vmul.f32 %v1828, %v715
        %v1899 = vmul.f32 %v1828, %v719
        %v1900 = vmul.f32 %v1832, %v715
        %v1901 = vmul.f32 %v1832, %v719
        %v1902 = vmul.f32 %v1836, %v715
        %v1903 = vmul.f32 %v1836, %v719
        %v1904 = vmul.f32 %v1840, %v715
        %v1905 = vmul.f32 %v1840, %v719
        %1970 = vrot.lane.b32.xlu0 %v1842, 126
        %v1971 = vpop.permute.xlu0 %1970
        %1972 = vrot.lane.b32.xlu0 %v1843, 126
        %v1973 = vpop.permute.xlu0 %1972
        %1974 = vrot.lane.b32.xlu0 %v1844, 126
        %v1975 = vpop.permute.xlu0 %1974
        %1976 = vrot.lane.b32.xlu0 %v1845, 126
        %v1977 = vpop.permute.xlu0 %1976
        %1978 = vrot.lane.b32.xlu0 %v1846, 126
        %v1979 = vpop.permute.xlu0 %1978
        %1980 = vrot.lane.b32.xlu0 %v1847, 126
        %v1981 = vpop.permute.xlu0 %1980
        %1982 = vrot.lane.b32.xlu0 %v1848, 126
        %v1983 = vpop.permute.xlu0 %1982
        %1984 = vrot.lane.b32.xlu0 %v1849, 126
        %v1985 = vpop.permute.xlu0 %1984
        %1986 = vrot.lane.b32.xlu0 %v1850, 126
        %v1987 = vpop.permute.xlu0 %1986
        %1988 = vrot.lane.b32.xlu0 %v1851, 126
        %v1989 = vpop.permute.xlu0 %1988
        %1990 = vrot.lane.b32.xlu0 %v1852, 126
        %v1991 = vpop.permute.xlu0 %1990
        %1992 = vrot.lane.b32.xlu0 %v1853, 126
        %v1993 = vpop.permute.xlu0 %1992
        %1994 = vrot.lane.b32.xlu0 %v1854, 126
        %v1995 = vpop.permute.xlu0 %1994
        %1996 = vrot.lane.b32.xlu0 %v1855, 126
        %v1997 = vpop.permute.xlu0 %1996
        %1998 = vrot.lane.b32.xlu0 %v1856, 126
        %v1999 = vpop.permute.xlu0 %1998
        %2000 = vrot.lane.b32.xlu0 %v1857, 126
        %v2001 = vpop.permute.xlu0 %2000
        %2002 = vrot.lane.b32.xlu0 %v1858, 126
        %v2003 = vpop.permute.xlu0 %2002
        %2004 = vrot.lane.b32.xlu0 %v1859, 126
        %v2005 = vpop.permute.xlu0 %2004
        %2006 = vrot.lane.b32.xlu0 %v1860, 126
        %v2007 = vpop.permute.xlu0 %2006
        %2008 = vrot.lane.b32.xlu0 %v1861, 126
        %v2009 = vpop.permute.xlu0 %2008
        %2010 = vrot.lane.b32.xlu0 %v1862, 126
        %v2011 = vpop.permute.xlu0 %2010
        %2012 = vrot.lane.b32.xlu0 %v1863, 126
        %v2013 = vpop.permute.xlu0 %2012
        %2014 = vrot.lane.b32.xlu0 %v1864, 126
        %v2015 = vpop.permute.xlu0 %2014
        %2016 = vrot.lane.b32.xlu0 %v1865, 126
        %v2017 = vpop.permute.xlu0 %2016
        %2018 = vrot.lane.b32.xlu0 %v1866, 126
        %v2019 = vpop.permute.xlu0 %2018
        %2020 = vrot.lane.b32.xlu0 %v1867, 126
        %v2021 = vpop.permute.xlu0 %2020
        %2022 = vrot.lane.b32.xlu0 %v1868, 126
        %v2023 = vpop.permute.xlu0 %2022
        %2024 = vrot.lane.b32.xlu0 %v1869, 126
        %v2025 = vpop.permute.xlu0 %2024
        %2026 = vrot.lane.b32.xlu0 %v1870, 126
        %v2027 = vpop.permute.xlu0 %2026
        %2028 = vrot.lane.b32.xlu0 %v1871, 126
        %v2029 = vpop.permute.xlu0 %2028
        %2030 = vrot.lane.b32.xlu0 %v1872, 126
        %v2031 = vpop.permute.xlu0 %2030
        %2032 = vrot.lane.b32.xlu0 %v1873, 126
        %v2033 = vpop.permute.xlu0 %2032
        %2034 = vrot.lane.b32.xlu0 %v1874, 126
        %v2035 = vpop.permute.xlu0 %2034
        %2036 = vrot.lane.b32.xlu0 %v1875, 126
        %v2037 = vpop.permute.xlu0 %2036
        %2038 = vrot.lane.b32.xlu0 %v1876, 126
        %v2039 = vpop.permute.xlu0 %2038
        %2040 = vrot.lane.b32.xlu0 %v1877, 126
        %v2041 = vpop.permute.xlu0 %2040
        %2042 = vrot.lane.b32.xlu0 %v1878, 126
        %v2043 = vpop.permute.xlu0 %2042
        %2044 = vrot.lane.b32.xlu0 %v1879, 126
        %v2045 = vpop.permute.xlu0 %2044
        %2046 = vrot.lane.b32.xlu0 %v1880, 126
        %v2047 = vpop.permute.xlu0 %2046
        %2048 = vrot.lane.b32.xlu0 %v1881, 126
        %v2049 = vpop.permute.xlu0 %2048
        %2050 = vrot.lane.b32.xlu0 %v1882, 126
        %v2051 = vpop.permute.xlu0 %2050
        %2052 = vrot.lane.b32.xlu0 %v1883, 126
        %v2053 = vpop.permute.xlu0 %2052
        %2054 = vrot.lane.b32.xlu0 %v1884, 126
        %v2055 = vpop.permute.xlu0 %2054
        %2056 = vrot.lane.b32.xlu0 %v1885, 126
        %v2057 = vpop.permute.xlu0 %2056
        %2058 = vrot.lane.b32.xlu0 %v1886, 126
        %v2059 = vpop.permute.xlu0 %2058
        %2060 = vrot.lane.b32.xlu0 %v1887, 126
        %v2061 = vpop.permute.xlu0 %2060
        %2062 = vrot.lane.b32.xlu0 %v1888, 126
        %v2063 = vpop.permute.xlu0 %2062
        %2064 = vrot.lane.b32.xlu0 %v1889, 126
        %v2065 = vpop.permute.xlu0 %2064
        %2066 = vrot.lane.b32.xlu0 %v1890, 126
        %v2067 = vpop.permute.xlu0 %2066
        %2068 = vrot.lane.b32.xlu0 %v1891, 126
        %v2069 = vpop.permute.xlu0 %2068
        %2070 = vrot.lane.b32.xlu0 %v1892, 126
        %v2071 = vpop.permute.xlu0 %2070
        %2072 = vrot.lane.b32.xlu0 %v1893, 126
        %v2073 = vpop.permute.xlu0 %2072
        %2074 = vrot.lane.b32.xlu0 %v1894, 126
        %v2075 = vpop.permute.xlu0 %2074
        %2076 = vrot.lane.b32.xlu0 %v1895, 126
        %v2077 = vpop.permute.xlu0 %2076
        %2078 = vrot.lane.b32.xlu0 %v1896, 126
        %v2079 = vpop.permute.xlu0 %2078
        %2080 = vrot.lane.b32.xlu0 %v1897, 126
        %v2081 = vpop.permute.xlu0 %2080
        %2082 = vrot.lane.b32.xlu0 %v1898, 126
        %v2083 = vpop.permute.xlu0 %2082
        %2084 = vrot.lane.b32.xlu0 %v1899, 126
        %v2085 = vpop.permute.xlu0 %2084
        %2086 = vrot.lane.b32.xlu0 %v1900, 126
        %v2087 = vpop.permute.xlu0 %2086
        %2088 = vrot.lane.b32.xlu0 %v1901, 126
        %v2089 = vpop.permute.xlu0 %2088
        %2090 = vrot.lane.b32.xlu0 %v1902, 126
        %v2091 = vpop.permute.xlu0 %2090
        %2092 = vrot.lane.b32.xlu0 %v1903, 126
        %v2093 = vpop.permute.xlu0 %2092
        %2094 = vrot.lane.b32.xlu0 %v1904, 126
        %v2095 = vpop.permute.xlu0 %2094
        %2096 = vrot.lane.b32.xlu0 %v1905, 126
        %v2097 = vpop.permute.xlu0 %2096
        %v2098 = vsel %vm1729, %v1971, %v1973
        %v2099 = vsel %vm1729, %v1975, %v1977
        %v2100 = vsel %vm1729, %v1979, %v1981
        %v2101 = vsel %vm1729, %v1983, %v1985
        %v2102 = vsel %vm1729, %v1987, %v1989
        %v2103 = vsel %vm1729, %v1991, %v1993
        %v2104 = vsel %vm1729, %v1995, %v1997
        %v2105 = vsel %vm1729, %v1999, %v2001
        %v2106 = vsel %vm1729, %v2003, %v2005
        %v2107 = vsel %vm1729, %v2007, %v2009
        %v2108 = vsel %vm1729, %v2011, %v2013
        %v2109 = vsel %vm1729, %v2015, %v2017
        %v2110 = vsel %vm1729, %v2019, %v2021
        %v2111 = vsel %vm1729, %v2023, %v2025
        %v2112 = vsel %vm1729, %v2027, %v2029
        %v2113 = vsel %vm1729, %v2031, %v2033
        %v2114 = vsel %vm1729, %v2035, %v2037
        %v2115 = vsel %vm1729, %v2039, %v2041
        %v2116 = vsel %vm1729, %v2043, %v2045
        %v2117 = vsel %vm1729, %v2047, %v2049
        %v2118 = vsel %vm1729, %v2051, %v2053
        %v2119 = vsel %vm1729, %v2055, %v2057
        %v2120 = vsel %vm1729, %v2059, %v2061
        %v2121 = vsel %vm1729, %v2063, %v2065
        %v2122 = vsel %vm1729, %v2067, %v2069
        %v2123 = vsel %vm1729, %v2071, %v2073
        %v2124 = vsel %vm1729, %v2075, %v2077
        %v2125 = vsel %vm1729, %v2079, %v2081
        %v2126 = vsel %vm1729, %v2083, %v2085
        %v2127 = vsel %vm1729, %v2087, %v2089
        %v2128 = vsel %vm1729, %v2091, %v2093
        %v2129 = vsel %vm1729, %v2095, %v2097
        %v2162 = vadd.f32 %v1425, %v2098
        %v2163 = vadd.f32 %v1426, %v2099
        %v2164 = vadd.f32 %v1427, %v2100
        %v2165 = vadd.f32 %v1428, %v2101
        %v2166 = vadd.f32 %v1429, %v2102
        %v2167 = vadd.f32 %v1430, %v2103
        %v2168 = vadd.f32 %v1431, %v2104
        %v2169 = vadd.f32 %v1432, %v2105
        %v2170 = vadd.f32 %v1433, %v2106
        %v2171 = vadd.f32 %v1434, %v2107
        %v2172 = vadd.f32 %v1435, %v2108
        %v2173 = vadd.f32 %v1436, %v2109
        %v2174 = vadd.f32 %v1437, %v2110
        %v2175 = vadd.f32 %v1438, %v2111
        %v2176 = vadd.f32 %v1439, %v2112
        %v2177 = vadd.f32 %v1440, %v2113
        %v2178 = vadd.f32 %v1441, %v2114
        %v2179 = vadd.f32 %v1442, %v2115
        %v2180 = vadd.f32 %v1443, %v2116
        %v2181 = vadd.f32 %v1444, %v2117
        %v2182 = vadd.f32 %v1445, %v2118
        %v2183 = vadd.f32 %v1446, %v2119
        %v2184 = vadd.f32 %v1447, %v2120
        %v2185 = vadd.f32 %v1448, %v2121
        %v2186 = vadd.f32 %v1449, %v2122
        %v2187 = vadd.f32 %v1450, %v2123
        %v2188 = vadd.f32 %v1451, %v2124
        %v2189 = vadd.f32 %v1452, %v2125
        %v2190 = vadd.f32 %v1453, %v2126
        %v2191 = vadd.f32 %v1454, %v2127
        %v2192 = vadd.f32 %v1455, %v2128
        %v2193 = vadd.f32 %v1456, %v2129
        %2194 = vset.pattern.permute.xlu0 3
        %2195 = vperm.xlu0 %2194, %v274
        %v2196 = vpop.permute.xlu0 %2195
        %2198 = vset.pattern.permute.xlu0 3
        %2199 = vperm.xlu0 %2198, %v275
        %v2200 = vpop.permute.xlu0 %2199
        %2202 = vset.pattern.permute.xlu0 3
        %2203 = vperm.xlu0 %2202, %v276
        %v2204 = vpop.permute.xlu0 %2203
        %2206 = vset.pattern.permute.xlu0 3
        %2207 = vperm.xlu0 %2206, %v277
        %v2208 = vpop.permute.xlu0 %2207
        %v2210 = vmul.f32 %v2196, %v659
        %v2211 = vmul.f32 %v2196, %v663
        %v2212 = vmul.f32 %v2200, %v659
        %v2213 = vmul.f32 %v2200, %v663
        %v2214 = vmul.f32 %v2204, %v659
        %v2215 = vmul.f32 %v2204, %v663
        %v2216 = vmul.f32 %v2208, %v659
        %v2217 = vmul.f32 %v2208, %v663
        %v2218 = vmul.f32 %v2196, %v667
        %v2219 = vmul.f32 %v2196, %v671
        %v2220 = vmul.f32 %v2200, %v667
        %v2221 = vmul.f32 %v2200, %v671
        %v2222 = vmul.f32 %v2204, %v667
        %v2223 = vmul.f32 %v2204, %v671
        %v2224 = vmul.f32 %v2208, %v667
        %v2225 = vmul.f32 %v2208, %v671
        %v2226 = vmul.f32 %v2196, %v675
        %v2227 = vmul.f32 %v2196, %v679
        %v2228 = vmul.f32 %v2200, %v675
        %v2229 = vmul.f32 %v2200, %v679
        %v2230 = vmul.f32 %v2204, %v675
        %v2231 = vmul.f32 %v2204, %v679
        %v2232 = vmul.f32 %v2208, %v675
        %v2233 = vmul.f32 %v2208, %v679
        %v2234 = vmul.f32 %v2196, %v683
        %v2235 = vmul.f32 %v2196, %v687
        %v2236 = vmul.f32 %v2200, %v683
        %v2237 = vmul.f32 %v2200, %v687
        %v2238 = vmul.f32 %v2204, %v683
        %v2239 = vmul.f32 %v2204, %v687
        %v2240 = vmul.f32 %v2208, %v683
        %v2241 = vmul.f32 %v2208, %v687
        %v2242 = vmul.f32 %v2196, %v691
        %v2243 = vmul.f32 %v2196, %v695
        %v2244 = vmul.f32 %v2200, %v691
        %v2245 = vmul.f32 %v2200, %v695
        %v2246 = vmul.f32 %v2204, %v691
        %v2247 = vmul.f32 %v2204, %v695
        %v2248 = vmul.f32 %v2208, %v691
        %v2249 = vmul.f32 %v2208, %v695
        %v2250 = vmul.f32 %v2196, %v699
        %v2251 = vmul.f32 %v2196, %v703
        %v2252 = vmul.f32 %v2200, %v699
        %v2253 = vmul.f32 %v2200, %v703
        %v2254 = vmul.f32 %v2204, %v699
        %v2255 = vmul.f32 %v2204, %v703
        %v2256 = vmul.f32 %v2208, %v699
        %v2257 = vmul.f32 %v2208, %v703
        %v2258 = vmul.f32 %v2196, %v707
        %v2259 = vmul.f32 %v2196, %v711
        %v2260 = vmul.f32 %v2200, %v707
        %v2261 = vmul.f32 %v2200, %v711
        %v2262 = vmul.f32 %v2204, %v707
        %v2263 = vmul.f32 %v2204, %v711
        %v2264 = vmul.f32 %v2208, %v707
        %v2265 = vmul.f32 %v2208, %v711
        %v2266 = vmul.f32 %v2196, %v715
        %v2267 = vmul.f32 %v2196, %v719
        %v2268 = vmul.f32 %v2200, %v715
        %v2269 = vmul.f32 %v2200, %v719
        %v2270 = vmul.f32 %v2204, %v715
        %v2271 = vmul.f32 %v2204, %v719
        %v2272 = vmul.f32 %v2208, %v715
        %v2273 = vmul.f32 %v2208, %v719
        %2338 = vrot.lane.b32.xlu0 %v2210, 125
        %v2339 = vpop.permute.xlu0 %2338
        %2340 = vrot.lane.b32.xlu0 %v2211, 125
        %v2341 = vpop.permute.xlu0 %2340
        %2342 = vrot.lane.b32.xlu0 %v2212, 125
        %v2343 = vpop.permute.xlu0 %2342
        %2344 = vrot.lane.b32.xlu0 %v2213, 125
        %v2345 = vpop.permute.xlu0 %2344
        %2346 = vrot.lane.b32.xlu0 %v2214, 125
        %v2347 = vpop.permute.xlu0 %2346
        %2348 = vrot.lane.b32.xlu0 %v2215, 125
        %v2349 = vpop.permute.xlu0 %2348
        %2350 = vrot.lane.b32.xlu0 %v2216, 125
        %v2351 = vpop.permute.xlu0 %2350
        %2352 = vrot.lane.b32.xlu0 %v2217, 125
        %v2353 = vpop.permute.xlu0 %2352
        %2354 = vrot.lane.b32.xlu0 %v2218, 125
        %v2355 = vpop.permute.xlu0 %2354
        %2356 = vrot.lane.b32.xlu0 %v2219, 125
        %v2357 = vpop.permute.xlu0 %2356
        %2358 = vrot.lane.b32.xlu0 %v2220, 125
        %v2359 = vpop.permute.xlu0 %2358
        %2360 = vrot.lane.b32.xlu0 %v2221, 125
        %v2361 = vpop.permute.xlu0 %2360
        %2362 = vrot.lane.b32.xlu0 %v2222, 125
        %v2363 = vpop.permute.xlu0 %2362
        %2364 = vrot.lane.b32.xlu0 %v2223, 125
        %v2365 = vpop.permute.xlu0 %2364
        %2366 = vrot.lane.b32.xlu0 %v2224, 125
        %v2367 = vpop.permute.xlu0 %2366
        %2368 = vrot.lane.b32.xlu0 %v2225, 125
        %v2369 = vpop.permute.xlu0 %2368
        %2370 = vrot.lane.b32.xlu0 %v2226, 125
        %v2371 = vpop.permute.xlu0 %2370
        %2372 = vrot.lane.b32.xlu0 %v2227, 125
        %v2373 = vpop.permute.xlu0 %2372
        %2374 = vrot.lane.b32.xlu0 %v2228, 125
        %v2375 = vpop.permute.xlu0 %2374
        %2376 = vrot.lane.b32.xlu0 %v2229, 125
        %v2377 = vpop.permute.xlu0 %2376
        %2378 = vrot.lane.b32.xlu0 %v2230, 125
        %v2379 = vpop.permute.xlu0 %2378
        %2380 = vrot.lane.b32.xlu0 %v2231, 125
        %v2381 = vpop.permute.xlu0 %2380
        %2382 = vrot.lane.b32.xlu0 %v2232, 125
        %v2383 = vpop.permute.xlu0 %2382
        %2384 = vrot.lane.b32.xlu0 %v2233, 125
        %v2385 = vpop.permute.xlu0 %2384
        %2386 = vrot.lane.b32.xlu0 %v2234, 125
        %v2387 = vpop.permute.xlu0 %2386
        %2388 = vrot.lane.b32.xlu0 %v2235, 125
        %v2389 = vpop.permute.xlu0 %2388
        %2390 = vrot.lane.b32.xlu0 %v2236, 125
        %v2391 = vpop.permute.xlu0 %2390
        %2392 = vrot.lane.b32.xlu0 %v2237, 125
        %v2393 = vpop.permute.xlu0 %2392
        %2394 = vrot.lane.b32.xlu0 %v2238, 125
        %v2395 = vpop.permute.xlu0 %2394
        %2396 = vrot.lane.b32.xlu0 %v2239, 125
        %v2397 = vpop.permute.xlu0 %2396
        %2398 = vrot.lane.b32.xlu0 %v2240, 125
        %v2399 = vpop.permute.xlu0 %2398
        %2400 = vrot.lane.b32.xlu0 %v2241, 125
        %v2401 = vpop.permute.xlu0 %2400
        %2402 = vrot.lane.b32.xlu0 %v2242, 125
        %v2403 = vpop.permute.xlu0 %2402
        %2404 = vrot.lane.b32.xlu0 %v2243, 125
        %v2405 = vpop.permute.xlu0 %2404
        %2406 = vrot.lane.b32.xlu0 %v2244, 125
        %v2407 = vpop.permute.xlu0 %2406
        %2408 = vrot.lane.b32.xlu0 %v2245, 125
        %v2409 = vpop.permute.xlu0 %2408
        %2410 = vrot.lane.b32.xlu0 %v2246, 125
        %v2411 = vpop.permute.xlu0 %2410
        %2412 = vrot.lane.b32.xlu0 %v2247, 125
        %v2413 = vpop.permute.xlu0 %2412
        %2414 = vrot.lane.b32.xlu0 %v2248, 125
        %v2415 = vpop.permute.xlu0 %2414
        %2416 = vrot.lane.b32.xlu0 %v2249, 125
        %v2417 = vpop.permute.xlu0 %2416
        %2418 = vrot.lane.b32.xlu0 %v2250, 125
        %v2419 = vpop.permute.xlu0 %2418
        %2420 = vrot.lane.b32.xlu0 %v2251, 125
        %v2421 = vpop.permute.xlu0 %2420
        %2422 = vrot.lane.b32.xlu0 %v2252, 125
        %v2423 = vpop.permute.xlu0 %2422
        %2424 = vrot.lane.b32.xlu0 %v2253, 125
        %v2425 = vpop.permute.xlu0 %2424
        %2426 = vrot.lane.b32.xlu0 %v2254, 125
        %v2427 = vpop.permute.xlu0 %2426
        %2428 = vrot.lane.b32.xlu0 %v2255, 125
        %v2429 = vpop.permute.xlu0 %2428
        %2430 = vrot.lane.b32.xlu0 %v2256, 125
        %v2431 = vpop.permute.xlu0 %2430
        %2432 = vrot.lane.b32.xlu0 %v2257, 125
        %v2433 = vpop.permute.xlu0 %2432
        %2434 = vrot.lane.b32.xlu0 %v2258, 125
        %v2435 = vpop.permute.xlu0 %2434
        %2436 = vrot.lane.b32.xlu0 %v2259, 125
        %v2437 = vpop.permute.xlu0 %2436
        %2438 = vrot.lane.b32.xlu0 %v2260, 125
        %v2439 = vpop.permute.xlu0 %2438
        %2440 = vrot.lane.b32.xlu0 %v2261, 125
        %v2441 = vpop.permute.xlu0 %2440
        %2442 = vrot.lane.b32.xlu0 %v2262, 125
        %v2443 = vpop.permute.xlu0 %2442
        %2444 = vrot.lane.b32.xlu0 %v2263, 125
        %v2445 = vpop.permute.xlu0 %2444
        %2446 = vrot.lane.b32.xlu0 %v2264, 125
        %v2447 = vpop.permute.xlu0 %2446
        %2448 = vrot.lane.b32.xlu0 %v2265, 125
        %v2449 = vpop.permute.xlu0 %2448
        %2450 = vrot.lane.b32.xlu0 %v2266, 125
        %v2451 = vpop.permute.xlu0 %2450
        %2452 = vrot.lane.b32.xlu0 %v2267, 125
        %v2453 = vpop.permute.xlu0 %2452
        %2454 = vrot.lane.b32.xlu0 %v2268, 125
        %v2455 = vpop.permute.xlu0 %2454
        %2456 = vrot.lane.b32.xlu0 %v2269, 125
        %v2457 = vpop.permute.xlu0 %2456
        %2458 = vrot.lane.b32.xlu0 %v2270, 125
        %v2459 = vpop.permute.xlu0 %2458
        %2460 = vrot.lane.b32.xlu0 %v2271, 125
        %v2461 = vpop.permute.xlu0 %2460
        %2462 = vrot.lane.b32.xlu0 %v2272, 125
        %v2463 = vpop.permute.xlu0 %2462
        %2464 = vrot.lane.b32.xlu0 %v2273, 125
        %v2465 = vpop.permute.xlu0 %2464
        %vm2466 = vcmask 1022976
        %v2467 = vsel %vm2466, %v2339, %v2341
        %v2468 = vsel %vm2466, %v2343, %v2345
        %v2469 = vsel %vm2466, %v2347, %v2349
        %v2470 = vsel %vm2466, %v2351, %v2353
        %v2471 = vsel %vm2466, %v2355, %v2357
        %v2472 = vsel %vm2466, %v2359, %v2361
        %v2473 = vsel %vm2466, %v2363, %v2365
        %v2474 = vsel %vm2466, %v2367, %v2369
        %v2475 = vsel %vm2466, %v2371, %v2373
        %v2476 = vsel %vm2466, %v2375, %v2377
        %v2477 = vsel %vm2466, %v2379, %v2381
        %v2478 = vsel %vm2466, %v2383, %v2385
        %v2479 = vsel %vm2466, %v2387, %v2389
        %v2480 = vsel %vm2466, %v2391, %v2393
        %v2481 = vsel %vm2466, %v2395, %v2397
        %v2482 = vsel %vm2466, %v2399, %v2401
        %v2483 = vsel %vm2466, %v2403, %v2405
        %v2484 = vsel %vm2466, %v2407, %v2409
        %v2485 = vsel %vm2466, %v2411, %v2413
        %v2486 = vsel %vm2466, %v2415, %v2417
        %v2487 = vsel %vm2466, %v2419, %v2421
        %v2488 = vsel %vm2466, %v2423, %v2425
        %v2489 = vsel %vm2466, %v2427, %v2429
        %v2490 = vsel %vm2466, %v2431, %v2433
        %v2491 = vsel %vm2466, %v2435, %v2437
        %v2492 = vsel %vm2466, %v2439, %v2441
        %v2493 = vsel %vm2466, %v2443, %v2445
        %v2494 = vsel %vm2466, %v2447, %v2449
        %v2495 = vsel %vm2466, %v2451, %v2453
        %v2496 = vsel %vm2466, %v2455, %v2457
        %v2497 = vsel %vm2466, %v2459, %v2461
        %v2498 = vsel %vm2466, %v2463, %v2465
        %v2531 = vadd.f32 %v1794, %v2467
        %v2532 = vadd.f32 %v1795, %v2468
        %v2533 = vadd.f32 %v1796, %v2469
        %v2534 = vadd.f32 %v1797, %v2470
        %v2535 = vadd.f32 %v1798, %v2471
        %v2536 = vadd.f32 %v1799, %v2472
        %v2537 = vadd.f32 %v1800, %v2473
        %v2538 = vadd.f32 %v1801, %v2474
        %v2539 = vadd.f32 %v1802, %v2475
        %v2540 = vadd.f32 %v1803, %v2476
        %v2541 = vadd.f32 %v1804, %v2477
        %v2542 = vadd.f32 %v1805, %v2478
        %v2543 = vadd.f32 %v1806, %v2479
        %v2544 = vadd.f32 %v1807, %v2480
        %v2545 = vadd.f32 %v1808, %v2481
        %v2546 = vadd.f32 %v1809, %v2482
        %v2547 = vadd.f32 %v1810, %v2483
        %v2548 = vadd.f32 %v1811, %v2484
        %v2549 = vadd.f32 %v1812, %v2485
        %v2550 = vadd.f32 %v1813, %v2486
        %v2551 = vadd.f32 %v1814, %v2487
        %v2552 = vadd.f32 %v1815, %v2488
        %v2553 = vadd.f32 %v1816, %v2489
        %v2554 = vadd.f32 %v1817, %v2490
        %v2555 = vadd.f32 %v1818, %v2491
        %v2556 = vadd.f32 %v1819, %v2492
        %v2557 = vadd.f32 %v1820, %v2493
        %v2558 = vadd.f32 %v1821, %v2494
        %v2559 = vadd.f32 %v1822, %v2495
        %v2560 = vadd.f32 %v1823, %v2496
        %v2561 = vadd.f32 %v1824, %v2497
        %v2562 = vadd.f32 %v1825, %v2498
        %2563 = vset.pattern.permute.xlu0 3
        %2564 = vperm.xlu0 %2563, %v278
        %v2565 = vpop.permute.xlu0 %2564
        %2567 = vset.pattern.permute.xlu0 3
        %2568 = vperm.xlu0 %2567, %v279
        %v2569 = vpop.permute.xlu0 %2568
        %2571 = vset.pattern.permute.xlu0 3
        %2572 = vperm.xlu0 %2571, %v280
        %v2573 = vpop.permute.xlu0 %2572
        %2575 = vset.pattern.permute.xlu0 3
        %2576 = vperm.xlu0 %2575, %v281
        %v2577 = vpop.permute.xlu0 %2576
        %v2579 = vmul.f32 %v2565, %v659
        %v2580 = vmul.f32 %v2565, %v663
        %v2581 = vmul.f32 %v2569, %v659
        %v2582 = vmul.f32 %v2569, %v663
        %v2583 = vmul.f32 %v2573, %v659
        %v2584 = vmul.f32 %v2573, %v663
        %v2585 = vmul.f32 %v2577, %v659
        %v2586 = vmul.f32 %v2577, %v663
        %v2587 = vmul.f32 %v2565, %v667
        %v2588 = vmul.f32 %v2565, %v671
        %v2589 = vmul.f32 %v2569, %v667
        %v2590 = vmul.f32 %v2569, %v671
        %v2591 = vmul.f32 %v2573, %v667
        %v2592 = vmul.f32 %v2573, %v671
        %v2593 = vmul.f32 %v2577, %v667
        %v2594 = vmul.f32 %v2577, %v671
        %v2595 = vmul.f32 %v2565, %v675
        %v2596 = vmul.f32 %v2565, %v679
        %v2597 = vmul.f32 %v2569, %v675
        %v2598 = vmul.f32 %v2569, %v679
        %v2599 = vmul.f32 %v2573, %v675
        %v2600 = vmul.f32 %v2573, %v679
        %v2601 = vmul.f32 %v2577, %v675
        %v2602 = vmul.f32 %v2577, %v679
        %v2603 = vmul.f32 %v2565, %v683
        %v2604 = vmul.f32 %v2565, %v687
        %v2605 = vmul.f32 %v2569, %v683
        %v2606 = vmul.f32 %v2569, %v687
        %v2607 = vmul.f32 %v2573, %v683
        %v2608 = vmul.f32 %v2573, %v687
        %v2609 = vmul.f32 %v2577, %v683
        %v2610 = vmul.f32 %v2577, %v687
        %v2611 = vmul.f32 %v2565, %v691
        %v2612 = vmul.f32 %v2565, %v695
        %v2613 = vmul.f32 %v2569, %v691
        %v2614 = vmul.f32 %v2569, %v695
        %v2615 = vmul.f32 %v2573, %v691
        %v2616 = vmul.f32 %v2573, %v695
        %v2617 = vmul.f32 %v2577, %v691
        %v2618 = vmul.f32 %v2577, %v695
        %v2619 = vmul.f32 %v2565, %v699
        %v2620 = vmul.f32 %v2565, %v703
        %v2621 = vmul.f32 %v2569, %v699
        %v2622 = vmul.f32 %v2569, %v703
        %v2623 = vmul.f32 %v2573, %v699
        %v2624 = vmul.f32 %v2573, %v703
        %v2625 = vmul.f32 %v2577, %v699
        %v2626 = vmul.f32 %v2577, %v703
        %v2627 = vmul.f32 %v2565, %v707
        %v2628 = vmul.f32 %v2565, %v711
        %v2629 = vmul.f32 %v2569, %v707
        %v2630 = vmul.f32 %v2569, %v711
        %v2631 = vmul.f32 %v2573, %v707
        %v2632 = vmul.f32 %v2573, %v711
        %v2633 = vmul.f32 %v2577, %v707
        %v2634 = vmul.f32 %v2577, %v711
        %v2635 = vmul.f32 %v2565, %v715
        %v2636 = vmul.f32 %v2565, %v719
        %v2637 = vmul.f32 %v2569, %v715
        %v2638 = vmul.f32 %v2569, %v719
        %v2639 = vmul.f32 %v2573, %v715
        %v2640 = vmul.f32 %v2573, %v719
        %v2641 = vmul.f32 %v2577, %v715
        %v2642 = vmul.f32 %v2577, %v719
        %2707 = vrot.lane.b32.xlu0 %v2579, 125
        %v2708 = vpop.permute.xlu0 %2707
        %2709 = vrot.lane.b32.xlu0 %v2580, 125
        %v2710 = vpop.permute.xlu0 %2709
        %2711 = vrot.lane.b32.xlu0 %v2581, 125
        %v2712 = vpop.permute.xlu0 %2711
        %2713 = vrot.lane.b32.xlu0 %v2582, 125
        %v2714 = vpop.permute.xlu0 %2713
        %2715 = vrot.lane.b32.xlu0 %v2583, 125
        %v2716 = vpop.permute.xlu0 %2715
        %2717 = vrot.lane.b32.xlu0 %v2584, 125
        %v2718 = vpop.permute.xlu0 %2717
        %2719 = vrot.lane.b32.xlu0 %v2585, 125
        %v2720 = vpop.permute.xlu0 %2719
        %2721 = vrot.lane.b32.xlu0 %v2586, 125
        %v2722 = vpop.permute.xlu0 %2721
        %2723 = vrot.lane.b32.xlu0 %v2587, 125
        %v2724 = vpop.permute.xlu0 %2723
        %2725 = vrot.lane.b32.xlu0 %v2588, 125
        %v2726 = vpop.permute.xlu0 %2725
        %2727 = vrot.lane.b32.xlu0 %v2589, 125
        %v2728 = vpop.permute.xlu0 %2727
        %2729 = vrot.lane.b32.xlu0 %v2590, 125
        %v2730 = vpop.permute.xlu0 %2729
        %2731 = vrot.lane.b32.xlu0 %v2591, 125
        %v2732 = vpop.permute.xlu0 %2731
        %2733 = vrot.lane.b32.xlu0 %v2592, 125
        %v2734 = vpop.permute.xlu0 %2733
        %2735 = vrot.lane.b32.xlu0 %v2593, 125
        %v2736 = vpop.permute.xlu0 %2735
        %2737 = vrot.lane.b32.xlu0 %v2594, 125
        %v2738 = vpop.permute.xlu0 %2737
        %2739 = vrot.lane.b32.xlu0 %v2595, 125
        %v2740 = vpop.permute.xlu0 %2739
        %2741 = vrot.lane.b32.xlu0 %v2596, 125
        %v2742 = vpop.permute.xlu0 %2741
        %2743 = vrot.lane.b32.xlu0 %v2597, 125
        %v2744 = vpop.permute.xlu0 %2743
        %2745 = vrot.lane.b32.xlu0 %v2598, 125
        %v2746 = vpop.permute.xlu0 %2745
        %2747 = vrot.lane.b32.xlu0 %v2599, 125
        %v2748 = vpop.permute.xlu0 %2747
        %2749 = vrot.lane.b32.xlu0 %v2600, 125
        %v2750 = vpop.permute.xlu0 %2749
        %2751 = vrot.lane.b32.xlu0 %v2601, 125
        %v2752 = vpop.permute.xlu0 %2751
        %2753 = vrot.lane.b32.xlu0 %v2602, 125
        %v2754 = vpop.permute.xlu0 %2753
        %2755 = vrot.lane.b32.xlu0 %v2603, 125
        %v2756 = vpop.permute.xlu0 %2755
        %2757 = vrot.lane.b32.xlu0 %v2604, 125
        %v2758 = vpop.permute.xlu0 %2757
        %2759 = vrot.lane.b32.xlu0 %v2605, 125
        %v2760 = vpop.permute.xlu0 %2759
        %2761 = vrot.lane.b32.xlu0 %v2606, 125
        %v2762 = vpop.permute.xlu0 %2761
        %2763 = vrot.lane.b32.xlu0 %v2607, 125
        %v2764 = vpop.permute.xlu0 %2763
        %2765 = vrot.lane.b32.xlu0 %v2608, 125
        %v2766 = vpop.permute.xlu0 %2765
        %2767 = vrot.lane.b32.xlu0 %v2609, 125
        %v2768 = vpop.permute.xlu0 %2767
        %2769 = vrot.lane.b32.xlu0 %v2610, 125
        %v2770 = vpop.permute.xlu0 %2769
        %2771 = vrot.lane.b32.xlu0 %v2611, 125
        %v2772 = vpop.permute.xlu0 %2771
        %2773 = vrot.lane.b32.xlu0 %v2612, 125
        %v2774 = vpop.permute.xlu0 %2773
        %2775 = vrot.lane.b32.xlu0 %v2613, 125
        %v2776 = vpop.permute.xlu0 %2775
        %2777 = vrot.lane.b32.xlu0 %v2614, 125
        %v2778 = vpop.permute.xlu0 %2777
        %2779 = vrot.lane.b32.xlu0 %v2615, 125
        %v2780 = vpop.permute.xlu0 %2779
        %2781 = vrot.lane.b32.xlu0 %v2616, 125
        %v2782 = vpop.permute.xlu0 %2781
        %2783 = vrot.lane.b32.xlu0 %v2617, 125
        %v2784 = vpop.permute.xlu0 %2783
        %2785 = vrot.lane.b32.xlu0 %v2618, 125
        %v2786 = vpop.permute.xlu0 %2785
        %2787 = vrot.lane.b32.xlu0 %v2619, 125
        %v2788 = vpop.permute.xlu0 %2787
        %2789 = vrot.lane.b32.xlu0 %v2620, 125
        %v2790 = vpop.permute.xlu0 %2789
        %2791 = vrot.lane.b32.xlu0 %v2621, 125
        %v2792 = vpop.permute.xlu0 %2791
        %2793 = vrot.lane.b32.xlu0 %v2622, 125
        %v2794 = vpop.permute.xlu0 %2793
        %2795 = vrot.lane.b32.xlu0 %v2623, 125
        %v2796 = vpop.permute.xlu0 %2795
        %2797 = vrot.lane.b32.xlu0 %v2624, 125
        %v2798 = vpop.permute.xlu0 %2797
        %2799 = vrot.lane.b32.xlu0 %v2625, 125
        %v2800 = vpop.permute.xlu0 %2799
        %2801 = vrot.lane.b32.xlu0 %v2626, 125
        %v2802 = vpop.permute.xlu0 %2801
        %2803 = vrot.lane.b32.xlu0 %v2627, 125
        %v2804 = vpop.permute.xlu0 %2803
        %2805 = vrot.lane.b32.xlu0 %v2628, 125
        %v2806 = vpop.permute.xlu0 %2805
        %2807 = vrot.lane.b32.xlu0 %v2629, 125
        %v2808 = vpop.permute.xlu0 %2807
        %2809 = vrot.lane.b32.xlu0 %v2630, 125
        %v2810 = vpop.permute.xlu0 %2809
        %2811 = vrot.lane.b32.xlu0 %v2631, 125
        %v2812 = vpop.permute.xlu0 %2811
        %2813 = vrot.lane.b32.xlu0 %v2632, 125
        %v2814 = vpop.permute.xlu0 %2813
        %2815 = vrot.lane.b32.xlu0 %v2633, 125
        %v2816 = vpop.permute.xlu0 %2815
        %2817 = vrot.lane.b32.xlu0 %v2634, 125
        %v2818 = vpop.permute.xlu0 %2817
        %2819 = vrot.lane.b32.xlu0 %v2635, 125
        %v2820 = vpop.permute.xlu0 %2819
        %2821 = vrot.lane.b32.xlu0 %v2636, 125
        %v2822 = vpop.permute.xlu0 %2821
        %2823 = vrot.lane.b32.xlu0 %v2637, 125
        %v2824 = vpop.permute.xlu0 %2823
        %2825 = vrot.lane.b32.xlu0 %v2638, 125
        %v2826 = vpop.permute.xlu0 %2825
        %2827 = vrot.lane.b32.xlu0 %v2639, 125
        %v2828 = vpop.permute.xlu0 %2827
        %2829 = vrot.lane.b32.xlu0 %v2640, 125
        %v2830 = vpop.permute.xlu0 %2829
        %2831 = vrot.lane.b32.xlu0 %v2641, 125
        %v2832 = vpop.permute.xlu0 %2831
        %2833 = vrot.lane.b32.xlu0 %v2642, 125
        %v2834 = vpop.permute.xlu0 %2833
        %v2835 = vsel %vm2466, %v2708, %v2710
        %v2836 = vsel %vm2466, %v2712, %v2714
        %v2837 = vsel %vm2466, %v2716, %v2718
        %v2838 = vsel %vm2466, %v2720, %v2722
        %v2839 = vsel %vm2466, %v2724, %v2726
        %v2840 = vsel %vm2466, %v2728, %v2730
        %v2841 = vsel %vm2466, %v2732, %v2734
        %v2842 = vsel %vm2466, %v2736, %v2738
        %v2843 = vsel %vm2466, %v2740, %v2742
        %v2844 = vsel %vm2466, %v2744, %v2746
        %v2845 = vsel %vm2466, %v2748, %v2750
        %v2846 = vsel %vm2466, %v2752, %v2754
        %v2847 = vsel %vm2466, %v2756, %v2758
        %v2848 = vsel %vm2466, %v2760, %v2762
        %v2849 = vsel %vm2466, %v2764, %v2766
        %v2850 = vsel %vm2466, %v2768, %v2770
        %v2851 = vsel %vm2466, %v2772, %v2774
        %v2852 = vsel %vm2466, %v2776, %v2778
        %v2853 = vsel %vm2466, %v2780, %v2782
        %v2854 = vsel %vm2466, %v2784, %v2786
        %v2855 = vsel %vm2466, %v2788, %v2790
        %v2856 = vsel %vm2466, %v2792, %v2794
        %v2857 = vsel %vm2466, %v2796, %v2798
        %v2858 = vsel %vm2466, %v2800, %v2802
        %v2859 = vsel %vm2466, %v2804, %v2806
        %v2860 = vsel %vm2466, %v2808, %v2810
        %v2861 = vsel %vm2466, %v2812, %v2814
        %v2862 = vsel %vm2466, %v2816, %v2818
        %v2863 = vsel %vm2466, %v2820, %v2822
        %v2864 = vsel %vm2466, %v2824, %v2826
        %v2865 = vsel %vm2466, %v2828, %v2830
        %v2866 = vsel %vm2466, %v2832, %v2834
        %v2899 = vadd.f32 %v2162, %v2835
        %v2900 = vadd.f32 %v2163, %v2836
        %v2901 = vadd.f32 %v2164, %v2837
        %v2902 = vadd.f32 %v2165, %v2838
        %v2903 = vadd.f32 %v2166, %v2839
        %v2904 = vadd.f32 %v2167, %v2840
        %v2905 = vadd.f32 %v2168, %v2841
        %v2906 = vadd.f32 %v2169, %v2842
        %v2907 = vadd.f32 %v2170, %v2843
        %v2908 = vadd.f32 %v2171, %v2844
        %v2909 = vadd.f32 %v2172, %v2845
        %v2910 = vadd.f32 %v2173, %v2846
        %v2911 = vadd.f32 %v2174, %v2847
        %v2912 = vadd.f32 %v2175, %v2848
        %v2913 = vadd.f32 %v2176, %v2849
        %v2914 = vadd.f32 %v2177, %v2850
        %v2915 = vadd.f32 %v2178, %v2851
        %v2916 = vadd.f32 %v2179, %v2852
        %v2917 = vadd.f32 %v2180, %v2853
        %v2918 = vadd.f32 %v2181, %v2854
        %v2919 = vadd.f32 %v2182, %v2855
        %v2920 = vadd.f32 %v2183, %v2856
        %v2921 = vadd.f32 %v2184, %v2857
        %v2922 = vadd.f32 %v2185, %v2858
        %v2923 = vadd.f32 %v2186, %v2859
        %v2924 = vadd.f32 %v2187, %v2860
        %v2925 = vadd.f32 %v2188, %v2861
        %v2926 = vadd.f32 %v2189, %v2862
        %v2927 = vadd.f32 %v2190, %v2863
        %v2928 = vadd.f32 %v2191, %v2864
        %v2929 = vadd.f32 %v2192, %v2865
        %v2930 = vadd.f32 %v2193, %v2866
        %2931 = vset.pattern.permute.xlu0 4
        %2932 = vperm.xlu0 %2931, %v274
        %v2933 = vpop.permute.xlu0 %2932
        %2935 = vset.pattern.permute.xlu0 4
        %2936 = vperm.xlu0 %2935, %v275
        %v2937 = vpop.permute.xlu0 %2936
        %2939 = vset.pattern.permute.xlu0 4
        %2940 = vperm.xlu0 %2939, %v276
        %v2941 = vpop.permute.xlu0 %2940
        %2943 = vset.pattern.permute.xlu0 4
        %2944 = vperm.xlu0 %2943, %v277
        %v2945 = vpop.permute.xlu0 %2944
        %v2947 = vmul.f32 %v2933, %v659
        %v2948 = vmul.f32 %v2933, %v663
        %v2949 = vmul.f32 %v2937, %v659
        %v2950 = vmul.f32 %v2937, %v663
        %v2951 = vmul.f32 %v2941, %v659
        %v2952 = vmul.f32 %v2941, %v663
        %v2953 = vmul.f32 %v2945, %v659
        %v2954 = vmul.f32 %v2945, %v663
        %v2955 = vmul.f32 %v2933, %v667
        %v2956 = vmul.f32 %v2933, %v671
        %v2957 = vmul.f32 %v2937, %v667
        %v2958 = vmul.f32 %v2937, %v671
        %v2959 = vmul.f32 %v2941, %v667
        %v2960 = vmul.f32 %v2941, %v671
        %v2961 = vmul.f32 %v2945, %v667
        %v2962 = vmul.f32 %v2945, %v671
        %v2963 = vmul.f32 %v2933, %v675
        %v2964 = vmul.f32 %v2933, %v679
        %v2965 = vmul.f32 %v2937, %v675
        %v2966 = vmul.f32 %v2937, %v679
        %v2967 = vmul.f32 %v2941, %v675
        %v2968 = vmul.f32 %v2941, %v679
        %v2969 = vmul.f32 %v2945, %v675
        %v2970 = vmul.f32 %v2945, %v679
        %v2971 = vmul.f32 %v2933, %v683
        %v2972 = vmul.f32 %v2933, %v687
        %v2973 = vmul.f32 %v2937, %v683
        %v2974 = vmul.f32 %v2937, %v687
        %v2975 = vmul.f32 %v2941, %v683
        %v2976 = vmul.f32 %v2941, %v687
        %v2977 = vmul.f32 %v2945, %v683
        %v2978 = vmul.f32 %v2945, %v687
        %v2979 = vmul.f32 %v2933, %v691
        %v2980 = vmul.f32 %v2933, %v695
        %v2981 = vmul.f32 %v2937, %v691
        %v2982 = vmul.f32 %v2937, %v695
        %v2983 = vmul.f32 %v2941, %v691
        %v2984 = vmul.f32 %v2941, %v695
        %v2985 = vmul.f32 %v2945, %v691
        %v2986 = vmul.f32 %v2945, %v695
        %v2987 = vmul.f32 %v2933, %v699
        %v2988 = vmul.f32 %v2933, %v703
        %v2989 = vmul.f32 %v2937, %v699
        %v2990 = vmul.f32 %v2937, %v703
        %v2991 = vmul.f32 %v2941, %v699
        %v2992 = vmul.f32 %v2941, %v703
        %v2993 = vmul.f32 %v2945, %v699
        %v2994 = vmul.f32 %v2945, %v703
        %v2995 = vmul.f32 %v2933, %v707
        %v2996 = vmul.f32 %v2933, %v711
        %v2997 = vmul.f32 %v2937, %v707
        %v2998 = vmul.f32 %v2937, %v711
        %v2999 = vmul.f32 %v2941, %v707
        %v3000 = vmul.f32 %v2941, %v711
        %v3001 = vmul.f32 %v2945, %v707
        %v3002 = vmul.f32 %v2945, %v711
        %v3003 = vmul.f32 %v2933, %v715
        %v3004 = vmul.f32 %v2933, %v719
        %v3005 = vmul.f32 %v2937, %v715
        %v3006 = vmul.f32 %v2937, %v719
        %v3007 = vmul.f32 %v2941, %v715
        %v3008 = vmul.f32 %v2941, %v719
        %v3009 = vmul.f32 %v2945, %v715
        %v3010 = vmul.f32 %v2945, %v719
        %3075 = vrot.lane.b32.xlu0 %v2947, 124
        %v3076 = vpop.permute.xlu0 %3075
        %3077 = vrot.lane.b32.xlu0 %v2948, 124
        %v3078 = vpop.permute.xlu0 %3077
        %3079 = vrot.lane.b32.xlu0 %v2949, 124
        %v3080 = vpop.permute.xlu0 %3079
        %3081 = vrot.lane.b32.xlu0 %v2950, 124
        %v3082 = vpop.permute.xlu0 %3081
        %3083 = vrot.lane.b32.xlu0 %v2951, 124
        %v3084 = vpop.permute.xlu0 %3083
        %3085 = vrot.lane.b32.xlu0 %v2952, 124
        %v3086 = vpop.permute.xlu0 %3085
        %3087 = vrot.lane.b32.xlu0 %v2953, 124
        %v3088 = vpop.permute.xlu0 %3087
        %3089 = vrot.lane.b32.xlu0 %v2954, 124
        %v3090 = vpop.permute.xlu0 %3089
        %3091 = vrot.lane.b32.xlu0 %v2955, 124
        %v3092 = vpop.permute.xlu0 %3091
        %3093 = vrot.lane.b32.xlu0 %v2956, 124
        %v3094 = vpop.permute.xlu0 %3093
        %3095 = vrot.lane.b32.xlu0 %v2957, 124
        %v3096 = vpop.permute.xlu0 %3095
        %3097 = vrot.lane.b32.xlu0 %v2958, 124
        %v3098 = vpop.permute.xlu0 %3097
        %3099 = vrot.lane.b32.xlu0 %v2959, 124
        %v3100 = vpop.permute.xlu0 %3099
        %3101 = vrot.lane.b32.xlu0 %v2960, 124
        %v3102 = vpop.permute.xlu0 %3101
        %3103 = vrot.lane.b32.xlu0 %v2961, 124
        %v3104 = vpop.permute.xlu0 %3103
        %3105 = vrot.lane.b32.xlu0 %v2962, 124
        %v3106 = vpop.permute.xlu0 %3105
        %3107 = vrot.lane.b32.xlu0 %v2963, 124
        %v3108 = vpop.permute.xlu0 %3107
        %3109 = vrot.lane.b32.xlu0 %v2964, 124
        %v3110 = vpop.permute.xlu0 %3109
        %3111 = vrot.lane.b32.xlu0 %v2965, 124
        %v3112 = vpop.permute.xlu0 %3111
        %3113 = vrot.lane.b32.xlu0 %v2966, 124
        %v3114 = vpop.permute.xlu0 %3113
        %3115 = vrot.lane.b32.xlu0 %v2967, 124
        %v3116 = vpop.permute.xlu0 %3115
        %3117 = vrot.lane.b32.xlu0 %v2968, 124
        %v3118 = vpop.permute.xlu0 %3117
        %3119 = vrot.lane.b32.xlu0 %v2969, 124
        %v3120 = vpop.permute.xlu0 %3119
        %3121 = vrot.lane.b32.xlu0 %v2970, 124
        %v3122 = vpop.permute.xlu0 %3121
        %3123 = vrot.lane.b32.xlu0 %v2971, 124
        %v3124 = vpop.permute.xlu0 %3123
        %3125 = vrot.lane.b32.xlu0 %v2972, 124
        %v3126 = vpop.permute.xlu0 %3125
        %3127 = vrot.lane.b32.xlu0 %v2973, 124
        %v3128 = vpop.permute.xlu0 %3127
        %3129 = vrot.lane.b32.xlu0 %v2974, 124
        %v3130 = vpop.permute.xlu0 %3129
        %3131 = vrot.lane.b32.xlu0 %v2975, 124
        %v3132 = vpop.permute.xlu0 %3131
        %3133 = vrot.lane.b32.xlu0 %v2976, 124
        %v3134 = vpop.permute.xlu0 %3133
        %3135 = vrot.lane.b32.xlu0 %v2977, 124
        %v3136 = vpop.permute.xlu0 %3135
        %3137 = vrot.lane.b32.xlu0 %v2978, 124
        %v3138 = vpop.permute.xlu0 %3137
        %3139 = vrot.lane.b32.xlu0 %v2979, 124
        %v3140 = vpop.permute.xlu0 %3139
        %3141 = vrot.lane.b32.xlu0 %v2980, 124
        %v3142 = vpop.permute.xlu0 %3141
        %3143 = vrot.lane.b32.xlu0 %v2981, 124
        %v3144 = vpop.permute.xlu0 %3143
        %3145 = vrot.lane.b32.xlu0 %v2982, 124
        %v3146 = vpop.permute.xlu0 %3145
        %3147 = vrot.lane.b32.xlu0 %v2983, 124
        %v3148 = vpop.permute.xlu0 %3147
        %3149 = vrot.lane.b32.xlu0 %v2984, 124
        %v3150 = vpop.permute.xlu0 %3149
        %3151 = vrot.lane.b32.xlu0 %v2985, 124
        %v3152 = vpop.permute.xlu0 %3151
        %3153 = vrot.lane.b32.xlu0 %v2986, 124
        %v3154 = vpop.permute.xlu0 %3153
        %3155 = vrot.lane.b32.xlu0 %v2987, 124
        %v3156 = vpop.permute.xlu0 %3155
        %3157 = vrot.lane.b32.xlu0 %v2988, 124
        %v3158 = vpop.permute.xlu0 %3157
        %3159 = vrot.lane.b32.xlu0 %v2989, 124
        %v3160 = vpop.permute.xlu0 %3159
        %3161 = vrot.lane.b32.xlu0 %v2990, 124
        %v3162 = vpop.permute.xlu0 %3161
        %3163 = vrot.lane.b32.xlu0 %v2991, 124
        %v3164 = vpop.permute.xlu0 %3163
        %3165 = vrot.lane.b32.xlu0 %v2992, 124
        %v3166 = vpop.permute.xlu0 %3165
        %3167 = vrot.lane.b32.xlu0 %v2993, 124
        %v3168 = vpop.permute.xlu0 %3167
        %3169 = vrot.lane.b32.xlu0 %v2994, 124
        %v3170 = vpop.permute.xlu0 %3169
        %3171 = vrot.lane.b32.xlu0 %v2995, 124
        %v3172 = vpop.permute.xlu0 %3171
        %3173 = vrot.lane.b32.xlu0 %v2996, 124
        %v3174 = vpop.permute.xlu0 %3173
        %3175 = vrot.lane.b32.xlu0 %v2997, 124
        %v3176 = vpop.permute.xlu0 %3175
        %3177 = vrot.lane.b32.xlu0 %v2998, 124
        %v3178 = vpop.permute.xlu0 %3177
        %3179 = vrot.lane.b32.xlu0 %v2999, 124
        %v3180 = vpop.permute.xlu0 %3179
        %3181 = vrot.lane.b32.xlu0 %v3000, 124
        %v3182 = vpop.permute.xlu0 %3181
        %3183 = vrot.lane.b32.xlu0 %v3001, 124
        %v3184 = vpop.permute.xlu0 %3183
        %3185 = vrot.lane.b32.xlu0 %v3002, 124
        %v3186 = vpop.permute.xlu0 %3185
        %3187 = vrot.lane.b32.xlu0 %v3003, 124
        %v3188 = vpop.permute.xlu0 %3187
        %3189 = vrot.lane.b32.xlu0 %v3004, 124
        %v3190 = vpop.permute.xlu0 %3189
        %3191 = vrot.lane.b32.xlu0 %v3005, 124
        %v3192 = vpop.permute.xlu0 %3191
        %3193 = vrot.lane.b32.xlu0 %v3006, 124
        %v3194 = vpop.permute.xlu0 %3193
        %3195 = vrot.lane.b32.xlu0 %v3007, 124
        %v3196 = vpop.permute.xlu0 %3195
        %3197 = vrot.lane.b32.xlu0 %v3008, 124
        %v3198 = vpop.permute.xlu0 %3197
        %3199 = vrot.lane.b32.xlu0 %v3009, 124
        %v3200 = vpop.permute.xlu0 %3199
        %3201 = vrot.lane.b32.xlu0 %v3010, 124
        %v3202 = vpop.permute.xlu0 %3201
        %vm3203 = vcmask 1014784
        %v3204 = vsel %vm3203, %v3076, %v3078
        %v3205 = vsel %vm3203, %v3080, %v3082
        %v3206 = vsel %vm3203, %v3084, %v3086
        %v3207 = vsel %vm3203, %v3088, %v3090
        %v3208 = vsel %vm3203, %v3092, %v3094
        %v3209 = vsel %vm3203, %v3096, %v3098
        %v3210 = vsel %vm3203, %v3100, %v3102
        %v3211 = vsel %vm3203, %v3104, %v3106
        %v3212 = vsel %vm3203, %v3108, %v3110
        %v3213 = vsel %vm3203, %v3112, %v3114
        %v3214 = vsel %vm3203, %v3116, %v3118
        %v3215 = vsel %vm3203, %v3120, %v3122
        %v3216 = vsel %vm3203, %v3124, %v3126
        %v3217 = vsel %vm3203, %v3128, %v3130
        %v3218 = vsel %vm3203, %v3132, %v3134
        %v3219 = vsel %vm3203, %v3136, %v3138
        %v3220 = vsel %vm3203, %v3140, %v3142
        %v3221 = vsel %vm3203, %v3144, %v3146
        %v3222 = vsel %vm3203, %v3148, %v3150
        %v3223 = vsel %vm3203, %v3152, %v3154
        %v3224 = vsel %vm3203, %v3156, %v3158
        %v3225 = vsel %vm3203, %v3160, %v3162
        %v3226 = vsel %vm3203, %v3164, %v3166
        %v3227 = vsel %vm3203, %v3168, %v3170
        %v3228 = vsel %vm3203, %v3172, %v3174
        %v3229 = vsel %vm3203, %v3176, %v3178
        %v3230 = vsel %vm3203, %v3180, %v3182
        %v3231 = vsel %vm3203, %v3184, %v3186
        %v3232 = vsel %vm3203, %v3188, %v3190
        %v3233 = vsel %vm3203, %v3192, %v3194
        %v3234 = vsel %vm3203, %v3196, %v3198
        %v3235 = vsel %vm3203, %v3200, %v3202
        %v3268 = vadd.f32 %v2531, %v3204
        %v3269 = vadd.f32 %v2532, %v3205
        %v3270 = vadd.f32 %v2533, %v3206
        %v3271 = vadd.f32 %v2534, %v3207
        %v3272 = vadd.f32 %v2535, %v3208
        %v3273 = vadd.f32 %v2536, %v3209
        %v3274 = vadd.f32 %v2537, %v3210
        %v3275 = vadd.f32 %v2538, %v3211
        %v3276 = vadd.f32 %v2539, %v3212
        %v3277 = vadd.f32 %v2540, %v3213
        %v3278 = vadd.f32 %v2541, %v3214
        %v3279 = vadd.f32 %v2542, %v3215
        %v3280 = vadd.f32 %v2543, %v3216
        %v3281 = vadd.f32 %v2544, %v3217
        %v3282 = vadd.f32 %v2545, %v3218
        %v3283 = vadd.f32 %v2546, %v3219
        %v3284 = vadd.f32 %v2547, %v3220
        %v3285 = vadd.f32 %v2548, %v3221
        %v3286 = vadd.f32 %v2549, %v3222
        %v3287 = vadd.f32 %v2550, %v3223
        %v3288 = vadd.f32 %v2551, %v3224
        %v3289 = vadd.f32 %v2552, %v3225
        %v3290 = vadd.f32 %v2553, %v3226
        %v3291 = vadd.f32 %v2554, %v3227
        %v3292 = vadd.f32 %v2555, %v3228
        %v3293 = vadd.f32 %v2556, %v3229
        %v3294 = vadd.f32 %v2557, %v3230
        %v3295 = vadd.f32 %v2558, %v3231
        %v3296 = vadd.f32 %v2559, %v3232
        %v3297 = vadd.f32 %v2560, %v3233
        %v3298 = vadd.f32 %v2561, %v3234
        %v3299 = vadd.f32 %v2562, %v3235
        %3300 = vset.pattern.permute.xlu0 4
        %3301 = vperm.xlu0 %3300, %v278
        %v3302 = vpop.permute.xlu0 %3301
        %3304 = vset.pattern.permute.xlu0 4
        %3305 = vperm.xlu0 %3304, %v279
        %v3306 = vpop.permute.xlu0 %3305
        %3308 = vset.pattern.permute.xlu0 4
        %3309 = vperm.xlu0 %3308, %v280
        %v3310 = vpop.permute.xlu0 %3309
        %3312 = vset.pattern.permute.xlu0 4
        %3313 = vperm.xlu0 %3312, %v281
        %v3314 = vpop.permute.xlu0 %3313
        %v3316 = vmul.f32 %v3302, %v659
        %v3317 = vmul.f32 %v3302, %v663
        %v3318 = vmul.f32 %v3306, %v659
        %v3319 = vmul.f32 %v3306, %v663
        %v3320 = vmul.f32 %v3310, %v659
        %v3321 = vmul.f32 %v3310, %v663
        %v3322 = vmul.f32 %v3314, %v659
        %v3323 = vmul.f32 %v3314, %v663
        %v3324 = vmul.f32 %v3302, %v667
        %v3325 = vmul.f32 %v3302, %v671
        %v3326 = vmul.f32 %v3306, %v667
        %v3327 = vmul.f32 %v3306, %v671
        %v3328 = vmul.f32 %v3310, %v667
        %v3329 = vmul.f32 %v3310, %v671
        %v3330 = vmul.f32 %v3314, %v667
        %v3331 = vmul.f32 %v3314, %v671
        %v3332 = vmul.f32 %v3302, %v675
        %v3333 = vmul.f32 %v3302, %v679
        %v3334 = vmul.f32 %v3306, %v675
        %v3335 = vmul.f32 %v3306, %v679
        %v3336 = vmul.f32 %v3310, %v675
        %v3337 = vmul.f32 %v3310, %v679
        %v3338 = vmul.f32 %v3314, %v675
        %v3339 = vmul.f32 %v3314, %v679
        %v3340 = vmul.f32 %v3302, %v683
        %v3341 = vmul.f32 %v3302, %v687
        %v3342 = vmul.f32 %v3306, %v683
        %v3343 = vmul.f32 %v3306, %v687
        %v3344 = vmul.f32 %v3310, %v683
        %v3345 = vmul.f32 %v3310, %v687
        %v3346 = vmul.f32 %v3314, %v683
        %v3347 = vmul.f32 %v3314, %v687
        %v3348 = vmul.f32 %v3302, %v691
        %v3349 = vmul.f32 %v3302, %v695
        %v3350 = vmul.f32 %v3306, %v691
        %v3351 = vmul.f32 %v3306, %v695
        %v3352 = vmul.f32 %v3310, %v691
        %v3353 = vmul.f32 %v3310, %v695
        %v3354 = vmul.f32 %v3314, %v691
        %v3355 = vmul.f32 %v3314, %v695
        %v3356 = vmul.f32 %v3302, %v699
        %v3357 = vmul.f32 %v3302, %v703
        %v3358 = vmul.f32 %v3306, %v699
        %v3359 = vmul.f32 %v3306, %v703
        %v3360 = vmul.f32 %v3310, %v699
        %v3361 = vmul.f32 %v3310, %v703
        %v3362 = vmul.f32 %v3314, %v699
        %v3363 = vmul.f32 %v3314, %v703
        %v3364 = vmul.f32 %v3302, %v707
        %v3365 = vmul.f32 %v3302, %v711
        %v3366 = vmul.f32 %v3306, %v707
        %v3367 = vmul.f32 %v3306, %v711
        %v3368 = vmul.f32 %v3310, %v707
        %v3369 = vmul.f32 %v3310, %v711
        %v3370 = vmul.f32 %v3314, %v707
        %v3371 = vmul.f32 %v3314, %v711
        %v3372 = vmul.f32 %v3302, %v715
        %v3373 = vmul.f32 %v3302, %v719
        %v3374 = vmul.f32 %v3306, %v715
        %v3375 = vmul.f32 %v3306, %v719
        %v3376 = vmul.f32 %v3310, %v715
        %v3377 = vmul.f32 %v3310, %v719
        %v3378 = vmul.f32 %v3314, %v715
        %v3379 = vmul.f32 %v3314, %v719
        %3444 = vrot.lane.b32.xlu0 %v3316, 124
        %v3445 = vpop.permute.xlu0 %3444
        %3446 = vrot.lane.b32.xlu0 %v3317, 124
        %v3447 = vpop.permute.xlu0 %3446
        %3448 = vrot.lane.b32.xlu0 %v3318, 124
        %v3449 = vpop.permute.xlu0 %3448
        %3450 = vrot.lane.b32.xlu0 %v3319, 124
        %v3451 = vpop.permute.xlu0 %3450
        %3452 = vrot.lane.b32.xlu0 %v3320, 124
        %v3453 = vpop.permute.xlu0 %3452
        %3454 = vrot.lane.b32.xlu0 %v3321, 124
        %v3455 = vpop.permute.xlu0 %3454
        %3456 = vrot.lane.b32.xlu0 %v3322, 124
        %v3457 = vpop.permute.xlu0 %3456
        %3458 = vrot.lane.b32.xlu0 %v3323, 124
        %v3459 = vpop.permute.xlu0 %3458
        %3460 = vrot.lane.b32.xlu0 %v3324, 124
        %v3461 = vpop.permute.xlu0 %3460
        %3462 = vrot.lane.b32.xlu0 %v3325, 124
        %v3463 = vpop.permute.xlu0 %3462
        %3464 = vrot.lane.b32.xlu0 %v3326, 124
        %v3465 = vpop.permute.xlu0 %3464
        %3466 = vrot.lane.b32.xlu0 %v3327, 124
        %v3467 = vpop.permute.xlu0 %3466
        %3468 = vrot.lane.b32.xlu0 %v3328, 124
        %v3469 = vpop.permute.xlu0 %3468
        %3470 = vrot.lane.b32.xlu0 %v3329, 124
        %v3471 = vpop.permute.xlu0 %3470
        %3472 = vrot.lane.b32.xlu0 %v3330, 124
        %v3473 = vpop.permute.xlu0 %3472
        %3474 = vrot.lane.b32.xlu0 %v3331, 124
        %v3475 = vpop.permute.xlu0 %3474
        %3476 = vrot.lane.b32.xlu0 %v3332, 124
        %v3477 = vpop.permute.xlu0 %3476
        %3478 = vrot.lane.b32.xlu0 %v3333, 124
        %v3479 = vpop.permute.xlu0 %3478
        %3480 = vrot.lane.b32.xlu0 %v3334, 124
        %v3481 = vpop.permute.xlu0 %3480
        %3482 = vrot.lane.b32.xlu0 %v3335, 124
        %v3483 = vpop.permute.xlu0 %3482
        %3484 = vrot.lane.b32.xlu0 %v3336, 124
        %v3485 = vpop.permute.xlu0 %3484
        %3486 = vrot.lane.b32.xlu0 %v3337, 124
        %v3487 = vpop.permute.xlu0 %3486
        %3488 = vrot.lane.b32.xlu0 %v3338, 124
        %v3489 = vpop.permute.xlu0 %3488
        %3490 = vrot.lane.b32.xlu0 %v3339, 124
        %v3491 = vpop.permute.xlu0 %3490
        %3492 = vrot.lane.b32.xlu0 %v3340, 124
        %v3493 = vpop.permute.xlu0 %3492
        %3494 = vrot.lane.b32.xlu0 %v3341, 124
        %v3495 = vpop.permute.xlu0 %3494
        %3496 = vrot.lane.b32.xlu0 %v3342, 124
        %v3497 = vpop.permute.xlu0 %3496
        %3498 = vrot.lane.b32.xlu0 %v3343, 124
        %v3499 = vpop.permute.xlu0 %3498
        %3500 = vrot.lane.b32.xlu0 %v3344, 124
        %v3501 = vpop.permute.xlu0 %3500
        %3502 = vrot.lane.b32.xlu0 %v3345, 124
        %v3503 = vpop.permute.xlu0 %3502
        %3504 = vrot.lane.b32.xlu0 %v3346, 124
        %v3505 = vpop.permute.xlu0 %3504
        %3506 = vrot.lane.b32.xlu0 %v3347, 124
        %v3507 = vpop.permute.xlu0 %3506
        %3508 = vrot.lane.b32.xlu0 %v3348, 124
        %v3509 = vpop.permute.xlu0 %3508
        %3510 = vrot.lane.b32.xlu0 %v3349, 124
        %v3511 = vpop.permute.xlu0 %3510
        %3512 = vrot.lane.b32.xlu0 %v3350, 124
        %v3513 = vpop.permute.xlu0 %3512
        %3514 = vrot.lane.b32.xlu0 %v3351, 124
        %v3515 = vpop.permute.xlu0 %3514
        %3516 = vrot.lane.b32.xlu0 %v3352, 124
        %v3517 = vpop.permute.xlu0 %3516
        %3518 = vrot.lane.b32.xlu0 %v3353, 124
        %v3519 = vpop.permute.xlu0 %3518
        %3520 = vrot.lane.b32.xlu0 %v3354, 124
        %v3521 = vpop.permute.xlu0 %3520
        %3522 = vrot.lane.b32.xlu0 %v3355, 124
        %v3523 = vpop.permute.xlu0 %3522
        %3524 = vrot.lane.b32.xlu0 %v3356, 124
        %v3525 = vpop.permute.xlu0 %3524
        %3526 = vrot.lane.b32.xlu0 %v3357, 124
        %v3527 = vpop.permute.xlu0 %3526
        %3528 = vrot.lane.b32.xlu0 %v3358, 124
        %v3529 = vpop.permute.xlu0 %3528
        %3530 = vrot.lane.b32.xlu0 %v3359, 124
        %v3531 = vpop.permute.xlu0 %3530
        %3532 = vrot.lane.b32.xlu0 %v3360, 124
        %v3533 = vpop.permute.xlu0 %3532
        %3534 = vrot.lane.b32.xlu0 %v3361, 124
        %v3535 = vpop.permute.xlu0 %3534
        %3536 = vrot.lane.b32.xlu0 %v3362, 124
        %v3537 = vpop.permute.xlu0 %3536
        %3538 = vrot.lane.b32.xlu0 %v3363, 124
        %v3539 = vpop.permute.xlu0 %3538
        %3540 = vrot.lane.b32.xlu0 %v3364, 124
        %v3541 = vpop.permute.xlu0 %3540
        %3542 = vrot.lane.b32.xlu0 %v3365, 124
        %v3543 = vpop.permute.xlu0 %3542
        %3544 = vrot.lane.b32.xlu0 %v3366, 124
        %v3545 = vpop.permute.xlu0 %3544
        %3546 = vrot.lane.b32.xlu0 %v3367, 124
        %v3547 = vpop.permute.xlu0 %3546
        %3548 = vrot.lane.b32.xlu0 %v3368, 124
        %v3549 = vpop.permute.xlu0 %3548
        %3550 = vrot.lane.b32.xlu0 %v3369, 124
        %v3551 = vpop.permute.xlu0 %3550
        %3552 = vrot.lane.b32.xlu0 %v3370, 124
        %v3553 = vpop.permute.xlu0 %3552
        %3554 = vrot.lane.b32.xlu0 %v3371, 124
        %v3555 = vpop.permute.xlu0 %3554
        %3556 = vrot.lane.b32.xlu0 %v3372, 124
        %v3557 = vpop.permute.xlu0 %3556
        %3558 = vrot.lane.b32.xlu0 %v3373, 124
        %v3559 = vpop.permute.xlu0 %3558
        %3560 = vrot.lane.b32.xlu0 %v3374, 124
        %v3561 = vpop.permute.xlu0 %3560
        %3562 = vrot.lane.b32.xlu0 %v3375, 124
        %v3563 = vpop.permute.xlu0 %3562
        %3564 = vrot.lane.b32.xlu0 %v3376, 124
        %v3565 = vpop.permute.xlu0 %3564
        %3566 = vrot.lane.b32.xlu0 %v3377, 124
        %v3567 = vpop.permute.xlu0 %3566
        %3568 = vrot.lane.b32.xlu0 %v3378, 124
        %v3569 = vpop.permute.xlu0 %3568
        %3570 = vrot.lane.b32.xlu0 %v3379, 124
        %v3571 = vpop.permute.xlu0 %3570
        %v3572 = vsel %vm3203, %v3445, %v3447
        %v3573 = vsel %vm3203, %v3449, %v3451
        %v3574 = vsel %vm3203, %v3453, %v3455
        %v3575 = vsel %vm3203, %v3457, %v3459
        %v3576 = vsel %vm3203, %v3461, %v3463
        %v3577 = vsel %vm3203, %v3465, %v3467
        %v3578 = vsel %vm3203, %v3469, %v3471
        %v3579 = vsel %vm3203, %v3473, %v3475
        %v3580 = vsel %vm3203, %v3477, %v3479
        %v3581 = vsel %vm3203, %v3481, %v3483
        %v3582 = vsel %vm3203, %v3485, %v3487
        %v3583 = vsel %vm3203, %v3489, %v3491
        %v3584 = vsel %vm3203, %v3493, %v3495
        %v3585 = vsel %vm3203, %v3497, %v3499
        %v3586 = vsel %vm3203, %v3501, %v3503
        %v3587 = vsel %vm3203, %v3505, %v3507
        %v3588 = vsel %vm3203, %v3509, %v3511
        %v3589 = vsel %vm3203, %v3513, %v3515
        %v3590 = vsel %vm3203, %v3517, %v3519
        %v3591 = vsel %vm3203, %v3521, %v3523
        %v3592 = vsel %vm3203, %v3525, %v3527
        %v3593 = vsel %vm3203, %v3529, %v3531
        %v3594 = vsel %vm3203, %v3533, %v3535
        %v3595 = vsel %vm3203, %v3537, %v3539
        %v3596 = vsel %vm3203, %v3541, %v3543
        %v3597 = vsel %vm3203, %v3545, %v3547
        %v3598 = vsel %vm3203, %v3549, %v3551
        %v3599 = vsel %vm3203, %v3553, %v3555
        %v3600 = vsel %vm3203, %v3557, %v3559
        %v3601 = vsel %vm3203, %v3561, %v3563
        %v3602 = vsel %vm3203, %v3565, %v3567
        %v3603 = vsel %vm3203, %v3569, %v3571
        %v3636 = vadd.f32 %v2899, %v3572
        %v3637 = vadd.f32 %v2900, %v3573
        %v3638 = vadd.f32 %v2901, %v3574
        %v3639 = vadd.f32 %v2902, %v3575
        %v3640 = vadd.f32 %v2903, %v3576
        %v3641 = vadd.f32 %v2904, %v3577
        %v3642 = vadd.f32 %v2905, %v3578
        %v3643 = vadd.f32 %v2906, %v3579
        %v3644 = vadd.f32 %v2907, %v3580
        %v3645 = vadd.f32 %v2908, %v3581
        %v3646 = vadd.f32 %v2909, %v3582
        %v3647 = vadd.f32 %v2910, %v3583
        %v3648 = vadd.f32 %v2911, %v3584
        %v3649 = vadd.f32 %v2912, %v3585
        %v3650 = vadd.f32 %v2913, %v3586
        %v3651 = vadd.f32 %v2914, %v3587
        %v3652 = vadd.f32 %v2915, %v3588
        %v3653 = vadd.f32 %v2916, %v3589
        %v3654 = vadd.f32 %v2917, %v3590
        %v3655 = vadd.f32 %v2918, %v3591
        %v3656 = vadd.f32 %v2919, %v3592
        %v3657 = vadd.f32 %v2920, %v3593
        %v3658 = vadd.f32 %v2921, %v3594
        %v3659 = vadd.f32 %v2922, %v3595
        %v3660 = vadd.f32 %v2923, %v3596
        %v3661 = vadd.f32 %v2924, %v3597
        %v3662 = vadd.f32 %v2925, %v3598
        %v3663 = vadd.f32 %v2926, %v3599
        %v3664 = vadd.f32 %v2927, %v3600
        %v3665 = vadd.f32 %v2928, %v3601
        %v3666 = vadd.f32 %v2929, %v3602
        %v3667 = vadd.f32 %v2930, %v3603
        %v3668 = vmul.f32 %v3268, %v3636
        %v3669 = vmul.f32 %v3269, %v3637
        %v3670 = vmul.f32 %v3270, %v3638
        %v3671 = vmul.f32 %v3271, %v3639
        %v3672 = vmul.f32 %v3268, %v3640
        %v3673 = vmul.f32 %v3269, %v3641
        %v3674 = vmul.f32 %v3270, %v3642
        %v3675 = vmul.f32 %v3271, %v3643
        %v3676 = vmul.f32 %v3268, %v3644
        %v3677 = vmul.f32 %v3269, %v3645
        %v3678 = vmul.f32 %v3270, %v3646
        %v3679 = vmul.f32 %v3271, %v3647
        %v3680 = vmul.f32 %v3268, %v3648
        %v3681 = vmul.f32 %v3269, %v3649
        %v3682 = vmul.f32 %v3270, %v3650
        %v3683 = vmul.f32 %v3271, %v3651
        %v3684 = vmul.f32 %v3268, %v3652
        %v3685 = vmul.f32 %v3269, %v3653
        %v3686 = vmul.f32 %v3270, %v3654
        %v3687 = vmul.f32 %v3271, %v3655
        %v3688 = vmul.f32 %v3268, %v3656
        %v3689 = vmul.f32 %v3269, %v3657
        %v3690 = vmul.f32 %v3270, %v3658
        %v3691 = vmul.f32 %v3271, %v3659
        %v3692 = vmul.f32 %v3268, %v3660
        %v3693 = vmul.f32 %v3269, %v3661
        %v3694 = vmul.f32 %v3270, %v3662
        %v3695 = vmul.f32 %v3271, %v3663
        %v3696 = vmul.f32 %v3268, %v3664
        %v3697 = vmul.f32 %v3269, %v3665
        %v3698 = vmul.f32 %v3270, %v3666
        %v3699 = vmul.f32 %v3271, %v3667
        %v3700 = vadd.f32 %v3668, %v3669
        %v3701 = vadd.f32 %v3700, %v3670
        %v3702 = vadd.f32 %v3701, %v3671
        %v3703 = vrot.slane %v3702, 4
        %v3704 = vadd.f32 %v3702, %v3703
        %v3705 = vrot.slane %v3704, 2
        %v3706 = vadd.f32 %v3704, %v3705
        %v3707 = vrot.slane %v3706, 1
        %v3708 = vadd.f32 %v3706, %v3707
        %v3709 = vadd.f32 %v3672, %v3673
        %v3710 = vadd.f32 %v3709, %v3674
        %v3711 = vadd.f32 %v3710, %v3675
        %v3712 = vrot.slane %v3711, 4
        %v3713 = vadd.f32 %v3711, %v3712
        %v3714 = vrot.slane %v3713, 2
        %v3715 = vadd.f32 %v3713, %v3714
        %v3716 = vrot.slane %v3715, 1
        %v3717 = vadd.f32 %v3715, %v3716
        %v3718 = vadd.f32 %v3676, %v3677
        %v3719 = vadd.f32 %v3718, %v3678
        %v3720 = vadd.f32 %v3719, %v3679
        %v3721 = vrot.slane %v3720, 4
        %v3722 = vadd.f32 %v3720, %v3721
        %v3723 = vrot.slane %v3722, 2
        %v3724 = vadd.f32 %v3722, %v3723
        %v3725 = vrot.slane %v3724, 1
        %v3726 = vadd.f32 %v3724, %v3725
        %v3727 = vadd.f32 %v3680, %v3681
        %v3728 = vadd.f32 %v3727, %v3682
        %v3729 = vadd.f32 %v3728, %v3683
        %v3730 = vrot.slane %v3729, 4
        %v3731 = vadd.f32 %v3729, %v3730
        %v3732 = vrot.slane %v3731, 2
        %v3733 = vadd.f32 %v3731, %v3732
        %v3734 = vrot.slane %v3733, 1
        %v3735 = vadd.f32 %v3733, %v3734
        %v3736 = vadd.f32 %v3684, %v3685
        %v3737 = vadd.f32 %v3736, %v3686
        %v3738 = vadd.f32 %v3737, %v3687
        %v3739 = vrot.slane %v3738, 4
        %v3740 = vadd.f32 %v3738, %v3739
        %v3741 = vrot.slane %v3740, 2
        %v3742 = vadd.f32 %v3740, %v3741
        %v3743 = vrot.slane %v3742, 1
        %v3744 = vadd.f32 %v3742, %v3743
        %v3745 = vadd.f32 %v3688, %v3689
        %v3746 = vadd.f32 %v3745, %v3690
        %v3747 = vadd.f32 %v3746, %v3691
        %v3748 = vrot.slane %v3747, 4
        %v3749 = vadd.f32 %v3747, %v3748
        %v3750 = vrot.slane %v3749, 2
        %v3751 = vadd.f32 %v3749, %v3750
        %v3752 = vrot.slane %v3751, 1
        %v3753 = vadd.f32 %v3751, %v3752
        %v3754 = vadd.f32 %v3692, %v3693
        %v3755 = vadd.f32 %v3754, %v3694
        %v3756 = vadd.f32 %v3755, %v3695
        %v3757 = vrot.slane %v3756, 4
        %v3758 = vadd.f32 %v3756, %v3757
        %v3759 = vrot.slane %v3758, 2
        %v3760 = vadd.f32 %v3758, %v3759
        %v3761 = vrot.slane %v3760, 1
        %v3762 = vadd.f32 %v3760, %v3761
        %v3763 = vadd.f32 %v3696, %v3697
        %v3764 = vadd.f32 %v3763, %v3698
        %v3765 = vadd.f32 %v3764, %v3699
        %v3766 = vrot.slane %v3765, 4
        %v3767 = vadd.f32 %v3765, %v3766
        %v3768 = vrot.slane %v3767, 2
        %v3769 = vadd.f32 %v3767, %v3768
        %v3770 = vrot.slane %v3769, 1
        %v3771 = vadd.f32 %v3769, %v3770
        %v3772 = vmul.f32 %v3272, %v3636
        %v3773 = vmul.f32 %v3273, %v3637
        %v3774 = vmul.f32 %v3274, %v3638
        %v3775 = vmul.f32 %v3275, %v3639
        %v3776 = vmul.f32 %v3272, %v3640
        %v3777 = vmul.f32 %v3273, %v3641
        %v3778 = vmul.f32 %v3274, %v3642
        %v3779 = vmul.f32 %v3275, %v3643
        %v3780 = vmul.f32 %v3272, %v3644
        %v3781 = vmul.f32 %v3273, %v3645
        %v3782 = vmul.f32 %v3274, %v3646
        %v3783 = vmul.f32 %v3275, %v3647
        %v3784 = vmul.f32 %v3272, %v3648
        %v3785 = vmul.f32 %v3273, %v3649
        %v3786 = vmul.f32 %v3274, %v3650
        %v3787 = vmul.f32 %v3275, %v3651
        %v3788 = vmul.f32 %v3272, %v3652
        %v3789 = vmul.f32 %v3273, %v3653
        %v3790 = vmul.f32 %v3274, %v3654
        %v3791 = vmul.f32 %v3275, %v3655
        %v3792 = vmul.f32 %v3272, %v3656
        %v3793 = vmul.f32 %v3273, %v3657
        %v3794 = vmul.f32 %v3274, %v3658
        %v3795 = vmul.f32 %v3275, %v3659
        %v3796 = vmul.f32 %v3272, %v3660
        %v3797 = vmul.f32 %v3273, %v3661
        %v3798 = vmul.f32 %v3274, %v3662
        %v3799 = vmul.f32 %v3275, %v3663
        %v3800 = vmul.f32 %v3272, %v3664
        %v3801 = vmul.f32 %v3273, %v3665
        %v3802 = vmul.f32 %v3274, %v3666
        %v3803 = vmul.f32 %v3275, %v3667
        %v3804 = vadd.f32 %v3772, %v3773
        %v3805 = vadd.f32 %v3804, %v3774
        %v3806 = vadd.f32 %v3805, %v3775
        %v3807 = vrot.slane %v3806, 4
        %v3808 = vadd.f32 %v3806, %v3807
        %v3809 = vrot.slane %v3808, 2
        %v3810 = vadd.f32 %v3808, %v3809
        %v3811 = vrot.slane %v3810, 1
        %v3812 = vadd.f32 %v3810, %v3811
        %v3813 = vadd.f32 %v3776, %v3777
        %v3814 = vadd.f32 %v3813, %v3778
        %v3815 = vadd.f32 %v3814, %v3779
        %v3816 = vrot.slane %v3815, 4
        %v3817 = vadd.f32 %v3815, %v3816
        %v3818 = vrot.slane %v3817, 2
        %v3819 = vadd.f32 %v3817, %v3818
        %v3820 = vrot.slane %v3819, 1
        %v3821 = vadd.f32 %v3819, %v3820
        %v3822 = vadd.f32 %v3780, %v3781
        %v3823 = vadd.f32 %v3822, %v3782
        %v3824 = vadd.f32 %v3823, %v3783
        %v3825 = vrot.slane %v3824, 4
        %v3826 = vadd.f32 %v3824, %v3825
        %v3827 = vrot.slane %v3826, 2
        %v3828 = vadd.f32 %v3826, %v3827
        %v3829 = vrot.slane %v3828, 1
        %v3830 = vadd.f32 %v3828, %v3829
        %v3831 = vadd.f32 %v3784, %v3785
        %v3832 = vadd.f32 %v3831, %v3786
        %v3833 = vadd.f32 %v3832, %v3787
        %v3834 = vrot.slane %v3833, 4
        %v3835 = vadd.f32 %v3833, %v3834
        %v3836 = vrot.slane %v3835, 2
        %v3837 = vadd.f32 %v3835, %v3836
        %v3838 = vrot.slane %v3837, 1
        %v3839 = vadd.f32 %v3837, %v3838
        %v3840 = vadd.f32 %v3788, %v3789
        %v3841 = vadd.f32 %v3840, %v3790
        %v3842 = vadd.f32 %v3841, %v3791
        %v3843 = vrot.slane %v3842, 4
        %v3844 = vadd.f32 %v3842, %v3843
        %v3845 = vrot.slane %v3844, 2
        %v3846 = vadd.f32 %v3844, %v3845
        %v3847 = vrot.slane %v3846, 1
        %v3848 = vadd.f32 %v3846, %v3847
        %v3849 = vadd.f32 %v3792, %v3793
        %v3850 = vadd.f32 %v3849, %v3794
        %v3851 = vadd.f32 %v3850, %v3795
        %v3852 = vrot.slane %v3851, 4
        %v3853 = vadd.f32 %v3851, %v3852
        %v3854 = vrot.slane %v3853, 2
        %v3855 = vadd.f32 %v3853, %v3854
        %v3856 = vrot.slane %v3855, 1
        %v3857 = vadd.f32 %v3855, %v3856
        %v3858 = vadd.f32 %v3796, %v3797
        %v3859 = vadd.f32 %v3858, %v3798
        %v3860 = vadd.f32 %v3859, %v3799
        %v3861 = vrot.slane %v3860, 4
        %v3862 = vadd.f32 %v3860, %v3861
        %v3863 = vrot.slane %v3862, 2
        %v3864 = vadd.f32 %v3862, %v3863
        %v3865 = vrot.slane %v3864, 1
        %v3866 = vadd.f32 %v3864, %v3865
        %v3867 = vadd.f32 %v3800, %v3801
        %v3868 = vadd.f32 %v3867, %v3802
        %v3869 = vadd.f32 %v3868, %v3803
        %v3870 = vrot.slane %v3869, 4
        %v3871 = vadd.f32 %v3869, %v3870
        %v3872 = vrot.slane %v3871, 2
        %v3873 = vadd.f32 %v3871, %v3872
        %v3874 = vrot.slane %v3873, 1
        %v3875 = vadd.f32 %v3873, %v3874
        %v3876 = vmul.f32 %v3276, %v3636
        %v3877 = vmul.f32 %v3277, %v3637
        %v3878 = vmul.f32 %v3278, %v3638
        %v3879 = vmul.f32 %v3279, %v3639
        %v3880 = vmul.f32 %v3276, %v3640
        %v3881 = vmul.f32 %v3277, %v3641
        %v3882 = vmul.f32 %v3278, %v3642
        %v3883 = vmul.f32 %v3279, %v3643
        %v3884 = vmul.f32 %v3276, %v3644
        %v3885 = vmul.f32 %v3277, %v3645
        %v3886 = vmul.f32 %v3278, %v3646
        %v3887 = vmul.f32 %v3279, %v3647
        %v3888 = vmul.f32 %v3276, %v3648
        %v3889 = vmul.f32 %v3277, %v3649
        %v3890 = vmul.f32 %v3278, %v3650
        %v3891 = vmul.f32 %v3279, %v3651
        %v3892 = vmul.f32 %v3276, %v3652
        %v3893 = vmul.f32 %v3277, %v3653
        %v3894 = vmul.f32 %v3278, %v3654
        %v3895 = vmul.f32 %v3279, %v3655
        %v3896 = vmul.f32 %v3276, %v3656
        %v3897 = vmul.f32 %v3277, %v3657
        %v3898 = vmul.f32 %v3278, %v3658
        %v3899 = vmul.f32 %v3279, %v3659
        %v3900 = vmul.f32 %v3276, %v3660
        %v3901 = vmul.f32 %v3277, %v3661
        %v3902 = vmul.f32 %v3278, %v3662
        %v3903 = vmul.f32 %v3279, %v3663
        %v3904 = vmul.f32 %v3276, %v3664
        %v3905 = vmul.f32 %v3277, %v3665
        %v3906 = vmul.f32 %v3278, %v3666
        %v3907 = vmul.f32 %v3279, %v3667
        %v3908 = vadd.f32 %v3876, %v3877
        %v3909 = vadd.f32 %v3908, %v3878
        %v3910 = vadd.f32 %v3909, %v3879
        %v3911 = vrot.slane %v3910, 4
        %v3912 = vadd.f32 %v3910, %v3911
        %v3913 = vrot.slane %v3912, 2
        %v3914 = vadd.f32 %v3912, %v3913
        %v3915 = vrot.slane %v3914, 1
        %v3916 = vadd.f32 %v3914, %v3915
        %v3917 = vadd.f32 %v3880, %v3881
        %v3918 = vadd.f32 %v3917, %v3882
        %v3919 = vadd.f32 %v3918, %v3883
        %v3920 = vrot.slane %v3919, 4
        %v3921 = vadd.f32 %v3919, %v3920
        %v3922 = vrot.slane %v3921, 2
        %v3923 = vadd.f32 %v3921, %v3922
        %v3924 = vrot.slane %v3923, 1
        %v3925 = vadd.f32 %v3923, %v3924
        %v3926 = vadd.f32 %v3884, %v3885
        %v3927 = vadd.f32 %v3926, %v3886
        %v3928 = vadd.f32 %v3927, %v3887
        %v3929 = vrot.slane %v3928, 4
        %v3930 = vadd.f32 %v3928, %v3929
        %v3931 = vrot.slane %v3930, 2
        %v3932 = vadd.f32 %v3930, %v3931
        %v3933 = vrot.slane %v3932, 1
        %v3934 = vadd.f32 %v3932, %v3933
        %v3935 = vadd.f32 %v3888, %v3889
        %v3936 = vadd.f32 %v3935, %v3890
        %v3937 = vadd.f32 %v3936, %v3891
        %v3938 = vrot.slane %v3937, 4
        %v3939 = vadd.f32 %v3937, %v3938
        %v3940 = vrot.slane %v3939, 2
        %v3941 = vadd.f32 %v3939, %v3940
        %v3942 = vrot.slane %v3941, 1
        %v3943 = vadd.f32 %v3941, %v3942
        %v3944 = vadd.f32 %v3892, %v3893
        %v3945 = vadd.f32 %v3944, %v3894
        %v3946 = vadd.f32 %v3945, %v3895
        %v3947 = vrot.slane %v3946, 4
        %v3948 = vadd.f32 %v3946, %v3947
        %v3949 = vrot.slane %v3948, 2
        %v3950 = vadd.f32 %v3948, %v3949
        %v3951 = vrot.slane %v3950, 1
        %v3952 = vadd.f32 %v3950, %v3951
        %v3953 = vadd.f32 %v3896, %v3897
        %v3954 = vadd.f32 %v3953, %v3898
        %v3955 = vadd.f32 %v3954, %v3899
        %v3956 = vrot.slane %v3955, 4
        %v3957 = vadd.f32 %v3955, %v3956
        %v3958 = vrot.slane %v3957, 2
        %v3959 = vadd.f32 %v3957, %v3958
        %v3960 = vrot.slane %v3959, 1
        %v3961 = vadd.f32 %v3959, %v3960
        %v3962 = vadd.f32 %v3900, %v3901
        %v3963 = vadd.f32 %v3962, %v3902
        %v3964 = vadd.f32 %v3963, %v3903
        %v3965 = vrot.slane %v3964, 4
        %v3966 = vadd.f32 %v3964, %v3965
        %v3967 = vrot.slane %v3966, 2
        %v3968 = vadd.f32 %v3966, %v3967
        %v3969 = vrot.slane %v3968, 1
        %v3970 = vadd.f32 %v3968, %v3969
        %v3971 = vadd.f32 %v3904, %v3905
        %v3972 = vadd.f32 %v3971, %v3906
        %v3973 = vadd.f32 %v3972, %v3907
        %v3974 = vrot.slane %v3973, 4
        %v3975 = vadd.f32 %v3973, %v3974
        %v3976 = vrot.slane %v3975, 2
        %v3977 = vadd.f32 %v3975, %v3976
        %v3978 = vrot.slane %v3977, 1
        %v3979 = vadd.f32 %v3977, %v3978
        %v3980 = vmul.f32 %v3280, %v3636
        %v3981 = vmul.f32 %v3281, %v3637
        %v3982 = vmul.f32 %v3282, %v3638
        %v3983 = vmul.f32 %v3283, %v3639
        %v3984 = vmul.f32 %v3280, %v3640
        %v3985 = vmul.f32 %v3281, %v3641
        %v3986 = vmul.f32 %v3282, %v3642
        %v3987 = vmul.f32 %v3283, %v3643
        %v3988 = vmul.f32 %v3280, %v3644
        %v3989 = vmul.f32 %v3281, %v3645
        %v3990 = vmul.f32 %v3282, %v3646
        %v3991 = vmul.f32 %v3283, %v3647
        %v3992 = vmul.f32 %v3280, %v3648
        %v3993 = vmul.f32 %v3281, %v3649
        %v3994 = vmul.f32 %v3282, %v3650
        %v3995 = vmul.f32 %v3283, %v3651
        %v3996 = vmul.f32 %v3280, %v3652
        %v3997 = vmul.f32 %v3281, %v3653
        %v3998 = vmul.f32 %v3282, %v3654
        %v3999 = vmul.f32 %v3283, %v3655
        %v4000 = vmul.f32 %v3280, %v3656
        %v4001 = vmul.f32 %v3281, %v3657
        %v4002 = vmul.f32 %v3282, %v3658
        %v4003 = vmul.f32 %v3283, %v3659
        %v4004 = vmul.f32 %v3280, %v3660
        %v4005 = vmul.f32 %v3281, %v3661
        %v4006 = vmul.f32 %v3282, %v3662
        %v4007 = vmul.f32 %v3283, %v3663
        %v4008 = vmul.f32 %v3280, %v3664
        %v4009 = vmul.f32 %v3281, %v3665
        %v4010 = vmul.f32 %v3282, %v3666
        %v4011 = vmul.f32 %v3283, %v3667
        %v4012 = vadd.f32 %v3980, %v3981
        %v4013 = vadd.f32 %v4012, %v3982
        %v4014 = vadd.f32 %v4013, %v3983
        %v4015 = vrot.slane %v4014, 4
        %v4016 = vadd.f32 %v4014, %v4015
        %v4017 = vrot.slane %v4016, 2
        %v4018 = vadd.f32 %v4016, %v4017
        %v4019 = vrot.slane %v4018, 1
        %v4020 = vadd.f32 %v4018, %v4019
        %v4021 = vadd.f32 %v3984, %v3985
        %v4022 = vadd.f32 %v4021, %v3986
        %v4023 = vadd.f32 %v4022, %v3987
        %v4024 = vrot.slane %v4023, 4
        %v4025 = vadd.f32 %v4023, %v4024
        %v4026 = vrot.slane %v4025, 2
        %v4027 = vadd.f32 %v4025, %v4026
        %v4028 = vrot.slane %v4027, 1
        %v4029 = vadd.f32 %v4027, %v4028
        %v4030 = vadd.f32 %v3988, %v3989
        %v4031 = vadd.f32 %v4030, %v3990
        %v4032 = vadd.f32 %v4031, %v3991
        %v4033 = vrot.slane %v4032, 4
        %v4034 = vadd.f32 %v4032, %v4033
        %v4035 = vrot.slane %v4034, 2
        %v4036 = vadd.f32 %v4034, %v4035
        %v4037 = vrot.slane %v4036, 1
        %v4038 = vadd.f32 %v4036, %v4037
        %v4039 = vadd.f32 %v3992, %v3993
        %v4040 = vadd.f32 %v4039, %v3994
        %v4041 = vadd.f32 %v4040, %v3995
        %v4042 = vrot.slane %v4041, 4
        %v4043 = vadd.f32 %v4041, %v4042
        %v4044 = vrot.slane %v4043, 2
        %v4045 = vadd.f32 %v4043, %v4044
        %v4046 = vrot.slane %v4045, 1
        %v4047 = vadd.f32 %v4045, %v4046
        %v4048 = vadd.f32 %v3996, %v3997
        %v4049 = vadd.f32 %v4048, %v3998
        %v4050 = vadd.f32 %v4049, %v3999
        %v4051 = vrot.slane %v4050, 4
        %v4052 = vadd.f32 %v4050, %v4051
        %v4053 = vrot.slane %v4052, 2
        %v4054 = vadd.f32 %v4052, %v4053
        %v4055 = vrot.slane %v4054, 1
        %v4056 = vadd.f32 %v4054, %v4055
        %v4057 = vadd.f32 %v4000, %v4001
        %v4058 = vadd.f32 %v4057, %v4002
        %v4059 = vadd.f32 %v4058, %v4003
        %v4060 = vrot.slane %v4059, 4
        %v4061 = vadd.f32 %v4059, %v4060
        %v4062 = vrot.slane %v4061, 2
        %v4063 = vadd.f32 %v4061, %v4062
        %v4064 = vrot.slane %v4063, 1
        %v4065 = vadd.f32 %v4063, %v4064
        %v4066 = vadd.f32 %v4004, %v4005
        %v4067 = vadd.f32 %v4066, %v4006
        %v4068 = vadd.f32 %v4067, %v4007
        %v4069 = vrot.slane %v4068, 4
        %v4070 = vadd.f32 %v4068, %v4069
        %v4071 = vrot.slane %v4070, 2
        %v4072 = vadd.f32 %v4070, %v4071
        %v4073 = vrot.slane %v4072, 1
        %v4074 = vadd.f32 %v4072, %v4073
        %v4075 = vadd.f32 %v4008, %v4009
        %v4076 = vadd.f32 %v4075, %v4010
        %v4077 = vadd.f32 %v4076, %v4011
        %v4078 = vrot.slane %v4077, 4
        %v4079 = vadd.f32 %v4077, %v4078
        %v4080 = vrot.slane %v4079, 2
        %v4081 = vadd.f32 %v4079, %v4080
        %v4082 = vrot.slane %v4081, 1
        %v4083 = vadd.f32 %v4081, %v4082
        %v4084 = vmul.f32 %v3284, %v3636
        %v4085 = vmul.f32 %v3285, %v3637
        %v4086 = vmul.f32 %v3286, %v3638
        %v4087 = vmul.f32 %v3287, %v3639
        %v4088 = vmul.f32 %v3284, %v3640
        %v4089 = vmul.f32 %v3285, %v3641
        %v4090 = vmul.f32 %v3286, %v3642
        %v4091 = vmul.f32 %v3287, %v3643
        %v4092 = vmul.f32 %v3284, %v3644
        %v4093 = vmul.f32 %v3285, %v3645
        %v4094 = vmul.f32 %v3286, %v3646
        %v4095 = vmul.f32 %v3287, %v3647
        %v4096 = vmul.f32 %v3284, %v3648
        %v4097 = vmul.f32 %v3285, %v3649
        %v4098 = vmul.f32 %v3286, %v3650
        %v4099 = vmul.f32 %v3287, %v3651
        %v4100 = vmul.f32 %v3284, %v3652
        %v4101 = vmul.f32 %v3285, %v3653
        %v4102 = vmul.f32 %v3286, %v3654
        %v4103 = vmul.f32 %v3287, %v3655
        %v4104 = vmul.f32 %v3284, %v3656
        %v4105 = vmul.f32 %v3285, %v3657
        %v4106 = vmul.f32 %v3286, %v3658
        %v4107 = vmul.f32 %v3287, %v3659
        %v4108 = vmul.f32 %v3284, %v3660
        %v4109 = vmul.f32 %v3285, %v3661
        %v4110 = vmul.f32 %v3286, %v3662
        %v4111 = vmul.f32 %v3287, %v3663
        %v4112 = vmul.f32 %v3284, %v3664
        %v4113 = vmul.f32 %v3285, %v3665
        %v4114 = vmul.f32 %v3286, %v3666
        %v4115 = vmul.f32 %v3287, %v3667
        %v4116 = vadd.f32 %v4084, %v4085
        %v4117 = vadd.f32 %v4116, %v4086
        %v4118 = vadd.f32 %v4117, %v4087
        %v4119 = vrot.slane %v4118, 4
        %v4120 = vadd.f32 %v4118, %v4119
        %v4121 = vrot.slane %v4120, 2
        %v4122 = vadd.f32 %v4120, %v4121
        %v4123 = vrot.slane %v4122, 1
        %v4124 = vadd.f32 %v4122, %v4123
        %v4125 = vadd.f32 %v4088, %v4089
        %v4126 = vadd.f32 %v4125, %v4090
        %v4127 = vadd.f32 %v4126, %v4091
        %v4128 = vrot.slane %v4127, 4
        %v4129 = vadd.f32 %v4127, %v4128
        %v4130 = vrot.slane %v4129, 2
        %v4131 = vadd.f32 %v4129, %v4130
        %v4132 = vrot.slane %v4131, 1
        %v4133 = vadd.f32 %v4131, %v4132
        %v4134 = vadd.f32 %v4092, %v4093
        %v4135 = vadd.f32 %v4134, %v4094
        %v4136 = vadd.f32 %v4135, %v4095
        %v4137 = vrot.slane %v4136, 4
        %v4138 = vadd.f32 %v4136, %v4137
        %v4139 = vrot.slane %v4138, 2
        %v4140 = vadd.f32 %v4138, %v4139
        %v4141 = vrot.slane %v4140, 1
        %v4142 = vadd.f32 %v4140, %v4141
        %v4143 = vadd.f32 %v4096, %v4097
        %v4144 = vadd.f32 %v4143, %v4098
        %v4145 = vadd.f32 %v4144, %v4099
        %v4146 = vrot.slane %v4145, 4
        %v4147 = vadd.f32 %v4145, %v4146
        %v4148 = vrot.slane %v4147, 2
        %v4149 = vadd.f32 %v4147, %v4148
        %v4150 = vrot.slane %v4149, 1
        %v4151 = vadd.f32 %v4149, %v4150
        %v4152 = vadd.f32 %v4100, %v4101
        %v4153 = vadd.f32 %v4152, %v4102
        %v4154 = vadd.f32 %v4153, %v4103
        %v4155 = vrot.slane %v4154, 4
        %v4156 = vadd.f32 %v4154, %v4155
        %v4157 = vrot.slane %v4156, 2
        %v4158 = vadd.f32 %v4156, %v4157
        %v4159 = vrot.slane %v4158, 1
        %v4160 = vadd.f32 %v4158, %v4159
        %v4161 = vadd.f32 %v4104, %v4105
        %v4162 = vadd.f32 %v4161, %v4106
        %v4163 = vadd.f32 %v4162, %v4107
        %v4164 = vrot.slane %v4163, 4
        %v4165 = vadd.f32 %v4163, %v4164
        %v4166 = vrot.slane %v4165, 2
        %v4167 = vadd.f32 %v4165, %v4166
        %v4168 = vrot.slane %v4167, 1
        %v4169 = vadd.f32 %v4167, %v4168
        %v4170 = vadd.f32 %v4108, %v4109
        %v4171 = vadd.f32 %v4170, %v4110
        %v4172 = vadd.f32 %v4171, %v4111
        %v4173 = vrot.slane %v4172, 4
        %v4174 = vadd.f32 %v4172, %v4173
        %v4175 = vrot.slane %v4174, 2
        %v4176 = vadd.f32 %v4174, %v4175
        %v4177 = vrot.slane %v4176, 1
        %v4178 = vadd.f32 %v4176, %v4177
        %v4179 = vadd.f32 %v4112, %v4113
        %v4180 = vadd.f32 %v4179, %v4114
        %v4181 = vadd.f32 %v4180, %v4115
        %v4182 = vrot.slane %v4181, 4
        %v4183 = vadd.f32 %v4181, %v4182
        %v4184 = vrot.slane %v4183, 2
        %v4185 = vadd.f32 %v4183, %v4184
        %v4186 = vrot.slane %v4185, 1
        %v4187 = vadd.f32 %v4185, %v4186
        %v4188 = vmul.f32 %v3288, %v3636
        %v4189 = vmul.f32 %v3289, %v3637
        %v4190 = vmul.f32 %v3290, %v3638
        %v4191 = vmul.f32 %v3291, %v3639
        %v4192 = vmul.f32 %v3288, %v3640
        %v4193 = vmul.f32 %v3289, %v3641
        %v4194 = vmul.f32 %v3290, %v3642
        %v4195 = vmul.f32 %v3291, %v3643
        %v4196 = vmul.f32 %v3288, %v3644
        %v4197 = vmul.f32 %v3289, %v3645
        %v4198 = vmul.f32 %v3290, %v3646
        %v4199 = vmul.f32 %v3291, %v3647
        %v4200 = vmul.f32 %v3288, %v3648
        %v4201 = vmul.f32 %v3289, %v3649
        %v4202 = vmul.f32 %v3290, %v3650
        %v4203 = vmul.f32 %v3291, %v3651
        %v4204 = vmul.f32 %v3288, %v3652
        %v4205 = vmul.f32 %v3289, %v3653
        %v4206 = vmul.f32 %v3290, %v3654
        %v4207 = vmul.f32 %v3291, %v3655
        %v4208 = vmul.f32 %v3288, %v3656
        %v4209 = vmul.f32 %v3289, %v3657
        %v4210 = vmul.f32 %v3290, %v3658
        %v4211 = vmul.f32 %v3291, %v3659
        %v4212 = vmul.f32 %v3288, %v3660
        %v4213 = vmul.f32 %v3289, %v3661
        %v4214 = vmul.f32 %v3290, %v3662
        %v4215 = vmul.f32 %v3291, %v3663
        %v4216 = vmul.f32 %v3288, %v3664
        %v4217 = vmul.f32 %v3289, %v3665
        %v4218 = vmul.f32 %v3290, %v3666
        %v4219 = vmul.f32 %v3291, %v3667
        %v4220 = vadd.f32 %v4188, %v4189
        %v4221 = vadd.f32 %v4220, %v4190
        %v4222 = vadd.f32 %v4221, %v4191
        %v4223 = vrot.slane %v4222, 4
        %v4224 = vadd.f32 %v4222, %v4223
        %v4225 = vrot.slane %v4224, 2
        %v4226 = vadd.f32 %v4224, %v4225
        %v4227 = vrot.slane %v4226, 1
        %v4228 = vadd.f32 %v4226, %v4227
        %v4229 = vadd.f32 %v4192, %v4193
        %v4230 = vadd.f32 %v4229, %v4194
        %v4231 = vadd.f32 %v4230, %v4195
        %v4232 = vrot.slane %v4231, 4
        %v4233 = vadd.f32 %v4231, %v4232
        %v4234 = vrot.slane %v4233, 2
        %v4235 = vadd.f32 %v4233, %v4234
        %v4236 = vrot.slane %v4235, 1
        %v4237 = vadd.f32 %v4235, %v4236
        %v4238 = vadd.f32 %v4196, %v4197
        %v4239 = vadd.f32 %v4238, %v4198
        %v4240 = vadd.f32 %v4239, %v4199
        %v4241 = vrot.slane %v4240, 4
        %v4242 = vadd.f32 %v4240, %v4241
        %v4243 = vrot.slane %v4242, 2
        %v4244 = vadd.f32 %v4242, %v4243
        %v4245 = vrot.slane %v4244, 1
        %v4246 = vadd.f32 %v4244, %v4245
        %v4247 = vadd.f32 %v4200, %v4201
        %v4248 = vadd.f32 %v4247, %v4202
        %v4249 = vadd.f32 %v4248, %v4203
        %v4250 = vrot.slane %v4249, 4
        %v4251 = vadd.f32 %v4249, %v4250
        %v4252 = vrot.slane %v4251, 2
        %v4253 = vadd.f32 %v4251, %v4252
        %v4254 = vrot.slane %v4253, 1
        %v4255 = vadd.f32 %v4253, %v4254
        %v4256 = vadd.f32 %v4204, %v4205
        %v4257 = vadd.f32 %v4256, %v4206
        %v4258 = vadd.f32 %v4257, %v4207
        %v4259 = vrot.slane %v4258, 4
        %v4260 = vadd.f32 %v4258, %v4259
        %v4261 = vrot.slane %v4260, 2
        %v4262 = vadd.f32 %v4260, %v4261
        %v4263 = vrot.slane %v4262, 1
        %v4264 = vadd.f32 %v4262, %v4263
        %v4265 = vadd.f32 %v4208, %v4209
        %v4266 = vadd.f32 %v4265, %v4210
        %v4267 = vadd.f32 %v4266, %v4211
        %v4268 = vrot.slane %v4267, 4
        %v4269 = vadd.f32 %v4267, %v4268
        %v4270 = vrot.slane %v4269, 2
        %v4271 = vadd.f32 %v4269, %v4270
        %v4272 = vrot.slane %v4271, 1
        %v4273 = vadd.f32 %v4271, %v4272
        %v4274 = vadd.f32 %v4212, %v4213
        %v4275 = vadd.f32 %v4274, %v4214
        %v4276 = vadd.f32 %v4275, %v4215
        %v4277 = vrot.slane %v4276, 4
        %v4278 = vadd.f32 %v4276, %v4277
        %v4279 = vrot.slane %v4278, 2
        %v4280 = vadd.f32 %v4278, %v4279
        %v4281 = vrot.slane %v4280, 1
        %v4282 = vadd.f32 %v4280, %v4281
        %v4283 = vadd.f32 %v4216, %v4217
        %v4284 = vadd.f32 %v4283, %v4218
        %v4285 = vadd.f32 %v4284, %v4219
        %v4286 = vrot.slane %v4285, 4
        %v4287 = vadd.f32 %v4285, %v4286
        %v4288 = vrot.slane %v4287, 2
        %v4289 = vadd.f32 %v4287, %v4288
        %v4290 = vrot.slane %v4289, 1
        %v4291 = vadd.f32 %v4289, %v4290
        %v4292 = vmul.f32 %v3292, %v3636
        %v4293 = vmul.f32 %v3293, %v3637
        %v4294 = vmul.f32 %v3294, %v3638
        %v4295 = vmul.f32 %v3295, %v3639
        %v4296 = vmul.f32 %v3292, %v3640
        %v4297 = vmul.f32 %v3293, %v3641
        %v4298 = vmul.f32 %v3294, %v3642
        %v4299 = vmul.f32 %v3295, %v3643
        %v4300 = vmul.f32 %v3292, %v3644
        %v4301 = vmul.f32 %v3293, %v3645
        %v4302 = vmul.f32 %v3294, %v3646
        %v4303 = vmul.f32 %v3295, %v3647
        %v4304 = vmul.f32 %v3292, %v3648
        %v4305 = vmul.f32 %v3293, %v3649
        %v4306 = vmul.f32 %v3294, %v3650
        %v4307 = vmul.f32 %v3295, %v3651
        %v4308 = vmul.f32 %v3292, %v3652
        %v4309 = vmul.f32 %v3293, %v3653
        %v4310 = vmul.f32 %v3294, %v3654
        %v4311 = vmul.f32 %v3295, %v3655
        %v4312 = vmul.f32 %v3292, %v3656
        %v4313 = vmul.f32 %v3293, %v3657
        %v4314 = vmul.f32 %v3294, %v3658
        %v4315 = vmul.f32 %v3295, %v3659
        %v4316 = vmul.f32 %v3292, %v3660
        %v4317 = vmul.f32 %v3293, %v3661
        %v4318 = vmul.f32 %v3294, %v3662
        %v4319 = vmul.f32 %v3295, %v3663
        %v4320 = vmul.f32 %v3292, %v3664
        %v4321 = vmul.f32 %v3293, %v3665
        %v4322 = vmul.f32 %v3294, %v3666
        %v4323 = vmul.f32 %v3295, %v3667
        %v4324 = vadd.f32 %v4292, %v4293
        %v4325 = vadd.f32 %v4324, %v4294
        %v4326 = vadd.f32 %v4325, %v4295
        %v4327 = vrot.slane %v4326, 4
        %v4328 = vadd.f32 %v4326, %v4327
        %v4329 = vrot.slane %v4328, 2
        %v4330 = vadd.f32 %v4328, %v4329
        %v4331 = vrot.slane %v4330, 1
        %v4332 = vadd.f32 %v4330, %v4331
        %v4333 = vadd.f32 %v4296, %v4297
        %v4334 = vadd.f32 %v4333, %v4298
        %v4335 = vadd.f32 %v4334, %v4299
        %v4336 = vrot.slane %v4335, 4
        %v4337 = vadd.f32 %v4335, %v4336
        %v4338 = vrot.slane %v4337, 2
        %v4339 = vadd.f32 %v4337, %v4338
        %v4340 = vrot.slane %v4339, 1
        %v4341 = vadd.f32 %v4339, %v4340
        %v4342 = vadd.f32 %v4300, %v4301
        %v4343 = vadd.f32 %v4342, %v4302
        %v4344 = vadd.f32 %v4343, %v4303
        %v4345 = vrot.slane %v4344, 4
        %v4346 = vadd.f32 %v4344, %v4345
        %v4347 = vrot.slane %v4346, 2
        %v4348 = vadd.f32 %v4346, %v4347
        %v4349 = vrot.slane %v4348, 1
        %v4350 = vadd.f32 %v4348, %v4349
        %v4351 = vadd.f32 %v4304, %v4305
        %v4352 = vadd.f32 %v4351, %v4306
        %v4353 = vadd.f32 %v4352, %v4307
        %v4354 = vrot.slane %v4353, 4
        %v4355 = vadd.f32 %v4353, %v4354
        %v4356 = vrot.slane %v4355, 2
        %v4357 = vadd.f32 %v4355, %v4356
        %v4358 = vrot.slane %v4357, 1
        %v4359 = vadd.f32 %v4357, %v4358
        %v4360 = vadd.f32 %v4308, %v4309
        %v4361 = vadd.f32 %v4360, %v4310
        %v4362 = vadd.f32 %v4361, %v4311
        %v4363 = vrot.slane %v4362, 4
        %v4364 = vadd.f32 %v4362, %v4363
        %v4365 = vrot.slane %v4364, 2
        %v4366 = vadd.f32 %v4364, %v4365
        %v4367 = vrot.slane %v4366, 1
        %v4368 = vadd.f32 %v4366, %v4367
        %v4369 = vadd.f32 %v4312, %v4313
        %v4370 = vadd.f32 %v4369, %v4314
        %v4371 = vadd.f32 %v4370, %v4315
        %v4372 = vrot.slane %v4371, 4
        %v4373 = vadd.f32 %v4371, %v4372
        %v4374 = vrot.slane %v4373, 2
        %v4375 = vadd.f32 %v4373, %v4374
        %v4376 = vrot.slane %v4375, 1
        %v4377 = vadd.f32 %v4375, %v4376
        %v4378 = vadd.f32 %v4316, %v4317
        %v4379 = vadd.f32 %v4378, %v4318
        %v4380 = vadd.f32 %v4379, %v4319
        %v4381 = vrot.slane %v4380, 4
        %v4382 = vadd.f32 %v4380, %v4381
        %v4383 = vrot.slane %v4382, 2
        %v4384 = vadd.f32 %v4382, %v4383
        %v4385 = vrot.slane %v4384, 1
        %v4386 = vadd.f32 %v4384, %v4385
        %v4387 = vadd.f32 %v4320, %v4321
        %v4388 = vadd.f32 %v4387, %v4322
        %v4389 = vadd.f32 %v4388, %v4323
        %v4390 = vrot.slane %v4389, 4
        %v4391 = vadd.f32 %v4389, %v4390
        %v4392 = vrot.slane %v4391, 2
        %v4393 = vadd.f32 %v4391, %v4392
        %v4394 = vrot.slane %v4393, 1
        %v4395 = vadd.f32 %v4393, %v4394
        %v4396 = vmul.f32 %v3296, %v3636
        %v4397 = vmul.f32 %v3297, %v3637
        %v4398 = vmul.f32 %v3298, %v3638
        %v4399 = vmul.f32 %v3299, %v3639
        %v4400 = vmul.f32 %v3296, %v3640
        %v4401 = vmul.f32 %v3297, %v3641
        %v4402 = vmul.f32 %v3298, %v3642
        %v4403 = vmul.f32 %v3299, %v3643
        %v4404 = vmul.f32 %v3296, %v3644
        %v4405 = vmul.f32 %v3297, %v3645
        %v4406 = vmul.f32 %v3298, %v3646
        %v4407 = vmul.f32 %v3299, %v3647
        %v4408 = vmul.f32 %v3296, %v3648
        %v4409 = vmul.f32 %v3297, %v3649
        %v4410 = vmul.f32 %v3298, %v3650
        %v4411 = vmul.f32 %v3299, %v3651
        %v4412 = vmul.f32 %v3296, %v3652
        %v4413 = vmul.f32 %v3297, %v3653
        %v4414 = vmul.f32 %v3298, %v3654
        %v4415 = vmul.f32 %v3299, %v3655
        %v4416 = vmul.f32 %v3296, %v3656
        %v4417 = vmul.f32 %v3297, %v3657
        %v4418 = vmul.f32 %v3298, %v3658
        %v4419 = vmul.f32 %v3299, %v3659
        %v4420 = vmul.f32 %v3296, %v3660
        %v4421 = vmul.f32 %v3297, %v3661
        %v4422 = vmul.f32 %v3298, %v3662
        %v4423 = vmul.f32 %v3299, %v3663
        %v4424 = vmul.f32 %v3296, %v3664
        %v4425 = vmul.f32 %v3297, %v3665
        %v4426 = vmul.f32 %v3298, %v3666
        %v4427 = vmul.f32 %v3299, %v3667
        %v4428 = vadd.f32 %v4396, %v4397
        %v4429 = vadd.f32 %v4428, %v4398
        %v4430 = vadd.f32 %v4429, %v4399
        %v4431 = vrot.slane %v4430, 4
        %v4432 = vadd.f32 %v4430, %v4431
        %v4433 = vrot.slane %v4432, 2
        %v4434 = vadd.f32 %v4432, %v4433
        %v4435 = vrot.slane %v4434, 1
        %v4436 = vadd.f32 %v4434, %v4435
        %v4437 = vadd.f32 %v4400, %v4401
        %v4438 = vadd.f32 %v4437, %v4402
        %v4439 = vadd.f32 %v4438, %v4403
        %v4440 = vrot.slane %v4439, 4
        %v4441 = vadd.f32 %v4439, %v4440
        %v4442 = vrot.slane %v4441, 2
        %v4443 = vadd.f32 %v4441, %v4442
        %v4444 = vrot.slane %v4443, 1
        %v4445 = vadd.f32 %v4443, %v4444
        %v4446 = vadd.f32 %v4404, %v4405
        %v4447 = vadd.f32 %v4446, %v4406
        %v4448 = vadd.f32 %v4447, %v4407
        %v4449 = vrot.slane %v4448, 4
        %v4450 = vadd.f32 %v4448, %v4449
        %v4451 = vrot.slane %v4450, 2
        %v4452 = vadd.f32 %v4450, %v4451
        %v4453 = vrot.slane %v4452, 1
        %v4454 = vadd.f32 %v4452, %v4453
        %v4455 = vadd.f32 %v4408, %v4409
        %v4456 = vadd.f32 %v4455, %v4410
        %v4457 = vadd.f32 %v4456, %v4411
        %v4458 = vrot.slane %v4457, 4
        %v4459 = vadd.f32 %v4457, %v4458
        %v4460 = vrot.slane %v4459, 2
        %v4461 = vadd.f32 %v4459, %v4460
        %v4462 = vrot.slane %v4461, 1
        %v4463 = vadd.f32 %v4461, %v4462
        %v4464 = vadd.f32 %v4412, %v4413
        %v4465 = vadd.f32 %v4464, %v4414
        %v4466 = vadd.f32 %v4465, %v4415
        %v4467 = vrot.slane %v4466, 4
        %v4468 = vadd.f32 %v4466, %v4467
        %v4469 = vrot.slane %v4468, 2
        %v4470 = vadd.f32 %v4468, %v4469
        %v4471 = vrot.slane %v4470, 1
        %v4472 = vadd.f32 %v4470, %v4471
        %v4473 = vadd.f32 %v4416, %v4417
        %v4474 = vadd.f32 %v4473, %v4418
        %v4475 = vadd.f32 %v4474, %v4419
        %v4476 = vrot.slane %v4475, 4
        %v4477 = vadd.f32 %v4475, %v4476
        %v4478 = vrot.slane %v4477, 2
        %v4479 = vadd.f32 %v4477, %v4478
        %v4480 = vrot.slane %v4479, 1
        %v4481 = vadd.f32 %v4479, %v4480
        %v4482 = vadd.f32 %v4420, %v4421
        %v4483 = vadd.f32 %v4482, %v4422
        %v4484 = vadd.f32 %v4483, %v4423
        %v4485 = vrot.slane %v4484, 4
        %v4486 = vadd.f32 %v4484, %v4485
        %v4487 = vrot.slane %v4486, 2
        %v4488 = vadd.f32 %v4486, %v4487
        %v4489 = vrot.slane %v4488, 1
        %v4490 = vadd.f32 %v4488, %v4489
        %v4491 = vadd.f32 %v4424, %v4425
        %v4492 = vadd.f32 %v4491, %v4426
        %v4493 = vadd.f32 %v4492, %v4427
        %v4494 = vrot.slane %v4493, 4
        %v4495 = vadd.f32 %v4493, %v4494
        %v4496 = vrot.slane %v4495, 2
        %v4497 = vadd.f32 %v4495, %v4496
        %v4498 = vrot.slane %v4497, 1
        %v4499 = vadd.f32 %v4497, %v4498
        %v4500 = vmul.f32 %v3708, %v3708
        %v4501 = vmul.f32 %v3717, %v3717
        %v4502 = vmul.f32 %v3726, %v3726
        %v4503 = vmul.f32 %v3735, %v3735
        %v4504 = vmul.f32 %v3744, %v3744
        %v4505 = vmul.f32 %v3753, %v3753
        %v4506 = vmul.f32 %v3762, %v3762
        %v4507 = vmul.f32 %v3771, %v3771
        %v4508 = vmul.f32 %v3812, %v3812
        %v4509 = vmul.f32 %v3821, %v3821
        %v4510 = vmul.f32 %v3830, %v3830
        %v4511 = vmul.f32 %v3839, %v3839
        %v4512 = vmul.f32 %v3848, %v3848
        %v4513 = vmul.f32 %v3857, %v3857
        %v4514 = vmul.f32 %v3866, %v3866
        %v4515 = vmul.f32 %v3875, %v3875
        %v4516 = vmul.f32 %v3916, %v3916
        %v4517 = vmul.f32 %v3925, %v3925
        %v4518 = vmul.f32 %v3934, %v3934
        %v4519 = vmul.f32 %v3943, %v3943
        %v4520 = vmul.f32 %v3952, %v3952
        %v4521 = vmul.f32 %v3961, %v3961
        %v4522 = vmul.f32 %v3970, %v3970
        %v4523 = vmul.f32 %v3979, %v3979
        %v4524 = vmul.f32 %v4020, %v4020
        %v4525 = vmul.f32 %v4029, %v4029
        %v4526 = vmul.f32 %v4038, %v4038
        %v4527 = vmul.f32 %v4047, %v4047
        %v4528 = vmul.f32 %v4056, %v4056
        %v4529 = vmul.f32 %v4065, %v4065
        %v4530 = vmul.f32 %v4074, %v4074
        %v4531 = vmul.f32 %v4083, %v4083
        %v4532 = vmul.f32 %v4124, %v4124
        %v4533 = vmul.f32 %v4133, %v4133
        %v4534 = vmul.f32 %v4142, %v4142
        %v4535 = vmul.f32 %v4151, %v4151
        %v4536 = vmul.f32 %v4160, %v4160
        %v4537 = vmul.f32 %v4169, %v4169
        %v4538 = vmul.f32 %v4178, %v4178
        %v4539 = vmul.f32 %v4187, %v4187
        %v4540 = vmul.f32 %v4228, %v4228
        %v4541 = vmul.f32 %v4237, %v4237
        %v4542 = vmul.f32 %v4246, %v4246
        %v4543 = vmul.f32 %v4255, %v4255
        %v4544 = vmul.f32 %v4264, %v4264
        %v4545 = vmul.f32 %v4273, %v4273
        %v4546 = vmul.f32 %v4282, %v4282
        %v4547 = vmul.f32 %v4291, %v4291
        %v4548 = vmul.f32 %v4332, %v4332
        %v4549 = vmul.f32 %v4341, %v4341
        %v4550 = vmul.f32 %v4350, %v4350
        %v4551 = vmul.f32 %v4359, %v4359
        %v4552 = vmul.f32 %v4368, %v4368
        %v4553 = vmul.f32 %v4377, %v4377
        %v4554 = vmul.f32 %v4386, %v4386
        %v4555 = vmul.f32 %v4395, %v4395
        %v4556 = vmul.f32 %v4436, %v4436
        %v4557 = vmul.f32 %v4445, %v4445
        %v4558 = vmul.f32 %v4454, %v4454
        %v4559 = vmul.f32 %v4463, %v4463
        %v4560 = vmul.f32 %v4472, %v4472
        %v4561 = vmul.f32 %v4481, %v4481
        %v4562 = vmul.f32 %v4490, %v4490
        %v4563 = vmul.f32 %v4499, %v4499
        %v4628 = vrot.slane %v4501, 7
        %vm4629 = vcmask 1041409
        %v4630 = vsel %vm4629, %v4628, %v4500
        %v4631 = vrot.slane %v4502, 6
        %vm4632 = vcmask 1042434
        %v4633 = vsel %vm4632, %v4631, %v4630
        %v4634 = vrot.slane %v4503, 5
        %vm4635 = vcmask 1043459
        %v4636 = vsel %vm4635, %v4634, %v4633
        %v4637 = vrot.slane %v4504, 4
        %vm4638 = vcmask 1044484
        %v4639 = vsel %vm4638, %v4637, %v4636
        %v4640 = vrot.slane %v4505, 3
        %vm4641 = vcmask 1045509
        %v4642 = vsel %vm4641, %v4640, %v4639
        %v4643 = vrot.slane %v4506, 2
        %vm4644 = vcmask 1046534
        %v4645 = vsel %vm4644, %v4643, %v4642
        %v4646 = vrot.slane %v4507, 1
        %vm4647 = vcmask 1047559
        %v4648 = vsel %vm4647, %v4646, %v4645
        %v4649 = vrot.slane %v4509, 7
        %v4650 = vsel %vm4629, %v4649, %v4508
        %v4651 = vrot.slane %v4510, 6
        %v4652 = vsel %vm4632, %v4651, %v4650
        %v4653 = vrot.slane %v4511, 5
        %v4654 = vsel %vm4635, %v4653, %v4652
        %v4655 = vrot.slane %v4512, 4
        %v4656 = vsel %vm4638, %v4655, %v4654
        %v4657 = vrot.slane %v4513, 3
        %v4658 = vsel %vm4641, %v4657, %v4656
        %v4659 = vrot.slane %v4514, 2
        %v4660 = vsel %vm4644, %v4659, %v4658
        %v4661 = vrot.slane %v4515, 1
        %v4662 = vsel %vm4647, %v4661, %v4660
        %v4663 = vrot.slane %v4517, 7
        %v4664 = vsel %vm4629, %v4663, %v4516
        %v4665 = vrot.slane %v4518, 6
        %v4666 = vsel %vm4632, %v4665, %v4664
        %v4667 = vrot.slane %v4519, 5
        %v4668 = vsel %vm4635, %v4667, %v4666
        %v4669 = vrot.slane %v4520, 4
        %v4670 = vsel %vm4638, %v4669, %v4668
        %v4671 = vrot.slane %v4521, 3
        %v4672 = vsel %vm4641, %v4671, %v4670
        %v4673 = vrot.slane %v4522, 2
        %v4674 = vsel %vm4644, %v4673, %v4672
        %v4675 = vrot.slane %v4523, 1
        %v4676 = vsel %vm4647, %v4675, %v4674
        %v4677 = vrot.slane %v4525, 7
        %v4678 = vsel %vm4629, %v4677, %v4524
        %v4679 = vrot.slane %v4526, 6
        %v4680 = vsel %vm4632, %v4679, %v4678
        %v4681 = vrot.slane %v4527, 5
        %v4682 = vsel %vm4635, %v4681, %v4680
        %v4683 = vrot.slane %v4528, 4
        %v4684 = vsel %vm4638, %v4683, %v4682
        %v4685 = vrot.slane %v4529, 3
        %v4686 = vsel %vm4641, %v4685, %v4684
        %v4687 = vrot.slane %v4530, 2
        %v4688 = vsel %vm4644, %v4687, %v4686
        %v4689 = vrot.slane %v4531, 1
        %v4690 = vsel %vm4647, %v4689, %v4688
        %v4691 = vrot.slane %v4533, 7
        %v4692 = vsel %vm4629, %v4691, %v4532
        %v4693 = vrot.slane %v4534, 6
        %v4694 = vsel %vm4632, %v4693, %v4692
        %v4695 = vrot.slane %v4535, 5
        %v4696 = vsel %vm4635, %v4695, %v4694
        %v4697 = vrot.slane %v4536, 4
        %v4698 = vsel %vm4638, %v4697, %v4696
        %v4699 = vrot.slane %v4537, 3
        %v4700 = vsel %vm4641, %v4699, %v4698
        %v4701 = vrot.slane %v4538, 2
        %v4702 = vsel %vm4644, %v4701, %v4700
        %v4703 = vrot.slane %v4539, 1
        %v4704 = vsel %vm4647, %v4703, %v4702
        %v4705 = vrot.slane %v4541, 7
        %v4706 = vsel %vm4629, %v4705, %v4540
        %v4707 = vrot.slane %v4542, 6
        %v4708 = vsel %vm4632, %v4707, %v4706
        %v4709 = vrot.slane %v4543, 5
        %v4710 = vsel %vm4635, %v4709, %v4708
        %v4711 = vrot.slane %v4544, 4
        %v4712 = vsel %vm4638, %v4711, %v4710
        %v4713 = vrot.slane %v4545, 3
        %v4714 = vsel %vm4641, %v4713, %v4712
        %v4715 = vrot.slane %v4546, 2
        %v4716 = vsel %vm4644, %v4715, %v4714
        %v4717 = vrot.slane %v4547, 1
        %v4718 = vsel %vm4647, %v4717, %v4716
        %v4719 = vrot.slane %v4549, 7
        %v4720 = vsel %vm4629, %v4719, %v4548
        %v4721 = vrot.slane %v4550, 6
        %v4722 = vsel %vm4632, %v4721, %v4720
        %v4723 = vrot.slane %v4551, 5
        %v4724 = vsel %vm4635, %v4723, %v4722
        %v4725 = vrot.slane %v4552, 4
        %v4726 = vsel %vm4638, %v4725, %v4724
        %v4727 = vrot.slane %v4553, 3
        %v4728 = vsel %vm4641, %v4727, %v4726
        %v4729 = vrot.slane %v4554, 2
        %v4730 = vsel %vm4644, %v4729, %v4728
        %v4731 = vrot.slane %v4555, 1
        %v4732 = vsel %vm4647, %v4731, %v4730
        %v4733 = vrot.slane %v4557, 7
        %v4734 = vsel %vm4629, %v4733, %v4556
        %v4735 = vrot.slane %v4558, 6
        %v4736 = vsel %vm4632, %v4735, %v4734
        %v4737 = vrot.slane %v4559, 5
        %v4738 = vsel %vm4635, %v4737, %v4736
        %v4739 = vrot.slane %v4560, 4
        %v4740 = vsel %vm4638, %v4739, %v4738
        %v4741 = vrot.slane %v4561, 3
        %v4742 = vsel %vm4641, %v4741, %v4740
        %v4743 = vrot.slane %v4562, 2
        %v4744 = vsel %vm4644, %v4743, %v4742
        %v4745 = vrot.slane %v4563, 1
        %v4746 = vsel %vm4647, %v4745, %v4744
        %v4755 = vrot.slane %v4648, 4
        %v4756 = vadd.f32 %v4648, %v4755
        %v4757 = vrot.slane %v4756, 2
        %v4758 = vadd.f32 %v4756, %v4757
        %v4759 = vrot.slane %v4758, 1
        %v4760 = vadd.f32 %v4758, %v4759
        %v4761 = vrot.slane %v4662, 4
        %v4762 = vadd.f32 %v4662, %v4761
        %v4763 = vrot.slane %v4762, 2
        %v4764 = vadd.f32 %v4762, %v4763
        %v4765 = vrot.slane %v4764, 1
        %v4766 = vadd.f32 %v4764, %v4765
        %v4767 = vrot.slane %v4676, 4
        %v4768 = vadd.f32 %v4676, %v4767
        %v4769 = vrot.slane %v4768, 2
        %v4770 = vadd.f32 %v4768, %v4769
        %v4771 = vrot.slane %v4770, 1
        %v4772 = vadd.f32 %v4770, %v4771
        %v4773 = vrot.slane %v4690, 4
        %v4774 = vadd.f32 %v4690, %v4773
        %v4775 = vrot.slane %v4774, 2
        %v4776 = vadd.f32 %v4774, %v4775
        %v4777 = vrot.slane %v4776, 1
        %v4778 = vadd.f32 %v4776, %v4777
        %v4779 = vrot.slane %v4704, 4
        %v4780 = vadd.f32 %v4704, %v4779
        %v4781 = vrot.slane %v4780, 2
        %v4782 = vadd.f32 %v4780, %v4781
        %v4783 = vrot.slane %v4782, 1
        %v4784 = vadd.f32 %v4782, %v4783
        %v4785 = vrot.slane %v4718, 4
        %v4786 = vadd.f32 %v4718, %v4785
        %v4787 = vrot.slane %v4786, 2
        %v4788 = vadd.f32 %v4786, %v4787
        %v4789 = vrot.slane %v4788, 1
        %v4790 = vadd.f32 %v4788, %v4789
        %v4791 = vrot.slane %v4732, 4
        %v4792 = vadd.f32 %v4732, %v4791
        %v4793 = vrot.slane %v4792, 2
        %v4794 = vadd.f32 %v4792, %v4793
        %v4795 = vrot.slane %v4794, 1
        %v4796 = vadd.f32 %v4794, %v4795
        %v4797 = vrot.slane %v4746, 4
        %v4798 = vadd.f32 %v4746, %v4797
        %v4799 = vrot.slane %v4798, 2
        %v4800 = vadd.f32 %v4798, %v4799
        %v4801 = vrot.slane %v4800, 1
        %v4802 = vadd.f32 %v4800, %v4801
        %v4803 = vmax.f32 %v4760, 1e-24
        %v4804 = vmax.f32 %v4766, 1e-24
        %v4805 = vmax.f32 %v4772, 1e-24
        %v4806 = vmax.f32 %v4778, 1e-24
        %v4807 = vmax.f32 %v4784, 1e-24
        %v4808 = vmax.f32 %v4790, 1e-24
        %v4809 = vmax.f32 %v4796, 1e-24
        %v4810 = vmax.f32 %v4802, 1e-24
        %v4811 = vrsqrt.pop %v4803
        %v4812 = vrsqrt.pop %v4804
        %v4813 = vrsqrt.pop %v4805
        %v4814 = vrsqrt.pop %v4806
        %v4815 = vrsqrt.pop %v4807
        %v4816 = vrsqrt.pop %v4808
        %v4817 = vrsqrt.pop %v4809
        %v4818 = vrsqrt.pop %v4810
        %v4819 = vlaneseq
        %v4820 = vshrl.u32 %v4819, 7
        %v4821 = vsub.s32 0, %v4820
        %v4822 = vrot.slane %v4811, %v4821
        %v4823 = vlaneseq
        %v4824 = vshrl.u32 %v4823, 7
        %v4825 = vsub.s32 0, %v4824
        %v4826 = vrot.slane %v4812, %v4825
        %v4827 = vlaneseq
        %v4828 = vshrl.u32 %v4827, 7
        %v4829 = vsub.s32 0, %v4828
        %v4830 = vrot.slane %v4813, %v4829
        %v4831 = vlaneseq
        %v4832 = vshrl.u32 %v4831, 7
        %v4833 = vsub.s32 0, %v4832
        %v4834 = vrot.slane %v4814, %v4833
        %v4835 = vlaneseq
        %v4836 = vshrl.u32 %v4835, 7
        %v4837 = vsub.s32 0, %v4836
        %v4838 = vrot.slane %v4815, %v4837
        %v4839 = vlaneseq
        %v4840 = vshrl.u32 %v4839, 7
        %v4841 = vsub.s32 0, %v4840
        %v4842 = vrot.slane %v4816, %v4841
        %v4843 = vlaneseq
        %v4844 = vshrl.u32 %v4843, 7
        %v4845 = vsub.s32 0, %v4844
        %v4846 = vrot.slane %v4817, %v4845
        %v4847 = vlaneseq
        %v4848 = vshrl.u32 %v4847, 7
        %v4849 = vsub.s32 0, %v4848
        %v4850 = vrot.slane %v4818, %v4849
        %v4851 = vmul.f32 %v3708, %v4822
        %v4852 = vmul.f32 %v3717, %v4822
        %v4853 = vmul.f32 %v3726, %v4822
        %v4854 = vmul.f32 %v3735, %v4822
        %v4855 = vmul.f32 %v3744, %v4822
        %v4856 = vmul.f32 %v3753, %v4822
        %v4857 = vmul.f32 %v3762, %v4822
        %v4858 = vmul.f32 %v3771, %v4822
        %v4859 = vmul.f32 %v3812, %v4826
        %v4860 = vmul.f32 %v3821, %v4826
        %v4861 = vmul.f32 %v3830, %v4826
        %v4862 = vmul.f32 %v3839, %v4826
        %v4863 = vmul.f32 %v3848, %v4826
        %v4864 = vmul.f32 %v3857, %v4826
        %v4865 = vmul.f32 %v3866, %v4826
        %v4866 = vmul.f32 %v3875, %v4826
        %v4867 = vmul.f32 %v3916, %v4830
        %v4868 = vmul.f32 %v3925, %v4830
        %v4869 = vmul.f32 %v3934, %v4830
        %v4870 = vmul.f32 %v3943, %v4830
        %v4871 = vmul.f32 %v3952, %v4830
        %v4872 = vmul.f32 %v3961, %v4830
        %v4873 = vmul.f32 %v3970, %v4830
        %v4874 = vmul.f32 %v3979, %v4830
        %v4875 = vmul.f32 %v4020, %v4834
        %v4876 = vmul.f32 %v4029, %v4834
        %v4877 = vmul.f32 %v4038, %v4834
        %v4878 = vmul.f32 %v4047, %v4834
        %v4879 = vmul.f32 %v4056, %v4834
        %v4880 = vmul.f32 %v4065, %v4834
        %v4881 = vmul.f32 %v4074, %v4834
        %v4882 = vmul.f32 %v4083, %v4834
        %v4883 = vmul.f32 %v4124, %v4838
        %v4884 = vmul.f32 %v4133, %v4838
        %v4885 = vmul.f32 %v4142, %v4838
        %v4886 = vmul.f32 %v4151, %v4838
        %v4887 = vmul.f32 %v4160, %v4838
        %v4888 = vmul.f32 %v4169, %v4838
        %v4889 = vmul.f32 %v4178, %v4838
        %v4890 = vmul.f32 %v4187, %v4838
        %v4891 = vmul.f32 %v4228, %v4842
        %v4892 = vmul.f32 %v4237, %v4842
        %v4893 = vmul.f32 %v4246, %v4842
        %v4894 = vmul.f32 %v4255, %v4842
        %v4895 = vmul.f32 %v4264, %v4842
        %v4896 = vmul.f32 %v4273, %v4842
        %v4897 = vmul.f32 %v4282, %v4842
        %v4898 = vmul.f32 %v4291, %v4842
        %v4899 = vmul.f32 %v4332, %v4846
        %v4900 = vmul.f32 %v4341, %v4846
        %v4901 = vmul.f32 %v4350, %v4846
        %v4902 = vmul.f32 %v4359, %v4846
        %v4903 = vmul.f32 %v4368, %v4846
        %v4904 = vmul.f32 %v4377, %v4846
        %v4905 = vmul.f32 %v4386, %v4846
        %v4906 = vmul.f32 %v4395, %v4846
        %v4907 = vmul.f32 %v4436, %v4850
        %v4908 = vmul.f32 %v4445, %v4850
        %v4909 = vmul.f32 %v4454, %v4850
        %v4910 = vmul.f32 %v4463, %v4850
        %v4911 = vmul.f32 %v4472, %v4850
        %v4912 = vmul.f32 %v4481, %v4850
        %v4913 = vmul.f32 %v4490, %v4850
        %v4914 = vmul.f32 %v4499, %v4850
        %4916 = vset.pattern.permute.xlu0 0
        %4917 = vperm.xlu0 %4916, %v282
        %v4918 = vpop.permute.xlu0 %4917
        %v4920 = vrot.slane %v4918, 1
        %v4921 = vrot.slane %v4918, 2
        %v4922 = vrot.slane %v4918, 3
        %v4923 = vrot.slane %v4918, 4
        %v4924 = vrot.slane %v4918, 5
        %v4925 = vrot.slane %v4918, 6
        %v4926 = vrot.slane %v4918, 7
        %v4934 = vmul.f32 %v4851, %v4918
        %v4935 = vmul.f32 %v4852, %v4920
        %v4936 = vmul.f32 %v4853, %v4921
        %v4937 = vmul.f32 %v4854, %v4922
        %v4938 = vmul.f32 %v4855, %v4923
        %v4939 = vmul.f32 %v4856, %v4924
        %v4940 = vmul.f32 %v4857, %v4925
        %v4941 = vmul.f32 %v4858, %v4926
        %v4942 = vmul.f32 %v4859, %v4918
        %v4943 = vmul.f32 %v4860, %v4920
        %v4944 = vmul.f32 %v4861, %v4921
        %v4945 = vmul.f32 %v4862, %v4922
        %v4946 = vmul.f32 %v4863, %v4923
        %v4947 = vmul.f32 %v4864, %v4924
        %v4948 = vmul.f32 %v4865, %v4925
        %v4949 = vmul.f32 %v4866, %v4926
        %v4950 = vmul.f32 %v4867, %v4918
        %v4951 = vmul.f32 %v4868, %v4920
        %v4952 = vmul.f32 %v4869, %v4921
        %v4953 = vmul.f32 %v4870, %v4922
        %v4954 = vmul.f32 %v4871, %v4923
        %v4955 = vmul.f32 %v4872, %v4924
        %v4956 = vmul.f32 %v4873, %v4925
        %v4957 = vmul.f32 %v4874, %v4926
        %v4958 = vmul.f32 %v4875, %v4918
        %v4959 = vmul.f32 %v4876, %v4920
        %v4960 = vmul.f32 %v4877, %v4921
        %v4961 = vmul.f32 %v4878, %v4922
        %v4962 = vmul.f32 %v4879, %v4923
        %v4963 = vmul.f32 %v4880, %v4924
        %v4964 = vmul.f32 %v4881, %v4925
        %v4965 = vmul.f32 %v4882, %v4926
        %v4966 = vmul.f32 %v4883, %v4918
        %v4967 = vmul.f32 %v4884, %v4920
        %v4968 = vmul.f32 %v4885, %v4921
        %v4969 = vmul.f32 %v4886, %v4922
        %v4970 = vmul.f32 %v4887, %v4923
        %v4971 = vmul.f32 %v4888, %v4924
        %v4972 = vmul.f32 %v4889, %v4925
        %v4973 = vmul.f32 %v4890, %v4926
        %v4974 = vmul.f32 %v4891, %v4918
        %v4975 = vmul.f32 %v4892, %v4920
        %v4976 = vmul.f32 %v4893, %v4921
        %v4977 = vmul.f32 %v4894, %v4922
        %v4978 = vmul.f32 %v4895, %v4923
        %v4979 = vmul.f32 %v4896, %v4924
        %v4980 = vmul.f32 %v4897, %v4925
        %v4981 = vmul.f32 %v4898, %v4926
        %v4982 = vmul.f32 %v4899, %v4918
        %v4983 = vmul.f32 %v4900, %v4920
        %v4984 = vmul.f32 %v4901, %v4921
        %v4985 = vmul.f32 %v4902, %v4922
        %v4986 = vmul.f32 %v4903, %v4923
        %v4987 = vmul.f32 %v4904, %v4924
        %v4988 = vmul.f32 %v4905, %v4925
        %v4989 = vmul.f32 %v4906, %v4926
        %v4990 = vmul.f32 %v4907, %v4918
        %v4991 = vmul.f32 %v4908, %v4920
        %v4992 = vmul.f32 %v4909, %v4921
        %v4993 = vmul.f32 %v4910, %v4922
        %v4994 = vmul.f32 %v4911, %v4923
        %v4995 = vmul.f32 %v4912, %v4924
        %v4996 = vmul.f32 %v4913, %v4925
        %v4997 = vmul.f32 %v4914, %v4926
        %v5062 = vrot.slane %v4935, 7
        %v5063 = vsel %vm4629, %v5062, %v4934
        %v5064 = vrot.slane %v4936, 6
        %v5065 = vsel %vm4632, %v5064, %v5063
        %v5066 = vrot.slane %v4937, 5
        %v5067 = vsel %vm4635, %v5066, %v5065
        %v5068 = vrot.slane %v4938, 4
        %v5069 = vsel %vm4638, %v5068, %v5067
        %v5070 = vrot.slane %v4939, 3
        %v5071 = vsel %vm4641, %v5070, %v5069
        %v5072 = vrot.slane %v4940, 2
        %v5073 = vsel %vm4644, %v5072, %v5071
        %v5074 = vrot.slane %v4941, 1
        %v5075 = vsel %vm4647, %v5074, %v5073
        %v5076 = vrot.slane %v4943, 7
        %v5077 = vsel %vm4629, %v5076, %v4942
        %v5078 = vrot.slane %v4944, 6
        %v5079 = vsel %vm4632, %v5078, %v5077
        %v5080 = vrot.slane %v4945, 5
        %v5081 = vsel %vm4635, %v5080, %v5079
        %v5082 = vrot.slane %v4946, 4
        %v5083 = vsel %vm4638, %v5082, %v5081
        %v5084 = vrot.slane %v4947, 3
        %v5085 = vsel %vm4641, %v5084, %v5083
        %v5086 = vrot.slane %v4948, 2
        %v5087 = vsel %vm4644, %v5086, %v5085
        %v5088 = vrot.slane %v4949, 1
        %v5089 = vsel %vm4647, %v5088, %v5087
        %v5090 = vrot.slane %v4951, 7
        %v5091 = vsel %vm4629, %v5090, %v4950
        %v5092 = vrot.slane %v4952, 6
        %v5093 = vsel %vm4632, %v5092, %v5091
        %v5094 = vrot.slane %v4953, 5
        %v5095 = vsel %vm4635, %v5094, %v5093
        %v5096 = vrot.slane %v4954, 4
        %v5097 = vsel %vm4638, %v5096, %v5095
        %v5098 = vrot.slane %v4955, 3
        %v5099 = vsel %vm4641, %v5098, %v5097
        %v5100 = vrot.slane %v4956, 2
        %v5101 = vsel %vm4644, %v5100, %v5099
        %v5102 = vrot.slane %v4957, 1
        %v5103 = vsel %vm4647, %v5102, %v5101
        %v5104 = vrot.slane %v4959, 7
        %v5105 = vsel %vm4629, %v5104, %v4958
        %v5106 = vrot.slane %v4960, 6
        %v5107 = vsel %vm4632, %v5106, %v5105
        %v5108 = vrot.slane %v4961, 5
        %v5109 = vsel %vm4635, %v5108, %v5107
        %v5110 = vrot.slane %v4962, 4
        %v5111 = vsel %vm4638, %v5110, %v5109
        %v5112 = vrot.slane %v4963, 3
        %v5113 = vsel %vm4641, %v5112, %v5111
        %v5114 = vrot.slane %v4964, 2
        %v5115 = vsel %vm4644, %v5114, %v5113
        %v5116 = vrot.slane %v4965, 1
        %v5117 = vsel %vm4647, %v5116, %v5115
        %v5118 = vrot.slane %v4967, 7
        %v5119 = vsel %vm4629, %v5118, %v4966
        %v5120 = vrot.slane %v4968, 6
        %v5121 = vsel %vm4632, %v5120, %v5119
        %v5122 = vrot.slane %v4969, 5
        %v5123 = vsel %vm4635, %v5122, %v5121
        %v5124 = vrot.slane %v4970, 4
        %v5125 = vsel %vm4638, %v5124, %v5123
        %v5126 = vrot.slane %v4971, 3
        %v5127 = vsel %vm4641, %v5126, %v5125
        %v5128 = vrot.slane %v4972, 2
        %v5129 = vsel %vm4644, %v5128, %v5127
        %v5130 = vrot.slane %v4973, 1
        %v5131 = vsel %vm4647, %v5130, %v5129
        %v5132 = vrot.slane %v4975, 7
        %v5133 = vsel %vm4629, %v5132, %v4974
        %v5134 = vrot.slane %v4976, 6
        %v5135 = vsel %vm4632, %v5134, %v5133
        %v5136 = vrot.slane %v4977, 5
        %v5137 = vsel %vm4635, %v5136, %v5135
        %v5138 = vrot.slane %v4978, 4
        %v5139 = vsel %vm4638, %v5138, %v5137
        %v5140 = vrot.slane %v4979, 3
        %v5141 = vsel %vm4641, %v5140, %v5139
        %v5142 = vrot.slane %v4980, 2
        %v5143 = vsel %vm4644, %v5142, %v5141
        %v5144 = vrot.slane %v4981, 1
        %v5145 = vsel %vm4647, %v5144, %v5143
        %v5146 = vrot.slane %v4983, 7
        %v5147 = vsel %vm4629, %v5146, %v4982
        %v5148 = vrot.slane %v4984, 6
        %v5149 = vsel %vm4632, %v5148, %v5147
        %v5150 = vrot.slane %v4985, 5
        %v5151 = vsel %vm4635, %v5150, %v5149
        %v5152 = vrot.slane %v4986, 4
        %v5153 = vsel %vm4638, %v5152, %v5151
        %v5154 = vrot.slane %v4987, 3
        %v5155 = vsel %vm4641, %v5154, %v5153
        %v5156 = vrot.slane %v4988, 2
        %v5157 = vsel %vm4644, %v5156, %v5155
        %v5158 = vrot.slane %v4989, 1
        %v5159 = vsel %vm4647, %v5158, %v5157
        %v5160 = vrot.slane %v4991, 7
        %v5161 = vsel %vm4629, %v5160, %v4990
        %v5162 = vrot.slane %v4992, 6
        %v5163 = vsel %vm4632, %v5162, %v5161
        %v5164 = vrot.slane %v4993, 5
        %v5165 = vsel %vm4635, %v5164, %v5163
        %v5166 = vrot.slane %v4994, 4
        %v5167 = vsel %vm4638, %v5166, %v5165
        %v5168 = vrot.slane %v4995, 3
        %v5169 = vsel %vm4641, %v5168, %v5167
        %v5170 = vrot.slane %v4996, 2
        %v5171 = vsel %vm4644, %v5170, %v5169
        %v5172 = vrot.slane %v4997, 1
        %v5173 = vsel %vm4647, %v5172, %v5171
        %v5182 = vrot.slane %v5075, 4
        %v5183 = vadd.f32 %v5075, %v5182
        %v5184 = vrot.slane %v5183, 2
        %v5185 = vadd.f32 %v5183, %v5184
        %v5186 = vrot.slane %v5185, 1
        %v5187 = vadd.f32 %v5185, %v5186
        %v5188 = vrot.slane %v5089, 4
        %v5189 = vadd.f32 %v5089, %v5188
        %v5190 = vrot.slane %v5189, 2
        %v5191 = vadd.f32 %v5189, %v5190
        %v5192 = vrot.slane %v5191, 1
        %v5193 = vadd.f32 %v5191, %v5192
        %v5194 = vrot.slane %v5103, 4
        %v5195 = vadd.f32 %v5103, %v5194
        %v5196 = vrot.slane %v5195, 2
        %v5197 = vadd.f32 %v5195, %v5196
        %v5198 = vrot.slane %v5197, 1
        %v5199 = vadd.f32 %v5197, %v5198
        %v5200 = vrot.slane %v5117, 4
        %v5201 = vadd.f32 %v5117, %v5200
        %v5202 = vrot.slane %v5201, 2
        %v5203 = vadd.f32 %v5201, %v5202
        %v5204 = vrot.slane %v5203, 1
        %v5205 = vadd.f32 %v5203, %v5204
        %v5206 = vrot.slane %v5131, 4
        %v5207 = vadd.f32 %v5131, %v5206
        %v5208 = vrot.slane %v5207, 2
        %v5209 = vadd.f32 %v5207, %v5208
        %v5210 = vrot.slane %v5209, 1
        %v5211 = vadd.f32 %v5209, %v5210
        %v5212 = vrot.slane %v5145, 4
        %v5213 = vadd.f32 %v5145, %v5212
        %v5214 = vrot.slane %v5213, 2
        %v5215 = vadd.f32 %v5213, %v5214
        %v5216 = vrot.slane %v5215, 1
        %v5217 = vadd.f32 %v5215, %v5216
        %v5218 = vrot.slane %v5159, 4
        %v5219 = vadd.f32 %v5159, %v5218
        %v5220 = vrot.slane %v5219, 2
        %v5221 = vadd.f32 %v5219, %v5220
        %v5222 = vrot.slane %v5221, 1
        %v5223 = vadd.f32 %v5221, %v5222
        %v5224 = vrot.slane %v5173, 4
        %v5225 = vadd.f32 %v5173, %v5224
        %v5226 = vrot.slane %v5225, 2
        %v5227 = vadd.f32 %v5225, %v5226
        %v5228 = vrot.slane %v5227, 1
        %v5229 = vadd.f32 %v5227, %v5228
        %5230 = vset.pattern.permute.xlu0 1
        %5231 = vperm.xlu0 %5230, %v282
        %v5232 = vpop.permute.xlu0 %5231
        %v5234 = vrot.slane %v5232, 1
        %v5235 = vrot.slane %v5232, 2
        %v5236 = vrot.slane %v5232, 3
        %v5237 = vrot.slane %v5232, 4
        %v5238 = vrot.slane %v5232, 5
        %v5239 = vrot.slane %v5232, 6
        %v5240 = vrot.slane %v5232, 7
        %v5248 = vmul.f32 %v4851, %v5232
        %v5249 = vmul.f32 %v4852, %v5234
        %v5250 = vmul.f32 %v4853, %v5235
        %v5251 = vmul.f32 %v4854, %v5236
        %v5252 = vmul.f32 %v4855, %v5237
        %v5253 = vmul.f32 %v4856, %v5238
        %v5254 = vmul.f32 %v4857, %v5239
        %v5255 = vmul.f32 %v4858, %v5240
        %v5256 = vmul.f32 %v4859, %v5232
        %v5257 = vmul.f32 %v4860, %v5234
        %v5258 = vmul.f32 %v4861, %v5235
        %v5259 = vmul.f32 %v4862, %v5236
        %v5260 = vmul.f32 %v4863, %v5237
        %v5261 = vmul.f32 %v4864, %v5238
        %v5262 = vmul.f32 %v4865, %v5239
        %v5263 = vmul.f32 %v4866, %v5240
        %v5264 = vmul.f32 %v4867, %v5232
        %v5265 = vmul.f32 %v4868, %v5234
        %v5266 = vmul.f32 %v4869, %v5235
        %v5267 = vmul.f32 %v4870, %v5236
        %v5268 = vmul.f32 %v4871, %v5237
        %v5269 = vmul.f32 %v4872, %v5238
        %v5270 = vmul.f32 %v4873, %v5239
        %v5271 = vmul.f32 %v4874, %v5240
        %v5272 = vmul.f32 %v4875, %v5232
        %v5273 = vmul.f32 %v4876, %v5234
        %v5274 = vmul.f32 %v4877, %v5235
        %v5275 = vmul.f32 %v4878, %v5236
        %v5276 = vmul.f32 %v4879, %v5237
        %v5277 = vmul.f32 %v4880, %v5238
        %v5278 = vmul.f32 %v4881, %v5239
        %v5279 = vmul.f32 %v4882, %v5240
        %v5280 = vmul.f32 %v4883, %v5232
        %v5281 = vmul.f32 %v4884, %v5234
        %v5282 = vmul.f32 %v4885, %v5235
        %v5283 = vmul.f32 %v4886, %v5236
        %v5284 = vmul.f32 %v4887, %v5237
        %v5285 = vmul.f32 %v4888, %v5238
        %v5286 = vmul.f32 %v4889, %v5239
        %v5287 = vmul.f32 %v4890, %v5240
        %v5288 = vmul.f32 %v4891, %v5232
        %v5289 = vmul.f32 %v4892, %v5234
        %v5290 = vmul.f32 %v4893, %v5235
        %v5291 = vmul.f32 %v4894, %v5236
        %v5292 = vmul.f32 %v4895, %v5237
        %v5293 = vmul.f32 %v4896, %v5238
        %v5294 = vmul.f32 %v4897, %v5239
        %v5295 = vmul.f32 %v4898, %v5240
        %v5296 = vmul.f32 %v4899, %v5232
        %v5297 = vmul.f32 %v4900, %v5234
        %v5298 = vmul.f32 %v4901, %v5235
        %v5299 = vmul.f32 %v4902, %v5236
        %v5300 = vmul.f32 %v4903, %v5237
        %v5301 = vmul.f32 %v4904, %v5238
        %v5302 = vmul.f32 %v4905, %v5239
        %v5303 = vmul.f32 %v4906, %v5240
        %v5304 = vmul.f32 %v4907, %v5232
        %v5305 = vmul.f32 %v4908, %v5234
        %v5306 = vmul.f32 %v4909, %v5235
        %v5307 = vmul.f32 %v4910, %v5236
        %v5308 = vmul.f32 %v4911, %v5237
        %v5309 = vmul.f32 %v4912, %v5238
        %v5310 = vmul.f32 %v4913, %v5239
        %v5311 = vmul.f32 %v4914, %v5240
        %v5376 = vrot.slane %v5249, 7
        %v5377 = vsel %vm4629, %v5376, %v5248
        %v5378 = vrot.slane %v5250, 6
        %v5379 = vsel %vm4632, %v5378, %v5377
        %v5380 = vrot.slane %v5251, 5
        %v5381 = vsel %vm4635, %v5380, %v5379
        %v5382 = vrot.slane %v5252, 4
        %v5383 = vsel %vm4638, %v5382, %v5381
        %v5384 = vrot.slane %v5253, 3
        %v5385 = vsel %vm4641, %v5384, %v5383
        %v5386 = vrot.slane %v5254, 2
        %v5387 = vsel %vm4644, %v5386, %v5385
        %v5388 = vrot.slane %v5255, 1
        %v5389 = vsel %vm4647, %v5388, %v5387
        %v5390 = vrot.slane %v5257, 7
        %v5391 = vsel %vm4629, %v5390, %v5256
        %v5392 = vrot.slane %v5258, 6
        %v5393 = vsel %vm4632, %v5392, %v5391
        %v5394 = vrot.slane %v5259, 5
        %v5395 = vsel %vm4635, %v5394, %v5393
        %v5396 = vrot.slane %v5260, 4
        %v5397 = vsel %vm4638, %v5396, %v5395
        %v5398 = vrot.slane %v5261, 3
        %v5399 = vsel %vm4641, %v5398, %v5397
        %v5400 = vrot.slane %v5262, 2
        %v5401 = vsel %vm4644, %v5400, %v5399
        %v5402 = vrot.slane %v5263, 1
        %v5403 = vsel %vm4647, %v5402, %v5401
        %v5404 = vrot.slane %v5265, 7
        %v5405 = vsel %vm4629, %v5404, %v5264
        %v5406 = vrot.slane %v5266, 6
        %v5407 = vsel %vm4632, %v5406, %v5405
        %v5408 = vrot.slane %v5267, 5
        %v5409 = vsel %vm4635, %v5408, %v5407
        %v5410 = vrot.slane %v5268, 4
        %v5411 = vsel %vm4638, %v5410, %v5409
        %v5412 = vrot.slane %v5269, 3
        %v5413 = vsel %vm4641, %v5412, %v5411
        %v5414 = vrot.slane %v5270, 2
        %v5415 = vsel %vm4644, %v5414, %v5413
        %v5416 = vrot.slane %v5271, 1
        %v5417 = vsel %vm4647, %v5416, %v5415
        %v5418 = vrot.slane %v5273, 7
        %v5419 = vsel %vm4629, %v5418, %v5272
        %v5420 = vrot.slane %v5274, 6
        %v5421 = vsel %vm4632, %v5420, %v5419
        %v5422 = vrot.slane %v5275, 5
        %v5423 = vsel %vm4635, %v5422, %v5421
        %v5424 = vrot.slane %v5276, 4
        %v5425 = vsel %vm4638, %v5424, %v5423
        %v5426 = vrot.slane %v5277, 3
        %v5427 = vsel %vm4641, %v5426, %v5425
        %v5428 = vrot.slane %v5278, 2
        %v5429 = vsel %vm4644, %v5428, %v5427
        %v5430 = vrot.slane %v5279, 1
        %v5431 = vsel %vm4647, %v5430, %v5429
        %v5432 = vrot.slane %v5281, 7
        %v5433 = vsel %vm4629, %v5432, %v5280
        %v5434 = vrot.slane %v5282, 6
        %v5435 = vsel %vm4632, %v5434, %v5433
        %v5436 = vrot.slane %v5283, 5
        %v5437 = vsel %vm4635, %v5436, %v5435
        %v5438 = vrot.slane %v5284, 4
        %v5439 = vsel %vm4638, %v5438, %v5437
        %v5440 = vrot.slane %v5285, 3
        %v5441 = vsel %vm4641, %v5440, %v5439
        %v5442 = vrot.slane %v5286, 2
        %v5443 = vsel %vm4644, %v5442, %v5441
        %v5444 = vrot.slane %v5287, 1
        %v5445 = vsel %vm4647, %v5444, %v5443
        %v5446 = vrot.slane %v5289, 7
        %v5447 = vsel %vm4629, %v5446, %v5288
        %v5448 = vrot.slane %v5290, 6
        %v5449 = vsel %vm4632, %v5448, %v5447
        %v5450 = vrot.slane %v5291, 5
        %v5451 = vsel %vm4635, %v5450, %v5449
        %v5452 = vrot.slane %v5292, 4
        %v5453 = vsel %vm4638, %v5452, %v5451
        %v5454 = vrot.slane %v5293, 3
        %v5455 = vsel %vm4641, %v5454, %v5453
        %v5456 = vrot.slane %v5294, 2
        %v5457 = vsel %vm4644, %v5456, %v5455
        %v5458 = vrot.slane %v5295, 1
        %v5459 = vsel %vm4647, %v5458, %v5457
        %v5460 = vrot.slane %v5297, 7
        %v5461 = vsel %vm4629, %v5460, %v5296
        %v5462 = vrot.slane %v5298, 6
        %v5463 = vsel %vm4632, %v5462, %v5461
        %v5464 = vrot.slane %v5299, 5
        %v5465 = vsel %vm4635, %v5464, %v5463
        %v5466 = vrot.slane %v5300, 4
        %v5467 = vsel %vm4638, %v5466, %v5465
        %v5468 = vrot.slane %v5301, 3
        %v5469 = vsel %vm4641, %v5468, %v5467
        %v5470 = vrot.slane %v5302, 2
        %v5471 = vsel %vm4644, %v5470, %v5469
        %v5472 = vrot.slane %v5303, 1
        %v5473 = vsel %vm4647, %v5472, %v5471
        %v5474 = vrot.slane %v5305, 7
        %v5475 = vsel %vm4629, %v5474, %v5304
        %v5476 = vrot.slane %v5306, 6
        %v5477 = vsel %vm4632, %v5476, %v5475
        %v5478 = vrot.slane %v5307, 5
        %v5479 = vsel %vm4635, %v5478, %v5477
        %v5480 = vrot.slane %v5308, 4
        %v5481 = vsel %vm4638, %v5480, %v5479
        %v5482 = vrot.slane %v5309, 3
        %v5483 = vsel %vm4641, %v5482, %v5481
        %v5484 = vrot.slane %v5310, 2
        %v5485 = vsel %vm4644, %v5484, %v5483
        %v5486 = vrot.slane %v5311, 1
        %v5487 = vsel %vm4647, %v5486, %v5485
        %v5496 = vrot.slane %v5389, 4
        %v5497 = vadd.f32 %v5389, %v5496
        %v5498 = vrot.slane %v5497, 2
        %v5499 = vadd.f32 %v5497, %v5498
        %v5500 = vrot.slane %v5499, 1
        %v5501 = vadd.f32 %v5499, %v5500
        %v5502 = vrot.slane %v5403, 4
        %v5503 = vadd.f32 %v5403, %v5502
        %v5504 = vrot.slane %v5503, 2
        %v5505 = vadd.f32 %v5503, %v5504
        %v5506 = vrot.slane %v5505, 1
        %v5507 = vadd.f32 %v5505, %v5506
        %v5508 = vrot.slane %v5417, 4
        %v5509 = vadd.f32 %v5417, %v5508
        %v5510 = vrot.slane %v5509, 2
        %v5511 = vadd.f32 %v5509, %v5510
        %v5512 = vrot.slane %v5511, 1
        %v5513 = vadd.f32 %v5511, %v5512
        %v5514 = vrot.slane %v5431, 4
        %v5515 = vadd.f32 %v5431, %v5514
        %v5516 = vrot.slane %v5515, 2
        %v5517 = vadd.f32 %v5515, %v5516
        %v5518 = vrot.slane %v5517, 1
        %v5519 = vadd.f32 %v5517, %v5518
        %v5520 = vrot.slane %v5445, 4
        %v5521 = vadd.f32 %v5445, %v5520
        %v5522 = vrot.slane %v5521, 2
        %v5523 = vadd.f32 %v5521, %v5522
        %v5524 = vrot.slane %v5523, 1
        %v5525 = vadd.f32 %v5523, %v5524
        %v5526 = vrot.slane %v5459, 4
        %v5527 = vadd.f32 %v5459, %v5526
        %v5528 = vrot.slane %v5527, 2
        %v5529 = vadd.f32 %v5527, %v5528
        %v5530 = vrot.slane %v5529, 1
        %v5531 = vadd.f32 %v5529, %v5530
        %v5532 = vrot.slane %v5473, 4
        %v5533 = vadd.f32 %v5473, %v5532
        %v5534 = vrot.slane %v5533, 2
        %v5535 = vadd.f32 %v5533, %v5534
        %v5536 = vrot.slane %v5535, 1
        %v5537 = vadd.f32 %v5535, %v5536
        %v5538 = vrot.slane %v5487, 4
        %v5539 = vadd.f32 %v5487, %v5538
        %v5540 = vrot.slane %v5539, 2
        %v5541 = vadd.f32 %v5539, %v5540
        %v5542 = vrot.slane %v5541, 1
        %v5543 = vadd.f32 %v5541, %v5542
        %5544 = vset.pattern.permute.xlu0 2
        %5545 = vperm.xlu0 %5544, %v282
        %v5546 = vpop.permute.xlu0 %5545
        %v5548 = vrot.slane %v5546, 1
        %v5549 = vrot.slane %v5546, 2
        %v5550 = vrot.slane %v5546, 3
        %v5551 = vrot.slane %v5546, 4
        %v5552 = vrot.slane %v5546, 5
        %v5553 = vrot.slane %v5546, 6
        %v5554 = vrot.slane %v5546, 7
        %v5562 = vmul.f32 %v4851, %v5546
        %v5563 = vmul.f32 %v4852, %v5548
        %v5564 = vmul.f32 %v4853, %v5549
        %v5565 = vmul.f32 %v4854, %v5550
        %v5566 = vmul.f32 %v4855, %v5551
        %v5567 = vmul.f32 %v4856, %v5552
        %v5568 = vmul.f32 %v4857, %v5553
        %v5569 = vmul.f32 %v4858, %v5554
        %v5570 = vmul.f32 %v4859, %v5546
        %v5571 = vmul.f32 %v4860, %v5548
        %v5572 = vmul.f32 %v4861, %v5549
        %v5573 = vmul.f32 %v4862, %v5550
        %v5574 = vmul.f32 %v4863, %v5551
        %v5575 = vmul.f32 %v4864, %v5552
        %v5576 = vmul.f32 %v4865, %v5553
        %v5577 = vmul.f32 %v4866, %v5554
        %v5578 = vmul.f32 %v4867, %v5546
        %v5579 = vmul.f32 %v4868, %v5548
        %v5580 = vmul.f32 %v4869, %v5549
        %v5581 = vmul.f32 %v4870, %v5550
        %v5582 = vmul.f32 %v4871, %v5551
        %v5583 = vmul.f32 %v4872, %v5552
        %v5584 = vmul.f32 %v4873, %v5553
        %v5585 = vmul.f32 %v4874, %v5554
        %v5586 = vmul.f32 %v4875, %v5546
        %v5587 = vmul.f32 %v4876, %v5548
        %v5588 = vmul.f32 %v4877, %v5549
        %v5589 = vmul.f32 %v4878, %v5550
        %v5590 = vmul.f32 %v4879, %v5551
        %v5591 = vmul.f32 %v4880, %v5552
        %v5592 = vmul.f32 %v4881, %v5553
        %v5593 = vmul.f32 %v4882, %v5554
        %v5594 = vmul.f32 %v4883, %v5546
        %v5595 = vmul.f32 %v4884, %v5548
        %v5596 = vmul.f32 %v4885, %v5549
        %v5597 = vmul.f32 %v4886, %v5550
        %v5598 = vmul.f32 %v4887, %v5551
        %v5599 = vmul.f32 %v4888, %v5552
        %v5600 = vmul.f32 %v4889, %v5553
        %v5601 = vmul.f32 %v4890, %v5554
        %v5602 = vmul.f32 %v4891, %v5546
        %v5603 = vmul.f32 %v4892, %v5548
        %v5604 = vmul.f32 %v4893, %v5549
        %v5605 = vmul.f32 %v4894, %v5550
        %v5606 = vmul.f32 %v4895, %v5551
        %v5607 = vmul.f32 %v4896, %v5552
        %v5608 = vmul.f32 %v4897, %v5553
        %v5609 = vmul.f32 %v4898, %v5554
        %v5610 = vmul.f32 %v4899, %v5546
        %v5611 = vmul.f32 %v4900, %v5548
        %v5612 = vmul.f32 %v4901, %v5549
        %v5613 = vmul.f32 %v4902, %v5550
        %v5614 = vmul.f32 %v4903, %v5551
        %v5615 = vmul.f32 %v4904, %v5552
        %v5616 = vmul.f32 %v4905, %v5553
        %v5617 = vmul.f32 %v4906, %v5554
        %v5618 = vmul.f32 %v4907, %v5546
        %v5619 = vmul.f32 %v4908, %v5548
        %v5620 = vmul.f32 %v4909, %v5549
        %v5621 = vmul.f32 %v4910, %v5550
        %v5622 = vmul.f32 %v4911, %v5551
        %v5623 = vmul.f32 %v4912, %v5552
        %v5624 = vmul.f32 %v4913, %v5553
        %v5625 = vmul.f32 %v4914, %v5554
        %v5690 = vrot.slane %v5563, 7
        %v5691 = vsel %vm4629, %v5690, %v5562
        %v5692 = vrot.slane %v5564, 6
        %v5693 = vsel %vm4632, %v5692, %v5691
        %v5694 = vrot.slane %v5565, 5
        %v5695 = vsel %vm4635, %v5694, %v5693
        %v5696 = vrot.slane %v5566, 4
        %v5697 = vsel %vm4638, %v5696, %v5695
        %v5698 = vrot.slane %v5567, 3
        %v5699 = vsel %vm4641, %v5698, %v5697
        %v5700 = vrot.slane %v5568, 2
        %v5701 = vsel %vm4644, %v5700, %v5699
        %v5702 = vrot.slane %v5569, 1
        %v5703 = vsel %vm4647, %v5702, %v5701
        %v5704 = vrot.slane %v5571, 7
        %v5705 = vsel %vm4629, %v5704, %v5570
        %v5706 = vrot.slane %v5572, 6
        %v5707 = vsel %vm4632, %v5706, %v5705
        %v5708 = vrot.slane %v5573, 5
        %v5709 = vsel %vm4635, %v5708, %v5707
        %v5710 = vrot.slane %v5574, 4
        %v5711 = vsel %vm4638, %v5710, %v5709
        %v5712 = vrot.slane %v5575, 3
        %v5713 = vsel %vm4641, %v5712, %v5711
        %v5714 = vrot.slane %v5576, 2
        %v5715 = vsel %vm4644, %v5714, %v5713
        %v5716 = vrot.slane %v5577, 1
        %v5717 = vsel %vm4647, %v5716, %v5715
        %v5718 = vrot.slane %v5579, 7
        %v5719 = vsel %vm4629, %v5718, %v5578
        %v5720 = vrot.slane %v5580, 6
        %v5721 = vsel %vm4632, %v5720, %v5719
        %v5722 = vrot.slane %v5581, 5
        %v5723 = vsel %vm4635, %v5722, %v5721
        %v5724 = vrot.slane %v5582, 4
        %v5725 = vsel %vm4638, %v5724, %v5723
        %v5726 = vrot.slane %v5583, 3
        %v5727 = vsel %vm4641, %v5726, %v5725
        %v5728 = vrot.slane %v5584, 2
        %v5729 = vsel %vm4644, %v5728, %v5727
        %v5730 = vrot.slane %v5585, 1
        %v5731 = vsel %vm4647, %v5730, %v5729
        %v5732 = vrot.slane %v5587, 7
        %v5733 = vsel %vm4629, %v5732, %v5586
        %v5734 = vrot.slane %v5588, 6
        %v5735 = vsel %vm4632, %v5734, %v5733
        %v5736 = vrot.slane %v5589, 5
        %v5737 = vsel %vm4635, %v5736, %v5735
        %v5738 = vrot.slane %v5590, 4
        %v5739 = vsel %vm4638, %v5738, %v5737
        %v5740 = vrot.slane %v5591, 3
        %v5741 = vsel %vm4641, %v5740, %v5739
        %v5742 = vrot.slane %v5592, 2
        %v5743 = vsel %vm4644, %v5742, %v5741
        %v5744 = vrot.slane %v5593, 1
        %v5745 = vsel %vm4647, %v5744, %v5743
        %v5746 = vrot.slane %v5595, 7
        %v5747 = vsel %vm4629, %v5746, %v5594
        %v5748 = vrot.slane %v5596, 6
        %v5749 = vsel %vm4632, %v5748, %v5747
        %v5750 = vrot.slane %v5597, 5
        %v5751 = vsel %vm4635, %v5750, %v5749
        %v5752 = vrot.slane %v5598, 4
        %v5753 = vsel %vm4638, %v5752, %v5751
        %v5754 = vrot.slane %v5599, 3
        %v5755 = vsel %vm4641, %v5754, %v5753
        %v5756 = vrot.slane %v5600, 2
        %v5757 = vsel %vm4644, %v5756, %v5755
        %v5758 = vrot.slane %v5601, 1
        %v5759 = vsel %vm4647, %v5758, %v5757
        %v5760 = vrot.slane %v5603, 7
        %v5761 = vsel %vm4629, %v5760, %v5602
        %v5762 = vrot.slane %v5604, 6
        %v5763 = vsel %vm4632, %v5762, %v5761
        %v5764 = vrot.slane %v5605, 5
        %v5765 = vsel %vm4635, %v5764, %v5763
        %v5766 = vrot.slane %v5606, 4
        %v5767 = vsel %vm4638, %v5766, %v5765
        %v5768 = vrot.slane %v5607, 3
        %v5769 = vsel %vm4641, %v5768, %v5767
        %v5770 = vrot.slane %v5608, 2
        %v5771 = vsel %vm4644, %v5770, %v5769
        %v5772 = vrot.slane %v5609, 1
        %v5773 = vsel %vm4647, %v5772, %v5771
        %v5774 = vrot.slane %v5611, 7
        %v5775 = vsel %vm4629, %v5774, %v5610
        %v5776 = vrot.slane %v5612, 6
        %v5777 = vsel %vm4632, %v5776, %v5775
        %v5778 = vrot.slane %v5613, 5
        %v5779 = vsel %vm4635, %v5778, %v5777
        %v5780 = vrot.slane %v5614, 4
        %v5781 = vsel %vm4638, %v5780, %v5779
        %v5782 = vrot.slane %v5615, 3
        %v5783 = vsel %vm4641, %v5782, %v5781
        %v5784 = vrot.slane %v5616, 2
        %v5785 = vsel %vm4644, %v5784, %v5783
        %v5786 = vrot.slane %v5617, 1
        %v5787 = vsel %vm4647, %v5786, %v5785
        %v5788 = vrot.slane %v5619, 7
        %v5789 = vsel %vm4629, %v5788, %v5618
        %v5790 = vrot.slane %v5620, 6
        %v5791 = vsel %vm4632, %v5790, %v5789
        %v5792 = vrot.slane %v5621, 5
        %v5793 = vsel %vm4635, %v5792, %v5791
        %v5794 = vrot.slane %v5622, 4
        %v5795 = vsel %vm4638, %v5794, %v5793
        %v5796 = vrot.slane %v5623, 3
        %v5797 = vsel %vm4641, %v5796, %v5795
        %v5798 = vrot.slane %v5624, 2
        %v5799 = vsel %vm4644, %v5798, %v5797
        %v5800 = vrot.slane %v5625, 1
        %v5801 = vsel %vm4647, %v5800, %v5799
        %v5810 = vrot.slane %v5703, 4
        %v5811 = vadd.f32 %v5703, %v5810
        %v5812 = vrot.slane %v5811, 2
        %v5813 = vadd.f32 %v5811, %v5812
        %v5814 = vrot.slane %v5813, 1
        %v5815 = vadd.f32 %v5813, %v5814
        %v5816 = vrot.slane %v5717, 4
        %v5817 = vadd.f32 %v5717, %v5816
        %v5818 = vrot.slane %v5817, 2
        %v5819 = vadd.f32 %v5817, %v5818
        %v5820 = vrot.slane %v5819, 1
        %v5821 = vadd.f32 %v5819, %v5820
        %v5822 = vrot.slane %v5731, 4
        %v5823 = vadd.f32 %v5731, %v5822
        %v5824 = vrot.slane %v5823, 2
        %v5825 = vadd.f32 %v5823, %v5824
        %v5826 = vrot.slane %v5825, 1
        %v5827 = vadd.f32 %v5825, %v5826
        %v5828 = vrot.slane %v5745, 4
        %v5829 = vadd.f32 %v5745, %v5828
        %v5830 = vrot.slane %v5829, 2
        %v5831 = vadd.f32 %v5829, %v5830
        %v5832 = vrot.slane %v5831, 1
        %v5833 = vadd.f32 %v5831, %v5832
        %v5834 = vrot.slane %v5759, 4
        %v5835 = vadd.f32 %v5759, %v5834
        %v5836 = vrot.slane %v5835, 2
        %v5837 = vadd.f32 %v5835, %v5836
        %v5838 = vrot.slane %v5837, 1
        %v5839 = vadd.f32 %v5837, %v5838
        %v5840 = vrot.slane %v5773, 4
        %v5841 = vadd.f32 %v5773, %v5840
        %v5842 = vrot.slane %v5841, 2
        %v5843 = vadd.f32 %v5841, %v5842
        %v5844 = vrot.slane %v5843, 1
        %v5845 = vadd.f32 %v5843, %v5844
        %v5846 = vrot.slane %v5787, 4
        %v5847 = vadd.f32 %v5787, %v5846
        %v5848 = vrot.slane %v5847, 2
        %v5849 = vadd.f32 %v5847, %v5848
        %v5850 = vrot.slane %v5849, 1
        %v5851 = vadd.f32 %v5849, %v5850
        %v5852 = vrot.slane %v5801, 4
        %v5853 = vadd.f32 %v5801, %v5852
        %v5854 = vrot.slane %v5853, 2
        %v5855 = vadd.f32 %v5853, %v5854
        %v5856 = vrot.slane %v5855, 1
        %v5857 = vadd.f32 %v5855, %v5856
        %5858 = vset.pattern.permute.xlu0 3
        %5859 = vperm.xlu0 %5858, %v282
        %v5860 = vpop.permute.xlu0 %5859
        %v5862 = vrot.slane %v5860, 1
        %v5863 = vrot.slane %v5860, 2
        %v5864 = vrot.slane %v5860, 3
        %v5865 = vrot.slane %v5860, 4
        %v5866 = vrot.slane %v5860, 5
        %v5867 = vrot.slane %v5860, 6
        %v5868 = vrot.slane %v5860, 7
        %v5876 = vmul.f32 %v4851, %v5860
        %v5877 = vmul.f32 %v4852, %v5862
        %v5878 = vmul.f32 %v4853, %v5863
        %v5879 = vmul.f32 %v4854, %v5864
        %v5880 = vmul.f32 %v4855, %v5865
        %v5881 = vmul.f32 %v4856, %v5866
        %v5882 = vmul.f32 %v4857, %v5867
        %v5883 = vmul.f32 %v4858, %v5868
        %v5884 = vmul.f32 %v4859, %v5860
        %v5885 = vmul.f32 %v4860, %v5862
        %v5886 = vmul.f32 %v4861, %v5863
        %v5887 = vmul.f32 %v4862, %v5864
        %v5888 = vmul.f32 %v4863, %v5865
        %v5889 = vmul.f32 %v4864, %v5866
        %v5890 = vmul.f32 %v4865, %v5867
        %v5891 = vmul.f32 %v4866, %v5868
        %v5892 = vmul.f32 %v4867, %v5860
        %v5893 = vmul.f32 %v4868, %v5862
        %v5894 = vmul.f32 %v4869, %v5863
        %v5895 = vmul.f32 %v4870, %v5864
        %v5896 = vmul.f32 %v4871, %v5865
        %v5897 = vmul.f32 %v4872, %v5866
        %v5898 = vmul.f32 %v4873, %v5867
        %v5899 = vmul.f32 %v4874, %v5868
        %v5900 = vmul.f32 %v4875, %v5860
        %v5901 = vmul.f32 %v4876, %v5862
        %v5902 = vmul.f32 %v4877, %v5863
        %v5903 = vmul.f32 %v4878, %v5864
        %v5904 = vmul.f32 %v4879, %v5865
        %v5905 = vmul.f32 %v4880, %v5866
        %v5906 = vmul.f32 %v4881, %v5867
        %v5907 = vmul.f32 %v4882, %v5868
        %v5908 = vmul.f32 %v4883, %v5860
        %v5909 = vmul.f32 %v4884, %v5862
        %v5910 = vmul.f32 %v4885, %v5863
        %v5911 = vmul.f32 %v4886, %v5864
        %v5912 = vmul.f32 %v4887, %v5865
        %v5913 = vmul.f32 %v4888, %v5866
        %v5914 = vmul.f32 %v4889, %v5867
        %v5915 = vmul.f32 %v4890, %v5868
        %v5916 = vmul.f32 %v4891, %v5860
        %v5917 = vmul.f32 %v4892, %v5862
        %v5918 = vmul.f32 %v4893, %v5863
        %v5919 = vmul.f32 %v4894, %v5864
        %v5920 = vmul.f32 %v4895, %v5865
        %v5921 = vmul.f32 %v4896, %v5866
        %v5922 = vmul.f32 %v4897, %v5867
        %v5923 = vmul.f32 %v4898, %v5868
        %v5924 = vmul.f32 %v4899, %v5860
        %v5925 = vmul.f32 %v4900, %v5862
        %v5926 = vmul.f32 %v4901, %v5863
        %v5927 = vmul.f32 %v4902, %v5864
        %v5928 = vmul.f32 %v4903, %v5865
        %v5929 = vmul.f32 %v4904, %v5866
        %v5930 = vmul.f32 %v4905, %v5867
        %v5931 = vmul.f32 %v4906, %v5868
        %v5932 = vmul.f32 %v4907, %v5860
        %v5933 = vmul.f32 %v4908, %v5862
        %v5934 = vmul.f32 %v4909, %v5863
        %v5935 = vmul.f32 %v4910, %v5864
        %v5936 = vmul.f32 %v4911, %v5865
        %v5937 = vmul.f32 %v4912, %v5866
        %v5938 = vmul.f32 %v4913, %v5867
        %v5939 = vmul.f32 %v4914, %v5868
        %v6004 = vrot.slane %v5877, 7
        %v6005 = vsel %vm4629, %v6004, %v5876
        %v6006 = vrot.slane %v5878, 6
        %v6007 = vsel %vm4632, %v6006, %v6005
        %v6008 = vrot.slane %v5879, 5
        %v6009 = vsel %vm4635, %v6008, %v6007
        %v6010 = vrot.slane %v5880, 4
        %v6011 = vsel %vm4638, %v6010, %v6009
        %v6012 = vrot.slane %v5881, 3
        %v6013 = vsel %vm4641, %v6012, %v6011
        %v6014 = vrot.slane %v5882, 2
        %v6015 = vsel %vm4644, %v6014, %v6013
        %v6016 = vrot.slane %v5883, 1
        %v6017 = vsel %vm4647, %v6016, %v6015
        %v6018 = vrot.slane %v5885, 7
        %v6019 = vsel %vm4629, %v6018, %v5884
        %v6020 = vrot.slane %v5886, 6
        %v6021 = vsel %vm4632, %v6020, %v6019
        %v6022 = vrot.slane %v5887, 5
        %v6023 = vsel %vm4635, %v6022, %v6021
        %v6024 = vrot.slane %v5888, 4
        %v6025 = vsel %vm4638, %v6024, %v6023
        %v6026 = vrot.slane %v5889, 3
        %v6027 = vsel %vm4641, %v6026, %v6025
        %v6028 = vrot.slane %v5890, 2
        %v6029 = vsel %vm4644, %v6028, %v6027
        %v6030 = vrot.slane %v5891, 1
        %v6031 = vsel %vm4647, %v6030, %v6029
        %v6032 = vrot.slane %v5893, 7
        %v6033 = vsel %vm4629, %v6032, %v5892
        %v6034 = vrot.slane %v5894, 6
        %v6035 = vsel %vm4632, %v6034, %v6033
        %v6036 = vrot.slane %v5895, 5
        %v6037 = vsel %vm4635, %v6036, %v6035
        %v6038 = vrot.slane %v5896, 4
        %v6039 = vsel %vm4638, %v6038, %v6037
        %v6040 = vrot.slane %v5897, 3
        %v6041 = vsel %vm4641, %v6040, %v6039
        %v6042 = vrot.slane %v5898, 2
        %v6043 = vsel %vm4644, %v6042, %v6041
        %v6044 = vrot.slane %v5899, 1
        %v6045 = vsel %vm4647, %v6044, %v6043
        %v6046 = vrot.slane %v5901, 7
        %v6047 = vsel %vm4629, %v6046, %v5900
        %v6048 = vrot.slane %v5902, 6
        %v6049 = vsel %vm4632, %v6048, %v6047
        %v6050 = vrot.slane %v5903, 5
        %v6051 = vsel %vm4635, %v6050, %v6049
        %v6052 = vrot.slane %v5904, 4
        %v6053 = vsel %vm4638, %v6052, %v6051
        %v6054 = vrot.slane %v5905, 3
        %v6055 = vsel %vm4641, %v6054, %v6053
        %v6056 = vrot.slane %v5906, 2
        %v6057 = vsel %vm4644, %v6056, %v6055
        %v6058 = vrot.slane %v5907, 1
        %v6059 = vsel %vm4647, %v6058, %v6057
        %v6060 = vrot.slane %v5909, 7
        %v6061 = vsel %vm4629, %v6060, %v5908
        %v6062 = vrot.slane %v5910, 6
        %v6063 = vsel %vm4632, %v6062, %v6061
        %v6064 = vrot.slane %v5911, 5
        %v6065 = vsel %vm4635, %v6064, %v6063
        %v6066 = vrot.slane %v5912, 4
        %v6067 = vsel %vm4638, %v6066, %v6065
        %v6068 = vrot.slane %v5913, 3
        %v6069 = vsel %vm4641, %v6068, %v6067
        %v6070 = vrot.slane %v5914, 2
        %v6071 = vsel %vm4644, %v6070, %v6069
        %v6072 = vrot.slane %v5915, 1
        %v6073 = vsel %vm4647, %v6072, %v6071
        %v6074 = vrot.slane %v5917, 7
        %v6075 = vsel %vm4629, %v6074, %v5916
        %v6076 = vrot.slane %v5918, 6
        %v6077 = vsel %vm4632, %v6076, %v6075
        %v6078 = vrot.slane %v5919, 5
        %v6079 = vsel %vm4635, %v6078, %v6077
        %v6080 = vrot.slane %v5920, 4
        %v6081 = vsel %vm4638, %v6080, %v6079
        %v6082 = vrot.slane %v5921, 3
        %v6083 = vsel %vm4641, %v6082, %v6081
        %v6084 = vrot.slane %v5922, 2
        %v6085 = vsel %vm4644, %v6084, %v6083
        %v6086 = vrot.slane %v5923, 1
        %v6087 = vsel %vm4647, %v6086, %v6085
        %v6088 = vrot.slane %v5925, 7
        %v6089 = vsel %vm4629, %v6088, %v5924
        %v6090 = vrot.slane %v5926, 6
        %v6091 = vsel %vm4632, %v6090, %v6089
        %v6092 = vrot.slane %v5927, 5
        %v6093 = vsel %vm4635, %v6092, %v6091
        %v6094 = vrot.slane %v5928, 4
        %v6095 = vsel %vm4638, %v6094, %v6093
        %v6096 = vrot.slane %v5929, 3
        %v6097 = vsel %vm4641, %v6096, %v6095
        %v6098 = vrot.slane %v5930, 2
        %v6099 = vsel %vm4644, %v6098, %v6097
        %v6100 = vrot.slane %v5931, 1
        %v6101 = vsel %vm4647, %v6100, %v6099
        %v6102 = vrot.slane %v5933, 7
        %v6103 = vsel %vm4629, %v6102, %v5932
        %v6104 = vrot.slane %v5934, 6
        %v6105 = vsel %vm4632, %v6104, %v6103
        %v6106 = vrot.slane %v5935, 5
        %v6107 = vsel %vm4635, %v6106, %v6105
        %v6108 = vrot.slane %v5936, 4
        %v6109 = vsel %vm4638, %v6108, %v6107
        %v6110 = vrot.slane %v5937, 3
        %v6111 = vsel %vm4641, %v6110, %v6109
        %v6112 = vrot.slane %v5938, 2
        %v6113 = vsel %vm4644, %v6112, %v6111
        %v6114 = vrot.slane %v5939, 1
        %v6115 = vsel %vm4647, %v6114, %v6113
        %v6124 = vrot.slane %v6017, 4
        %v6125 = vadd.f32 %v6017, %v6124
        %v6126 = vrot.slane %v6125, 2
        %v6127 = vadd.f32 %v6125, %v6126
        %v6128 = vrot.slane %v6127, 1
        %v6129 = vadd.f32 %v6127, %v6128
        %v6130 = vrot.slane %v6031, 4
        %v6131 = vadd.f32 %v6031, %v6130
        %v6132 = vrot.slane %v6131, 2
        %v6133 = vadd.f32 %v6131, %v6132
        %v6134 = vrot.slane %v6133, 1
        %v6135 = vadd.f32 %v6133, %v6134
        %v6136 = vrot.slane %v6045, 4
        %v6137 = vadd.f32 %v6045, %v6136
        %v6138 = vrot.slane %v6137, 2
        %v6139 = vadd.f32 %v6137, %v6138
        %v6140 = vrot.slane %v6139, 1
        %v6141 = vadd.f32 %v6139, %v6140
        %v6142 = vrot.slane %v6059, 4
        %v6143 = vadd.f32 %v6059, %v6142
        %v6144 = vrot.slane %v6143, 2
        %v6145 = vadd.f32 %v6143, %v6144
        %v6146 = vrot.slane %v6145, 1
        %v6147 = vadd.f32 %v6145, %v6146
        %v6148 = vrot.slane %v6073, 4
        %v6149 = vadd.f32 %v6073, %v6148
        %v6150 = vrot.slane %v6149, 2
        %v6151 = vadd.f32 %v6149, %v6150
        %v6152 = vrot.slane %v6151, 1
        %v6153 = vadd.f32 %v6151, %v6152
        %v6154 = vrot.slane %v6087, 4
        %v6155 = vadd.f32 %v6087, %v6154
        %v6156 = vrot.slane %v6155, 2
        %v6157 = vadd.f32 %v6155, %v6156
        %v6158 = vrot.slane %v6157, 1
        %v6159 = vadd.f32 %v6157, %v6158
        %v6160 = vrot.slane %v6101, 4
        %v6161 = vadd.f32 %v6101, %v6160
        %v6162 = vrot.slane %v6161, 2
        %v6163 = vadd.f32 %v6161, %v6162
        %v6164 = vrot.slane %v6163, 1
        %v6165 = vadd.f32 %v6163, %v6164
        %v6166 = vrot.slane %v6115, 4
        %v6167 = vadd.f32 %v6115, %v6166
        %v6168 = vrot.slane %v6167, 2
        %v6169 = vadd.f32 %v6167, %v6168
        %v6170 = vrot.slane %v6169, 1
        %v6171 = vadd.f32 %v6169, %v6170
        %6172 = vset.pattern.permute.xlu0 4
        %6173 = vperm.xlu0 %6172, %v282
        %v6174 = vpop.permute.xlu0 %6173
        %v6176 = vrot.slane %v6174, 1
        %v6177 = vrot.slane %v6174, 2
        %v6178 = vrot.slane %v6174, 3
        %v6179 = vrot.slane %v6174, 4
        %v6180 = vrot.slane %v6174, 5
        %v6181 = vrot.slane %v6174, 6
        %v6182 = vrot.slane %v6174, 7
        %v6190 = vmul.f32 %v4851, %v6174
        %v6191 = vmul.f32 %v4852, %v6176
        %v6192 = vmul.f32 %v4853, %v6177
        %v6193 = vmul.f32 %v4854, %v6178
        %v6194 = vmul.f32 %v4855, %v6179
        %v6195 = vmul.f32 %v4856, %v6180
        %v6196 = vmul.f32 %v4857, %v6181
        %v6197 = vmul.f32 %v4858, %v6182
        %v6198 = vmul.f32 %v4859, %v6174
        %v6199 = vmul.f32 %v4860, %v6176
        %v6200 = vmul.f32 %v4861, %v6177
        %v6201 = vmul.f32 %v4862, %v6178
        %v6202 = vmul.f32 %v4863, %v6179
        %v6203 = vmul.f32 %v4864, %v6180
        %v6204 = vmul.f32 %v4865, %v6181
        %v6205 = vmul.f32 %v4866, %v6182
        %v6206 = vmul.f32 %v4867, %v6174
        %v6207 = vmul.f32 %v4868, %v6176
        %v6208 = vmul.f32 %v4869, %v6177
        %v6209 = vmul.f32 %v4870, %v6178
        %v6210 = vmul.f32 %v4871, %v6179
        %v6211 = vmul.f32 %v4872, %v6180
        %v6212 = vmul.f32 %v4873, %v6181
        %v6213 = vmul.f32 %v4874, %v6182
        %v6214 = vmul.f32 %v4875, %v6174
        %v6215 = vmul.f32 %v4876, %v6176
        %v6216 = vmul.f32 %v4877, %v6177
        %v6217 = vmul.f32 %v4878, %v6178
        %v6218 = vmul.f32 %v4879, %v6179
        %v6219 = vmul.f32 %v4880, %v6180
        %v6220 = vmul.f32 %v4881, %v6181
        %v6221 = vmul.f32 %v4882, %v6182
        %v6222 = vmul.f32 %v4883, %v6174
        %v6223 = vmul.f32 %v4884, %v6176
        %v6224 = vmul.f32 %v4885, %v6177
        %v6225 = vmul.f32 %v4886, %v6178
        %v6226 = vmul.f32 %v4887, %v6179
        %v6227 = vmul.f32 %v4888, %v6180
        %v6228 = vmul.f32 %v4889, %v6181
        %v6229 = vmul.f32 %v4890, %v6182
        %v6230 = vmul.f32 %v4891, %v6174
        %v6231 = vmul.f32 %v4892, %v6176
        %v6232 = vmul.f32 %v4893, %v6177
        %v6233 = vmul.f32 %v4894, %v6178
        %v6234 = vmul.f32 %v4895, %v6179
        %v6235 = vmul.f32 %v4896, %v6180
        %v6236 = vmul.f32 %v4897, %v6181
        %v6237 = vmul.f32 %v4898, %v6182
        %v6238 = vmul.f32 %v4899, %v6174
        %v6239 = vmul.f32 %v4900, %v6176
        %v6240 = vmul.f32 %v4901, %v6177
        %v6241 = vmul.f32 %v4902, %v6178
        %v6242 = vmul.f32 %v4903, %v6179
        %v6243 = vmul.f32 %v4904, %v6180
        %v6244 = vmul.f32 %v4905, %v6181
        %v6245 = vmul.f32 %v4906, %v6182
        %v6246 = vmul.f32 %v4907, %v6174
        %v6247 = vmul.f32 %v4908, %v6176
        %v6248 = vmul.f32 %v4909, %v6177
        %v6249 = vmul.f32 %v4910, %v6178
        %v6250 = vmul.f32 %v4911, %v6179
        %v6251 = vmul.f32 %v4912, %v6180
        %v6252 = vmul.f32 %v4913, %v6181
        %v6253 = vmul.f32 %v4914, %v6182
        %v6318 = vrot.slane %v6191, 7
        %v6319 = vsel %vm4629, %v6318, %v6190
        %v6320 = vrot.slane %v6192, 6
        %v6321 = vsel %vm4632, %v6320, %v6319
        %v6322 = vrot.slane %v6193, 5
        %v6323 = vsel %vm4635, %v6322, %v6321
        %v6324 = vrot.slane %v6194, 4
        %v6325 = vsel %vm4638, %v6324, %v6323
        %v6326 = vrot.slane %v6195, 3
        %v6327 = vsel %vm4641, %v6326, %v6325
        %v6328 = vrot.slane %v6196, 2
        %v6329 = vsel %vm4644, %v6328, %v6327
        %v6330 = vrot.slane %v6197, 1
        %v6331 = vsel %vm4647, %v6330, %v6329
        %v6332 = vrot.slane %v6199, 7
        %v6333 = vsel %vm4629, %v6332, %v6198
        %v6334 = vrot.slane %v6200, 6
        %v6335 = vsel %vm4632, %v6334, %v6333
        %v6336 = vrot.slane %v6201, 5
        %v6337 = vsel %vm4635, %v6336, %v6335
        %v6338 = vrot.slane %v6202, 4
        %v6339 = vsel %vm4638, %v6338, %v6337
        %v6340 = vrot.slane %v6203, 3
        %v6341 = vsel %vm4641, %v6340, %v6339
        %v6342 = vrot.slane %v6204, 2
        %v6343 = vsel %vm4644, %v6342, %v6341
        %v6344 = vrot.slane %v6205, 1
        %v6345 = vsel %vm4647, %v6344, %v6343
        %v6346 = vrot.slane %v6207, 7
        %v6347 = vsel %vm4629, %v6346, %v6206
        %v6348 = vrot.slane %v6208, 6
        %v6349 = vsel %vm4632, %v6348, %v6347
        %v6350 = vrot.slane %v6209, 5
        %v6351 = vsel %vm4635, %v6350, %v6349
        %v6352 = vrot.slane %v6210, 4
        %v6353 = vsel %vm4638, %v6352, %v6351
        %v6354 = vrot.slane %v6211, 3
        %v6355 = vsel %vm4641, %v6354, %v6353
        %v6356 = vrot.slane %v6212, 2
        %v6357 = vsel %vm4644, %v6356, %v6355
        %v6358 = vrot.slane %v6213, 1
        %v6359 = vsel %vm4647, %v6358, %v6357
        %v6360 = vrot.slane %v6215, 7
        %v6361 = vsel %vm4629, %v6360, %v6214
        %v6362 = vrot.slane %v6216, 6
        %v6363 = vsel %vm4632, %v6362, %v6361
        %v6364 = vrot.slane %v6217, 5
        %v6365 = vsel %vm4635, %v6364, %v6363
        %v6366 = vrot.slane %v6218, 4
        %v6367 = vsel %vm4638, %v6366, %v6365
        %v6368 = vrot.slane %v6219, 3
        %v6369 = vsel %vm4641, %v6368, %v6367
        %v6370 = vrot.slane %v6220, 2
        %v6371 = vsel %vm4644, %v6370, %v6369
        %v6372 = vrot.slane %v6221, 1
        %v6373 = vsel %vm4647, %v6372, %v6371
        %v6374 = vrot.slane %v6223, 7
        %v6375 = vsel %vm4629, %v6374, %v6222
        %v6376 = vrot.slane %v6224, 6
        %v6377 = vsel %vm4632, %v6376, %v6375
        %v6378 = vrot.slane %v6225, 5
        %v6379 = vsel %vm4635, %v6378, %v6377
        %v6380 = vrot.slane %v6226, 4
        %v6381 = vsel %vm4638, %v6380, %v6379
        %v6382 = vrot.slane %v6227, 3
        %v6383 = vsel %vm4641, %v6382, %v6381
        %v6384 = vrot.slane %v6228, 2
        %v6385 = vsel %vm4644, %v6384, %v6383
        %v6386 = vrot.slane %v6229, 1
        %v6387 = vsel %vm4647, %v6386, %v6385
        %v6388 = vrot.slane %v6231, 7
        %v6389 = vsel %vm4629, %v6388, %v6230
        %v6390 = vrot.slane %v6232, 6
        %v6391 = vsel %vm4632, %v6390, %v6389
        %v6392 = vrot.slane %v6233, 5
        %v6393 = vsel %vm4635, %v6392, %v6391
        %v6394 = vrot.slane %v6234, 4
        %v6395 = vsel %vm4638, %v6394, %v6393
        %v6396 = vrot.slane %v6235, 3
        %v6397 = vsel %vm4641, %v6396, %v6395
        %v6398 = vrot.slane %v6236, 2
        %v6399 = vsel %vm4644, %v6398, %v6397
        %v6400 = vrot.slane %v6237, 1
        %v6401 = vsel %vm4647, %v6400, %v6399
        %v6402 = vrot.slane %v6239, 7
        %v6403 = vsel %vm4629, %v6402, %v6238
        %v6404 = vrot.slane %v6240, 6
        %v6405 = vsel %vm4632, %v6404, %v6403
        %v6406 = vrot.slane %v6241, 5
        %v6407 = vsel %vm4635, %v6406, %v6405
        %v6408 = vrot.slane %v6242, 4
        %v6409 = vsel %vm4638, %v6408, %v6407
        %v6410 = vrot.slane %v6243, 3
        %v6411 = vsel %vm4641, %v6410, %v6409
        %v6412 = vrot.slane %v6244, 2
        %v6413 = vsel %vm4644, %v6412, %v6411
        %v6414 = vrot.slane %v6245, 1
        %v6415 = vsel %vm4647, %v6414, %v6413
        %v6416 = vrot.slane %v6247, 7
        %v6417 = vsel %vm4629, %v6416, %v6246
        %v6418 = vrot.slane %v6248, 6
        %v6419 = vsel %vm4632, %v6418, %v6417
        %v6420 = vrot.slane %v6249, 5
        %v6421 = vsel %vm4635, %v6420, %v6419
        %v6422 = vrot.slane %v6250, 4
        %v6423 = vsel %vm4638, %v6422, %v6421
        %v6424 = vrot.slane %v6251, 3
        %v6425 = vsel %vm4641, %v6424, %v6423
        %v6426 = vrot.slane %v6252, 2
        %v6427 = vsel %vm4644, %v6426, %v6425
        %v6428 = vrot.slane %v6253, 1
        %v6429 = vsel %vm4647, %v6428, %v6427
        %v6438 = vrot.slane %v6331, 4
        %v6439 = vadd.f32 %v6331, %v6438
        %v6440 = vrot.slane %v6439, 2
        %v6441 = vadd.f32 %v6439, %v6440
        %v6442 = vrot.slane %v6441, 1
        %v6443 = vadd.f32 %v6441, %v6442
        %v6444 = vrot.slane %v6345, 4
        %v6445 = vadd.f32 %v6345, %v6444
        %v6446 = vrot.slane %v6445, 2
        %v6447 = vadd.f32 %v6445, %v6446
        %v6448 = vrot.slane %v6447, 1
        %v6449 = vadd.f32 %v6447, %v6448
        %v6450 = vrot.slane %v6359, 4
        %v6451 = vadd.f32 %v6359, %v6450
        %v6452 = vrot.slane %v6451, 2
        %v6453 = vadd.f32 %v6451, %v6452
        %v6454 = vrot.slane %v6453, 1
        %v6455 = vadd.f32 %v6453, %v6454
        %v6456 = vrot.slane %v6373, 4
        %v6457 = vadd.f32 %v6373, %v6456
        %v6458 = vrot.slane %v6457, 2
        %v6459 = vadd.f32 %v6457, %v6458
        %v6460 = vrot.slane %v6459, 1
        %v6461 = vadd.f32 %v6459, %v6460
        %v6462 = vrot.slane %v6387, 4
        %v6463 = vadd.f32 %v6387, %v6462
        %v6464 = vrot.slane %v6463, 2
        %v6465 = vadd.f32 %v6463, %v6464
        %v6466 = vrot.slane %v6465, 1
        %v6467 = vadd.f32 %v6465, %v6466
        %v6468 = vrot.slane %v6401, 4
        %v6469 = vadd.f32 %v6401, %v6468
        %v6470 = vrot.slane %v6469, 2
        %v6471 = vadd.f32 %v6469, %v6470
        %v6472 = vrot.slane %v6471, 1
        %v6473 = vadd.f32 %v6471, %v6472
        %v6474 = vrot.slane %v6415, 4
        %v6475 = vadd.f32 %v6415, %v6474
        %v6476 = vrot.slane %v6475, 2
        %v6477 = vadd.f32 %v6475, %v6476
        %v6478 = vrot.slane %v6477, 1
        %v6479 = vadd.f32 %v6477, %v6478
        %v6480 = vrot.slane %v6429, 4
        %v6481 = vadd.f32 %v6429, %v6480
        %v6482 = vrot.slane %v6481, 2
        %v6483 = vadd.f32 %v6481, %v6482
        %v6484 = vrot.slane %v6483, 1
        %v6485 = vadd.f32 %v6483, %v6484
        %6486 = vset.pattern.permute.xlu0 5
        %6487 = vperm.xlu0 %6486, %v282
        %v6488 = vpop.permute.xlu0 %6487
        %v6490 = vrot.slane %v6488, 1
        %v6491 = vrot.slane %v6488, 2
        %v6492 = vrot.slane %v6488, 3
        %v6493 = vrot.slane %v6488, 4
        %v6494 = vrot.slane %v6488, 5
        %v6495 = vrot.slane %v6488, 6
        %v6496 = vrot.slane %v6488, 7
        %v6504 = vmul.f32 %v4851, %v6488
        %v6505 = vmul.f32 %v4852, %v6490
        %v6506 = vmul.f32 %v4853, %v6491
        %v6507 = vmul.f32 %v4854, %v6492
        %v6508 = vmul.f32 %v4855, %v6493
        %v6509 = vmul.f32 %v4856, %v6494
        %v6510 = vmul.f32 %v4857, %v6495
        %v6511 = vmul.f32 %v4858, %v6496
        %v6512 = vmul.f32 %v4859, %v6488
        %v6513 = vmul.f32 %v4860, %v6490
        %v6514 = vmul.f32 %v4861, %v6491
        %v6515 = vmul.f32 %v4862, %v6492
        %v6516 = vmul.f32 %v4863, %v6493
        %v6517 = vmul.f32 %v4864, %v6494
        %v6518 = vmul.f32 %v4865, %v6495
        %v6519 = vmul.f32 %v4866, %v6496
        %v6520 = vmul.f32 %v4867, %v6488
        %v6521 = vmul.f32 %v4868, %v6490
        %v6522 = vmul.f32 %v4869, %v6491
        %v6523 = vmul.f32 %v4870, %v6492
        %v6524 = vmul.f32 %v4871, %v6493
        %v6525 = vmul.f32 %v4872, %v6494
        %v6526 = vmul.f32 %v4873, %v6495
        %v6527 = vmul.f32 %v4874, %v6496
        %v6528 = vmul.f32 %v4875, %v6488
        %v6529 = vmul.f32 %v4876, %v6490
        %v6530 = vmul.f32 %v4877, %v6491
        %v6531 = vmul.f32 %v4878, %v6492
        %v6532 = vmul.f32 %v4879, %v6493
        %v6533 = vmul.f32 %v4880, %v6494
        %v6534 = vmul.f32 %v4881, %v6495
        %v6535 = vmul.f32 %v4882, %v6496
        %v6536 = vmul.f32 %v4883, %v6488
        %v6537 = vmul.f32 %v4884, %v6490
        %v6538 = vmul.f32 %v4885, %v6491
        %v6539 = vmul.f32 %v4886, %v6492
        %v6540 = vmul.f32 %v4887, %v6493
        %v6541 = vmul.f32 %v4888, %v6494
        %v6542 = vmul.f32 %v4889, %v6495
        %v6543 = vmul.f32 %v4890, %v6496
        %v6544 = vmul.f32 %v4891, %v6488
        %v6545 = vmul.f32 %v4892, %v6490
        %v6546 = vmul.f32 %v4893, %v6491
        %v6547 = vmul.f32 %v4894, %v6492
        %v6548 = vmul.f32 %v4895, %v6493
        %v6549 = vmul.f32 %v4896, %v6494
        %v6550 = vmul.f32 %v4897, %v6495
        %v6551 = vmul.f32 %v4898, %v6496
        %v6552 = vmul.f32 %v4899, %v6488
        %v6553 = vmul.f32 %v4900, %v6490
        %v6554 = vmul.f32 %v4901, %v6491
        %v6555 = vmul.f32 %v4902, %v6492
        %v6556 = vmul.f32 %v4903, %v6493
        %v6557 = vmul.f32 %v4904, %v6494
        %v6558 = vmul.f32 %v4905, %v6495
        %v6559 = vmul.f32 %v4906, %v6496
        %v6560 = vmul.f32 %v4907, %v6488
        %v6561 = vmul.f32 %v4908, %v6490
        %v6562 = vmul.f32 %v4909, %v6491
        %v6563 = vmul.f32 %v4910, %v6492
        %v6564 = vmul.f32 %v4911, %v6493
        %v6565 = vmul.f32 %v4912, %v6494
        %v6566 = vmul.f32 %v4913, %v6495
        %v6567 = vmul.f32 %v4914, %v6496
        %v6632 = vrot.slane %v6505, 7
        %v6633 = vsel %vm4629, %v6632, %v6504
        %v6634 = vrot.slane %v6506, 6
        %v6635 = vsel %vm4632, %v6634, %v6633
        %v6636 = vrot.slane %v6507, 5
        %v6637 = vsel %vm4635, %v6636, %v6635
        %v6638 = vrot.slane %v6508, 4
        %v6639 = vsel %vm4638, %v6638, %v6637
        %v6640 = vrot.slane %v6509, 3
        %v6641 = vsel %vm4641, %v6640, %v6639
        %v6642 = vrot.slane %v6510, 2
        %v6643 = vsel %vm4644, %v6642, %v6641
        %v6644 = vrot.slane %v6511, 1
        %v6645 = vsel %vm4647, %v6644, %v6643
        %v6646 = vrot.slane %v6513, 7
        %v6647 = vsel %vm4629, %v6646, %v6512
        %v6648 = vrot.slane %v6514, 6
        %v6649 = vsel %vm4632, %v6648, %v6647
        %v6650 = vrot.slane %v6515, 5
        %v6651 = vsel %vm4635, %v6650, %v6649
        %v6652 = vrot.slane %v6516, 4
        %v6653 = vsel %vm4638, %v6652, %v6651
        %v6654 = vrot.slane %v6517, 3
        %v6655 = vsel %vm4641, %v6654, %v6653
        %v6656 = vrot.slane %v6518, 2
        %v6657 = vsel %vm4644, %v6656, %v6655
        %v6658 = vrot.slane %v6519, 1
        %v6659 = vsel %vm4647, %v6658, %v6657
        %v6660 = vrot.slane %v6521, 7
        %v6661 = vsel %vm4629, %v6660, %v6520
        %v6662 = vrot.slane %v6522, 6
        %v6663 = vsel %vm4632, %v6662, %v6661
        %v6664 = vrot.slane %v6523, 5
        %v6665 = vsel %vm4635, %v6664, %v6663
        %v6666 = vrot.slane %v6524, 4
        %v6667 = vsel %vm4638, %v6666, %v6665
        %v6668 = vrot.slane %v6525, 3
        %v6669 = vsel %vm4641, %v6668, %v6667
        %v6670 = vrot.slane %v6526, 2
        %v6671 = vsel %vm4644, %v6670, %v6669
        %v6672 = vrot.slane %v6527, 1
        %v6673 = vsel %vm4647, %v6672, %v6671
        %v6674 = vrot.slane %v6529, 7
        %v6675 = vsel %vm4629, %v6674, %v6528
        %v6676 = vrot.slane %v6530, 6
        %v6677 = vsel %vm4632, %v6676, %v6675
        %v6678 = vrot.slane %v6531, 5
        %v6679 = vsel %vm4635, %v6678, %v6677
        %v6680 = vrot.slane %v6532, 4
        %v6681 = vsel %vm4638, %v6680, %v6679
        %v6682 = vrot.slane %v6533, 3
        %v6683 = vsel %vm4641, %v6682, %v6681
        %v6684 = vrot.slane %v6534, 2
        %v6685 = vsel %vm4644, %v6684, %v6683
        %v6686 = vrot.slane %v6535, 1
        %v6687 = vsel %vm4647, %v6686, %v6685
        %v6688 = vrot.slane %v6537, 7
        %v6689 = vsel %vm4629, %v6688, %v6536
        %v6690 = vrot.slane %v6538, 6
        %v6691 = vsel %vm4632, %v6690, %v6689
        %v6692 = vrot.slane %v6539, 5
        %v6693 = vsel %vm4635, %v6692, %v6691
        %v6694 = vrot.slane %v6540, 4
        %v6695 = vsel %vm4638, %v6694, %v6693
        %v6696 = vrot.slane %v6541, 3
        %v6697 = vsel %vm4641, %v6696, %v6695
        %v6698 = vrot.slane %v6542, 2
        %v6699 = vsel %vm4644, %v6698, %v6697
        %v6700 = vrot.slane %v6543, 1
        %v6701 = vsel %vm4647, %v6700, %v6699
        %v6702 = vrot.slane %v6545, 7
        %v6703 = vsel %vm4629, %v6702, %v6544
        %v6704 = vrot.slane %v6546, 6
        %v6705 = vsel %vm4632, %v6704, %v6703
        %v6706 = vrot.slane %v6547, 5
        %v6707 = vsel %vm4635, %v6706, %v6705
        %v6708 = vrot.slane %v6548, 4
        %v6709 = vsel %vm4638, %v6708, %v6707
        %v6710 = vrot.slane %v6549, 3
        %v6711 = vsel %vm4641, %v6710, %v6709
        %v6712 = vrot.slane %v6550, 2
        %v6713 = vsel %vm4644, %v6712, %v6711
        %v6714 = vrot.slane %v6551, 1
        %v6715 = vsel %vm4647, %v6714, %v6713
        %v6716 = vrot.slane %v6553, 7
        %v6717 = vsel %vm4629, %v6716, %v6552
        %v6718 = vrot.slane %v6554, 6
        %v6719 = vsel %vm4632, %v6718, %v6717
        %v6720 = vrot.slane %v6555, 5
        %v6721 = vsel %vm4635, %v6720, %v6719
        %v6722 = vrot.slane %v6556, 4
        %v6723 = vsel %vm4638, %v6722, %v6721
        %v6724 = vrot.slane %v6557, 3
        %v6725 = vsel %vm4641, %v6724, %v6723
        %v6726 = vrot.slane %v6558, 2
        %v6727 = vsel %vm4644, %v6726, %v6725
        %v6728 = vrot.slane %v6559, 1
        %v6729 = vsel %vm4647, %v6728, %v6727
        %v6730 = vrot.slane %v6561, 7
        %v6731 = vsel %vm4629, %v6730, %v6560
        %v6732 = vrot.slane %v6562, 6
        %v6733 = vsel %vm4632, %v6732, %v6731
        %v6734 = vrot.slane %v6563, 5
        %v6735 = vsel %vm4635, %v6734, %v6733
        %v6736 = vrot.slane %v6564, 4
        %v6737 = vsel %vm4638, %v6736, %v6735
        %v6738 = vrot.slane %v6565, 3
        %v6739 = vsel %vm4641, %v6738, %v6737
        %v6740 = vrot.slane %v6566, 2
        %v6741 = vsel %vm4644, %v6740, %v6739
        %v6742 = vrot.slane %v6567, 1
        %v6743 = vsel %vm4647, %v6742, %v6741
        %v6752 = vrot.slane %v6645, 4
        %v6753 = vadd.f32 %v6645, %v6752
        %v6754 = vrot.slane %v6753, 2
        %v6755 = vadd.f32 %v6753, %v6754
        %v6756 = vrot.slane %v6755, 1
        %v6757 = vadd.f32 %v6755, %v6756
        %v6758 = vrot.slane %v6659, 4
        %v6759 = vadd.f32 %v6659, %v6758
        %v6760 = vrot.slane %v6759, 2
        %v6761 = vadd.f32 %v6759, %v6760
        %v6762 = vrot.slane %v6761, 1
        %v6763 = vadd.f32 %v6761, %v6762
        %v6764 = vrot.slane %v6673, 4
        %v6765 = vadd.f32 %v6673, %v6764
        %v6766 = vrot.slane %v6765, 2
        %v6767 = vadd.f32 %v6765, %v6766
        %v6768 = vrot.slane %v6767, 1
        %v6769 = vadd.f32 %v6767, %v6768
        %v6770 = vrot.slane %v6687, 4
        %v6771 = vadd.f32 %v6687, %v6770
        %v6772 = vrot.slane %v6771, 2
        %v6773 = vadd.f32 %v6771, %v6772
        %v6774 = vrot.slane %v6773, 1
        %v6775 = vadd.f32 %v6773, %v6774
        %v6776 = vrot.slane %v6701, 4
        %v6777 = vadd.f32 %v6701, %v6776
        %v6778 = vrot.slane %v6777, 2
        %v6779 = vadd.f32 %v6777, %v6778
        %v6780 = vrot.slane %v6779, 1
        %v6781 = vadd.f32 %v6779, %v6780
        %v6782 = vrot.slane %v6715, 4
        %v6783 = vadd.f32 %v6715, %v6782
        %v6784 = vrot.slane %v6783, 2
        %v6785 = vadd.f32 %v6783, %v6784
        %v6786 = vrot.slane %v6785, 1
        %v6787 = vadd.f32 %v6785, %v6786
        %v6788 = vrot.slane %v6729, 4
        %v6789 = vadd.f32 %v6729, %v6788
        %v6790 = vrot.slane %v6789, 2
        %v6791 = vadd.f32 %v6789, %v6790
        %v6792 = vrot.slane %v6791, 1
        %v6793 = vadd.f32 %v6791, %v6792
        %v6794 = vrot.slane %v6743, 4
        %v6795 = vadd.f32 %v6743, %v6794
        %v6796 = vrot.slane %v6795, 2
        %v6797 = vadd.f32 %v6795, %v6796
        %v6798 = vrot.slane %v6797, 1
        %v6799 = vadd.f32 %v6797, %v6798
        %6800 = vset.pattern.permute.xlu0 6
        %6801 = vperm.xlu0 %6800, %v282
        %v6802 = vpop.permute.xlu0 %6801
        %v6804 = vrot.slane %v6802, 1
        %v6805 = vrot.slane %v6802, 2
        %v6806 = vrot.slane %v6802, 3
        %v6807 = vrot.slane %v6802, 4
        %v6808 = vrot.slane %v6802, 5
        %v6809 = vrot.slane %v6802, 6
        %v6810 = vrot.slane %v6802, 7
        %v6818 = vmul.f32 %v4851, %v6802
        %v6819 = vmul.f32 %v4852, %v6804
        %v6820 = vmul.f32 %v4853, %v6805
        %v6821 = vmul.f32 %v4854, %v6806
        %v6822 = vmul.f32 %v4855, %v6807
        %v6823 = vmul.f32 %v4856, %v6808
        %v6824 = vmul.f32 %v4857, %v6809
        %v6825 = vmul.f32 %v4858, %v6810
        %v6826 = vmul.f32 %v4859, %v6802
        %v6827 = vmul.f32 %v4860, %v6804
        %v6828 = vmul.f32 %v4861, %v6805
        %v6829 = vmul.f32 %v4862, %v6806
        %v6830 = vmul.f32 %v4863, %v6807
        %v6831 = vmul.f32 %v4864, %v6808
        %v6832 = vmul.f32 %v4865, %v6809
        %v6833 = vmul.f32 %v4866, %v6810
        %v6834 = vmul.f32 %v4867, %v6802
        %v6835 = vmul.f32 %v4868, %v6804
        %v6836 = vmul.f32 %v4869, %v6805
        %v6837 = vmul.f32 %v4870, %v6806
        %v6838 = vmul.f32 %v4871, %v6807
        %v6839 = vmul.f32 %v4872, %v6808
        %v6840 = vmul.f32 %v4873, %v6809
        %v6841 = vmul.f32 %v4874, %v6810
        %v6842 = vmul.f32 %v4875, %v6802
        %v6843 = vmul.f32 %v4876, %v6804
        %v6844 = vmul.f32 %v4877, %v6805
        %v6845 = vmul.f32 %v4878, %v6806
        %v6846 = vmul.f32 %v4879, %v6807
        %v6847 = vmul.f32 %v4880, %v6808
        %v6848 = vmul.f32 %v4881, %v6809
        %v6849 = vmul.f32 %v4882, %v6810
        %v6850 = vmul.f32 %v4883, %v6802
        %v6851 = vmul.f32 %v4884, %v6804
        %v6852 = vmul.f32 %v4885, %v6805
        %v6853 = vmul.f32 %v4886, %v6806
        %v6854 = vmul.f32 %v4887, %v6807
        %v6855 = vmul.f32 %v4888, %v6808
        %v6856 = vmul.f32 %v4889, %v6809
        %v6857 = vmul.f32 %v4890, %v6810
        %v6858 = vmul.f32 %v4891, %v6802
        %v6859 = vmul.f32 %v4892, %v6804
        %v6860 = vmul.f32 %v4893, %v6805
        %v6861 = vmul.f32 %v4894, %v6806
        %v6862 = vmul.f32 %v4895, %v6807
        %v6863 = vmul.f32 %v4896, %v6808
        %v6864 = vmul.f32 %v4897, %v6809
        %v6865 = vmul.f32 %v4898, %v6810
        %v6866 = vmul.f32 %v4899, %v6802
        %v6867 = vmul.f32 %v4900, %v6804
        %v6868 = vmul.f32 %v4901, %v6805
        %v6869 = vmul.f32 %v4902, %v6806
        %v6870 = vmul.f32 %v4903, %v6807
        %v6871 = vmul.f32 %v4904, %v6808
        %v6872 = vmul.f32 %v4905, %v6809
        %v6873 = vmul.f32 %v4906, %v6810
        %v6874 = vmul.f32 %v4907, %v6802
        %v6875 = vmul.f32 %v4908, %v6804
        %v6876 = vmul.f32 %v4909, %v6805
        %v6877 = vmul.f32 %v4910, %v6806
        %v6878 = vmul.f32 %v4911, %v6807
        %v6879 = vmul.f32 %v4912, %v6808
        %v6880 = vmul.f32 %v4913, %v6809
        %v6881 = vmul.f32 %v4914, %v6810
        %v6946 = vrot.slane %v6819, 7
        %v6947 = vsel %vm4629, %v6946, %v6818
        %v6948 = vrot.slane %v6820, 6
        %v6949 = vsel %vm4632, %v6948, %v6947
        %v6950 = vrot.slane %v6821, 5
        %v6951 = vsel %vm4635, %v6950, %v6949
        %v6952 = vrot.slane %v6822, 4
        %v6953 = vsel %vm4638, %v6952, %v6951
        %v6954 = vrot.slane %v6823, 3
        %v6955 = vsel %vm4641, %v6954, %v6953
        %v6956 = vrot.slane %v6824, 2
        %v6957 = vsel %vm4644, %v6956, %v6955
        %v6958 = vrot.slane %v6825, 1
        %v6959 = vsel %vm4647, %v6958, %v6957
        %v6960 = vrot.slane %v6827, 7
        %v6961 = vsel %vm4629, %v6960, %v6826
        %v6962 = vrot.slane %v6828, 6
        %v6963 = vsel %vm4632, %v6962, %v6961
        %v6964 = vrot.slane %v6829, 5
        %v6965 = vsel %vm4635, %v6964, %v6963
        %v6966 = vrot.slane %v6830, 4
        %v6967 = vsel %vm4638, %v6966, %v6965
        %v6968 = vrot.slane %v6831, 3
        %v6969 = vsel %vm4641, %v6968, %v6967
        %v6970 = vrot.slane %v6832, 2
        %v6971 = vsel %vm4644, %v6970, %v6969
        %v6972 = vrot.slane %v6833, 1
        %v6973 = vsel %vm4647, %v6972, %v6971
        %v6974 = vrot.slane %v6835, 7
        %v6975 = vsel %vm4629, %v6974, %v6834
        %v6976 = vrot.slane %v6836, 6
        %v6977 = vsel %vm4632, %v6976, %v6975
        %v6978 = vrot.slane %v6837, 5
        %v6979 = vsel %vm4635, %v6978, %v6977
        %v6980 = vrot.slane %v6838, 4
        %v6981 = vsel %vm4638, %v6980, %v6979
        %v6982 = vrot.slane %v6839, 3
        %v6983 = vsel %vm4641, %v6982, %v6981
        %v6984 = vrot.slane %v6840, 2
        %v6985 = vsel %vm4644, %v6984, %v6983
        %v6986 = vrot.slane %v6841, 1
        %v6987 = vsel %vm4647, %v6986, %v6985
        %v6988 = vrot.slane %v6843, 7
        %v6989 = vsel %vm4629, %v6988, %v6842
        %v6990 = vrot.slane %v6844, 6
        %v6991 = vsel %vm4632, %v6990, %v6989
        %v6992 = vrot.slane %v6845, 5
        %v6993 = vsel %vm4635, %v6992, %v6991
        %v6994 = vrot.slane %v6846, 4
        %v6995 = vsel %vm4638, %v6994, %v6993
        %v6996 = vrot.slane %v6847, 3
        %v6997 = vsel %vm4641, %v6996, %v6995
        %v6998 = vrot.slane %v6848, 2
        %v6999 = vsel %vm4644, %v6998, %v6997
        %v7000 = vrot.slane %v6849, 1
        %v7001 = vsel %vm4647, %v7000, %v6999
        %v7002 = vrot.slane %v6851, 7
        %v7003 = vsel %vm4629, %v7002, %v6850
        %v7004 = vrot.slane %v6852, 6
        %v7005 = vsel %vm4632, %v7004, %v7003
        %v7006 = vrot.slane %v6853, 5
        %v7007 = vsel %vm4635, %v7006, %v7005
        %v7008 = vrot.slane %v6854, 4
        %v7009 = vsel %vm4638, %v7008, %v7007
        %v7010 = vrot.slane %v6855, 3
        %v7011 = vsel %vm4641, %v7010, %v7009
        %v7012 = vrot.slane %v6856, 2
        %v7013 = vsel %vm4644, %v7012, %v7011
        %v7014 = vrot.slane %v6857, 1
        %v7015 = vsel %vm4647, %v7014, %v7013
        %v7016 = vrot.slane %v6859, 7
        %v7017 = vsel %vm4629, %v7016, %v6858
        %v7018 = vrot.slane %v6860, 6
        %v7019 = vsel %vm4632, %v7018, %v7017
        %v7020 = vrot.slane %v6861, 5
        %v7021 = vsel %vm4635, %v7020, %v7019
        %v7022 = vrot.slane %v6862, 4
        %v7023 = vsel %vm4638, %v7022, %v7021
        %v7024 = vrot.slane %v6863, 3
        %v7025 = vsel %vm4641, %v7024, %v7023
        %v7026 = vrot.slane %v6864, 2
        %v7027 = vsel %vm4644, %v7026, %v7025
        %v7028 = vrot.slane %v6865, 1
        %v7029 = vsel %vm4647, %v7028, %v7027
        %v7030 = vrot.slane %v6867, 7
        %v7031 = vsel %vm4629, %v7030, %v6866
        %v7032 = vrot.slane %v6868, 6
        %v7033 = vsel %vm4632, %v7032, %v7031
        %v7034 = vrot.slane %v6869, 5
        %v7035 = vsel %vm4635, %v7034, %v7033
        %v7036 = vrot.slane %v6870, 4
        %v7037 = vsel %vm4638, %v7036, %v7035
        %v7038 = vrot.slane %v6871, 3
        %v7039 = vsel %vm4641, %v7038, %v7037
        %v7040 = vrot.slane %v6872, 2
        %v7041 = vsel %vm4644, %v7040, %v7039
        %v7042 = vrot.slane %v6873, 1
        %v7043 = vsel %vm4647, %v7042, %v7041
        %v7044 = vrot.slane %v6875, 7
        %v7045 = vsel %vm4629, %v7044, %v6874
        %v7046 = vrot.slane %v6876, 6
        %v7047 = vsel %vm4632, %v7046, %v7045
        %v7048 = vrot.slane %v6877, 5
        %v7049 = vsel %vm4635, %v7048, %v7047
        %v7050 = vrot.slane %v6878, 4
        %v7051 = vsel %vm4638, %v7050, %v7049
        %v7052 = vrot.slane %v6879, 3
        %v7053 = vsel %vm4641, %v7052, %v7051
        %v7054 = vrot.slane %v6880, 2
        %v7055 = vsel %vm4644, %v7054, %v7053
        %v7056 = vrot.slane %v6881, 1
        %v7057 = vsel %vm4647, %v7056, %v7055
        %v7066 = vrot.slane %v6959, 4
        %v7067 = vadd.f32 %v6959, %v7066
        %v7068 = vrot.slane %v7067, 2
        %v7069 = vadd.f32 %v7067, %v7068
        %v7070 = vrot.slane %v7069, 1
        %v7071 = vadd.f32 %v7069, %v7070
        %v7072 = vrot.slane %v6973, 4
        %v7073 = vadd.f32 %v6973, %v7072
        %v7074 = vrot.slane %v7073, 2
        %v7075 = vadd.f32 %v7073, %v7074
        %v7076 = vrot.slane %v7075, 1
        %v7077 = vadd.f32 %v7075, %v7076
        %v7078 = vrot.slane %v6987, 4
        %v7079 = vadd.f32 %v6987, %v7078
        %v7080 = vrot.slane %v7079, 2
        %v7081 = vadd.f32 %v7079, %v7080
        %v7082 = vrot.slane %v7081, 1
        %v7083 = vadd.f32 %v7081, %v7082
        %v7084 = vrot.slane %v7001, 4
        %v7085 = vadd.f32 %v7001, %v7084
        %v7086 = vrot.slane %v7085, 2
        %v7087 = vadd.f32 %v7085, %v7086
        %v7088 = vrot.slane %v7087, 1
        %v7089 = vadd.f32 %v7087, %v7088
        %v7090 = vrot.slane %v7015, 4
        %v7091 = vadd.f32 %v7015, %v7090
        %v7092 = vrot.slane %v7091, 2
        %v7093 = vadd.f32 %v7091, %v7092
        %v7094 = vrot.slane %v7093, 1
        %v7095 = vadd.f32 %v7093, %v7094
        %v7096 = vrot.slane %v7029, 4
        %v7097 = vadd.f32 %v7029, %v7096
        %v7098 = vrot.slane %v7097, 2
        %v7099 = vadd.f32 %v7097, %v7098
        %v7100 = vrot.slane %v7099, 1
        %v7101 = vadd.f32 %v7099, %v7100
        %v7102 = vrot.slane %v7043, 4
        %v7103 = vadd.f32 %v7043, %v7102
        %v7104 = vrot.slane %v7103, 2
        %v7105 = vadd.f32 %v7103, %v7104
        %v7106 = vrot.slane %v7105, 1
        %v7107 = vadd.f32 %v7105, %v7106
        %v7108 = vrot.slane %v7057, 4
        %v7109 = vadd.f32 %v7057, %v7108
        %v7110 = vrot.slane %v7109, 2
        %v7111 = vadd.f32 %v7109, %v7110
        %v7112 = vrot.slane %v7111, 1
        %v7113 = vadd.f32 %v7111, %v7112
        %7114 = vset.pattern.permute.xlu0 7
        %7115 = vperm.xlu0 %7114, %v282
        %v7116 = vpop.permute.xlu0 %7115
        %v7118 = vrot.slane %v7116, 1
        %v7119 = vrot.slane %v7116, 2
        %v7120 = vrot.slane %v7116, 3
        %v7121 = vrot.slane %v7116, 4
        %v7122 = vrot.slane %v7116, 5
        %v7123 = vrot.slane %v7116, 6
        %v7124 = vrot.slane %v7116, 7
        %v7132 = vmul.f32 %v4851, %v7116
        %v7133 = vmul.f32 %v4852, %v7118
        %v7134 = vmul.f32 %v4853, %v7119
        %v7135 = vmul.f32 %v4854, %v7120
        %v7136 = vmul.f32 %v4855, %v7121
        %v7137 = vmul.f32 %v4856, %v7122
        %v7138 = vmul.f32 %v4857, %v7123
        %v7139 = vmul.f32 %v4858, %v7124
        %v7140 = vmul.f32 %v4859, %v7116
        %v7141 = vmul.f32 %v4860, %v7118
        %v7142 = vmul.f32 %v4861, %v7119
        %v7143 = vmul.f32 %v4862, %v7120
        %v7144 = vmul.f32 %v4863, %v7121
        %v7145 = vmul.f32 %v4864, %v7122
        %v7146 = vmul.f32 %v4865, %v7123
        %v7147 = vmul.f32 %v4866, %v7124
        %v7148 = vmul.f32 %v4867, %v7116
        %v7149 = vmul.f32 %v4868, %v7118
        %v7150 = vmul.f32 %v4869, %v7119
        %v7151 = vmul.f32 %v4870, %v7120
        %v7152 = vmul.f32 %v4871, %v7121
        %v7153 = vmul.f32 %v4872, %v7122
        %v7154 = vmul.f32 %v4873, %v7123
        %v7155 = vmul.f32 %v4874, %v7124
        %v7156 = vmul.f32 %v4875, %v7116
        %v7157 = vmul.f32 %v4876, %v7118
        %v7158 = vmul.f32 %v4877, %v7119
        %v7159 = vmul.f32 %v4878, %v7120
        %v7160 = vmul.f32 %v4879, %v7121
        %v7161 = vmul.f32 %v4880, %v7122
        %v7162 = vmul.f32 %v4881, %v7123
        %v7163 = vmul.f32 %v4882, %v7124
        %v7164 = vmul.f32 %v4883, %v7116
        %v7165 = vmul.f32 %v4884, %v7118
        %v7166 = vmul.f32 %v4885, %v7119
        %v7167 = vmul.f32 %v4886, %v7120
        %v7168 = vmul.f32 %v4887, %v7121
        %v7169 = vmul.f32 %v4888, %v7122
        %v7170 = vmul.f32 %v4889, %v7123
        %v7171 = vmul.f32 %v4890, %v7124
        %v7172 = vmul.f32 %v4891, %v7116
        %v7173 = vmul.f32 %v4892, %v7118
        %v7174 = vmul.f32 %v4893, %v7119
        %v7175 = vmul.f32 %v4894, %v7120
        %v7176 = vmul.f32 %v4895, %v7121
        %v7177 = vmul.f32 %v4896, %v7122
        %v7178 = vmul.f32 %v4897, %v7123
        %v7179 = vmul.f32 %v4898, %v7124
        %v7180 = vmul.f32 %v4899, %v7116
        %v7181 = vmul.f32 %v4900, %v7118
        %v7182 = vmul.f32 %v4901, %v7119
        %v7183 = vmul.f32 %v4902, %v7120
        %v7184 = vmul.f32 %v4903, %v7121
        %v7185 = vmul.f32 %v4904, %v7122
        %v7186 = vmul.f32 %v4905, %v7123
        %v7187 = vmul.f32 %v4906, %v7124
        %v7188 = vmul.f32 %v4907, %v7116
        %v7189 = vmul.f32 %v4908, %v7118
        %v7190 = vmul.f32 %v4909, %v7119
        %v7191 = vmul.f32 %v4910, %v7120
        %v7192 = vmul.f32 %v4911, %v7121
        %v7193 = vmul.f32 %v4912, %v7122
        %v7194 = vmul.f32 %v4913, %v7123
        %v7195 = vmul.f32 %v4914, %v7124
        %v7260 = vrot.slane %v7133, 7
        %v7261 = vsel %vm4629, %v7260, %v7132
        %v7262 = vrot.slane %v7134, 6
        %v7263 = vsel %vm4632, %v7262, %v7261
        %v7264 = vrot.slane %v7135, 5
        %v7265 = vsel %vm4635, %v7264, %v7263
        %v7266 = vrot.slane %v7136, 4
        %v7267 = vsel %vm4638, %v7266, %v7265
        %v7268 = vrot.slane %v7137, 3
        %v7269 = vsel %vm4641, %v7268, %v7267
        %v7270 = vrot.slane %v7138, 2
        %v7271 = vsel %vm4644, %v7270, %v7269
        %v7272 = vrot.slane %v7139, 1
        %v7273 = vsel %vm4647, %v7272, %v7271
        %v7274 = vrot.slane %v7141, 7
        %v7275 = vsel %vm4629, %v7274, %v7140
        %v7276 = vrot.slane %v7142, 6
        %v7277 = vsel %vm4632, %v7276, %v7275
        %v7278 = vrot.slane %v7143, 5
        %v7279 = vsel %vm4635, %v7278, %v7277
        %v7280 = vrot.slane %v7144, 4
        %v7281 = vsel %vm4638, %v7280, %v7279
        %v7282 = vrot.slane %v7145, 3
        %v7283 = vsel %vm4641, %v7282, %v7281
        %v7284 = vrot.slane %v7146, 2
        %v7285 = vsel %vm4644, %v7284, %v7283
        %v7286 = vrot.slane %v7147, 1
        %v7287 = vsel %vm4647, %v7286, %v7285
        %v7288 = vrot.slane %v7149, 7
        %v7289 = vsel %vm4629, %v7288, %v7148
        %v7290 = vrot.slane %v7150, 6
        %v7291 = vsel %vm4632, %v7290, %v7289
        %v7292 = vrot.slane %v7151, 5
        %v7293 = vsel %vm4635, %v7292, %v7291
        %v7294 = vrot.slane %v7152, 4
        %v7295 = vsel %vm4638, %v7294, %v7293
        %v7296 = vrot.slane %v7153, 3
        %v7297 = vsel %vm4641, %v7296, %v7295
        %v7298 = vrot.slane %v7154, 2
        %v7299 = vsel %vm4644, %v7298, %v7297
        %v7300 = vrot.slane %v7155, 1
        %v7301 = vsel %vm4647, %v7300, %v7299
        %v7302 = vrot.slane %v7157, 7
        %v7303 = vsel %vm4629, %v7302, %v7156
        %v7304 = vrot.slane %v7158, 6
        %v7305 = vsel %vm4632, %v7304, %v7303
        %v7306 = vrot.slane %v7159, 5
        %v7307 = vsel %vm4635, %v7306, %v7305
        %v7308 = vrot.slane %v7160, 4
        %v7309 = vsel %vm4638, %v7308, %v7307
        %v7310 = vrot.slane %v7161, 3
        %v7311 = vsel %vm4641, %v7310, %v7309
        %v7312 = vrot.slane %v7162, 2
        %v7313 = vsel %vm4644, %v7312, %v7311
        %v7314 = vrot.slane %v7163, 1
        %v7315 = vsel %vm4647, %v7314, %v7313
        %v7316 = vrot.slane %v7165, 7
        %v7317 = vsel %vm4629, %v7316, %v7164
        %v7318 = vrot.slane %v7166, 6
        %v7319 = vsel %vm4632, %v7318, %v7317
        %v7320 = vrot.slane %v7167, 5
        %v7321 = vsel %vm4635, %v7320, %v7319
        %v7322 = vrot.slane %v7168, 4
        %v7323 = vsel %vm4638, %v7322, %v7321
        %v7324 = vrot.slane %v7169, 3
        %v7325 = vsel %vm4641, %v7324, %v7323
        %v7326 = vrot.slane %v7170, 2
        %v7327 = vsel %vm4644, %v7326, %v7325
        %v7328 = vrot.slane %v7171, 1
        %v7329 = vsel %vm4647, %v7328, %v7327
        %v7330 = vrot.slane %v7173, 7
        %v7331 = vsel %vm4629, %v7330, %v7172
        %v7332 = vrot.slane %v7174, 6
        %v7333 = vsel %vm4632, %v7332, %v7331
        %v7334 = vrot.slane %v7175, 5
        %v7335 = vsel %vm4635, %v7334, %v7333
        %v7336 = vrot.slane %v7176, 4
        %v7337 = vsel %vm4638, %v7336, %v7335
        %v7338 = vrot.slane %v7177, 3
        %v7339 = vsel %vm4641, %v7338, %v7337
        %v7340 = vrot.slane %v7178, 2
        %v7341 = vsel %vm4644, %v7340, %v7339
        %v7342 = vrot.slane %v7179, 1
        %v7343 = vsel %vm4647, %v7342, %v7341
        %v7344 = vrot.slane %v7181, 7
        %v7345 = vsel %vm4629, %v7344, %v7180
        %v7346 = vrot.slane %v7182, 6
        %v7347 = vsel %vm4632, %v7346, %v7345
        %v7348 = vrot.slane %v7183, 5
        %v7349 = vsel %vm4635, %v7348, %v7347
        %v7350 = vrot.slane %v7184, 4
        %v7351 = vsel %vm4638, %v7350, %v7349
        %v7352 = vrot.slane %v7185, 3
        %v7353 = vsel %vm4641, %v7352, %v7351
        %v7354 = vrot.slane %v7186, 2
        %v7355 = vsel %vm4644, %v7354, %v7353
        %v7356 = vrot.slane %v7187, 1
        %v7357 = vsel %vm4647, %v7356, %v7355
        %v7358 = vrot.slane %v7189, 7
        %v7359 = vsel %vm4629, %v7358, %v7188
        %v7360 = vrot.slane %v7190, 6
        %v7361 = vsel %vm4632, %v7360, %v7359
        %v7362 = vrot.slane %v7191, 5
        %v7363 = vsel %vm4635, %v7362, %v7361
        %v7364 = vrot.slane %v7192, 4
        %v7365 = vsel %vm4638, %v7364, %v7363
        %v7366 = vrot.slane %v7193, 3
        %v7367 = vsel %vm4641, %v7366, %v7365
        %v7368 = vrot.slane %v7194, 2
        %v7369 = vsel %vm4644, %v7368, %v7367
        %v7370 = vrot.slane %v7195, 1
        %v7371 = vsel %vm4647, %v7370, %v7369
        %v7380 = vrot.slane %v7273, 4
        %v7381 = vadd.f32 %v7273, %v7380
        %v7382 = vrot.slane %v7381, 2
        %v7383 = vadd.f32 %v7381, %v7382
        %v7384 = vrot.slane %v7383, 1
        %v7385 = vadd.f32 %v7383, %v7384
        %v7386 = vrot.slane %v7287, 4
        %v7387 = vadd.f32 %v7287, %v7386
        %v7388 = vrot.slane %v7387, 2
        %v7389 = vadd.f32 %v7387, %v7388
        %v7390 = vrot.slane %v7389, 1
        %v7391 = vadd.f32 %v7389, %v7390
        %v7392 = vrot.slane %v7301, 4
        %v7393 = vadd.f32 %v7301, %v7392
        %v7394 = vrot.slane %v7393, 2
        %v7395 = vadd.f32 %v7393, %v7394
        %v7396 = vrot.slane %v7395, 1
        %v7397 = vadd.f32 %v7395, %v7396
        %v7398 = vrot.slane %v7315, 4
        %v7399 = vadd.f32 %v7315, %v7398
        %v7400 = vrot.slane %v7399, 2
        %v7401 = vadd.f32 %v7399, %v7400
        %v7402 = vrot.slane %v7401, 1
        %v7403 = vadd.f32 %v7401, %v7402
        %v7404 = vrot.slane %v7329, 4
        %v7405 = vadd.f32 %v7329, %v7404
        %v7406 = vrot.slane %v7405, 2
        %v7407 = vadd.f32 %v7405, %v7406
        %v7408 = vrot.slane %v7407, 1
        %v7409 = vadd.f32 %v7407, %v7408
        %v7410 = vrot.slane %v7343, 4
        %v7411 = vadd.f32 %v7343, %v7410
        %v7412 = vrot.slane %v7411, 2
        %v7413 = vadd.f32 %v7411, %v7412
        %v7414 = vrot.slane %v7413, 1
        %v7415 = vadd.f32 %v7413, %v7414
        %v7416 = vrot.slane %v7357, 4
        %v7417 = vadd.f32 %v7357, %v7416
        %v7418 = vrot.slane %v7417, 2
        %v7419 = vadd.f32 %v7417, %v7418
        %v7420 = vrot.slane %v7419, 1
        %v7421 = vadd.f32 %v7419, %v7420
        %v7422 = vrot.slane %v7371, 4
        %v7423 = vadd.f32 %v7371, %v7422
        %v7424 = vrot.slane %v7423, 2
        %v7425 = vadd.f32 %v7423, %v7424
        %v7426 = vrot.slane %v7425, 1
        %v7427 = vadd.f32 %v7425, %v7426
        %v7428 = vmax.f32 %v5187, %v5501
        %v7429 = vmax.f32 %v5193, %v5507
        %v7430 = vmax.f32 %v5199, %v5513
        %v7431 = vmax.f32 %v5205, %v5519
        %v7432 = vmax.f32 %v5211, %v5525
        %v7433 = vmax.f32 %v5217, %v5531
        %v7434 = vmax.f32 %v5223, %v5537
        %v7435 = vmax.f32 %v5229, %v5543
        %v7436 = vmax.f32 %v7428, %v5815
        %v7437 = vmax.f32 %v7429, %v5821
        %v7438 = vmax.f32 %v7430, %v5827
        %v7439 = vmax.f32 %v7431, %v5833
        %v7440 = vmax.f32 %v7432, %v5839
        %v7441 = vmax.f32 %v7433, %v5845
        %v7442 = vmax.f32 %v7434, %v5851
        %v7443 = vmax.f32 %v7435, %v5857
        %v7444 = vmax.f32 %v7436, %v6129
        %v7445 = vmax.f32 %v7437, %v6135
        %v7446 = vmax.f32 %v7438, %v6141
        %v7447 = vmax.f32 %v7439, %v6147
        %v7448 = vmax.f32 %v7440, %v6153
        %v7449 = vmax.f32 %v7441, %v6159
        %v7450 = vmax.f32 %v7442, %v6165
        %v7451 = vmax.f32 %v7443, %v6171
        %v7452 = vmax.f32 %v7444, %v6443
        %v7453 = vmax.f32 %v7445, %v6449
        %v7454 = vmax.f32 %v7446, %v6455
        %v7455 = vmax.f32 %v7447, %v6461
        %v7456 = vmax.f32 %v7448, %v6467
        %v7457 = vmax.f32 %v7449, %v6473
        %v7458 = vmax.f32 %v7450, %v6479
        %v7459 = vmax.f32 %v7451, %v6485
        %v7460 = vmax.f32 %v7452, %v6757
        %v7461 = vmax.f32 %v7453, %v6763
        %v7462 = vmax.f32 %v7454, %v6769
        %v7463 = vmax.f32 %v7455, %v6775
        %v7464 = vmax.f32 %v7456, %v6781
        %v7465 = vmax.f32 %v7457, %v6787
        %v7466 = vmax.f32 %v7458, %v6793
        %v7467 = vmax.f32 %v7459, %v6799
        %v7468 = vmax.f32 %v7460, %v7071
        %v7469 = vmax.f32 %v7461, %v7077
        %v7470 = vmax.f32 %v7462, %v7083
        %v7471 = vmax.f32 %v7463, %v7089
        %v7472 = vmax.f32 %v7464, %v7095
        %v7473 = vmax.f32 %v7465, %v7101
        %v7474 = vmax.f32 %v7466, %v7107
        %v7475 = vmax.f32 %v7467, %v7113
        %v7476 = vmax.f32 %v7468, %v7385
        %v7477 = vmax.f32 %v7469, %v7391
        %v7478 = vmax.f32 %v7470, %v7397
        %v7479 = vmax.f32 %v7471, %v7403
        %v7480 = vmax.f32 %v7472, %v7409
        %v7481 = vmax.f32 %v7473, %v7415
        %v7482 = vmax.f32 %v7474, %v7421
        %v7483 = vmax.f32 %v7475, %v7427
        %vm7484 = vcmp.ge.f32.partialorder %v7385, %v7476
        %vm7485 = vcmp.ge.f32.partialorder %v7391, %v7477
        %vm7486 = vcmp.ge.f32.partialorder %v7397, %v7478
        %vm7487 = vcmp.ge.f32.partialorder %v7403, %v7479
        %vm7488 = vcmp.ge.f32.partialorder %v7409, %v7480
        %vm7489 = vcmp.ge.f32.partialorder %v7415, %v7481
        %vm7490 = vcmp.ge.f32.partialorder %v7421, %v7482
        %vm7491 = vcmp.ge.f32.partialorder %v7427, %v7483
        %v7492 = vsel %vm7484, 7, 8
        %v7493 = vsel %vm7485, 7, 8
        %v7494 = vsel %vm7486, 7, 8
        %v7495 = vsel %vm7487, 7, 8
        %v7496 = vsel %vm7488, 7, 8
        %v7497 = vsel %vm7489, 7, 8
        %v7498 = vsel %vm7490, 7, 8
        %v7499 = vsel %vm7491, 7, 8
        %vm7500 = vcmp.ge.f32.partialorder %v7071, %v7476
        %vm7501 = vcmp.ge.f32.partialorder %v7077, %v7477
        %vm7502 = vcmp.ge.f32.partialorder %v7083, %v7478
        %vm7503 = vcmp.ge.f32.partialorder %v7089, %v7479
        %vm7504 = vcmp.ge.f32.partialorder %v7095, %v7480
        %vm7505 = vcmp.ge.f32.partialorder %v7101, %v7481
        %vm7506 = vcmp.ge.f32.partialorder %v7107, %v7482
        %vm7507 = vcmp.ge.f32.partialorder %v7113, %v7483
        %v7508 = vsel %vm7500, 6, %v7492
        %v7509 = vsel %vm7501, 6, %v7493
        %v7510 = vsel %vm7502, 6, %v7494
        %v7511 = vsel %vm7503, 6, %v7495
        %v7512 = vsel %vm7504, 6, %v7496
        %v7513 = vsel %vm7505, 6, %v7497
        %v7514 = vsel %vm7506, 6, %v7498
        %v7515 = vsel %vm7507, 6, %v7499
        %vm7516 = vcmp.ge.f32.partialorder %v6757, %v7476
        %vm7517 = vcmp.ge.f32.partialorder %v6763, %v7477
        %vm7518 = vcmp.ge.f32.partialorder %v6769, %v7478
        %vm7519 = vcmp.ge.f32.partialorder %v6775, %v7479
        %vm7520 = vcmp.ge.f32.partialorder %v6781, %v7480
        %vm7521 = vcmp.ge.f32.partialorder %v6787, %v7481
        %vm7522 = vcmp.ge.f32.partialorder %v6793, %v7482
        %vm7523 = vcmp.ge.f32.partialorder %v6799, %v7483
        %v7524 = vsel %vm7516, 5, %v7508
        %v7525 = vsel %vm7517, 5, %v7509
        %v7526 = vsel %vm7518, 5, %v7510
        %v7527 = vsel %vm7519, 5, %v7511
        %v7528 = vsel %vm7520, 5, %v7512
        %v7529 = vsel %vm7521, 5, %v7513
        %v7530 = vsel %vm7522, 5, %v7514
        %v7531 = vsel %vm7523, 5, %v7515
        %vm7532 = vcmp.ge.f32.partialorder %v6443, %v7476
        %vm7533 = vcmp.ge.f32.partialorder %v6449, %v7477
        %vm7534 = vcmp.ge.f32.partialorder %v6455, %v7478
        %vm7535 = vcmp.ge.f32.partialorder %v6461, %v7479
        %vm7536 = vcmp.ge.f32.partialorder %v6467, %v7480
        %vm7537 = vcmp.ge.f32.partialorder %v6473, %v7481
        %vm7538 = vcmp.ge.f32.partialorder %v6479, %v7482
        %vm7539 = vcmp.ge.f32.partialorder %v6485, %v7483
        %v7540 = vsel %vm7532, 4, %v7524
        %v7541 = vsel %vm7533, 4, %v7525
        %v7542 = vsel %vm7534, 4, %v7526
        %v7543 = vsel %vm7535, 4, %v7527
        %v7544 = vsel %vm7536, 4, %v7528
        %v7545 = vsel %vm7537, 4, %v7529
        %v7546 = vsel %vm7538, 4, %v7530
        %v7547 = vsel %vm7539, 4, %v7531
        %vm7548 = vcmp.ge.f32.partialorder %v6129, %v7476
        %vm7549 = vcmp.ge.f32.partialorder %v6135, %v7477
        %vm7550 = vcmp.ge.f32.partialorder %v6141, %v7478
        %vm7551 = vcmp.ge.f32.partialorder %v6147, %v7479
        %vm7552 = vcmp.ge.f32.partialorder %v6153, %v7480
        %vm7553 = vcmp.ge.f32.partialorder %v6159, %v7481
        %vm7554 = vcmp.ge.f32.partialorder %v6165, %v7482
        %vm7555 = vcmp.ge.f32.partialorder %v6171, %v7483
        %v7556 = vsel %vm7548, 3, %v7540
        %v7557 = vsel %vm7549, 3, %v7541
        %v7558 = vsel %vm7550, 3, %v7542
        %v7559 = vsel %vm7551, 3, %v7543
        %v7560 = vsel %vm7552, 3, %v7544
        %v7561 = vsel %vm7553, 3, %v7545
        %v7562 = vsel %vm7554, 3, %v7546
        %v7563 = vsel %vm7555, 3, %v7547
        %vm7564 = vcmp.ge.f32.partialorder %v5815, %v7476
        %vm7565 = vcmp.ge.f32.partialorder %v5821, %v7477
        %vm7566 = vcmp.ge.f32.partialorder %v5827, %v7478
        %vm7567 = vcmp.ge.f32.partialorder %v5833, %v7479
        %vm7568 = vcmp.ge.f32.partialorder %v5839, %v7480
        %vm7569 = vcmp.ge.f32.partialorder %v5845, %v7481
        %vm7570 = vcmp.ge.f32.partialorder %v5851, %v7482
        %vm7571 = vcmp.ge.f32.partialorder %v5857, %v7483
        %v7572 = vsel %vm7564, 2, %v7556
        %v7573 = vsel %vm7565, 2, %v7557
        %v7574 = vsel %vm7566, 2, %v7558
        %v7575 = vsel %vm7567, 2, %v7559
        %v7576 = vsel %vm7568, 2, %v7560
        %v7577 = vsel %vm7569, 2, %v7561
        %v7578 = vsel %vm7570, 2, %v7562
        %v7579 = vsel %vm7571, 2, %v7563
        %vm7580 = vcmp.ge.f32.partialorder %v5501, %v7476
        %vm7581 = vcmp.ge.f32.partialorder %v5507, %v7477
        %vm7582 = vcmp.ge.f32.partialorder %v5513, %v7478
        %vm7583 = vcmp.ge.f32.partialorder %v5519, %v7479
        %vm7584 = vcmp.ge.f32.partialorder %v5525, %v7480
        %vm7585 = vcmp.ge.f32.partialorder %v5531, %v7481
        %vm7586 = vcmp.ge.f32.partialorder %v5537, %v7482
        %vm7587 = vcmp.ge.f32.partialorder %v5543, %v7483
        %v7588 = vsel %vm7580, 1, %v7572
        %v7589 = vsel %vm7581, 1, %v7573
        %v7590 = vsel %vm7582, 1, %v7574
        %v7591 = vsel %vm7583, 1, %v7575
        %v7592 = vsel %vm7584, 1, %v7576
        %v7593 = vsel %vm7585, 1, %v7577
        %v7594 = vsel %vm7586, 1, %v7578
        %v7595 = vsel %vm7587, 1, %v7579
        %vm7596 = vcmp.ge.f32.partialorder %v5187, %v7476
        %vm7597 = vcmp.ge.f32.partialorder %v5193, %v7477
        %vm7598 = vcmp.ge.f32.partialorder %v5199, %v7478
        %vm7599 = vcmp.ge.f32.partialorder %v5205, %v7479
        %vm7600 = vcmp.ge.f32.partialorder %v5211, %v7480
        %vm7601 = vcmp.ge.f32.partialorder %v5217, %v7481
        %vm7602 = vcmp.ge.f32.partialorder %v5223, %v7482
        %vm7603 = vcmp.ge.f32.partialorder %v5229, %v7483
        %v7604 = vsel %vm7596, 0, %v7588
        %v7605 = vsel %vm7597, 0, %v7589
        %v7606 = vsel %vm7598, 0, %v7590
        %v7607 = vsel %vm7599, 0, %v7591
        %v7608 = vsel %vm7600, 0, %v7592
        %v7609 = vsel %vm7601, 0, %v7593
        %v7610 = vsel %vm7602, 0, %v7594
        %v7611 = vsel %vm7603, 0, %v7595
        %v7612 = vsub.f32 %v5187, %v7476
        %v7613 = vsub.f32 %v5193, %v7477
        %v7614 = vsub.f32 %v5199, %v7478
        %v7615 = vsub.f32 %v5205, %v7479
        %v7616 = vsub.f32 %v5211, %v7480
        %v7617 = vsub.f32 %v5217, %v7481
        %v7618 = vsub.f32 %v5223, %v7482
        %v7619 = vsub.f32 %v5229, %v7483
        %v7620 = vmul.f32 %v7612, 10.0
        %v7621 = vmul.f32 %v7613, 10.0
        %v7622 = vmul.f32 %v7614, 10.0
        %v7623 = vmul.f32 %v7615, 10.0
        %v7624 = vmul.f32 %v7616, 10.0
        %v7625 = vmul.f32 %v7617, 10.0
        %v7626 = vmul.f32 %v7618, 10.0
        %v7627 = vmul.f32 %v7619, 10.0
        %v7628 = vmul.f32 %v7620, 1.442695
        %v7629 = vpow.pop %v7628
        %v7630 = vmul.f32 %v7621, 1.442695
        %v7631 = vpow.pop %v7630
        %v7632 = vmul.f32 %v7622, 1.442695
        %v7633 = vpow.pop %v7632
        %v7634 = vmul.f32 %v7623, 1.442695
        %v7635 = vpow.pop %v7634
        %v7636 = vmul.f32 %v7624, 1.442695
        %v7637 = vpow.pop %v7636
        %v7638 = vmul.f32 %v7625, 1.442695
        %v7639 = vpow.pop %v7638
        %v7640 = vmul.f32 %v7626, 1.442695
        %v7641 = vpow.pop %v7640
        %v7642 = vmul.f32 %v7627, 1.442695
        %v7643 = vpow.pop %v7642
        %v7644 = vadd.f32 %v7629, 0.0
        %v7645 = vadd.f32 %v7631, 0.0
        %v7646 = vadd.f32 %v7633, 0.0
        %v7647 = vadd.f32 %v7635, 0.0
        %v7648 = vadd.f32 %v7637, 0.0
        %v7649 = vadd.f32 %v7639, 0.0
        %v7650 = vadd.f32 %v7641, 0.0
        %v7651 = vadd.f32 %v7643, 0.0
        %v7652 = vsub.f32 %v5501, %v7476
        %v7653 = vsub.f32 %v5507, %v7477
        %v7654 = vsub.f32 %v5513, %v7478
        %v7655 = vsub.f32 %v5519, %v7479
        %v7656 = vsub.f32 %v5525, %v7480
        %v7657 = vsub.f32 %v5531, %v7481
        %v7658 = vsub.f32 %v5537, %v7482
        %v7659 = vsub.f32 %v5543, %v7483
        %v7660 = vmul.f32 %v7652, 10.0
        %v7661 = vmul.f32 %v7653, 10.0
        %v7662 = vmul.f32 %v7654, 10.0
        %v7663 = vmul.f32 %v7655, 10.0
        %v7664 = vmul.f32 %v7656, 10.0
        %v7665 = vmul.f32 %v7657, 10.0
        %v7666 = vmul.f32 %v7658, 10.0
        %v7667 = vmul.f32 %v7659, 10.0
        %v7668 = vmul.f32 %v7660, 1.442695
        %v7669 = vpow.pop %v7668
        %v7670 = vmul.f32 %v7661, 1.442695
        %v7671 = vpow.pop %v7670
        %v7672 = vmul.f32 %v7662, 1.442695
        %v7673 = vpow.pop %v7672
        %v7674 = vmul.f32 %v7663, 1.442695
        %v7675 = vpow.pop %v7674
        %v7676 = vmul.f32 %v7664, 1.442695
        %v7677 = vpow.pop %v7676
        %v7678 = vmul.f32 %v7665, 1.442695
        %v7679 = vpow.pop %v7678
        %v7680 = vmul.f32 %v7666, 1.442695
        %v7681 = vpow.pop %v7680
        %v7682 = vmul.f32 %v7667, 1.442695
        %v7683 = vpow.pop %v7682
        %v7684 = vadd.f32 %v7644, %v7669
        %v7685 = vadd.f32 %v7645, %v7671
        %v7686 = vadd.f32 %v7646, %v7673
        %v7687 = vadd.f32 %v7647, %v7675
        %v7688 = vadd.f32 %v7648, %v7677
        %v7689 = vadd.f32 %v7649, %v7679
        %v7690 = vadd.f32 %v7650, %v7681
        %v7691 = vadd.f32 %v7651, %v7683
        %v7692 = vsub.f32 %v5815, %v7476
        %v7693 = vsub.f32 %v5821, %v7477
        %v7694 = vsub.f32 %v5827, %v7478
        %v7695 = vsub.f32 %v5833, %v7479
        %v7696 = vsub.f32 %v5839, %v7480
        %v7697 = vsub.f32 %v5845, %v7481
        %v7698 = vsub.f32 %v5851, %v7482
        %v7699 = vsub.f32 %v5857, %v7483
        %v7700 = vmul.f32 %v7692, 10.0
        %v7701 = vmul.f32 %v7693, 10.0
        %v7702 = vmul.f32 %v7694, 10.0
        %v7703 = vmul.f32 %v7695, 10.0
        %v7704 = vmul.f32 %v7696, 10.0
        %v7705 = vmul.f32 %v7697, 10.0
        %v7706 = vmul.f32 %v7698, 10.0
        %v7707 = vmul.f32 %v7699, 10.0
        %v7708 = vmul.f32 %v7700, 1.442695
        %v7709 = vpow.pop %v7708
        %v7710 = vmul.f32 %v7701, 1.442695
        %v7711 = vpow.pop %v7710
        %v7712 = vmul.f32 %v7702, 1.442695
        %v7713 = vpow.pop %v7712
        %v7714 = vmul.f32 %v7703, 1.442695
        %v7715 = vpow.pop %v7714
        %v7716 = vmul.f32 %v7704, 1.442695
        %v7717 = vpow.pop %v7716
        %v7718 = vmul.f32 %v7705, 1.442695
        %v7719 = vpow.pop %v7718
        %v7720 = vmul.f32 %v7706, 1.442695
        %v7721 = vpow.pop %v7720
        %v7722 = vmul.f32 %v7707, 1.442695
        %v7723 = vpow.pop %v7722
        %v7724 = vadd.f32 %v7684, %v7709
        %v7725 = vadd.f32 %v7685, %v7711
        %v7726 = vadd.f32 %v7686, %v7713
        %v7727 = vadd.f32 %v7687, %v7715
        %v7728 = vadd.f32 %v7688, %v7717
        %v7729 = vadd.f32 %v7689, %v7719
        %v7730 = vadd.f32 %v7690, %v7721
        %v7731 = vadd.f32 %v7691, %v7723
        %v7732 = vsub.f32 %v6129, %v7476
        %v7733 = vsub.f32 %v6135, %v7477
        %v7734 = vsub.f32 %v6141, %v7478
        %v7735 = vsub.f32 %v6147, %v7479
        %v7736 = vsub.f32 %v6153, %v7480
        %v7737 = vsub.f32 %v6159, %v7481
        %v7738 = vsub.f32 %v6165, %v7482
        %v7739 = vsub.f32 %v6171, %v7483
        %v7740 = vmul.f32 %v7732, 10.0
        %v7741 = vmul.f32 %v7733, 10.0
        %v7742 = vmul.f32 %v7734, 10.0
        %v7743 = vmul.f32 %v7735, 10.0
        %v7744 = vmul.f32 %v7736, 10.0
        %v7745 = vmul.f32 %v7737, 10.0
        %v7746 = vmul.f32 %v7738, 10.0
        %v7747 = vmul.f32 %v7739, 10.0
        %v7748 = vmul.f32 %v7740, 1.442695
        %v7749 = vpow.pop %v7748
        %v7750 = vmul.f32 %v7741, 1.442695
        %v7751 = vpow.pop %v7750
        %v7752 = vmul.f32 %v7742, 1.442695
        %v7753 = vpow.pop %v7752
        %v7754 = vmul.f32 %v7743, 1.442695
        %v7755 = vpow.pop %v7754
        %v7756 = vmul.f32 %v7744, 1.442695
        %v7757 = vpow.pop %v7756
        %v7758 = vmul.f32 %v7745, 1.442695
        %v7759 = vpow.pop %v7758
        %v7760 = vmul.f32 %v7746, 1.442695
        %v7761 = vpow.pop %v7760
        %v7762 = vmul.f32 %v7747, 1.442695
        %v7763 = vpow.pop %v7762
        %v7764 = vadd.f32 %v7724, %v7749
        %v7765 = vadd.f32 %v7725, %v7751
        %v7766 = vadd.f32 %v7726, %v7753
        %v7767 = vadd.f32 %v7727, %v7755
        %v7768 = vadd.f32 %v7728, %v7757
        %v7769 = vadd.f32 %v7729, %v7759
        %v7770 = vadd.f32 %v7730, %v7761
        %v7771 = vadd.f32 %v7731, %v7763
        %v7772 = vsub.f32 %v6443, %v7476
        %v7773 = vsub.f32 %v6449, %v7477
        %v7774 = vsub.f32 %v6455, %v7478
        %v7775 = vsub.f32 %v6461, %v7479
        %v7776 = vsub.f32 %v6467, %v7480
        %v7777 = vsub.f32 %v6473, %v7481
        %v7778 = vsub.f32 %v6479, %v7482
        %v7779 = vsub.f32 %v6485, %v7483
        %v7780 = vmul.f32 %v7772, 10.0
        %v7781 = vmul.f32 %v7773, 10.0
        %v7782 = vmul.f32 %v7774, 10.0
        %v7783 = vmul.f32 %v7775, 10.0
        %v7784 = vmul.f32 %v7776, 10.0
        %v7785 = vmul.f32 %v7777, 10.0
        %v7786 = vmul.f32 %v7778, 10.0
        %v7787 = vmul.f32 %v7779, 10.0
        %v7788 = vmul.f32 %v7780, 1.442695
        %v7789 = vpow.pop %v7788
        %v7790 = vmul.f32 %v7781, 1.442695
        %v7791 = vpow.pop %v7790
        %v7792 = vmul.f32 %v7782, 1.442695
        %v7793 = vpow.pop %v7792
        %v7794 = vmul.f32 %v7783, 1.442695
        %v7795 = vpow.pop %v7794
        %v7796 = vmul.f32 %v7784, 1.442695
        %v7797 = vpow.pop %v7796
        %v7798 = vmul.f32 %v7785, 1.442695
        %v7799 = vpow.pop %v7798
        %v7800 = vmul.f32 %v7786, 1.442695
        %v7801 = vpow.pop %v7800
        %v7802 = vmul.f32 %v7787, 1.442695
        %v7803 = vpow.pop %v7802
        %v7804 = vadd.f32 %v7764, %v7789
        %v7805 = vadd.f32 %v7765, %v7791
        %v7806 = vadd.f32 %v7766, %v7793
        %v7807 = vadd.f32 %v7767, %v7795
        %v7808 = vadd.f32 %v7768, %v7797
        %v7809 = vadd.f32 %v7769, %v7799
        %v7810 = vadd.f32 %v7770, %v7801
        %v7811 = vadd.f32 %v7771, %v7803
        %v7812 = vsub.f32 %v6757, %v7476
        %v7813 = vsub.f32 %v6763, %v7477
        %v7814 = vsub.f32 %v6769, %v7478
        %v7815 = vsub.f32 %v6775, %v7479
        %v7816 = vsub.f32 %v6781, %v7480
        %v7817 = vsub.f32 %v6787, %v7481
        %v7818 = vsub.f32 %v6793, %v7482
        %v7819 = vsub.f32 %v6799, %v7483
        %v7820 = vmul.f32 %v7812, 10.0
        %v7821 = vmul.f32 %v7813, 10.0
        %v7822 = vmul.f32 %v7814, 10.0
        %v7823 = vmul.f32 %v7815, 10.0
        %v7824 = vmul.f32 %v7816, 10.0
        %v7825 = vmul.f32 %v7817, 10.0
        %v7826 = vmul.f32 %v7818, 10.0
        %v7827 = vmul.f32 %v7819, 10.0
        %v7828 = vmul.f32 %v7820, 1.442695
        %v7829 = vpow.pop %v7828
        %v7830 = vmul.f32 %v7821, 1.442695
        %v7831 = vpow.pop %v7830
        %v7832 = vmul.f32 %v7822, 1.442695
        %v7833 = vpow.pop %v7832
        %v7834 = vmul.f32 %v7823, 1.442695
        %v7835 = vpow.pop %v7834
        %v7836 = vmul.f32 %v7824, 1.442695
        %v7837 = vpow.pop %v7836
        %v7838 = vmul.f32 %v7825, 1.442695
        %v7839 = vpow.pop %v7838
        %v7840 = vmul.f32 %v7826, 1.442695
        %v7841 = vpow.pop %v7840
        %v7842 = vmul.f32 %v7827, 1.442695
        %v7843 = vpow.pop %v7842
        %v7844 = vadd.f32 %v7804, %v7829
        %v7845 = vadd.f32 %v7805, %v7831
        %v7846 = vadd.f32 %v7806, %v7833
        %v7847 = vadd.f32 %v7807, %v7835
        %v7848 = vadd.f32 %v7808, %v7837
        %v7849 = vadd.f32 %v7809, %v7839
        %v7850 = vadd.f32 %v7810, %v7841
        %v7851 = vadd.f32 %v7811, %v7843
        %v7852 = vsub.f32 %v7071, %v7476
        %v7853 = vsub.f32 %v7077, %v7477
        %v7854 = vsub.f32 %v7083, %v7478
        %v7855 = vsub.f32 %v7089, %v7479
        %v7856 = vsub.f32 %v7095, %v7480
        %v7857 = vsub.f32 %v7101, %v7481
        %v7858 = vsub.f32 %v7107, %v7482
        %v7859 = vsub.f32 %v7113, %v7483
        %v7860 = vmul.f32 %v7852, 10.0
        %v7861 = vmul.f32 %v7853, 10.0
        %v7862 = vmul.f32 %v7854, 10.0
        %v7863 = vmul.f32 %v7855, 10.0
        %v7864 = vmul.f32 %v7856, 10.0
        %v7865 = vmul.f32 %v7857, 10.0
        %v7866 = vmul.f32 %v7858, 10.0
        %v7867 = vmul.f32 %v7859, 10.0
        %v7868 = vmul.f32 %v7860, 1.442695
        %v7869 = vpow.pop %v7868
        %v7870 = vmul.f32 %v7861, 1.442695
        %v7871 = vpow.pop %v7870
        %v7872 = vmul.f32 %v7862, 1.442695
        %v7873 = vpow.pop %v7872
        %v7874 = vmul.f32 %v7863, 1.442695
        %v7875 = vpow.pop %v7874
        %v7876 = vmul.f32 %v7864, 1.442695
        %v7877 = vpow.pop %v7876
        %v7878 = vmul.f32 %v7865, 1.442695
        %v7879 = vpow.pop %v7878
        %v7880 = vmul.f32 %v7866, 1.442695
        %v7881 = vpow.pop %v7880
        %v7882 = vmul.f32 %v7867, 1.442695
        %v7883 = vpow.pop %v7882
        %v7884 = vadd.f32 %v7844, %v7869
        %v7885 = vadd.f32 %v7845, %v7871
        %v7886 = vadd.f32 %v7846, %v7873
        %v7887 = vadd.f32 %v7847, %v7875
        %v7888 = vadd.f32 %v7848, %v7877
        %v7889 = vadd.f32 %v7849, %v7879
        %v7890 = vadd.f32 %v7850, %v7881
        %v7891 = vadd.f32 %v7851, %v7883
        %v7892 = vsub.f32 %v7385, %v7476
        %v7893 = vsub.f32 %v7391, %v7477
        %v7894 = vsub.f32 %v7397, %v7478
        %v7895 = vsub.f32 %v7403, %v7479
        %v7896 = vsub.f32 %v7409, %v7480
        %v7897 = vsub.f32 %v7415, %v7481
        %v7898 = vsub.f32 %v7421, %v7482
        %v7899 = vsub.f32 %v7427, %v7483
        %v7900 = vmul.f32 %v7892, 10.0
        %v7901 = vmul.f32 %v7893, 10.0
        %v7902 = vmul.f32 %v7894, 10.0
        %v7903 = vmul.f32 %v7895, 10.0
        %v7904 = vmul.f32 %v7896, 10.0
        %v7905 = vmul.f32 %v7897, 10.0
        %v7906 = vmul.f32 %v7898, 10.0
        %v7907 = vmul.f32 %v7899, 10.0
        %v7908 = vmul.f32 %v7900, 1.442695
        %v7909 = vpow.pop %v7908
        %v7910 = vmul.f32 %v7901, 1.442695
        %v7911 = vpow.pop %v7910
        %v7912 = vmul.f32 %v7902, 1.442695
        %v7913 = vpow.pop %v7912
        %v7914 = vmul.f32 %v7903, 1.442695
        %v7915 = vpow.pop %v7914
        %v7916 = vmul.f32 %v7904, 1.442695
        %v7917 = vpow.pop %v7916
        %v7918 = vmul.f32 %v7905, 1.442695
        %v7919 = vpow.pop %v7918
        %v7920 = vmul.f32 %v7906, 1.442695
        %v7921 = vpow.pop %v7920
        %v7922 = vmul.f32 %v7907, 1.442695
        %v7923 = vpow.pop %v7922
        %v7924 = vadd.f32 %v7884, %v7909
        %v7925 = vadd.f32 %v7885, %v7911
        %v7926 = vadd.f32 %v7886, %v7913
        %v7927 = vadd.f32 %v7887, %v7915
        %v7928 = vadd.f32 %v7888, %v7917
        %v7929 = vadd.f32 %v7889, %v7919
        %v7930 = vadd.f32 %v7890, %v7921
        %v7931 = vadd.f32 %v7891, %v7923
        %vm7932 = vcmp.eq.s32.totalorder %v7604, 0
        %vm7933 = vcmp.eq.s32.totalorder %v7605, 0
        %vm7934 = vcmp.eq.s32.totalorder %v7606, 0
        %vm7935 = vcmp.eq.s32.totalorder %v7607, 0
        %vm7936 = vcmp.eq.s32.totalorder %v7608, 0
        %vm7937 = vcmp.eq.s32.totalorder %v7609, 0
        %vm7938 = vcmp.eq.s32.totalorder %v7610, 0
        %vm7939 = vcmp.eq.s32.totalorder %v7611, 0
        %v7940 = vsel %vm7932, 1, 0
        %v7941 = vsel %vm7933, 1, 0
        %v7942 = vsel %vm7934, 1, 0
        %v7943 = vsel %vm7935, 1, 0
        %v7944 = vsel %vm7936, 1, 0
        %v7945 = vsel %vm7937, 1, 0
        %v7946 = vsel %vm7938, 1, 0
        %v7947 = vsel %vm7939, 1, 0
        %v7948 = vcvt.s32.f32 %v7940
        %v7949 = vcvt.s32.f32 %v7941
        %v7950 = vcvt.s32.f32 %v7942
        %v7951 = vcvt.s32.f32 %v7943
        %v7952 = vcvt.s32.f32 %v7944
        %v7953 = vcvt.s32.f32 %v7945
        %v7954 = vcvt.s32.f32 %v7946
        %v7955 = vcvt.s32.f32 %v7947
        %v7956 = vlaneseq
        %v7957 = vshrl.u32 %v7956, 7
        %v7958 = vsub.s32 0, %v7957
        %v7959 = vrot.slane %v7948, %v7958
        %v7960 = vlaneseq
        %v7961 = vshrl.u32 %v7960, 7
        %v7962 = vsub.s32 0, %v7961
        %v7963 = vrot.slane %v7949, %v7962
        %v7964 = vlaneseq
        %v7965 = vshrl.u32 %v7964, 7
        %v7966 = vsub.s32 0, %v7965
        %v7967 = vrot.slane %v7950, %v7966
        %v7968 = vlaneseq
        %v7969 = vshrl.u32 %v7968, 7
        %v7970 = vsub.s32 0, %v7969
        %v7971 = vrot.slane %v7951, %v7970
        %v7972 = vlaneseq
        %v7973 = vshrl.u32 %v7972, 7
        %v7974 = vsub.s32 0, %v7973
        %v7975 = vrot.slane %v7952, %v7974
        %v7976 = vlaneseq
        %v7977 = vshrl.u32 %v7976, 7
        %v7978 = vsub.s32 0, %v7977
        %v7979 = vrot.slane %v7953, %v7978
        %v7980 = vlaneseq
        %v7981 = vshrl.u32 %v7980, 7
        %v7982 = vsub.s32 0, %v7981
        %v7983 = vrot.slane %v7954, %v7982
        %v7984 = vlaneseq
        %v7985 = vshrl.u32 %v7984, 7
        %v7986 = vsub.s32 0, %v7985
        %v7987 = vrot.slane %v7955, %v7986
        %v7988 = vmul.f32 %v7959, %v4918
        %v7989 = vmul.f32 %v7963, %v4918
        %v7990 = vmul.f32 %v7967, %v4918
        %v7991 = vmul.f32 %v7971, %v4918
        %v7992 = vmul.f32 %v7975, %v4918
        %v7993 = vmul.f32 %v7979, %v4918
        %v7994 = vmul.f32 %v7983, %v4918
        %v7995 = vmul.f32 %v7987, %v4918
        %v7996 = vadd.f32 %v7988, 0.0
        %v7997 = vadd.f32 %v7989, 0.0
        %v7998 = vadd.f32 %v7990, 0.0
        %v7999 = vadd.f32 %v7991, 0.0
        %v8000 = vadd.f32 %v7992, 0.0
        %v8001 = vadd.f32 %v7993, 0.0
        %v8002 = vadd.f32 %v7994, 0.0
        %v8003 = vadd.f32 %v7995, 0.0
        %vm8004 = vcmp.eq.s32.totalorder %v7604, 1
        %vm8005 = vcmp.eq.s32.totalorder %v7605, 1
        %vm8006 = vcmp.eq.s32.totalorder %v7606, 1
        %vm8007 = vcmp.eq.s32.totalorder %v7607, 1
        %vm8008 = vcmp.eq.s32.totalorder %v7608, 1
        %vm8009 = vcmp.eq.s32.totalorder %v7609, 1
        %vm8010 = vcmp.eq.s32.totalorder %v7610, 1
        %vm8011 = vcmp.eq.s32.totalorder %v7611, 1
        %v8012 = vsel %vm8004, 1, 0
        %v8013 = vsel %vm8005, 1, 0
        %v8014 = vsel %vm8006, 1, 0
        %v8015 = vsel %vm8007, 1, 0
        %v8016 = vsel %vm8008, 1, 0
        %v8017 = vsel %vm8009, 1, 0
        %v8018 = vsel %vm8010, 1, 0
        %v8019 = vsel %vm8011, 1, 0
        %v8020 = vcvt.s32.f32 %v8012
        %v8021 = vcvt.s32.f32 %v8013
        %v8022 = vcvt.s32.f32 %v8014
        %v8023 = vcvt.s32.f32 %v8015
        %v8024 = vcvt.s32.f32 %v8016
        %v8025 = vcvt.s32.f32 %v8017
        %v8026 = vcvt.s32.f32 %v8018
        %v8027 = vcvt.s32.f32 %v8019
        %v8028 = vlaneseq
        %v8029 = vshrl.u32 %v8028, 7
        %v8030 = vsub.s32 0, %v8029
        %v8031 = vrot.slane %v8020, %v8030
        %v8032 = vlaneseq
        %v8033 = vshrl.u32 %v8032, 7
        %v8034 = vsub.s32 0, %v8033
        %v8035 = vrot.slane %v8021, %v8034
        %v8036 = vlaneseq
        %v8037 = vshrl.u32 %v8036, 7
        %v8038 = vsub.s32 0, %v8037
        %v8039 = vrot.slane %v8022, %v8038
        %v8040 = vlaneseq
        %v8041 = vshrl.u32 %v8040, 7
        %v8042 = vsub.s32 0, %v8041
        %v8043 = vrot.slane %v8023, %v8042
        %v8044 = vlaneseq
        %v8045 = vshrl.u32 %v8044, 7
        %v8046 = vsub.s32 0, %v8045
        %v8047 = vrot.slane %v8024, %v8046
        %v8048 = vlaneseq
        %v8049 = vshrl.u32 %v8048, 7
        %v8050 = vsub.s32 0, %v8049
        %v8051 = vrot.slane %v8025, %v8050
        %v8052 = vlaneseq
        %v8053 = vshrl.u32 %v8052, 7
        %v8054 = vsub.s32 0, %v8053
        %v8055 = vrot.slane %v8026, %v8054
        %v8056 = vlaneseq
        %v8057 = vshrl.u32 %v8056, 7
        %v8058 = vsub.s32 0, %v8057
        %v8059 = vrot.slane %v8027, %v8058
        %v8060 = vmul.f32 %v8031, %v5232
        %v8061 = vmul.f32 %v8035, %v5232
        %v8062 = vmul.f32 %v8039, %v5232
        %v8063 = vmul.f32 %v8043, %v5232
        %v8064 = vmul.f32 %v8047, %v5232
        %v8065 = vmul.f32 %v8051, %v5232
        %v8066 = vmul.f32 %v8055, %v5232
        %v8067 = vmul.f32 %v8059, %v5232
        %v8068 = vadd.f32 %v7996, %v8060
        %v8069 = vadd.f32 %v7997, %v8061
        %v8070 = vadd.f32 %v7998, %v8062
        %v8071 = vadd.f32 %v7999, %v8063
        %v8072 = vadd.f32 %v8000, %v8064
        %v8073 = vadd.f32 %v8001, %v8065
        %v8074 = vadd.f32 %v8002, %v8066
        %v8075 = vadd.f32 %v8003, %v8067
        %vm8076 = vcmp.eq.s32.totalorder %v7604, 2
        %vm8077 = vcmp.eq.s32.totalorder %v7605, 2
        %vm8078 = vcmp.eq.s32.totalorder %v7606, 2
        %vm8079 = vcmp.eq.s32.totalorder %v7607, 2
        %vm8080 = vcmp.eq.s32.totalorder %v7608, 2
        %vm8081 = vcmp.eq.s32.totalorder %v7609, 2
        %vm8082 = vcmp.eq.s32.totalorder %v7610, 2
        %vm8083 = vcmp.eq.s32.totalorder %v7611, 2
        %v8084 = vsel %vm8076, 1, 0
        %v8085 = vsel %vm8077, 1, 0
        %v8086 = vsel %vm8078, 1, 0
        %v8087 = vsel %vm8079, 1, 0
        %v8088 = vsel %vm8080, 1, 0
        %v8089 = vsel %vm8081, 1, 0
        %v8090 = vsel %vm8082, 1, 0
        %v8091 = vsel %vm8083, 1, 0
        %v8092 = vcvt.s32.f32 %v8084
        %v8093 = vcvt.s32.f32 %v8085
        %v8094 = vcvt.s32.f32 %v8086
        %v8095 = vcvt.s32.f32 %v8087
        %v8096 = vcvt.s32.f32 %v8088
        %v8097 = vcvt.s32.f32 %v8089
        %v8098 = vcvt.s32.f32 %v8090
        %v8099 = vcvt.s32.f32 %v8091
        %v8100 = vlaneseq
        %v8101 = vshrl.u32 %v8100, 7
        %v8102 = vsub.s32 0, %v8101
        %v8103 = vrot.slane %v8092, %v8102
        %v8104 = vlaneseq
        %v8105 = vshrl.u32 %v8104, 7
        %v8106 = vsub.s32 0, %v8105
        %v8107 = vrot.slane %v8093, %v8106
        %v8108 = vlaneseq
        %v8109 = vshrl.u32 %v8108, 7
        %v8110 = vsub.s32 0, %v8109
        %v8111 = vrot.slane %v8094, %v8110
        %v8112 = vlaneseq
        %v8113 = vshrl.u32 %v8112, 7
        %v8114 = vsub.s32 0, %v8113
        %v8115 = vrot.slane %v8095, %v8114
        %v8116 = vlaneseq
        %v8117 = vshrl.u32 %v8116, 7
        %v8118 = vsub.s32 0, %v8117
        %v8119 = vrot.slane %v8096, %v8118
        %v8120 = vlaneseq
        %v8121 = vshrl.u32 %v8120, 7
        %v8122 = vsub.s32 0, %v8121
        %v8123 = vrot.slane %v8097, %v8122
        %v8124 = vlaneseq
        %v8125 = vshrl.u32 %v8124, 7
        %v8126 = vsub.s32 0, %v8125
        %v8127 = vrot.slane %v8098, %v8126
        %v8128 = vlaneseq
        %v8129 = vshrl.u32 %v8128, 7
        %v8130 = vsub.s32 0, %v8129
        %v8131 = vrot.slane %v8099, %v8130
        %v8132 = vmul.f32 %v8103, %v5546
        %v8133 = vmul.f32 %v8107, %v5546
        %v8134 = vmul.f32 %v8111, %v5546
        %v8135 = vmul.f32 %v8115, %v5546
        %v8136 = vmul.f32 %v8119, %v5546
        %v8137 = vmul.f32 %v8123, %v5546
        %v8138 = vmul.f32 %v8127, %v5546
        %v8139 = vmul.f32 %v8131, %v5546
        %v8140 = vadd.f32 %v8068, %v8132
        %v8141 = vadd.f32 %v8069, %v8133
        %v8142 = vadd.f32 %v8070, %v8134
        %v8143 = vadd.f32 %v8071, %v8135
        %v8144 = vadd.f32 %v8072, %v8136
        %v8145 = vadd.f32 %v8073, %v8137
        %v8146 = vadd.f32 %v8074, %v8138
        %v8147 = vadd.f32 %v8075, %v8139
        %vm8148 = vcmp.eq.s32.totalorder %v7604, 3
        %vm8149 = vcmp.eq.s32.totalorder %v7605, 3
        %vm8150 = vcmp.eq.s32.totalorder %v7606, 3
        %vm8151 = vcmp.eq.s32.totalorder %v7607, 3
        %vm8152 = vcmp.eq.s32.totalorder %v7608, 3
        %vm8153 = vcmp.eq.s32.totalorder %v7609, 3
        %vm8154 = vcmp.eq.s32.totalorder %v7610, 3
        %vm8155 = vcmp.eq.s32.totalorder %v7611, 3
        %v8156 = vsel %vm8148, 1, 0
        %v8157 = vsel %vm8149, 1, 0
        %v8158 = vsel %vm8150, 1, 0
        %v8159 = vsel %vm8151, 1, 0
        %v8160 = vsel %vm8152, 1, 0
        %v8161 = vsel %vm8153, 1, 0
        %v8162 = vsel %vm8154, 1, 0
        %v8163 = vsel %vm8155, 1, 0
        %v8164 = vcvt.s32.f32 %v8156
        %v8165 = vcvt.s32.f32 %v8157
        %v8166 = vcvt.s32.f32 %v8158
        %v8167 = vcvt.s32.f32 %v8159
        %v8168 = vcvt.s32.f32 %v8160
        %v8169 = vcvt.s32.f32 %v8161
        %v8170 = vcvt.s32.f32 %v8162
        %v8171 = vcvt.s32.f32 %v8163
        %v8172 = vlaneseq
        %v8173 = vshrl.u32 %v8172, 7
        %v8174 = vsub.s32 0, %v8173
        %v8175 = vrot.slane %v8164, %v8174
        %v8176 = vlaneseq
        %v8177 = vshrl.u32 %v8176, 7
        %v8178 = vsub.s32 0, %v8177
        %v8179 = vrot.slane %v8165, %v8178
        %v8180 = vlaneseq
        %v8181 = vshrl.u32 %v8180, 7
        %v8182 = vsub.s32 0, %v8181
        %v8183 = vrot.slane %v8166, %v8182
        %v8184 = vlaneseq
        %v8185 = vshrl.u32 %v8184, 7
        %v8186 = vsub.s32 0, %v8185
        %v8187 = vrot.slane %v8167, %v8186
        %v8188 = vlaneseq
        %v8189 = vshrl.u32 %v8188, 7
        %v8190 = vsub.s32 0, %v8189
        %v8191 = vrot.slane %v8168, %v8190
        %v8192 = vlaneseq
        %v8193 = vshrl.u32 %v8192, 7
        %v8194 = vsub.s32 0, %v8193
        %v8195 = vrot.slane %v8169, %v8194
        %v8196 = vlaneseq
        %v8197 = vshrl.u32 %v8196, 7
        %v8198 = vsub.s32 0, %v8197
        %v8199 = vrot.slane %v8170, %v8198
        %v8200 = vlaneseq
        %v8201 = vshrl.u32 %v8200, 7
        %v8202 = vsub.s32 0, %v8201
        %v8203 = vrot.slane %v8171, %v8202
        %v8204 = vmul.f32 %v8175, %v5860
        %v8205 = vmul.f32 %v8179, %v5860
        %v8206 = vmul.f32 %v8183, %v5860
        %v8207 = vmul.f32 %v8187, %v5860
        %v8208 = vmul.f32 %v8191, %v5860
        %v8209 = vmul.f32 %v8195, %v5860
        %v8210 = vmul.f32 %v8199, %v5860
        %v8211 = vmul.f32 %v8203, %v5860
        %v8212 = vadd.f32 %v8140, %v8204
        %v8213 = vadd.f32 %v8141, %v8205
        %v8214 = vadd.f32 %v8142, %v8206
        %v8215 = vadd.f32 %v8143, %v8207
        %v8216 = vadd.f32 %v8144, %v8208
        %v8217 = vadd.f32 %v8145, %v8209
        %v8218 = vadd.f32 %v8146, %v8210
        %v8219 = vadd.f32 %v8147, %v8211
        %vm8220 = vcmp.eq.s32.totalorder %v7604, 4
        %vm8221 = vcmp.eq.s32.totalorder %v7605, 4
        %vm8222 = vcmp.eq.s32.totalorder %v7606, 4
        %vm8223 = vcmp.eq.s32.totalorder %v7607, 4
        %vm8224 = vcmp.eq.s32.totalorder %v7608, 4
        %vm8225 = vcmp.eq.s32.totalorder %v7609, 4
        %vm8226 = vcmp.eq.s32.totalorder %v7610, 4
        %vm8227 = vcmp.eq.s32.totalorder %v7611, 4
        %v8228 = vsel %vm8220, 1, 0
        %v8229 = vsel %vm8221, 1, 0
        %v8230 = vsel %vm8222, 1, 0
        %v8231 = vsel %vm8223, 1, 0
        %v8232 = vsel %vm8224, 1, 0
        %v8233 = vsel %vm8225, 1, 0
        %v8234 = vsel %vm8226, 1, 0
        %v8235 = vsel %vm8227, 1, 0
        %v8236 = vcvt.s32.f32 %v8228
        %v8237 = vcvt.s32.f32 %v8229
        %v8238 = vcvt.s32.f32 %v8230
        %v8239 = vcvt.s32.f32 %v8231
        %v8240 = vcvt.s32.f32 %v8232
        %v8241 = vcvt.s32.f32 %v8233
        %v8242 = vcvt.s32.f32 %v8234
        %v8243 = vcvt.s32.f32 %v8235
        %v8244 = vlaneseq
        %v8245 = vshrl.u32 %v8244, 7
        %v8246 = vsub.s32 0, %v8245
        %v8247 = vrot.slane %v8236, %v8246
        %v8248 = vlaneseq
        %v8249 = vshrl.u32 %v8248, 7
        %v8250 = vsub.s32 0, %v8249
        %v8251 = vrot.slane %v8237, %v8250
        %v8252 = vlaneseq
        %v8253 = vshrl.u32 %v8252, 7
        %v8254 = vsub.s32 0, %v8253
        %v8255 = vrot.slane %v8238, %v8254
        %v8256 = vlaneseq
        %v8257 = vshrl.u32 %v8256, 7
        %v8258 = vsub.s32 0, %v8257
        %v8259 = vrot.slane %v8239, %v8258
        %v8260 = vlaneseq
        %v8261 = vshrl.u32 %v8260, 7
        %v8262 = vsub.s32 0, %v8261
        %v8263 = vrot.slane %v8240, %v8262
        %v8264 = vlaneseq
        %v8265 = vshrl.u32 %v8264, 7
        %v8266 = vsub.s32 0, %v8265
        %v8267 = vrot.slane %v8241, %v8266
        %v8268 = vlaneseq
        %v8269 = vshrl.u32 %v8268, 7
        %v8270 = vsub.s32 0, %v8269
        %v8271 = vrot.slane %v8242, %v8270
        %v8272 = vlaneseq
        %v8273 = vshrl.u32 %v8272, 7
        %v8274 = vsub.s32 0, %v8273
        %v8275 = vrot.slane %v8243, %v8274
        %v8276 = vmul.f32 %v8247, %v6174
        %v8277 = vmul.f32 %v8251, %v6174
        %v8278 = vmul.f32 %v8255, %v6174
        %v8279 = vmul.f32 %v8259, %v6174
        %v8280 = vmul.f32 %v8263, %v6174
        %v8281 = vmul.f32 %v8267, %v6174
        %v8282 = vmul.f32 %v8271, %v6174
        %v8283 = vmul.f32 %v8275, %v6174
        %v8284 = vadd.f32 %v8212, %v8276
        %v8285 = vadd.f32 %v8213, %v8277
        %v8286 = vadd.f32 %v8214, %v8278
        %v8287 = vadd.f32 %v8215, %v8279
        %v8288 = vadd.f32 %v8216, %v8280
        %v8289 = vadd.f32 %v8217, %v8281
        %v8290 = vadd.f32 %v8218, %v8282
        %v8291 = vadd.f32 %v8219, %v8283
        %vm8292 = vcmp.eq.s32.totalorder %v7604, 5
        %vm8293 = vcmp.eq.s32.totalorder %v7605, 5
        %vm8294 = vcmp.eq.s32.totalorder %v7606, 5
        %vm8295 = vcmp.eq.s32.totalorder %v7607, 5
        %vm8296 = vcmp.eq.s32.totalorder %v7608, 5
        %vm8297 = vcmp.eq.s32.totalorder %v7609, 5
        %vm8298 = vcmp.eq.s32.totalorder %v7610, 5
        %vm8299 = vcmp.eq.s32.totalorder %v7611, 5
        %v8300 = vsel %vm8292, 1, 0
        %v8301 = vsel %vm8293, 1, 0
        %v8302 = vsel %vm8294, 1, 0
        %v8303 = vsel %vm8295, 1, 0
        %v8304 = vsel %vm8296, 1, 0
        %v8305 = vsel %vm8297, 1, 0
        %v8306 = vsel %vm8298, 1, 0
        %v8307 = vsel %vm8299, 1, 0
        %v8308 = vcvt.s32.f32 %v8300
        %v8309 = vcvt.s32.f32 %v8301
        %v8310 = vcvt.s32.f32 %v8302
        %v8311 = vcvt.s32.f32 %v8303
        %v8312 = vcvt.s32.f32 %v8304
        %v8313 = vcvt.s32.f32 %v8305
        %v8314 = vcvt.s32.f32 %v8306
        %v8315 = vcvt.s32.f32 %v8307
        %v8316 = vlaneseq
        %v8317 = vshrl.u32 %v8316, 7
        %v8318 = vsub.s32 0, %v8317
        %v8319 = vrot.slane %v8308, %v8318
        %v8320 = vlaneseq
        %v8321 = vshrl.u32 %v8320, 7
        %v8322 = vsub.s32 0, %v8321
        %v8323 = vrot.slane %v8309, %v8322
        %v8324 = vlaneseq
        %v8325 = vshrl.u32 %v8324, 7
        %v8326 = vsub.s32 0, %v8325
        %v8327 = vrot.slane %v8310, %v8326
        %v8328 = vlaneseq
        %v8329 = vshrl.u32 %v8328, 7
        %v8330 = vsub.s32 0, %v8329
        %v8331 = vrot.slane %v8311, %v8330
        %v8332 = vlaneseq
        %v8333 = vshrl.u32 %v8332, 7
        %v8334 = vsub.s32 0, %v8333
        %v8335 = vrot.slane %v8312, %v8334
        %v8336 = vlaneseq
        %v8337 = vshrl.u32 %v8336, 7
        %v8338 = vsub.s32 0, %v8337
        %v8339 = vrot.slane %v8313, %v8338
        %v8340 = vlaneseq
        %v8341 = vshrl.u32 %v8340, 7
        %v8342 = vsub.s32 0, %v8341
        %v8343 = vrot.slane %v8314, %v8342
        %v8344 = vlaneseq
        %v8345 = vshrl.u32 %v8344, 7
        %v8346 = vsub.s32 0, %v8345
        %v8347 = vrot.slane %v8315, %v8346
        %v8348 = vmul.f32 %v8319, %v6488
        %v8349 = vmul.f32 %v8323, %v6488
        %v8350 = vmul.f32 %v8327, %v6488
        %v8351 = vmul.f32 %v8331, %v6488
        %v8352 = vmul.f32 %v8335, %v6488
        %v8353 = vmul.f32 %v8339, %v6488
        %v8354 = vmul.f32 %v8343, %v6488
        %v8355 = vmul.f32 %v8347, %v6488
        %v8356 = vadd.f32 %v8284, %v8348
        %v8357 = vadd.f32 %v8285, %v8349
        %v8358 = vadd.f32 %v8286, %v8350
        %v8359 = vadd.f32 %v8287, %v8351
        %v8360 = vadd.f32 %v8288, %v8352
        %v8361 = vadd.f32 %v8289, %v8353
        %v8362 = vadd.f32 %v8290, %v8354
        %v8363 = vadd.f32 %v8291, %v8355
        %vm8364 = vcmp.eq.s32.totalorder %v7604, 6
        %vm8365 = vcmp.eq.s32.totalorder %v7605, 6
        %vm8366 = vcmp.eq.s32.totalorder %v7606, 6
        %vm8367 = vcmp.eq.s32.totalorder %v7607, 6
        %vm8368 = vcmp.eq.s32.totalorder %v7608, 6
        %vm8369 = vcmp.eq.s32.totalorder %v7609, 6
        %vm8370 = vcmp.eq.s32.totalorder %v7610, 6
        %vm8371 = vcmp.eq.s32.totalorder %v7611, 6
        %v8372 = vsel %vm8364, 1, 0
        %v8373 = vsel %vm8365, 1, 0
        %v8374 = vsel %vm8366, 1, 0
        %v8375 = vsel %vm8367, 1, 0
        %v8376 = vsel %vm8368, 1, 0
        %v8377 = vsel %vm8369, 1, 0
        %v8378 = vsel %vm8370, 1, 0
        %v8379 = vsel %vm8371, 1, 0
        %v8380 = vcvt.s32.f32 %v8372
        %v8381 = vcvt.s32.f32 %v8373
        %v8382 = vcvt.s32.f32 %v8374
        %v8383 = vcvt.s32.f32 %v8375
        %v8384 = vcvt.s32.f32 %v8376
        %v8385 = vcvt.s32.f32 %v8377
        %v8386 = vcvt.s32.f32 %v8378
        %v8387 = vcvt.s32.f32 %v8379
        %v8388 = vlaneseq
        %v8389 = vshrl.u32 %v8388, 7
        %v8390 = vsub.s32 0, %v8389
        %v8391 = vrot.slane %v8380, %v8390
        %v8392 = vlaneseq
        %v8393 = vshrl.u32 %v8392, 7
        %v8394 = vsub.s32 0, %v8393
        %v8395 = vrot.slane %v8381, %v8394
        %v8396 = vlaneseq
        %v8397 = vshrl.u32 %v8396, 7
        %v8398 = vsub.s32 0, %v8397
        %v8399 = vrot.slane %v8382, %v8398
        %v8400 = vlaneseq
        %v8401 = vshrl.u32 %v8400, 7
        %v8402 = vsub.s32 0, %v8401
        %v8403 = vrot.slane %v8383, %v8402
        %v8404 = vlaneseq
        %v8405 = vshrl.u32 %v8404, 7
        %v8406 = vsub.s32 0, %v8405
        %v8407 = vrot.slane %v8384, %v8406
        %v8408 = vlaneseq
        %v8409 = vshrl.u32 %v8408, 7
        %v8410 = vsub.s32 0, %v8409
        %v8411 = vrot.slane %v8385, %v8410
        %v8412 = vlaneseq
        %v8413 = vshrl.u32 %v8412, 7
        %v8414 = vsub.s32 0, %v8413
        %v8415 = vrot.slane %v8386, %v8414
        %v8416 = vlaneseq
        %v8417 = vshrl.u32 %v8416, 7
        %v8418 = vsub.s32 0, %v8417
        %v8419 = vrot.slane %v8387, %v8418
        %v8420 = vmul.f32 %v8391, %v6802
        %v8421 = vmul.f32 %v8395, %v6802
        %v8422 = vmul.f32 %v8399, %v6802
        %v8423 = vmul.f32 %v8403, %v6802
        %v8424 = vmul.f32 %v8407, %v6802
        %v8425 = vmul.f32 %v8411, %v6802
        %v8426 = vmul.f32 %v8415, %v6802
        %v8427 = vmul.f32 %v8419, %v6802
        %v8428 = vadd.f32 %v8356, %v8420
        %v8429 = vadd.f32 %v8357, %v8421
        %v8430 = vadd.f32 %v8358, %v8422
        %v8431 = vadd.f32 %v8359, %v8423
        %v8432 = vadd.f32 %v8360, %v8424
        %v8433 = vadd.f32 %v8361, %v8425
        %v8434 = vadd.f32 %v8362, %v8426
        %v8435 = vadd.f32 %v8363, %v8427
        %vm8436 = vcmp.eq.s32.totalorder %v7604, 7
        %vm8437 = vcmp.eq.s32.totalorder %v7605, 7
        %vm8438 = vcmp.eq.s32.totalorder %v7606, 7
        %vm8439 = vcmp.eq.s32.totalorder %v7607, 7
        %vm8440 = vcmp.eq.s32.totalorder %v7608, 7
        %vm8441 = vcmp.eq.s32.totalorder %v7609, 7
        %vm8442 = vcmp.eq.s32.totalorder %v7610, 7
        %vm8443 = vcmp.eq.s32.totalorder %v7611, 7
        %v8444 = vsel %vm8436, 1, 0
        %v8445 = vsel %vm8437, 1, 0
        %v8446 = vsel %vm8438, 1, 0
        %v8447 = vsel %vm8439, 1, 0
        %v8448 = vsel %vm8440, 1, 0
        %v8449 = vsel %vm8441, 1, 0
        %v8450 = vsel %vm8442, 1, 0
        %v8451 = vsel %vm8443, 1, 0
        %v8452 = vcvt.s32.f32 %v8444
        %v8453 = vcvt.s32.f32 %v8445
        %v8454 = vcvt.s32.f32 %v8446
        %v8455 = vcvt.s32.f32 %v8447
        %v8456 = vcvt.s32.f32 %v8448
        %v8457 = vcvt.s32.f32 %v8449
        %v8458 = vcvt.s32.f32 %v8450
        %v8459 = vcvt.s32.f32 %v8451
        %v8460 = vlaneseq
        %v8461 = vshrl.u32 %v8460, 7
        %v8462 = vsub.s32 0, %v8461
        %v8463 = vrot.slane %v8452, %v8462
        %v8464 = vlaneseq
        %v8465 = vshrl.u32 %v8464, 7
        %v8466 = vsub.s32 0, %v8465
        %v8467 = vrot.slane %v8453, %v8466
        %v8468 = vlaneseq
        %v8469 = vshrl.u32 %v8468, 7
        %v8470 = vsub.s32 0, %v8469
        %v8471 = vrot.slane %v8454, %v8470
        %v8472 = vlaneseq
        %v8473 = vshrl.u32 %v8472, 7
        %v8474 = vsub.s32 0, %v8473
        %v8475 = vrot.slane %v8455, %v8474
        %v8476 = vlaneseq
        %v8477 = vshrl.u32 %v8476, 7
        %v8478 = vsub.s32 0, %v8477
        %v8479 = vrot.slane %v8456, %v8478
        %v8480 = vlaneseq
        %v8481 = vshrl.u32 %v8480, 7
        %v8482 = vsub.s32 0, %v8481
        %v8483 = vrot.slane %v8457, %v8482
        %v8484 = vlaneseq
        %v8485 = vshrl.u32 %v8484, 7
        %v8486 = vsub.s32 0, %v8485
        %v8487 = vrot.slane %v8458, %v8486
        %v8488 = vlaneseq
        %v8489 = vshrl.u32 %v8488, 7
        %v8490 = vsub.s32 0, %v8489
        %v8491 = vrot.slane %v8459, %v8490
        %v8492 = vmul.f32 %v8463, %v7116
        %v8493 = vmul.f32 %v8467, %v7116
        %v8494 = vmul.f32 %v8471, %v7116
        %v8495 = vmul.f32 %v8475, %v7116
        %v8496 = vmul.f32 %v8479, %v7116
        %v8497 = vmul.f32 %v8483, %v7116
        %v8498 = vmul.f32 %v8487, %v7116
        %v8499 = vmul.f32 %v8491, %v7116
        %v8500 = vadd.f32 %v8428, %v8492
        %v8501 = vadd.f32 %v8429, %v8493
        %v8502 = vadd.f32 %v8430, %v8494
        %v8503 = vadd.f32 %v8431, %v8495
        %v8504 = vadd.f32 %v8432, %v8496
        %v8505 = vadd.f32 %v8433, %v8497
        %v8506 = vadd.f32 %v8434, %v8498
        %v8507 = vadd.f32 %v8435, %v8499
        %v8516 = vrot.slane %v8500, 1
        %v8517 = vrot.slane %v8500, 2
        %v8518 = vrot.slane %v8500, 3
        %v8519 = vrot.slane %v8500, 4
        %v8520 = vrot.slane %v8500, 5
        %v8521 = vrot.slane %v8500, 6
        %v8522 = vrot.slane %v8500, 7
        %v8523 = vrot.slane %v8501, 1
        %v8524 = vrot.slane %v8501, 2
        %v8525 = vrot.slane %v8501, 3
        %v8526 = vrot.slane %v8501, 4
        %v8527 = vrot.slane %v8501, 5
        %v8528 = vrot.slane %v8501, 6
        %v8529 = vrot.slane %v8501, 7
        %v8530 = vrot.slane %v8502, 1
        %v8531 = vrot.slane %v8502, 2
        %v8532 = vrot.slane %v8502, 3
        %v8533 = vrot.slane %v8502, 4
        %v8534 = vrot.slane %v8502, 5
        %v8535 = vrot.slane %v8502, 6
        %v8536 = vrot.slane %v8502, 7
        %v8537 = vrot.slane %v8503, 1
        %v8538 = vrot.slane %v8503, 2
        %v8539 = vrot.slane %v8503, 3
        %v8540 = vrot.slane %v8503, 4
        %v8541 = vrot.slane %v8503, 5
        %v8542 = vrot.slane %v8503, 6
        %v8543 = vrot.slane %v8503, 7
        %v8544 = vrot.slane %v8504, 1
        %v8545 = vrot.slane %v8504, 2
        %v8546 = vrot.slane %v8504, 3
        %v8547 = vrot.slane %v8504, 4
        %v8548 = vrot.slane %v8504, 5
        %v8549 = vrot.slane %v8504, 6
        %v8550 = vrot.slane %v8504, 7
        %v8551 = vrot.slane %v8505, 1
        %v8552 = vrot.slane %v8505, 2
        %v8553 = vrot.slane %v8505, 3
        %v8554 = vrot.slane %v8505, 4
        %v8555 = vrot.slane %v8505, 5
        %v8556 = vrot.slane %v8505, 6
        %v8557 = vrot.slane %v8505, 7
        %v8558 = vrot.slane %v8506, 1
        %v8559 = vrot.slane %v8506, 2
        %v8560 = vrot.slane %v8506, 3
        %v8561 = vrot.slane %v8506, 4
        %v8562 = vrot.slane %v8506, 5
        %v8563 = vrot.slane %v8506, 6
        %v8564 = vrot.slane %v8506, 7
        %v8565 = vrot.slane %v8507, 1
        %v8566 = vrot.slane %v8507, 2
        %v8567 = vrot.slane %v8507, 3
        %v8568 = vrot.slane %v8507, 4
        %v8569 = vrot.slane %v8507, 5
        %v8570 = vrot.slane %v8507, 6
        %v8571 = vrot.slane %v8507, 7
        %v8636 = vsub.f32 %v4851, %v8500
        %v8637 = vsub.f32 %v4852, %v8516
        %v8638 = vsub.f32 %v4853, %v8517
        %v8639 = vsub.f32 %v4854, %v8518
        %v8640 = vsub.f32 %v4855, %v8519
        %v8641 = vsub.f32 %v4856, %v8520
        %v8642 = vsub.f32 %v4857, %v8521
        %v8643 = vsub.f32 %v4858, %v8522
        %v8644 = vsub.f32 %v4859, %v8501
        %v8645 = vsub.f32 %v4860, %v8523
        %v8646 = vsub.f32 %v4861, %v8524
        %v8647 = vsub.f32 %v4862, %v8525
        %v8648 = vsub.f32 %v4863, %v8526
        %v8649 = vsub.f32 %v4864, %v8527
        %v8650 = vsub.f32 %v4865, %v8528
        %v8651 = vsub.f32 %v4866, %v8529
        %v8652 = vsub.f32 %v4867, %v8502
        %v8653 = vsub.f32 %v4868, %v8530
        %v8654 = vsub.f32 %v4869, %v8531
        %v8655 = vsub.f32 %v4870, %v8532
        %v8656 = vsub.f32 %v4871, %v8533
        %v8657 = vsub.f32 %v4872, %v8534
        %v8658 = vsub.f32 %v4873, %v8535
        %v8659 = vsub.f32 %v4874, %v8536
        %v8660 = vsub.f32 %v4875, %v8503
        %v8661 = vsub.f32 %v4876, %v8537
        %v8662 = vsub.f32 %v4877, %v8538
        %v8663 = vsub.f32 %v4878, %v8539
        %v8664 = vsub.f32 %v4879, %v8540
        %v8665 = vsub.f32 %v4880, %v8541
        %v8666 = vsub.f32 %v4881, %v8542
        %v8667 = vsub.f32 %v4882, %v8543
        %v8668 = vsub.f32 %v4883, %v8504
        %v8669 = vsub.f32 %v4884, %v8544
        %v8670 = vsub.f32 %v4885, %v8545
        %v8671 = vsub.f32 %v4886, %v8546
        %v8672 = vsub.f32 %v4887, %v8547
        %v8673 = vsub.f32 %v4888, %v8548
        %v8674 = vsub.f32 %v4889, %v8549
        %v8675 = vsub.f32 %v4890, %v8550
        %v8676 = vsub.f32 %v4891, %v8505
        %v8677 = vsub.f32 %v4892, %v8551
        %v8678 = vsub.f32 %v4893, %v8552
        %v8679 = vsub.f32 %v4894, %v8553
        %v8680 = vsub.f32 %v4895, %v8554
        %v8681 = vsub.f32 %v4896, %v8555
        %v8682 = vsub.f32 %v4897, %v8556
        %v8683 = vsub.f32 %v4898, %v8557
        %v8684 = vsub.f32 %v4899, %v8506
        %v8685 = vsub.f32 %v4900, %v8558
        %v8686 = vsub.f32 %v4901, %v8559
        %v8687 = vsub.f32 %v4902, %v8560
        %v8688 = vsub.f32 %v4903, %v8561
        %v8689 = vsub.f32 %v4904, %v8562
        %v8690 = vsub.f32 %v4905, %v8563
        %v8691 = vsub.f32 %v4906, %v8564
        %v8692 = vsub.f32 %v4907, %v8507
        %v8693 = vsub.f32 %v4908, %v8565
        %v8694 = vsub.f32 %v4909, %v8566
        %v8695 = vsub.f32 %v4910, %v8567
        %v8696 = vsub.f32 %v4911, %v8568
        %v8697 = vsub.f32 %v4912, %v8569
        %v8698 = vsub.f32 %v4913, %v8570
        %v8699 = vsub.f32 %v4914, %v8571
        %v8700 = vmul.f32 %v8636, %v8636
        %v8701 = vmul.f32 %v8637, %v8637
        %v8702 = vmul.f32 %v8638, %v8638
        %v8703 = vmul.f32 %v8639, %v8639
        %v8704 = vmul.f32 %v8640, %v8640
        %v8705 = vmul.f32 %v8641, %v8641
        %v8706 = vmul.f32 %v8642, %v8642
        %v8707 = vmul.f32 %v8643, %v8643
        %v8708 = vmul.f32 %v8644, %v8644
        %v8709 = vmul.f32 %v8645, %v8645
        %v8710 = vmul.f32 %v8646, %v8646
        %v8711 = vmul.f32 %v8647, %v8647
        %v8712 = vmul.f32 %v8648, %v8648
        %v8713 = vmul.f32 %v8649, %v8649
        %v8714 = vmul.f32 %v8650, %v8650
        %v8715 = vmul.f32 %v8651, %v8651
        %v8716 = vmul.f32 %v8652, %v8652
        %v8717 = vmul.f32 %v8653, %v8653
        %v8718 = vmul.f32 %v8654, %v8654
        %v8719 = vmul.f32 %v8655, %v8655
        %v8720 = vmul.f32 %v8656, %v8656
        %v8721 = vmul.f32 %v8657, %v8657
        %v8722 = vmul.f32 %v8658, %v8658
        %v8723 = vmul.f32 %v8659, %v8659
        %v8724 = vmul.f32 %v8660, %v8660
        %v8725 = vmul.f32 %v8661, %v8661
        %v8726 = vmul.f32 %v8662, %v8662
        %v8727 = vmul.f32 %v8663, %v8663
        %v8728 = vmul.f32 %v8664, %v8664
        %v8729 = vmul.f32 %v8665, %v8665
        %v8730 = vmul.f32 %v8666, %v8666
        %v8731 = vmul.f32 %v8667, %v8667
        %v8732 = vmul.f32 %v8668, %v8668
        %v8733 = vmul.f32 %v8669, %v8669
        %v8734 = vmul.f32 %v8670, %v8670
        %v8735 = vmul.f32 %v8671, %v8671
        %v8736 = vmul.f32 %v8672, %v8672
        %v8737 = vmul.f32 %v8673, %v8673
        %v8738 = vmul.f32 %v8674, %v8674
        %v8739 = vmul.f32 %v8675, %v8675
        %v8740 = vmul.f32 %v8676, %v8676
        %v8741 = vmul.f32 %v8677, %v8677
        %v8742 = vmul.f32 %v8678, %v8678
        %v8743 = vmul.f32 %v8679, %v8679
        %v8744 = vmul.f32 %v8680, %v8680
        %v8745 = vmul.f32 %v8681, %v8681
        %v8746 = vmul.f32 %v8682, %v8682
        %v8747 = vmul.f32 %v8683, %v8683
        %v8748 = vmul.f32 %v8684, %v8684
        %v8749 = vmul.f32 %v8685, %v8685
        %v8750 = vmul.f32 %v8686, %v8686
        %v8751 = vmul.f32 %v8687, %v8687
        %v8752 = vmul.f32 %v8688, %v8688
        %v8753 = vmul.f32 %v8689, %v8689
        %v8754 = vmul.f32 %v8690, %v8690
        %v8755 = vmul.f32 %v8691, %v8691
        %v8756 = vmul.f32 %v8692, %v8692
        %v8757 = vmul.f32 %v8693, %v8693
        %v8758 = vmul.f32 %v8694, %v8694
        %v8759 = vmul.f32 %v8695, %v8695
        %v8760 = vmul.f32 %v8696, %v8696
        %v8761 = vmul.f32 %v8697, %v8697
        %v8762 = vmul.f32 %v8698, %v8698
        %v8763 = vmul.f32 %v8699, %v8699
        %v8828 = vrot.slane %v8701, 7
        %v8829 = vsel %vm4629, %v8828, %v8700
        %v8830 = vrot.slane %v8702, 6
        %v8831 = vsel %vm4632, %v8830, %v8829
        %v8832 = vrot.slane %v8703, 5
        %v8833 = vsel %vm4635, %v8832, %v8831
        %v8834 = vrot.slane %v8704, 4
        %v8835 = vsel %vm4638, %v8834, %v8833
        %v8836 = vrot.slane %v8705, 3
        %v8837 = vsel %vm4641, %v8836, %v8835
        %v8838 = vrot.slane %v8706, 2
        %v8839 = vsel %vm4644, %v8838, %v8837
        %v8840 = vrot.slane %v8707, 1
        %v8841 = vsel %vm4647, %v8840, %v8839
        %v8842 = vrot.slane %v8709, 7
        %v8843 = vsel %vm4629, %v8842, %v8708
        %v8844 = vrot.slane %v8710, 6
        %v8845 = vsel %vm4632, %v8844, %v8843
        %v8846 = vrot.slane %v8711, 5
        %v8847 = vsel %vm4635, %v8846, %v8845
        %v8848 = vrot.slane %v8712, 4
        %v8849 = vsel %vm4638, %v8848, %v8847
        %v8850 = vrot.slane %v8713, 3
        %v8851 = vsel %vm4641, %v8850, %v8849
        %v8852 = vrot.slane %v8714, 2
        %v8853 = vsel %vm4644, %v8852, %v8851
        %v8854 = vrot.slane %v8715, 1
        %v8855 = vsel %vm4647, %v8854, %v8853
        %v8856 = vrot.slane %v8717, 7
        %v8857 = vsel %vm4629, %v8856, %v8716
        %v8858 = vrot.slane %v8718, 6
        %v8859 = vsel %vm4632, %v8858, %v8857
        %v8860 = vrot.slane %v8719, 5
        %v8861 = vsel %vm4635, %v8860, %v8859
        %v8862 = vrot.slane %v8720, 4
        %v8863 = vsel %vm4638, %v8862, %v8861
        %v8864 = vrot.slane %v8721, 3
        %v8865 = vsel %vm4641, %v8864, %v8863
        %v8866 = vrot.slane %v8722, 2
        %v8867 = vsel %vm4644, %v8866, %v8865
        %v8868 = vrot.slane %v8723, 1
        %v8869 = vsel %vm4647, %v8868, %v8867
        %v8870 = vrot.slane %v8725, 7
        %v8871 = vsel %vm4629, %v8870, %v8724
        %v8872 = vrot.slane %v8726, 6
        %v8873 = vsel %vm4632, %v8872, %v8871
        %v8874 = vrot.slane %v8727, 5
        %v8875 = vsel %vm4635, %v8874, %v8873
        %v8876 = vrot.slane %v8728, 4
        %v8877 = vsel %vm4638, %v8876, %v8875
        %v8878 = vrot.slane %v8729, 3
        %v8879 = vsel %vm4641, %v8878, %v8877
        %v8880 = vrot.slane %v8730, 2
        %v8881 = vsel %vm4644, %v8880, %v8879
        %v8882 = vrot.slane %v8731, 1
        %v8883 = vsel %vm4647, %v8882, %v8881
        %v8884 = vrot.slane %v8733, 7
        %v8885 = vsel %vm4629, %v8884, %v8732
        %v8886 = vrot.slane %v8734, 6
        %v8887 = vsel %vm4632, %v8886, %v8885
        %v8888 = vrot.slane %v8735, 5
        %v8889 = vsel %vm4635, %v8888, %v8887
        %v8890 = vrot.slane %v8736, 4
        %v8891 = vsel %vm4638, %v8890, %v8889
        %v8892 = vrot.slane %v8737, 3
        %v8893 = vsel %vm4641, %v8892, %v8891
        %v8894 = vrot.slane %v8738, 2
        %v8895 = vsel %vm4644, %v8894, %v8893
        %v8896 = vrot.slane %v8739, 1
        %v8897 = vsel %vm4647, %v8896, %v8895
        %v8898 = vrot.slane %v8741, 7
        %v8899 = vsel %vm4629, %v8898, %v8740
        %v8900 = vrot.slane %v8742, 6
        %v8901 = vsel %vm4632, %v8900, %v8899
        %v8902 = vrot.slane %v8743, 5
        %v8903 = vsel %vm4635, %v8902, %v8901
        %v8904 = vrot.slane %v8744, 4
        %v8905 = vsel %vm4638, %v8904, %v8903
        %v8906 = vrot.slane %v8745, 3
        %v8907 = vsel %vm4641, %v8906, %v8905
        %v8908 = vrot.slane %v8746, 2
        %v8909 = vsel %vm4644, %v8908, %v8907
        %v8910 = vrot.slane %v8747, 1
        %v8911 = vsel %vm4647, %v8910, %v8909
        %v8912 = vrot.slane %v8749, 7
        %v8913 = vsel %vm4629, %v8912, %v8748
        %v8914 = vrot.slane %v8750, 6
        %v8915 = vsel %vm4632, %v8914, %v8913
        %v8916 = vrot.slane %v8751, 5
        %v8917 = vsel %vm4635, %v8916, %v8915
        %v8918 = vrot.slane %v8752, 4
        %v8919 = vsel %vm4638, %v8918, %v8917
        %v8920 = vrot.slane %v8753, 3
        %v8921 = vsel %vm4641, %v8920, %v8919
        %v8922 = vrot.slane %v8754, 2
        %v8923 = vsel %vm4644, %v8922, %v8921
        %v8924 = vrot.slane %v8755, 1
        %v8925 = vsel %vm4647, %v8924, %v8923
        %v8926 = vrot.slane %v8757, 7
        %v8927 = vsel %vm4629, %v8926, %v8756
        %v8928 = vrot.slane %v8758, 6
        %v8929 = vsel %vm4632, %v8928, %v8927
        %v8930 = vrot.slane %v8759, 5
        %v8931 = vsel %vm4635, %v8930, %v8929
        %v8932 = vrot.slane %v8760, 4
        %v8933 = vsel %vm4638, %v8932, %v8931
        %v8934 = vrot.slane %v8761, 3
        %v8935 = vsel %vm4641, %v8934, %v8933
        %v8936 = vrot.slane %v8762, 2
        %v8937 = vsel %vm4644, %v8936, %v8935
        %v8938 = vrot.slane %v8763, 1
        %v8939 = vsel %vm4647, %v8938, %v8937
        %v8948 = vrot.slane %v8841, 4
        %v8949 = vadd.f32 %v8841, %v8948
        %v8950 = vrot.slane %v8949, 2
        %v8951 = vadd.f32 %v8949, %v8950
        %v8952 = vrot.slane %v8951, 1
        %v8953 = vadd.f32 %v8951, %v8952
        %v8954 = vrot.slane %v8855, 4
        %v8955 = vadd.f32 %v8855, %v8954
        %v8956 = vrot.slane %v8955, 2
        %v8957 = vadd.f32 %v8955, %v8956
        %v8958 = vrot.slane %v8957, 1
        %v8959 = vadd.f32 %v8957, %v8958
        %v8960 = vrot.slane %v8869, 4
        %v8961 = vadd.f32 %v8869, %v8960
        %v8962 = vrot.slane %v8961, 2
        %v8963 = vadd.f32 %v8961, %v8962
        %v8964 = vrot.slane %v8963, 1
        %v8965 = vadd.f32 %v8963, %v8964
        %v8966 = vrot.slane %v8883, 4
        %v8967 = vadd.f32 %v8883, %v8966
        %v8968 = vrot.slane %v8967, 2
        %v8969 = vadd.f32 %v8967, %v8968
        %v8970 = vrot.slane %v8969, 1
        %v8971 = vadd.f32 %v8969, %v8970
        %v8972 = vrot.slane %v8897, 4
        %v8973 = vadd.f32 %v8897, %v8972
        %v8974 = vrot.slane %v8973, 2
        %v8975 = vadd.f32 %v8973, %v8974
        %v8976 = vrot.slane %v8975, 1
        %v8977 = vadd.f32 %v8975, %v8976
        %v8978 = vrot.slane %v8911, 4
        %v8979 = vadd.f32 %v8911, %v8978
        %v8980 = vrot.slane %v8979, 2
        %v8981 = vadd.f32 %v8979, %v8980
        %v8982 = vrot.slane %v8981, 1
        %v8983 = vadd.f32 %v8981, %v8982
        %v8984 = vrot.slane %v8925, 4
        %v8985 = vadd.f32 %v8925, %v8984
        %v8986 = vrot.slane %v8985, 2
        %v8987 = vadd.f32 %v8985, %v8986
        %v8988 = vrot.slane %v8987, 1
        %v8989 = vadd.f32 %v8987, %v8988
        %v8990 = vrot.slane %v8939, 4
        %v8991 = vadd.f32 %v8939, %v8990
        %v8992 = vrot.slane %v8991, 2
        %v8993 = vadd.f32 %v8991, %v8992
        %v8994 = vrot.slane %v8993, 1
        %v8995 = vadd.f32 %v8993, %v8994
        %v8996 = vlog2.pop %v7924
        %v8997 = vmul.f32 %v8996, 0.6931472
        %v8998 = vlog2.pop %v7925
        %v8999 = vmul.f32 %v8998, 0.6931472
        %v9000 = vlog2.pop %v7926
        %v9001 = vmul.f32 %v9000, 0.6931472
        %v9002 = vlog2.pop %v7927
        %v9003 = vmul.f32 %v9002, 0.6931472
        %v9004 = vlog2.pop %v7928
        %v9005 = vmul.f32 %v9004, 0.6931472
        %v9006 = vlog2.pop %v7929
        %v9007 = vmul.f32 %v9006, 0.6931472
        %v9008 = vlog2.pop %v7930
        %v9009 = vmul.f32 %v9008, 0.6931472
        %v9010 = vlog2.pop %v7931
        %v9011 = vmul.f32 %v9010, 0.6931472
        %v9012 = vmul.f32 %v8500, %v8500
        %v9013 = vmul.f32 %v8501, %v8501
        %v9014 = vmul.f32 %v8502, %v8502
        %v9015 = vmul.f32 %v8503, %v8503
        %v9016 = vmul.f32 %v8504, %v8504
        %v9017 = vmul.f32 %v8505, %v8505
        %v9018 = vmul.f32 %v8506, %v8506
        %v9019 = vmul.f32 %v8507, %v8507
        %v9020 = vrot.slane %v9012, 4
        %v9021 = vadd.f32 %v9012, %v9020
        %v9022 = vrot.slane %v9021, 2
        %v9023 = vadd.f32 %v9021, %v9022
        %v9024 = vrot.slane %v9023, 1
        %v9025 = vadd.f32 %v9023, %v9024
        %v9026 = vrot.slane %v9013, 4
        %v9027 = vadd.f32 %v9013, %v9026
        %v9028 = vrot.slane %v9027, 2
        %v9029 = vadd.f32 %v9027, %v9028
        %v9030 = vrot.slane %v9029, 1
        %v9031 = vadd.f32 %v9029, %v9030
        %v9032 = vrot.slane %v9014, 4
        %v9033 = vadd.f32 %v9014, %v9032
        %v9034 = vrot.slane %v9033, 2
        %v9035 = vadd.f32 %v9033, %v9034
        %v9036 = vrot.slane %v9035, 1
        %v9037 = vadd.f32 %v9035, %v9036
        %v9038 = vrot.slane %v9015, 4
        %v9039 = vadd.f32 %v9015, %v9038
        %v9040 = vrot.slane %v9039, 2
        %v9041 = vadd.f32 %v9039, %v9040
        %v9042 = vrot.slane %v9041, 1
        %v9043 = vadd.f32 %v9041, %v9042
        %v9044 = vrot.slane %v9016, 4
        %v9045 = vadd.f32 %v9016, %v9044
        %v9046 = vrot.slane %v9045, 2
        %v9047 = vadd.f32 %v9045, %v9046
        %v9048 = vrot.slane %v9047, 1
        %v9049 = vadd.f32 %v9047, %v9048
        %v9050 = vrot.slane %v9017, 4
        %v9051 = vadd.f32 %v9017, %v9050
        %v9052 = vrot.slane %v9051, 2
        %v9053 = vadd.f32 %v9051, %v9052
        %v9054 = vrot.slane %v9053, 1
        %v9055 = vadd.f32 %v9053, %v9054
        %v9056 = vrot.slane %v9018, 4
        %v9057 = vadd.f32 %v9018, %v9056
        %v9058 = vrot.slane %v9057, 2
        %v9059 = vadd.f32 %v9057, %v9058
        %v9060 = vrot.slane %v9059, 1
        %v9061 = vadd.f32 %v9059, %v9060
        %v9062 = vrot.slane %v9019, 4
        %v9063 = vadd.f32 %v9019, %v9062
        %v9064 = vrot.slane %v9063, 2
        %v9065 = vadd.f32 %v9063, %v9064
        %v9066 = vrot.slane %v9065, 1
        %v9067 = vadd.f32 %v9065, %v9066
        %v9068 = vmul.f32 %v4851, %v8500
        %v9069 = vmul.f32 %v4852, %v8516
        %v9070 = vmul.f32 %v4853, %v8517
        %v9071 = vmul.f32 %v4854, %v8518
        %v9072 = vmul.f32 %v4855, %v8519
        %v9073 = vmul.f32 %v4856, %v8520
        %v9074 = vmul.f32 %v4857, %v8521
        %v9075 = vmul.f32 %v4858, %v8522
        %v9076 = vmul.f32 %v4859, %v8501
        %v9077 = vmul.f32 %v4860, %v8523
        %v9078 = vmul.f32 %v4861, %v8524
        %v9079 = vmul.f32 %v4862, %v8525
        %v9080 = vmul.f32 %v4863, %v8526
        %v9081 = vmul.f32 %v4864, %v8527
        %v9082 = vmul.f32 %v4865, %v8528
        %v9083 = vmul.f32 %v4866, %v8529
        %v9084 = vmul.f32 %v4867, %v8502
        %v9085 = vmul.f32 %v4868, %v8530
        %v9086 = vmul.f32 %v4869, %v8531
        %v9087 = vmul.f32 %v4870, %v8532
        %v9088 = vmul.f32 %v4871, %v8533
        %v9089 = vmul.f32 %v4872, %v8534
        %v9090 = vmul.f32 %v4873, %v8535
        %v9091 = vmul.f32 %v4874, %v8536
        %v9092 = vmul.f32 %v4875, %v8503
        %v9093 = vmul.f32 %v4876, %v8537
        %v9094 = vmul.f32 %v4877, %v8538
        %v9095 = vmul.f32 %v4878, %v8539
        %v9096 = vmul.f32 %v4879, %v8540
        %v9097 = vmul.f32 %v4880, %v8541
        %v9098 = vmul.f32 %v4881, %v8542
        %v9099 = vmul.f32 %v4882, %v8543
        %v9100 = vmul.f32 %v4883, %v8504
        %v9101 = vmul.f32 %v4884, %v8544
        %v9102 = vmul.f32 %v4885, %v8545
        %v9103 = vmul.f32 %v4886, %v8546
        %v9104 = vmul.f32 %v4887, %v8547
        %v9105 = vmul.f32 %v4888, %v8548
        %v9106 = vmul.f32 %v4889, %v8549
        %v9107 = vmul.f32 %v4890, %v8550
        %v9108 = vmul.f32 %v4891, %v8505
        %v9109 = vmul.f32 %v4892, %v8551
        %v9110 = vmul.f32 %v4893, %v8552
        %v9111 = vmul.f32 %v4894, %v8553
        %v9112 = vmul.f32 %v4895, %v8554
        %v9113 = vmul.f32 %v4896, %v8555
        %v9114 = vmul.f32 %v4897, %v8556
        %v9115 = vmul.f32 %v4898, %v8557
        %v9116 = vmul.f32 %v4899, %v8506
        %v9117 = vmul.f32 %v4900, %v8558
        %v9118 = vmul.f32 %v4901, %v8559
        %v9119 = vmul.f32 %v4902, %v8560
        %v9120 = vmul.f32 %v4903, %v8561
        %v9121 = vmul.f32 %v4904, %v8562
        %v9122 = vmul.f32 %v4905, %v8563
        %v9123 = vmul.f32 %v4906, %v8564
        %v9124 = vmul.f32 %v4907, %v8507
        %v9125 = vmul.f32 %v4908, %v8565
        %v9126 = vmul.f32 %v4909, %v8566
        %v9127 = vmul.f32 %v4910, %v8567
        %v9128 = vmul.f32 %v4911, %v8568
        %v9129 = vmul.f32 %v4912, %v8569
        %v9130 = vmul.f32 %v4913, %v8570
        %v9131 = vmul.f32 %v4914, %v8571
        %v9196 = vrot.slane %v9069, 7
        %v9197 = vsel %vm4629, %v9196, %v9068
        %v9198 = vrot.slane %v9070, 6
        %v9199 = vsel %vm4632, %v9198, %v9197
        %v9200 = vrot.slane %v9071, 5
        %v9201 = vsel %vm4635, %v9200, %v9199
        %v9202 = vrot.slane %v9072, 4
        %v9203 = vsel %vm4638, %v9202, %v9201
        %v9204 = vrot.slane %v9073, 3
        %v9205 = vsel %vm4641, %v9204, %v9203
        %v9206 = vrot.slane %v9074, 2
        %v9207 = vsel %vm4644, %v9206, %v9205
        %v9208 = vrot.slane %v9075, 1
        %v9209 = vsel %vm4647, %v9208, %v9207
        %v9210 = vrot.slane %v9077, 7
        %v9211 = vsel %vm4629, %v9210, %v9076
        %v9212 = vrot.slane %v9078, 6
        %v9213 = vsel %vm4632, %v9212, %v9211
        %v9214 = vrot.slane %v9079, 5
        %v9215 = vsel %vm4635, %v9214, %v9213
        %v9216 = vrot.slane %v9080, 4
        %v9217 = vsel %vm4638, %v9216, %v9215
        %v9218 = vrot.slane %v9081, 3
        %v9219 = vsel %vm4641, %v9218, %v9217
        %v9220 = vrot.slane %v9082, 2
        %v9221 = vsel %vm4644, %v9220, %v9219
        %v9222 = vrot.slane %v9083, 1
        %v9223 = vsel %vm4647, %v9222, %v9221
        %v9224 = vrot.slane %v9085, 7
        %v9225 = vsel %vm4629, %v9224, %v9084
        %v9226 = vrot.slane %v9086, 6
        %v9227 = vsel %vm4632, %v9226, %v9225
        %v9228 = vrot.slane %v9087, 5
        %v9229 = vsel %vm4635, %v9228, %v9227
        %v9230 = vrot.slane %v9088, 4
        %v9231 = vsel %vm4638, %v9230, %v9229
        %v9232 = vrot.slane %v9089, 3
        %v9233 = vsel %vm4641, %v9232, %v9231
        %v9234 = vrot.slane %v9090, 2
        %v9235 = vsel %vm4644, %v9234, %v9233
        %v9236 = vrot.slane %v9091, 1
        %v9237 = vsel %vm4647, %v9236, %v9235
        %v9238 = vrot.slane %v9093, 7
        %v9239 = vsel %vm4629, %v9238, %v9092
        %v9240 = vrot.slane %v9094, 6
        %v9241 = vsel %vm4632, %v9240, %v9239
        %v9242 = vrot.slane %v9095, 5
        %v9243 = vsel %vm4635, %v9242, %v9241
        %v9244 = vrot.slane %v9096, 4
        %v9245 = vsel %vm4638, %v9244, %v9243
        %v9246 = vrot.slane %v9097, 3
        %v9247 = vsel %vm4641, %v9246, %v9245
        %v9248 = vrot.slane %v9098, 2
        %v9249 = vsel %vm4644, %v9248, %v9247
        %v9250 = vrot.slane %v9099, 1
        %v9251 = vsel %vm4647, %v9250, %v9249
        %v9252 = vrot.slane %v9101, 7
        %v9253 = vsel %vm4629, %v9252, %v9100
        %v9254 = vrot.slane %v9102, 6
        %v9255 = vsel %vm4632, %v9254, %v9253
        %v9256 = vrot.slane %v9103, 5
        %v9257 = vsel %vm4635, %v9256, %v9255
        %v9258 = vrot.slane %v9104, 4
        %v9259 = vsel %vm4638, %v9258, %v9257
        %v9260 = vrot.slane %v9105, 3
        %v9261 = vsel %vm4641, %v9260, %v9259
        %v9262 = vrot.slane %v9106, 2
        %v9263 = vsel %vm4644, %v9262, %v9261
        %v9264 = vrot.slane %v9107, 1
        %v9265 = vsel %vm4647, %v9264, %v9263
        %v9266 = vrot.slane %v9109, 7
        %v9267 = vsel %vm4629, %v9266, %v9108
        %v9268 = vrot.slane %v9110, 6
        %v9269 = vsel %vm4632, %v9268, %v9267
        %v9270 = vrot.slane %v9111, 5
        %v9271 = vsel %vm4635, %v9270, %v9269
        %v9272 = vrot.slane %v9112, 4
        %v9273 = vsel %vm4638, %v9272, %v9271
        %v9274 = vrot.slane %v9113, 3
        %v9275 = vsel %vm4641, %v9274, %v9273
        %v9276 = vrot.slane %v9114, 2
        %v9277 = vsel %vm4644, %v9276, %v9275
        %v9278 = vrot.slane %v9115, 1
        %v9279 = vsel %vm4647, %v9278, %v9277
        %v9280 = vrot.slane %v9117, 7
        %v9281 = vsel %vm4629, %v9280, %v9116
        %v9282 = vrot.slane %v9118, 6
        %v9283 = vsel %vm4632, %v9282, %v9281
        %v9284 = vrot.slane %v9119, 5
        %v9285 = vsel %vm4635, %v9284, %v9283
        %v9286 = vrot.slane %v9120, 4
        %v9287 = vsel %vm4638, %v9286, %v9285
        %v9288 = vrot.slane %v9121, 3
        %v9289 = vsel %vm4641, %v9288, %v9287
        %v9290 = vrot.slane %v9122, 2
        %v9291 = vsel %vm4644, %v9290, %v9289
        %v9292 = vrot.slane %v9123, 1
        %v9293 = vsel %vm4647, %v9292, %v9291
        %v9294 = vrot.slane %v9125, 7
        %v9295 = vsel %vm4629, %v9294, %v9124
        %v9296 = vrot.slane %v9126, 6
        %v9297 = vsel %vm4632, %v9296, %v9295
        %v9298 = vrot.slane %v9127, 5
        %v9299 = vsel %vm4635, %v9298, %v9297
        %v9300 = vrot.slane %v9128, 4
        %v9301 = vsel %vm4638, %v9300, %v9299
        %v9302 = vrot.slane %v9129, 3
        %v9303 = vsel %vm4641, %v9302, %v9301
        %v9304 = vrot.slane %v9130, 2
        %v9305 = vsel %vm4644, %v9304, %v9303
        %v9306 = vrot.slane %v9131, 1
        %v9307 = vsel %vm4647, %v9306, %v9305
        %v9316 = vrot.slane %v9209, 4
        %v9317 = vadd.f32 %v9209, %v9316
        %v9318 = vrot.slane %v9317, 2
        %v9319 = vadd.f32 %v9317, %v9318
        %v9320 = vrot.slane %v9319, 1
        %v9321 = vadd.f32 %v9319, %v9320
        %v9322 = vrot.slane %v9223, 4
        %v9323 = vadd.f32 %v9223, %v9322
        %v9324 = vrot.slane %v9323, 2
        %v9325 = vadd.f32 %v9323, %v9324
        %v9326 = vrot.slane %v9325, 1
        %v9327 = vadd.f32 %v9325, %v9326
        %v9328 = vrot.slane %v9237, 4
        %v9329 = vadd.f32 %v9237, %v9328
        %v9330 = vrot.slane %v9329, 2
        %v9331 = vadd.f32 %v9329, %v9330
        %v9332 = vrot.slane %v9331, 1
        %v9333 = vadd.f32 %v9331, %v9332
        %v9334 = vrot.slane %v9251, 4
        %v9335 = vadd.f32 %v9251, %v9334
        %v9336 = vrot.slane %v9335, 2
        %v9337 = vadd.f32 %v9335, %v9336
        %v9338 = vrot.slane %v9337, 1
        %v9339 = vadd.f32 %v9337, %v9338
        %v9340 = vrot.slane %v9265, 4
        %v9341 = vadd.f32 %v9265, %v9340
        %v9342 = vrot.slane %v9341, 2
        %v9343 = vadd.f32 %v9341, %v9342
        %v9344 = vrot.slane %v9343, 1
        %v9345 = vadd.f32 %v9343, %v9344
        %v9346 = vrot.slane %v9279, 4
        %v9347 = vadd.f32 %v9279, %v9346
        %v9348 = vrot.slane %v9347, 2
        %v9349 = vadd.f32 %v9347, %v9348
        %v9350 = vrot.slane %v9349, 1
        %v9351 = vadd.f32 %v9349, %v9350
        %v9352 = vrot.slane %v9293, 4
        %v9353 = vadd.f32 %v9293, %v9352
        %v9354 = vrot.slane %v9353, 2
        %v9355 = vadd.f32 %v9353, %v9354
        %v9356 = vrot.slane %v9355, 1
        %v9357 = vadd.f32 %v9355, %v9356
        %v9358 = vrot.slane %v9307, 4
        %v9359 = vadd.f32 %v9307, %v9358
        %v9360 = vrot.slane %v9359, 2
        %v9361 = vadd.f32 %v9359, %v9360
        %v9362 = vrot.slane %v9361, 1
        %v9363 = vadd.f32 %v9361, %v9362
        %v9364 = vmax.f32 %v9025, 1e-24
        %v9365 = vmax.f32 %v9031, 1e-24
        %v9366 = vmax.f32 %v9037, 1e-24
        %v9367 = vmax.f32 %v9043, 1e-24
        %v9368 = vmax.f32 %v9049, 1e-24
        %v9369 = vmax.f32 %v9055, 1e-24
        %v9370 = vmax.f32 %v9061, 1e-24
        %v9371 = vmax.f32 %v9067, 1e-24
        %v9372 = vrsqrt.pop %v9364
        %v9373 = vrsqrt.pop %v9365
        %v9374 = vrsqrt.pop %v9366
        %v9375 = vrsqrt.pop %v9367
        %v9376 = vrsqrt.pop %v9368
        %v9377 = vrsqrt.pop %v9369
        %v9378 = vrsqrt.pop %v9370
        %v9379 = vrsqrt.pop %v9371
        %v9380 = vmul.f32 %v9321, %v9372
        %v9381 = vmul.f32 %v9327, %v9373
        %v9382 = vmul.f32 %v9333, %v9374
        %v9383 = vmul.f32 %v9339, %v9375
        %v9384 = vmul.f32 %v9345, %v9376
        %v9385 = vmul.f32 %v9351, %v9377
        %v9386 = vmul.f32 %v9357, %v9378
        %v9387 = vmul.f32 %v9363, %v9379
        %v9388 = vsub.f32 1.0, %v9380
        %v9389 = vsub.f32 1.0, %v9381
        %v9390 = vsub.f32 1.0, %v9382
        %v9391 = vsub.f32 1.0, %v9383
        %v9392 = vsub.f32 1.0, %v9384
        %v9393 = vsub.f32 1.0, %v9385
        %v9394 = vsub.f32 1.0, %v9386
        %v9395 = vsub.f32 1.0, %v9387
        %v9404 = vrot.slane %v8959, 7
        %v9405 = vsel %vm4629, %v9404, %v8953
        %v9406 = vrot.slane %v8965, 6
        %v9407 = vsel %vm4632, %v9406, %v9405
        %v9408 = vrot.slane %v8971, 5
        %v9409 = vsel %vm4635, %v9408, %v9407
        %v9410 = vrot.slane %v8977, 4
        %v9411 = vsel %vm4638, %v9410, %v9409
        %v9412 = vrot.slane %v8983, 3
        %v9413 = vsel %vm4641, %v9412, %v9411
        %v9414 = vrot.slane %v8989, 2
        %v9415 = vsel %vm4644, %v9414, %v9413
        %v9416 = vrot.slane %v8995, 1
        %v9417 = vsel %vm4647, %v9416, %v9415
        %9419 = vst [vmem:[%s263] sm:$0xff] %v9417
        %v9428 = vrot.slane %v8999, 7
        %v9429 = vsel %vm4629, %v9428, %v8997
        %v9430 = vrot.slane %v9001, 6
        %v9431 = vsel %vm4632, %v9430, %v9429
        %v9432 = vrot.slane %v9003, 5
        %v9433 = vsel %vm4635, %v9432, %v9431
        %v9434 = vrot.slane %v9005, 4
        %v9435 = vsel %vm4638, %v9434, %v9433
        %v9436 = vrot.slane %v9007, 3
        %v9437 = vsel %vm4641, %v9436, %v9435
        %v9438 = vrot.slane %v9009, 2
        %v9439 = vsel %vm4644, %v9438, %v9437
        %v9440 = vrot.slane %v9011, 1
        %v9441 = vsel %vm4647, %v9440, %v9439
        %9443 = vst [vmem:[%s263 + $0x8] sm:$0xff] %v9441
        %v9452 = vrot.slane %v9389, 7
        %v9453 = vsel %vm4629, %v9452, %v9388
        %v9454 = vrot.slane %v9390, 6
        %v9455 = vsel %vm4632, %v9454, %v9453
        %v9456 = vrot.slane %v9391, 5
        %v9457 = vsel %vm4635, %v9456, %v9455
        %v9458 = vrot.slane %v9392, 4
        %v9459 = vsel %vm4638, %v9458, %v9457
        %v9460 = vrot.slane %v9393, 3
        %v9461 = vsel %vm4641, %v9460, %v9459
        %v9462 = vrot.slane %v9394, 2
        %v9463 = vsel %vm4644, %v9462, %v9461
        %v9464 = vrot.slane %v9395, 1
        %v9465 = vsel %vm4647, %v9464, %v9463
        %9467 = vst [vmem:[%s263 + $0x10] sm:$0xff] %v9465
        %s9468 = sand.u32 %s175, 1
        %s9469 = scalar_lea.sflag [#allocation3], %s9468
        %s9470 = sand.u32 %s175, 1
        %s9471 = smul.addr %s9470, 24
        %s9472 = scalar_lea.vmem [#allocation2], %s9471
        // Predicated region
        $region45: #{tpu_custom_call.1} parent=43 // pred_check
          %p9473 = pneg %p185
        $region46: #{tpu_custom_call.1} parent=43 // pred_check_branch
          %9475 = sbr.rel (%p9473) target = $region48
        $region47: #{tpu_custom_call.1} parent=43 // pred_region
          %s9476 = sadd.s32 %s24, %s25
          %s9478 = ssub.s32 384, 384
          %9479 = vsyncadd %s9469, %s9478
          %s9480 = smul.addr %s9476, 128
          %s9481 = scalar_lea.hbm %s6, %s9480
          %s9482 = sshll.u32 %s9472, 4
          %s9483 = int_to_ptr.vmem [resolvable:$true] %s9482
          %9488 = dma.vmem_to_hbm [thread:$0]  %s9483, 384, %s9481, %s9469, 128, 256, 8
        $region48: #{tpu_custom_call.1} parent=43 // pred_fallthru
          _
      $region44: #{tpu_custom_call.1} parent=5 // pred_fallthru
        _
      %p9489 = scmp.le.s32.totalorder 2, %s15
      // Predicated region
      $region49: #{tpu_custom_call.1} parent=5 // pred_check
        %p9490 = pneg %p9489
      $region50: #{tpu_custom_call.1} parent=5 // pred_check_branch
        %9492 = sbr.rel (%p9490) target = $region52
      $region51: #{tpu_custom_call.1} parent=5 // pred_region
        %s9493 = ssub.s32 %s15, 2
        // Predicated region
        $region53: #{tpu_custom_call.1} parent=51 // pred_check
          %p9494 = pneg %p191
        $region54: #{tpu_custom_call.1} parent=51 // pred_check_branch
          %9496 = sbr.rel (%p9494) target = $region56
        $region55: #{tpu_custom_call.1} parent=51 // pred_region
          %s9497 = sand.u32 %s176, 1
          %s9498 = scalar_lea.sflag [#allocation3], %s9497
          %s9499 = sand.u32 %s176, 1
          %s9500 = smul.addr %s9499, 24
          %s9501 = scalar_lea.vmem [#allocation2], %s9500
          %9502 = dma.done %s9498, 384
        $region56: #{tpu_custom_call.1} parent=51 // pred_fallthru
          _
      $region52: #{tpu_custom_call.1} parent=5 // pred_fallthru
        _
    $region6: #{tpu_custom_call.1} parent=1 // loop_footer
      %s19 = sadd.s32 1, %s15
    $region7: #{tpu_custom_call.1} parent=1 // loop_footer_branch
      %14 = sbr.rel target = $region3
    $region8: #{tpu_custom_call.1} parent=1 // loop_exit
      _
    %9503 = vsyncpa [#allocation3], 1
    %s9504 = scalar_lea.sflag [#allocation3], 1
    %9505 = vsyncpa %s9504, 1

</llo_original>
